<compile_context>
chip_gen: v6e
topology: v6e:2x2x1
jax: 0.10.0
libtpu: 0.0.40
codegen_flags: <defaults>
</compile_context>

<pallas_src>
import functools

import jax
import jax.numpy as jnp
from jax.experimental import pallas as pl
from jax.experimental.pallas import tpu as pltpu

_HALO_OFF = 8  # sublane-aligned offset of the interior inside the halo scratch


# ----------------------------------------------------------------------------
# Pallas kernel: concat'd input -> conv3x3+BN+ReLU -> conv3x3+BN+ReLU -> conv1x1
# ----------------------------------------------------------------------------
def _refine_kernel(xpad_ref, w1_ref, w2_ref, w3t_ref,
                   s1_ref, t1_ref, s2_ref, t2_ref, b3_ref,
                   out_ref, hpad_ref, *, H, W):
    """One batch element per grid step; everything stays in VMEM.

    xpad_ref : (1, H+2, W+2, Cin)   f32   spatially pre-padded, channels-last
    w1_ref   : (9, Cin, Cmid)       bf16  3x3 taps flattened (dy*3+dx)
    w2_ref   : (9, Cmid, Cmid)      bf16
    w3t_ref  : (2D, Cmid)           bf16  1x1 conv weight, pre-transposed
    s*/t*    : (1, Cmid)            f32   folded-BN scale / shift
    b3_ref   : (2D, 1)              f32   1x1 conv bias (column vector)
    out_ref  : (1, 2D, H*W)         f32   lane-dense (spatial axis in lanes)
    hpad_ref : (H+2, 2*OFF+W, Cmid) f32   VMEM halo scratch for the intermediate
    """
    M = H * W
    Cin = xpad_ref.shape[-1]
    Cmid = w1_ref.shape[-1]
    OFF = _HALO_OFF

    # ---- conv1: direct 3x3 over the pre-padded input (9 shifted MXU matmuls) --
    acc = jnp.zeros((M, Cmid), jnp.float32)
    for dy in range(3):
        for dx in range(3):
            patch = xpad_ref[0, dy:dy + H, dx:dx + W, :].reshape(M, Cin)
            acc += jnp.dot(patch.astype(jnp.bfloat16), w1_ref[dy * 3 + dx],
                           preferred_element_type=jnp.float32)
    h1 = jnp.maximum(acc * s1_ref[...] + t1_ref[...], 0.0)          # (M, Cmid) f32

    # ---- stage intermediate with a zero halo in VMEM (aligned interior store) --
    hpad_ref[...] = jnp.zeros_like(hpad_ref)
    hpad_ref[1:H + 1, OFF:OFF + W, :] = h1.reshape(H, W, Cmid)

    # ---- conv2: direct 3x3 over the halo scratch ------------------------------
    acc = jnp.zeros((M, Cmid), jnp.float32)
    for dy in range(3):
        for dx in range(3):
            patch = hpad_ref[dy:dy + H, OFF - 1 + dx:OFF - 1 + dx + W, :]
            acc += jnp.dot(patch.reshape(M, Cmid).astype(jnp.bfloat16),
                           w2_ref[dy * 3 + dx],
                           preferred_element_type=jnp.float32)
    h2 = jnp.maximum(acc * s2_ref[...] + t2_ref[...], 0.0)          # (M, Cmid) f32

    # ---- conv1x1 (+bias), emitted as (2D, M) so stores are lane-dense ---------
    yt = jax.lax.dot_general(w3t_ref[...], h2.astype(jnp.bfloat16),
                             dimension_numbers=(((1,), (1,)), ((), ())),
                             preferred_element_type=jnp.float32)    # (2D, M)
    out_ref[0] = (yt + b3_ref[...]).astype(out_ref.dtype)


# ----------------------------------------------------------------------------
# Wrapper: layout plumbing + pallas_call
# ----------------------------------------------------------------------------
def depth_refinement_forward(params, initial_logits, initial_log_var, fpn_feat):
    """Inputs NCHW: (N,D,H,W), (N,D,H,W), (N,F,H,W) -> (N,D,H,W), (N,D,H,W)."""
    N, D, H, W = initial_logits.shape
    Fc = fpn_feat.shape[1]
    Cin = 2 * D + Fc
    Cmid = params['w1'].shape[-1]
    f32 = jnp.float32

    # concat (channel dim) + NCHW->NHWC + spatial zero pad, all fused by XLA.
    x = jnp.concatenate([initial_logits, initial_log_var, fpn_feat], axis=1)
    x = jnp.transpose(x, (0, 2, 3, 1)).astype(f32)                    # (N,H,W,Cin)
    xpad = jnp.pad(x, ((0, 0), (1, 1), (1, 1), (0, 0)))               # (N,H+2,W+2,Cin)

    w1 = params['w1'].reshape(9, Cin, Cmid).astype(jnp.bfloat16)
    w2 = params['w2'].reshape(9, Cmid, Cmid).astype(jnp.bfloat16)
    w3t = params['w3'].T.astype(jnp.bfloat16)                         # (2D, Cmid)
    s1, t1 = params['bn1']
    s2, t2 = params['bn2']
    s1 = s1.reshape(1, Cmid).astype(f32)
    t1 = t1.reshape(1, Cmid).astype(f32)
    s2 = s2.reshape(1, Cmid).astype(f32)
    t2 = t2.reshape(1, Cmid).astype(f32)
    b3 = params['b3'].reshape(2 * D, 1).astype(f32)

    out = pl.pallas_call(
        functools.partial(_refine_kernel, H=H, W=W),
        out_shape=jax.ShapeDtypeStruct((N, 2 * D, H * W), f32),
        grid=(N,),
        in_specs=[
            pl.BlockSpec((1, H + 2, W + 2, Cin), lambda n: (n, 0, 0, 0)),
            pl.BlockSpec((9, Cin, Cmid), lambda n: (0, 0, 0)),
            pl.BlockSpec((9, Cmid, Cmid), lambda n: (0, 0, 0)),
            pl.BlockSpec((2 * D, Cmid), lambda n: (0, 0)),
            pl.BlockSpec((1, Cmid), lambda n: (0, 0)),
            pl.BlockSpec((1, Cmid), lambda n: (0, 0)),
            pl.BlockSpec((1, Cmid), lambda n: (0, 0)),
            pl.BlockSpec((1, Cmid), lambda n: (0, 0)),
            pl.BlockSpec((2 * D, 1), lambda n: (0, 0)),
        ],
        out_specs=pl.BlockSpec((1, 2 * D, H * W), lambda n: (n, 0, 0)),
        scratch_shapes=[pltpu.VMEM((H + 2, 2 * _HALO_OFF + W, Cmid), f32)],
        compiler_params=pltpu.CompilerParams(
            dimension_semantics=("parallel",)),
    )(xpad, w1, w2, w3t, s1, t1, s2, t2, b3)

    out = out.reshape(N, 2 * D, H, W)   # pure reshape -- kernel already wrote NC(HW)
    return out[:, :D], out[:, D:]


# ----------------------------------------------------------------------------
# Deterministic synthetic parameters (shapes follow the PyTorch module)
# ----------------------------------------------------------------------------
def init_params(key, D, fpn_channels, intermediate_channels=128):
    Cin = 2 * D + fpn_channels
    mid = intermediate_channels
    ks = jax.random.split(key, 6)

    def nrm(k, shape, s):
        return s * jax.random.normal(k, shape, jnp.float32)

    def bn(k, c):  # eval-mode folded BN -> (scale, shift)
        kg, kb, km, kv = jax.random.split(k, 4)
        gamma = 1.0 + 0.1 * jax.random.normal(kg, (c,), jnp.float32)
        beta = 0.05 * jax.random.normal(kb, (c,), jnp.float32)
        mean = 0.05 * jax.random.normal(km, (c,), jnp.float32)
        var = 1.0 + jnp.abs(0.1 * jax.random.normal(kv, (c,), jnp.float32))
        scale = gamma / jnp.sqrt(var + 1e-5)
        return scale, beta - mean * scale

    return {
        'w1': nrm(ks[0], (3, 3, Cin, mid), 0.3 / (3.0 * Cin ** 0.5)),
        'bn1': bn(ks[1], mid),
        'w2': nrm(ks[2], (3, 3, mid, mid), 0.3 / (3.0 * mid ** 0.5)),
        'bn2': bn(ks[3], mid),
        'w3': nrm(ks[4], (mid, 2 * D), 0.3 / mid ** 0.5),
        'b3': nrm(ks[5], (2 * D,), 0.02),
    }


# ----------------------------------------------------------------------------
# Pure-JAX reference (mirrors the kernel math, incl. bf16 operand quantization)
# ----------------------------------------------------------------------------
@jax.jit
def _ref_forward(params, initial_logits, initial_log_var, fpn_feat):
    f32 = jnp.float32
    q = lambda a: a.astype(jnp.bfloat16).astype(f32)   # mirror bf16 MXU operands
    D = initial_logits.shape[1]
    x = jnp.concatenate([initial_logits, initial_log_var, fpn_feat], axis=1)
    x = jnp.transpose(x, (0, 2, 3, 1)).astype(f32)
    N, H, W, _ = x.shape

    def conv3x3_bn_relu(xin, w, scale, shift):
        xp = jnp.pad(q(xin), ((0, 0), (1, 1), (1, 1), (0, 0)))
        wq = q(w)
        acc = jnp.zeros(xin.shape[:3] + (w.shape[-1],), f32)
        for dy in range(3):
            for dx in range(3):
                acc += jnp.einsum('nhwc,co->nhwo',
                                  xp[:, dy:dy + H, dx:dx + W, :], wq[dy, dx],
                                  precision=jax.lax.Precision.HIGHEST)
        return jnp.maximum(acc * scale + shift, 0.0)

    h1 = conv3x3_bn_relu(x, params['w1'], *params['bn1'])
    h2 = conv3x3_bn_relu(h1, params['w2'], *params['bn2'])
    y = jnp.einsum('nhwc,co->nhwo', q(h2), q(params['w3']),
                   precision=jax.lax.Precision.HIGHEST) + params['b3']
    y = jnp.transpose(y, (0, 3, 1, 2))                       # (N, 2D, H, W)
    return y[:, :D], y[:, D:]


if __name__ == "__main__":
    N, D, FPN_C, H, W = 2, 4, 32, 16, 16
    key = jax.random.PRNGKey(0)
    kp, k1, k2, k3 = jax.random.split(key, 4)
    params = init_params(kp, D, FPN_C, intermediate_channels=128)
    initial_logits = jax.random.normal(k1, (N, D, H, W), jnp.float32)
    initial_log_var = 0.5 * jax.random.normal(k2, (N, D, H, W), jnp.float32)
    fpn_feat = jax.random.normal(k3, (N, FPN_C, H, W), jnp.float32)

    fwd = jax.jit(depth_refinement_forward)
    refined_logits, refined_log_var = fwd(params, initial_logits,
                                          initial_log_var, fpn_feat)
    jax.block_until_ready((refined_logits, refined_log_var))

    assert refined_logits.shape == (N, D, H, W), refined_logits.shape
    assert refined_log_var.shape == (N, D, H, W), refined_log_var.shape
    assert bool(jnp.all(jnp.isfinite(refined_logits)))
    assert bool(jnp.all(jnp.isfinite(refined_log_var)))

    ref_logits, ref_logvar = _ref_forward(params, initial_logits,
                                          initial_log_var, fpn_feat)
    assert bool(jnp.allclose(refined_logits, ref_logits, atol=2e-2, rtol=2e-2))
    assert bool(jnp.allclose(refined_log_var, ref_logvar, atol=2e-2, rtol=2e-2))
    print("KERNEL_OK")
</pallas_src>

<mosaic_0001>
module attributes {stable_mosaic.version = 11 : i64} {
  func.func @_refine_kernel(%arg0: i32, %arg1: memref<1x18x18x40xf32, #tpu.memory_space<vmem>>, %arg2: memref<9x40x128xbf16, #tpu.memory_space<vmem>>, %arg3: memref<9x128x128xbf16, #tpu.memory_space<vmem>>, %arg4: memref<8x128xbf16, #tpu.memory_space<vmem>>, %arg5: memref<1x128xf32, #tpu.memory_space<vmem>>, %arg6: memref<1x128xf32, #tpu.memory_space<vmem>>, %arg7: memref<1x128xf32, #tpu.memory_space<vmem>>, %arg8: memref<1x128xf32, #tpu.memory_space<vmem>>, %arg9: memref<8x1xf32, #tpu.memory_space<vmem>>, %arg10: memref<1x8x256xf32, #tpu.memory_space<vmem>>, %arg11: memref<18x32x128xf32, #tpu.memory_space<vmem>>) attributes {dimension_semantics = [#tpu.dimension_semantics<parallel>], iteration_bounds = array<i64: 2>, scalar_prefetch = 0 : i64, scratch_operands = 1 : i64, tpu.core_type = #tpu.core_type<tc>, window_params = [{transform_indices = @transform_0, window_bounds = array<i64: 1, 18, 18, 40>}, {pipeline_mode = #tpu.pipeline_mode<synchronous>, transform_indices = @transform_1, window_bounds = array<i64: 9, 40, 128>}, {pipeline_mode = #tpu.pipeline_mode<synchronous>, transform_indices = @transform_2, window_bounds = array<i64: 9, 128, 128>}, {pipeline_mode = #tpu.pipeline_mode<synchronous>, transform_indices = @transform_3, window_bounds = array<i64: 8, 128>}, {pipeline_mode = #tpu.pipeline_mode<synchronous>, transform_indices = @transform_4, window_bounds = array<i64: 1, 128>}, {pipeline_mode = #tpu.pipeline_mode<synchronous>, transform_indices = @transform_5, window_bounds = array<i64: 1, 128>}, {pipeline_mode = #tpu.pipeline_mode<synchronous>, transform_indices = @transform_6, window_bounds = array<i64: 1, 128>}, {pipeline_mode = #tpu.pipeline_mode<synchronous>, transform_indices = @transform_7, window_bounds = array<i64: 1, 128>}, {pipeline_mode = #tpu.pipeline_mode<synchronous>, transform_indices = @transform_8, window_bounds = array<i64: 8, 1>}, {transform_indices = @transform_9, window_bounds = array<i64: 1, 8, 256>}]} {
    %cst = arith.constant 0.000000e+00 : f32
    %0 = vector.broadcast %cst : f32 to vector<256x128xf32>
    %c0 = arith.constant 0 : index
    %c0_0 = arith.constant 0 : index
    %c0_1 = arith.constant 0 : index
    %c0_2 = arith.constant 0 : index
    %1 = vector.load %arg1[%c0, %c0_0, %c0_1, %c0_2] : memref<1x18x18x40xf32, #tpu.memory_space<vmem>>, vector<1x16x16x40xf32>
    %2 = vector.shape_cast %1 : vector<1x16x16x40xf32> to vector<16x16x40xf32>
    %3 = vector.shape_cast %2 : vector<16x16x40xf32> to vector<256x40xf32>
    %4 = arith.truncf %3 : vector<256x40xf32> to vector<256x40xbf16>
    %c0_3 = arith.constant 0 : index
    %c0_4 = arith.constant 0 : index
    %c0_5 = arith.constant 0 : index
    %5 = vector.load %arg2[%c0_3, %c0_4, %c0_5] : memref<9x40x128xbf16, #tpu.memory_space<vmem>>, vector<1x40x128xbf16>
    %6 = vector.shape_cast %5 : vector<1x40x128xbf16> to vector<40x128xbf16>
    %cst_6 = arith.constant dense<0.000000e+00> : vector<256x128xf32>
    %7 = tpu.matmul %4, %6, %cst_6 {dimension_numbers = #tpu.dot_dimension_numbers<[1], [0], [0], [1], [0, 0, 1, 1], [], []>} : vector<256x40xbf16>, vector<40x128xbf16>, vector<256x128xf32> -> vector<256x128xf32>
    %8 = arith.addf %0, %7 : vector<256x128xf32>
    %c0_7 = arith.constant 0 : index
    %c0_8 = arith.constant 0 : index
    %c1 = arith.constant 1 : index
    %c0_9 = arith.constant 0 : index
    %9 = vector.load %arg1[%c0_7, %c0_8, %c1, %c0_9] : memref<1x18x18x40xf32, #tpu.memory_space<vmem>>, vector<1x16x16x40xf32>
    %10 = vector.shape_cast %9 : vector<1x16x16x40xf32> to vector<16x16x40xf32>
    %11 = vector.shape_cast %10 : vector<16x16x40xf32> to vector<256x40xf32>
    %12 = arith.truncf %11 : vector<256x40xf32> to vector<256x40xbf16>
    %c1_10 = arith.constant 1 : index
    %c0_11 = arith.constant 0 : index
    %c0_12 = arith.constant 0 : index
    %13 = vector.load %arg2[%c1_10, %c0_11, %c0_12] : memref<9x40x128xbf16, #tpu.memory_space<vmem>>, vector<1x40x128xbf16>
    %14 = vector.shape_cast %13 : vector<1x40x128xbf16> to vector<40x128xbf16>
    %cst_13 = arith.constant dense<0.000000e+00> : vector<256x128xf32>
    %15 = tpu.matmul %12, %14, %cst_13 {dimension_numbers = #tpu.dot_dimension_numbers<[1], [0], [0], [1], [0, 0, 1, 1], [], []>} : vector<256x40xbf16>, vector<40x128xbf16>, vector<256x128xf32> -> vector<256x128xf32>
    %16 = arith.addf %8, %15 : vector<256x128xf32>
    %c0_14 = arith.constant 0 : index
    %c0_15 = arith.constant 0 : index
    %c2 = arith.constant 2 : index
    %c0_16 = arith.constant 0 : index
    %17 = vector.load %arg1[%c0_14, %c0_15, %c2, %c0_16] : memref<1x18x18x40xf32, #tpu.memory_space<vmem>>, vector<1x16x16x40xf32>
    %18 = vector.shape_cast %17 : vector<1x16x16x40xf32> to vector<16x16x40xf32>
    %19 = vector.shape_cast %18 : vector<16x16x40xf32> to vector<256x40xf32>
    %20 = arith.truncf %19 : vector<256x40xf32> to vector<256x40xbf16>
    %c2_17 = arith.constant 2 : index
    %c0_18 = arith.constant 0 : index
    %c0_19 = arith.constant 0 : index
    %21 = vector.load %arg2[%c2_17, %c0_18, %c0_19] : memref<9x40x128xbf16, #tpu.memory_space<vmem>>, vector<1x40x128xbf16>
    %22 = vector.shape_cast %21 : vector<1x40x128xbf16> to vector<40x128xbf16>
    %cst_20 = arith.constant dense<0.000000e+00> : vector<256x128xf32>
    %23 = tpu.matmul %20, %22, %cst_20 {dimension_numbers = #tpu.dot_dimension_numbers<[1], [0], [0], [1], [0, 0, 1, 1], [], []>} : vector<256x40xbf16>, vector<40x128xbf16>, vector<256x128xf32> -> vector<256x128xf32>
    %24 = arith.addf %16, %23 : vector<256x128xf32>
    %c0_21 = arith.constant 0 : index
    %c1_22 = arith.constant 1 : index
    %c0_23 = arith.constant 0 : index
    %c0_24 = arith.constant 0 : index
    %25 = vector.load %arg1[%c0_21, %c1_22, %c0_23, %c0_24] : memref<1x18x18x40xf32, #tpu.memory_space<vmem>>, vector<1x16x16x40xf32>
    %26 = vector.shape_cast %25 : vector<1x16x16x40xf32> to vector<16x16x40xf32>
    %27 = vector.shape_cast %26 : vector<16x16x40xf32> to vector<256x40xf32>
    %28 = arith.truncf %27 : vector<256x40xf32> to vector<256x40xbf16>
    %c3 = arith.constant 3 : index
    %c0_25 = arith.constant 0 : index
    %c0_26 = arith.constant 0 : index
    %29 = vector.load %arg2[%c3, %c0_25, %c0_26] : memref<9x40x128xbf16, #tpu.memory_space<vmem>>, vector<1x40x128xbf16>
    %30 = vector.shape_cast %29 : vector<1x40x128xbf16> to vector<40x128xbf16>
    %cst_27 = arith.constant dense<0.000000e+00> : vector<256x128xf32>
    %31 = tpu.matmul %28, %30, %cst_27 {dimension_numbers = #tpu.dot_dimension_numbers<[1], [0], [0], [1], [0, 0, 1, 1], [], []>} : vector<256x40xbf16>, vector<40x128xbf16>, vector<256x128xf32> -> vector<256x128xf32>
    %32 = arith.addf %24, %31 : vector<256x128xf32>
    %c0_28 = arith.constant 0 : index
    %c1_29 = arith.constant 1 : index
    %c1_30 = arith.constant 1 : index
    %c0_31 = arith.constant 0 : index
    %33 = vector.load %arg1[%c0_28, %c1_29, %c1_30, %c0_31] : memref<1x18x18x40xf32, #tpu.memory_space<vmem>>, vector<1x16x16x40xf32>
    %34 = vector.shape_cast %33 : vector<1x16x16x40xf32> to vector<16x16x40xf32>
    %35 = vector.shape_cast %34 : vector<16x16x40xf32> to vector<256x40xf32>
    %36 = arith.truncf %35 : vector<256x40xf32> to vector<256x40xbf16>
    %c4 = arith.constant 4 : index
    %c0_32 = arith.constant 0 : index
    %c0_33 = arith.constant 0 : index
    %37 = vector.load %arg2[%c4, %c0_32, %c0_33] : memref<9x40x128xbf16, #tpu.memory_space<vmem>>, vector<1x40x128xbf16>
    %38 = vector.shape_cast %37 : vector<1x40x128xbf16> to vector<40x128xbf16>
    %cst_34 = arith.constant dense<0.000000e+00> : vector<256x128xf32>
    %39 = tpu.matmul %36, %38, %cst_34 {dimension_numbers = #tpu.dot_dimension_numbers<[1], [0], [0], [1], [0, 0, 1, 1], [], []>} : vector<256x40xbf16>, vector<40x128xbf16>, vector<256x128xf32> -> vector<256x128xf32>
    %40 = arith.addf %32, %39 : vector<256x128xf32>
    %c0_35 = arith.constant 0 : index
    %c1_36 = arith.constant 1 : index
    %c2_37 = arith.constant 2 : index
    %c0_38 = arith.constant 0 : index
    %41 = vector.load %arg1[%c0_35, %c1_36, %c2_37, %c0_38] : memref<1x18x18x40xf32, #tpu.memory_space<vmem>>, vector<1x16x16x40xf32>
    %42 = vector.shape_cast %41 : vector<1x16x16x40xf32> to vector<16x16x40xf32>
    %43 = vector.shape_cast %42 : vector<16x16x40xf32> to vector<256x40xf32>
    %44 = arith.truncf %43 : vector<256x40xf32> to vector<256x40xbf16>
    %c5 = arith.constant 5 : index
    %c0_39 = arith.constant 0 : index
    %c0_40 = arith.constant 0 : index
    %45 = vector.load %arg2[%c5, %c0_39, %c0_40] : memref<9x40x128xbf16, #tpu.memory_space<vmem>>, vector<1x40x128xbf16>
    %46 = vector.shape_cast %45 : vector<1x40x128xbf16> to vector<40x128xbf16>
    %cst_41 = arith.constant dense<0.000000e+00> : vector<256x128xf32>
    %47 = tpu.matmul %44, %46, %cst_41 {dimension_numbers = #tpu.dot_dimension_numbers<[1], [0], [0], [1], [0, 0, 1, 1], [], []>} : vector<256x40xbf16>, vector<40x128xbf16>, vector<256x128xf32> -> vector<256x128xf32>
    %48 = arith.addf %40, %47 : vector<256x128xf32>
    %c0_42 = arith.constant 0 : index
    %c2_43 = arith.constant 2 : index
    %c0_44 = arith.constant 0 : index
    %c0_45 = arith.constant 0 : index
    %49 = vector.load %arg1[%c0_42, %c2_43, %c0_44, %c0_45] : memref<1x18x18x40xf32, #tpu.memory_space<vmem>>, vector<1x16x16x40xf32>
    %50 = vector.shape_cast %49 : vector<1x16x16x40xf32> to vector<16x16x40xf32>
    %51 = vector.shape_cast %50 : vector<16x16x40xf32> to vector<256x40xf32>
    %52 = arith.truncf %51 : vector<256x40xf32> to vector<256x40xbf16>
    %c6 = arith.constant 6 : index
    %c0_46 = arith.constant 0 : index
    %c0_47 = arith.constant 0 : index
    %53 = vector.load %arg2[%c6, %c0_46, %c0_47] : memref<9x40x128xbf16, #tpu.memory_space<vmem>>, vector<1x40x128xbf16>
    %54 = vector.shape_cast %53 : vector<1x40x128xbf16> to vector<40x128xbf16>
    %cst_48 = arith.constant dense<0.000000e+00> : vector<256x128xf32>
    %55 = tpu.matmul %52, %54, %cst_48 {dimension_numbers = #tpu.dot_dimension_numbers<[1], [0], [0], [1], [0, 0, 1, 1], [], []>} : vector<256x40xbf16>, vector<40x128xbf16>, vector<256x128xf32> -> vector<256x128xf32>
    %56 = arith.addf %48, %55 : vector<256x128xf32>
    %c0_49 = arith.constant 0 : index
    %c2_50 = arith.constant 2 : index
    %c1_51 = arith.constant 1 : index
    %c0_52 = arith.constant 0 : index
    %57 = vector.load %arg1[%c0_49, %c2_50, %c1_51, %c0_52] : memref<1x18x18x40xf32, #tpu.memory_space<vmem>>, vector<1x16x16x40xf32>
    %58 = vector.shape_cast %57 : vector<1x16x16x40xf32> to vector<16x16x40xf32>
    %59 = vector.shape_cast %58 : vector<16x16x40xf32> to vector<256x40xf32>
    %60 = arith.truncf %59 : vector<256x40xf32> to vector<256x40xbf16>
    %c7 = arith.constant 7 : index
    %c0_53 = arith.constant 0 : index
    %c0_54 = arith.constant 0 : index
    %61 = vector.load %arg2[%c7, %c0_53, %c0_54] : memref<9x40x128xbf16, #tpu.memory_space<vmem>>, vector<1x40x128xbf16>
    %62 = vector.shape_cast %61 : vector<1x40x128xbf16> to vector<40x128xbf16>
    %cst_55 = arith.constant dense<0.000000e+00> : vector<256x128xf32>
    %63 = tpu.matmul %60, %62, %cst_55 {dimension_numbers = #tpu.dot_dimension_numbers<[1], [0], [0], [1], [0, 0, 1, 1], [], []>} : vector<256x40xbf16>, vector<40x128xbf16>, vector<256x128xf32> -> vector<256x128xf32>
    %64 = arith.addf %56, %63 : vector<256x128xf32>
    %c0_56 = arith.constant 0 : index
    %c2_57 = arith.constant 2 : index
    %c2_58 = arith.constant 2 : index
    %c0_59 = arith.constant 0 : index
    %65 = vector.load %arg1[%c0_56, %c2_57, %c2_58, %c0_59] : memref<1x18x18x40xf32, #tpu.memory_space<vmem>>, vector<1x16x16x40xf32>
    %66 = vector.shape_cast %65 : vector<1x16x16x40xf32> to vector<16x16x40xf32>
    %67 = vector.shape_cast %66 : vector<16x16x40xf32> to vector<256x40xf32>
    %68 = arith.truncf %67 : vector<256x40xf32> to vector<256x40xbf16>
    %c8 = arith.constant 8 : index
    %c0_60 = arith.constant 0 : index
    %c0_61 = arith.constant 0 : index
    %69 = vector.load %arg2[%c8, %c0_60, %c0_61] : memref<9x40x128xbf16, #tpu.memory_space<vmem>>, vector<1x40x128xbf16>
    %70 = vector.shape_cast %69 : vector<1x40x128xbf16> to vector<40x128xbf16>
    %cst_62 = arith.constant dense<0.000000e+00> : vector<256x128xf32>
    %71 = tpu.matmul %68, %70, %cst_62 {dimension_numbers = #tpu.dot_dimension_numbers<[1], [0], [0], [1], [0, 0, 1, 1], [], []>} : vector<256x40xbf16>, vector<40x128xbf16>, vector<256x128xf32> -> vector<256x128xf32>
    %72 = arith.addf %64, %71 : vector<256x128xf32>
    %c0_63 = arith.constant 0 : index
    %c0_64 = arith.constant 0 : index
    %73 = vector.load %arg5[%c0_63, %c0_64] : memref<1x128xf32, #tpu.memory_space<vmem>>, vector<1x128xf32>
    %74 = vector.broadcast %73 : vector<1x128xf32> to vector<256x128xf32>
    %75 = arith.mulf %72, %74 : vector<256x128xf32>
    %c0_65 = arith.constant 0 : index
    %c0_66 = arith.constant 0 : index
    %76 = vector.load %arg6[%c0_65, %c0_66] : memref<1x128xf32, #tpu.memory_space<vmem>>, vector<1x128xf32>
    %77 = vector.broadcast %76 : vector<1x128xf32> to vector<256x128xf32>
    %78 = arith.addf %75, %77 : vector<256x128xf32>
    %cst_67 = arith.constant 0.000000e+00 : f32
    %79 = vector.broadcast %cst_67 : f32 to vector<256x128xf32>
    %80 = arith.maximumf %78, %79 : vector<256x128xf32>
    %cst_68 = arith.constant 0.000000e+00 : f32
    %81 = vector.broadcast %cst_68 : f32 to vector<18x32x128xf32>
    %c0_69 = arith.constant 0 : index
    %c0_70 = arith.constant 0 : index
    %c0_71 = arith.constant 0 : index
    %82 = vector.load %arg11[%c0_69, %c0_70, %c0_71] : memref<18x32x128xf32, #tpu.memory_space<vmem>>, vector<18x32x128xf32>
    tpu.vector_store %arg11[%c0_69, %c0_70, %c0_71], %81 {strides = array<i32>} : memref<18x32x128xf32, #tpu.memory_space<vmem>>, vector<18x32x128xf32>,
    %83 = vector.shape_cast %80 : vector<256x128xf32> to vector<16x16x128xf32>
    %c1_72 = arith.constant 1 : index
    %c8_73 = arith.constant 8 : index
    %c0_74 = arith.constant 0 : index
    %84 = vector.load %arg11[%c1_72, %c8_73, %c0_74] : memref<18x32x128xf32, #tpu.memory_space<vmem>>, vector<16x16x128xf32>
    tpu.vector_store %arg11[%c1_72, %c8_73, %c0_74], %83 {strides = array<i32>} : memref<18x32x128xf32, #tpu.memory_space<vmem>>, vector<16x16x128xf32>,
    %cst_75 = arith.constant 0.000000e+00 : f32
    %85 = vector.broadcast %cst_75 : f32 to vector<256x128xf32>
    %c0_76 = arith.constant 0 : index
    %c7_77 = arith.constant 7 : index
    %c0_78 = arith.constant 0 : index
    %86 = vector.load %arg11[%c0_76, %c7_77, %c0_78] : memref<18x32x128xf32, #tpu.memory_space<vmem>>, vector<16x16x128xf32>
    %87 = vector.shape_cast %86 : vector<16x16x128xf32> to vector<256x128xf32>
    %88 = arith.truncf %87 : vector<256x128xf32> to vector<256x128xbf16>
    %c0_79 = arith.constant 0 : index
    %c0_80 = arith.constant 0 : index
    %c0_81 = arith.constant 0 : index
    %89 = vector.load %arg3[%c0_79, %c0_80, %c0_81] : memref<9x128x128xbf16, #tpu.memory_space<vmem>>, vector<1x128x128xbf16>
    %90 = vector.shape_cast %89 : vector<1x128x128xbf16> to vector<128x128xbf16>
    %cst_82 = arith.constant dense<0.000000e+00> : vector<256x128xf32>
    %91 = tpu.matmul %88, %90, %cst_82 {dimension_numbers = #tpu.dot_dimension_numbers<[1], [0], [0], [1], [0, 0, 1, 1], [], []>} : vector<256x128xbf16>, vector<128x128xbf16>, vector<256x128xf32> -> vector<256x128xf32>
    %92 = arith.addf %85, %91 : vector<256x128xf32>
    %c0_83 = arith.constant 0 : index
    %c8_84 = arith.constant 8 : index
    %c0_85 = arith.constant 0 : index
    %93 = vector.load %arg11[%c0_83, %c8_84, %c0_85] : memref<18x32x128xf32, #tpu.memory_space<vmem>>, vector<16x16x128xf32>
    %94 = vector.shape_cast %93 : vector<16x16x128xf32> to vector<256x128xf32>
    %95 = arith.truncf %94 : vector<256x128xf32> to vector<256x128xbf16>
    %c1_86 = arith.constant 1 : index
    %c0_87 = arith.constant 0 : index
    %c0_88 = arith.constant 0 : index
    %96 = vector.load %arg3[%c1_86, %c0_87, %c0_88] : memref<9x128x128xbf16, #tpu.memory_space<vmem>>, vector<1x128x128xbf16>
    %97 = vector.shape_cast %96 : vector<1x128x128xbf16> to vector<128x128xbf16>
    %cst_89 = arith.constant dense<0.000000e+00> : vector<256x128xf32>
    %98 = tpu.matmul %95, %97, %cst_89 {dimension_numbers = #tpu.dot_dimension_numbers<[1], [0], [0], [1], [0, 0, 1, 1], [], []>} : vector<256x128xbf16>, vector<128x128xbf16>, vector<256x128xf32> -> vector<256x128xf32>
    %99 = arith.addf %92, %98 : vector<256x128xf32>
    %c0_90 = arith.constant 0 : index
    %c9 = arith.constant 9 : index
    %c0_91 = arith.constant 0 : index
    %100 = vector.load %arg11[%c0_90, %c9, %c0_91] : memref<18x32x128xf32, #tpu.memory_space<vmem>>, vector<16x16x128xf32>
    %101 = vector.shape_cast %100 : vector<16x16x128xf32> to vector<256x128xf32>
    %102 = arith.truncf %101 : vector<256x128xf32> to vector<256x128xbf16>
    %c2_92 = arith.constant 2 : index
    %c0_93 = arith.constant 0 : index
    %c0_94 = arith.constant 0 : index
    %103 = vector.load %arg3[%c2_92, %c0_93, %c0_94] : memref<9x128x128xbf16, #tpu.memory_space<vmem>>, vector<1x128x128xbf16>
    %104 = vector.shape_cast %103 : vector<1x128x128xbf16> to vector<128x128xbf16>
    %cst_95 = arith.constant dense<0.000000e+00> : vector<256x128xf32>
    %105 = tpu.matmul %102, %104, %cst_95 {dimension_numbers = #tpu.dot_dimension_numbers<[1], [0], [0], [1], [0, 0, 1, 1], [], []>} : vector<256x128xbf16>, vector<128x128xbf16>, vector<256x128xf32> -> vector<256x128xf32>
    %106 = arith.addf %99, %105 : vector<256x128xf32>
    %c1_96 = arith.constant 1 : index
    %c7_97 = arith.constant 7 : index
    %c0_98 = arith.constant 0 : index
    %107 = vector.load %arg11[%c1_96, %c7_97, %c0_98] : memref<18x32x128xf32, #tpu.memory_space<vmem>>, vector<16x16x128xf32>
    %108 = vector.shape_cast %107 : vector<16x16x128xf32> to vector<256x128xf32>
    %109 = arith.truncf %108 : vector<256x128xf32> to vector<256x128xbf16>
    %c3_99 = arith.constant 3 : index
    %c0_100 = arith.constant 0 : index
    %c0_101 = arith.constant 0 : index
    %110 = vector.load %arg3[%c3_99, %c0_100, %c0_101] : memref<9x128x128xbf16, #tpu.memory_space<vmem>>, vector<1x128x128xbf16>
    %111 = vector.shape_cast %110 : vector<1x128x128xbf16> to vector<128x128xbf16>
    %cst_102 = arith.constant dense<0.000000e+00> : vector<256x128xf32>
    %112 = tpu.matmul %109, %111, %cst_102 {dimension_numbers = #tpu.dot_dimension_numbers<[1], [0], [0], [1], [0, 0, 1, 1], [], []>} : vector<256x128xbf16>, vector<128x128xbf16>, vector<256x128xf32> -> vector<256x128xf32>
    %113 = arith.addf %106, %112 : vector<256x128xf32>
    %c1_103 = arith.constant 1 : index
    %c8_104 = arith.constant 8 : index
    %c0_105 = arith.constant 0 : index
    %114 = vector.load %arg11[%c1_103, %c8_104, %c0_105] : memref<18x32x128xf32, #tpu.memory_space<vmem>>, vector<16x16x128xf32>
    %115 = vector.shape_cast %114 : vector<16x16x128xf32> to vector<256x128xf32>
    %116 = arith.truncf %115 : vector<256x128xf32> to vector<256x128xbf16>
    %c4_106 = arith.constant 4 : index
    %c0_107 = arith.constant 0 : index
    %c0_108 = arith.constant 0 : index
    %117 = vector.load %arg3[%c4_106, %c0_107, %c0_108] : memref<9x128x128xbf16, #tpu.memory_space<vmem>>, vector<1x128x128xbf16>
    %118 = vector.shape_cast %117 : vector<1x128x128xbf16> to vector<128x128xbf16>
    %cst_109 = arith.constant dense<0.000000e+00> : vector<256x128xf32>
    %119 = tpu.matmul %116, %118, %cst_109 {dimension_numbers = #tpu.dot_dimension_numbers<[1], [0], [0], [1], [0, 0, 1, 1], [], []>} : vector<256x128xbf16>, vector<128x128xbf16>, vector<256x128xf32> -> vector<256x128xf32>
    %120 = arith.addf %113, %119 : vector<256x128xf32>
    %c1_110 = arith.constant 1 : index
    %c9_111 = arith.constant 9 : index
    %c0_112 = arith.constant 0 : index
    %121 = vector.load %arg11[%c1_110, %c9_111, %c0_112] : memref<18x32x128xf32, #tpu.memory_space<vmem>>, vector<16x16x128xf32>
    %122 = vector.shape_cast %121 : vector<16x16x128xf32> to vector<256x128xf32>
    %123 = arith.truncf %122 : vector<256x128xf32> to vector<256x128xbf16>
    %c5_113 = arith.constant 5 : index
    %c0_114 = arith.constant 0 : index
    %c0_115 = arith.constant 0 : index
    %124 = vector.load %arg3[%c5_113, %c0_114, %c0_115] : memref<9x128x128xbf16, #tpu.memory_space<vmem>>, vector<1x128x128xbf16>
    %125 = vector.shape_cast %124 : vector<1x128x128xbf16> to vector<128x128xbf16>
    %cst_116 = arith.constant dense<0.000000e+00> : vector<256x128xf32>
    %126 = tpu.matmul %123, %125, %cst_116 {dimension_numbers = #tpu.dot_dimension_numbers<[1], [0], [0], [1], [0, 0, 1, 1], [], []>} : vector<256x128xbf16>, vector<128x128xbf16>, vector<256x128xf32> -> vector<256x128xf32>
    %127 = arith.addf %120, %126 : vector<256x128xf32>
    %c2_117 = arith.constant 2 : index
    %c7_118 = arith.constant 7 : index
    %c0_119 = arith.constant 0 : index
    %128 = vector.load %arg11[%c2_117, %c7_118, %c0_119] : memref<18x32x128xf32, #tpu.memory_space<vmem>>, vector<16x16x128xf32>
    %129 = vector.shape_cast %128 : vector<16x16x128xf32> to vector<256x128xf32>
    %130 = arith.truncf %129 : vector<256x128xf32> to vector<256x128xbf16>
    %c6_120 = arith.constant 6 : index
    %c0_121 = arith.constant 0 : index
    %c0_122 = arith.constant 0 : index
    %131 = vector.load %arg3[%c6_120, %c0_121, %c0_122] : memref<9x128x128xbf16, #tpu.memory_space<vmem>>, vector<1x128x128xbf16>
    %132 = vector.shape_cast %131 : vector<1x128x128xbf16> to vector<128x128xbf16>
    %cst_123 = arith.constant dense<0.000000e+00> : vector<256x128xf32>
    %133 = tpu.matmul %130, %132, %cst_123 {dimension_numbers = #tpu.dot_dimension_numbers<[1], [0], [0], [1], [0, 0, 1, 1], [], []>} : vector<256x128xbf16>, vector<128x128xbf16>, vector<256x128xf32> -> vector<256x128xf32>
    %134 = arith.addf %127, %133 : vector<256x128xf32>
    %c2_124 = arith.constant 2 : index
    %c8_125 = arith.constant 8 : index
    %c0_126 = arith.constant 0 : index
    %135 = vector.load %arg11[%c2_124, %c8_125, %c0_126] : memref<18x32x128xf32, #tpu.memory_space<vmem>>, vector<16x16x128xf32>
    %136 = vector.shape_cast %135 : vector<16x16x128xf32> to vector<256x128xf32>
    %137 = arith.truncf %136 : vector<256x128xf32> to vector<256x128xbf16>
    %c7_127 = arith.constant 7 : index
    %c0_128 = arith.constant 0 : index
    %c0_129 = arith.constant 0 : index
    %138 = vector.load %arg3[%c7_127, %c0_128, %c0_129] : memref<9x128x128xbf16, #tpu.memory_space<vmem>>, vector<1x128x128xbf16>
    %139 = vector.shape_cast %138 : vector<1x128x128xbf16> to vector<128x128xbf16>
    %cst_130 = arith.constant dense<0.000000e+00> : vector<256x128xf32>
    %140 = tpu.matmul %137, %139, %cst_130 {dimension_numbers = #tpu.dot_dimension_numbers<[1], [0], [0], [1], [0, 0, 1, 1], [], []>} : vector<256x128xbf16>, vector<128x128xbf16>, vector<256x128xf32> -> vector<256x128xf32>
    %141 = arith.addf %134, %140 : vector<256x128xf32>
    %c2_131 = arith.constant 2 : index
    %c9_132 = arith.constant 9 : index
    %c0_133 = arith.constant 0 : index
    %142 = vector.load %arg11[%c2_131, %c9_132, %c0_133] : memref<18x32x128xf32, #tpu.memory_space<vmem>>, vector<16x16x128xf32>
    %143 = vector.shape_cast %142 : vector<16x16x128xf32> to vector<256x128xf32>
    %144 = arith.truncf %143 : vector<256x128xf32> to vector<256x128xbf16>
    %c8_134 = arith.constant 8 : index
    %c0_135 = arith.constant 0 : index
    %c0_136 = arith.constant 0 : index
    %145 = vector.load %arg3[%c8_134, %c0_135, %c0_136] : memref<9x128x128xbf16, #tpu.memory_space<vmem>>, vector<1x128x128xbf16>
    %146 = vector.shape_cast %145 : vector<1x128x128xbf16> to vector<128x128xbf16>
    %cst_137 = arith.constant dense<0.000000e+00> : vector<256x128xf32>
    %147 = tpu.matmul %144, %146, %cst_137 {dimension_numbers = #tpu.dot_dimension_numbers<[1], [0], [0], [1], [0, 0, 1, 1], [], []>} : vector<256x128xbf16>, vector<128x128xbf16>, vector<256x128xf32> -> vector<256x128xf32>
    %148 = arith.addf %141, %147 : vector<256x128xf32>
    %c0_138 = arith.constant 0 : index
    %c0_139 = arith.constant 0 : index
    %149 = vector.load %arg7[%c0_138, %c0_139] : memref<1x128xf32, #tpu.memory_space<vmem>>, vector<1x128xf32>
    %150 = vector.broadcast %149 : vector<1x128xf32> to vector<256x128xf32>
    %151 = arith.mulf %148, %150 : vector<256x128xf32>
    %c0_140 = arith.constant 0 : index
    %c0_141 = arith.constant 0 : index
    %152 = vector.load %arg8[%c0_140, %c0_141] : memref<1x128xf32, #tpu.memory_space<vmem>>, vector<1x128xf32>
    %153 = vector.broadcast %152 : vector<1x128xf32> to vector<256x128xf32>
    %154 = arith.addf %151, %153 : vector<256x128xf32>
    %cst_142 = arith.constant 0.000000e+00 : f32
    %155 = vector.broadcast %cst_142 : f32 to vector<256x128xf32>
    %156 = arith.maximumf %154, %155 : vector<256x128xf32>
    %c0_143 = arith.constant 0 : index
    %c0_144 = arith.constant 0 : index
    %157 = vector.load %arg4[%c0_143, %c0_144] : memref<8x128xbf16, #tpu.memory_space<vmem>>, vector<8x128xbf16>
    %158 = arith.truncf %156 : vector<256x128xf32> to vector<256x128xbf16>
    %cst_145 = arith.constant dense<0.000000e+00> : vector<8x256xf32>
    %159 = tpu.matmul %157, %158, %cst_145 {dimension_numbers = #tpu.dot_dimension_numbers<[1], [1], [0], [0], [0, 0, 1, 0], [], []>} : vector<8x128xbf16>, vector<256x128xbf16>, vector<8x256xf32> -> vector<8x256xf32>
    %c0_146 = arith.constant 0 : index
    %c0_147 = arith.constant 0 : index
    %160 = vector.load %arg9[%c0_146, %c0_147] : memref<8x1xf32, #tpu.memory_space<vmem>>, vector<8x1xf32>
    %161 = vector.broadcast %160 : vector<8x1xf32> to vector<8x256xf32>
    %162 = arith.addf %159, %161 : vector<8x256xf32>
    %c0_148 = arith.constant 0 : index
    %c0_149 = arith.constant 0 : index
    %c0_150 = arith.constant 0 : index
    %163 = vector.load %arg10[%c0_148, %c0_149, %c0_150] : memref<1x8x256xf32, #tpu.memory_space<vmem>>, vector<1x8x256xf32>
    %164 = vector.shape_cast %163 : vector<1x8x256xf32> to vector<8x256xf32>
    %165 = vector.shape_cast %162 : vector<8x256xf32> to vector<1x8x256xf32>
    tpu.vector_store %arg10[%c0_148, %c0_149, %c0_150], %165 {strides = array<i32>} : memref<1x8x256xf32, #tpu.memory_space<vmem>>, vector<1x8x256xf32>,
    return
  }
  func.func @transform_0(%arg0: i32) -> (i32, i32, i32, i32) {
    %c0_i32 = arith.constant 0 : i32
    %c0_i32_0 = arith.constant 0 : i32
    %c0_i32_1 = arith.constant 0 : i32
    %c0_i32_2 = arith.constant 0 : i32
    return %arg0, %c0_i32, %c0_i32_0, %c0_i32_1 : i32, i32, i32, i32
  }
  func.func @transform_1(%arg0: i32) -> (i32, i32, i32) {
    %c0_i32 = arith.constant 0 : i32
    %c0_i32_0 = arith.constant 0 : i32
    %c0_i32_1 = arith.constant 0 : i32
    %c0_i32_2 = arith.constant 0 : i32
    return %c0_i32, %c0_i32_0, %c0_i32_1 : i32, i32, i32
  }
  func.func @transform_2(%arg0: i32) -> (i32, i32, i32) {
    %c0_i32 = arith.constant 0 : i32
    %c0_i32_0 = arith.constant 0 : i32
    %c0_i32_1 = arith.constant 0 : i32
    %c0_i32_2 = arith.constant 0 : i32
    return %c0_i32, %c0_i32_0, %c0_i32_1 : i32, i32, i32
  }
  func.func @transform_3(%arg0: i32) -> (i32, i32) {
    %c0_i32 = arith.constant 0 : i32
    %c0_i32_0 = arith.constant 0 : i32
    %c0_i32_1 = arith.constant 0 : i32
    return %c0_i32, %c0_i32_0 : i32, i32
  }
  func.func @transform_4(%arg0: i32) -> (i32, i32) {
    %c0_i32 = arith.constant 0 : i32
    %c0_i32_0 = arith.constant 0 : i32
    %c0_i32_1 = arith.constant 0 : i32
    return %c0_i32, %c0_i32_0 : i32, i32
  }
  func.func @transform_5(%arg0: i32) -> (i32, i32) {
    %c0_i32 = arith.constant 0 : i32
    %c0_i32_0 = arith.constant 0 : i32
    %c0_i32_1 = arith.constant 0 : i32
    return %c0_i32, %c0_i32_0 : i32, i32
  }
  func.func @transform_6(%arg0: i32) -> (i32, i32) {
    %c0_i32 = arith.constant 0 : i32
    %c0_i32_0 = arith.constant 0 : i32
    %c0_i32_1 = arith.constant 0 : i32
    return %c0_i32, %c0_i32_0 : i32, i32
  }
  func.func @transform_7(%arg0: i32) -> (i32, i32) {
    %c0_i32 = arith.constant 0 : i32
    %c0_i32_0 = arith.constant 0 : i32
    %c0_i32_1 = arith.constant 0 : i32
    return %c0_i32, %c0_i32_0 : i32, i32
  }
  func.func @transform_8(%arg0: i32) -> (i32, i32) {
    %c0_i32 = arith.constant 0 : i32
    %c0_i32_0 = arith.constant 0 : i32
    %c0_i32_1 = arith.constant 0 : i32
    return %c0_i32, %c0_i32_0 : i32, i32
  }
  func.func @transform_9(%arg0: i32) -> (i32, i32, i32) {
    %c0_i32 = arith.constant 0 : i32
    %c0_i32_0 = arith.constant 0 : i32
    %c0_i32_1 = arith.constant 0 : i32
    return %arg0, %c0_i32, %c0_i32_0 : i32, i32, i32
  }
}

</mosaic_0001>

<llo_original>
// kernel: depth_refinement_forward.1
$region0: #{depth_refinement_forward.1}
  #allocation0 [shape = 'u32[]', space=smem, size = 0x4, offset = 0x4, fixed_abs, tag = 'smem constant byte address 0x4 - core index']
  #allocation1 [shape = 'u32[144,128]{1,0:T(1,128)}', space=vmem, size = 0x12000, scoped, tag = 'internal scratch']
  #allocation2 [shape = 'f32[18,32,128]{2,1,0:T(8,128)}', space=vmem, size = 0x48000, scoped, tag = 'scratch operand']
  %s0 = inlined_call_operand.vmem [shape: f32[2,18,18,40], index: 0, kind: input, shape index: {}]
  %s1 = inlined_call_operand.vmem [shape: bf16[9,40,128], index: 1, kind: input, shape index: {}]
  %s2 = inlined_call_operand.vmem [shape: bf16[9,128,128], index: 2, kind: input, shape index: {}]
  %s3 = inlined_call_operand.vmem [shape: bf16[8,128], index: 3, kind: input, shape index: {}]
  %s4 = inlined_call_operand.vmem [shape: f32[1,128], index: 4, kind: input, shape index: {}]
  %s5 = inlined_call_operand.vmem [shape: f32[1,128], index: 5, kind: input, shape index: {}]
  %s6 = inlined_call_operand.vmem [shape: f32[1,128], index: 6, kind: input, shape index: {}]
  %s7 = inlined_call_operand.vmem [shape: f32[1,128], index: 7, kind: input, shape index: {}]
  %s8 = inlined_call_operand.vmem [shape: f32[8,1], index: 8, kind: input, shape index: {}]
  %s9 = inlined_call_operand.vmem [shape: f32[2,8,256], index: 9, kind: output, shape index: {}]
  %s10 = sld [smem:[#allocation0]]
  $region69: #{depth_refinement_forward.1} parent=0
    _
  %s12 = ssub.s32 1, %s10
  %s13 = scalar_select 0, %s12, %s10
  loop: start=0, step=1, limit=4
  $region2: #{depth_refinement_forward.1} parent=0 // loop_pre_header
    _
  $region3: #{depth_refinement_forward.1} parent=0 // loop_header
    %s15 = sphi 0, %s19
    %p16 = scmp.ge.s32.totalorder %s15, 4
    %s25 = sphi 0, %s27
    %s28 = sphi 0, %s25
    %s29 = sphi 0, %s28
    %s45 = sphi 0, %s29
    %s49 = sphi 0, %s49
    %s51 = sphi 0, %s49
    %s52 = sphi 0, %s51
    %s66 = sphi 0, %s52
    %s70 = sphi 0, %s70
    %s72 = sphi 0, %s70
    %s73 = sphi 0, %s72
    %s87 = sphi 0, %s73
    %s91 = sphi 0, %s91
    %s93 = sphi 0, %s91
    %s94 = sphi 0, %s93
    %s108 = sphi 0, %s94
    %s112 = sphi 0, %s112
    %s114 = sphi 0, %s112
    %s115 = sphi 0, %s114
    %s129 = sphi 0, %s115
    %s133 = sphi 0, %s133
    %s135 = sphi 0, %s133
    %s136 = sphi 0, %s135
    %s150 = sphi 0, %s136
    %s154 = sphi 0, %s154
    %s156 = sphi 0, %s154
    %s157 = sphi 0, %s156
    %s171 = sphi 0, %s157
    %s175 = sphi 0, %s175
    %s177 = sphi 0, %s175
    %s178 = sphi 0, %s177
    %s192 = sphi 0, %s178
    %s196 = sphi 0, %s196
    %s198 = sphi 0, %s196
    %s199 = sphi 0, %s198
    %s213 = sphi 0, %s199
    %s219 = sphi 0, %s221
    %s222 = sphi 0, %s219
    %s223 = sphi 0, %s222
    %s239 = sphi 0, %s223
  $region4: #{depth_refinement_forward.1} parent=0 // loop_header_branch
    %18 = sbr.rel (%p16) target = $region8
  $region5: #{depth_refinement_forward.1} parent=0 // loop_body
    %s20 = ssub.s32 %s15, 1
    %s21 = ssub.s32 %s15, 2
    %s22 = sadd.s32 %s15, 1
    %s23 = ssub.s32 %s15, %s22
    %p24 = scmp.eq.s32.totalorder %s23, 0
    %s26 = sadd.s32 %s25, 1
    %s27 = scalar_select %p24, %s25, %s26
    %p30 = pneg %p24
    %p31 = scmp.eq.s32.totalorder %s15, 1
    %p32 = por %p30, %p31
    %p33 = scmp.ne.s32.totalorder %s25, %s28
    %p34 = scmp.eq.s32.totalorder %s15, 0
    %p35 = por %p33, %p34
    %p36 = scmp.ne.s32.totalorder %s25, %s28
    %p37 = scmp.eq.s32.totalorder %s20, 1
    %p38 = por %p36, %p37
    %p39 = scmp.ne.s32.totalorder %s28, %s29
    %p40 = scmp.eq.s32.totalorder %s20, 0
    %p41 = por %p39, %p40
    %p42 = scmp.ne.s32.totalorder %s28, %s29
    %p43 = scmp.eq.s32.totalorder %s21, 1
    %p44 = por %p42, %p43
    %p46 = scmp.ne.s32.totalorder %s29, %s45
    %p47 = scmp.eq.s32.totalorder %s21, 0
    %p48 = por %p46, %p47
    %s50 = sadd.s32 %s49, 1
    %p53 = scmp.eq.s32.totalorder %s15, 1
    %p54 = scmp.ne.s32.totalorder %s49, %s51
    %p55 = scmp.eq.s32.totalorder %s15, 0
    %p56 = por %p54, %p55
    %p57 = scmp.ne.s32.totalorder %s49, %s51
    %p58 = scmp.eq.s32.totalorder %s20, 1
    %p59 = por %p57, %p58
    %p60 = scmp.ne.s32.totalorder %s51, %s52
    %p61 = scmp.eq.s32.totalorder %s20, 0
    %p62 = por %p60, %p61
    %p63 = scmp.ne.s32.totalorder %s51, %s52
    %p64 = scmp.eq.s32.totalorder %s21, 1
    %p65 = por %p63, %p64
    %p67 = scmp.ne.s32.totalorder %s52, %s66
    %p68 = scmp.eq.s32.totalorder %s21, 0
    %p69 = por %p67, %p68
    %s71 = sadd.s32 %s70, 1
    %p74 = scmp.eq.s32.totalorder %s15, 1
    %p75 = scmp.ne.s32.totalorder %s70, %s72
    %p76 = scmp.eq.s32.totalorder %s15, 0
    %p77 = por %p75, %p76
    %p78 = scmp.ne.s32.totalorder %s70, %s72
    %p79 = scmp.eq.s32.totalorder %s20, 1
    %p80 = por %p78, %p79
    %p81 = scmp.ne.s32.totalorder %s72, %s73
    %p82 = scmp.eq.s32.totalorder %s20, 0
    %p83 = por %p81, %p82
    %p84 = scmp.ne.s32.totalorder %s72, %s73
    %p85 = scmp.eq.s32.totalorder %s21, 1
    %p86 = por %p84, %p85
    %p88 = scmp.ne.s32.totalorder %s73, %s87
    %p89 = scmp.eq.s32.totalorder %s21, 0
    %p90 = por %p88, %p89
    %s92 = sadd.s32 %s91, 1
    %p95 = scmp.eq.s32.totalorder %s15, 1
    %p96 = scmp.ne.s32.totalorder %s91, %s93
    %p97 = scmp.eq.s32.totalorder %s15, 0
    %p98 = por %p96, %p97
    %p99 = scmp.ne.s32.totalorder %s91, %s93
    %p100 = scmp.eq.s32.totalorder %s20, 1
    %p101 = por %p99, %p100
    %p102 = scmp.ne.s32.totalorder %s93, %s94
    %p103 = scmp.eq.s32.totalorder %s20, 0
    %p104 = por %p102, %p103
    %p105 = scmp.ne.s32.totalorder %s93, %s94
    %p106 = scmp.eq.s32.totalorder %s21, 1
    %p107 = por %p105, %p106
    %p109 = scmp.ne.s32.totalorder %s94, %s108
    %p110 = scmp.eq.s32.totalorder %s21, 0
    %p111 = por %p109, %p110
    %s113 = sadd.s32 %s112, 1
    %p116 = scmp.eq.s32.totalorder %s15, 1
    %p117 = scmp.ne.s32.totalorder %s112, %s114
    %p118 = scmp.eq.s32.totalorder %s15, 0
    %p119 = por %p117, %p118
    %p120 = scmp.ne.s32.totalorder %s112, %s114
    %p121 = scmp.eq.s32.totalorder %s20, 1
    %p122 = por %p120, %p121
    %p123 = scmp.ne.s32.totalorder %s114, %s115
    %p124 = scmp.eq.s32.totalorder %s20, 0
    %p125 = por %p123, %p124
    %p126 = scmp.ne.s32.totalorder %s114, %s115
    %p127 = scmp.eq.s32.totalorder %s21, 1
    %p128 = por %p126, %p127
    %p130 = scmp.ne.s32.totalorder %s115, %s129
    %p131 = scmp.eq.s32.totalorder %s21, 0
    %p132 = por %p130, %p131
    %s134 = sadd.s32 %s133, 1
    %p137 = scmp.eq.s32.totalorder %s15, 1
    %p138 = scmp.ne.s32.totalorder %s133, %s135
    %p139 = scmp.eq.s32.totalorder %s15, 0
    %p140 = por %p138, %p139
    %p141 = scmp.ne.s32.totalorder %s133, %s135
    %p142 = scmp.eq.s32.totalorder %s20, 1
    %p143 = por %p141, %p142
    %p144 = scmp.ne.s32.totalorder %s135, %s136
    %p145 = scmp.eq.s32.totalorder %s20, 0
    %p146 = por %p144, %p145
    %p147 = scmp.ne.s32.totalorder %s135, %s136
    %p148 = scmp.eq.s32.totalorder %s21, 1
    %p149 = por %p147, %p148
    %p151 = scmp.ne.s32.totalorder %s136, %s150
    %p152 = scmp.eq.s32.totalorder %s21, 0
    %p153 = por %p151, %p152
    %s155 = sadd.s32 %s154, 1
    %p158 = scmp.eq.s32.totalorder %s15, 1
    %p159 = scmp.ne.s32.totalorder %s154, %s156
    %p160 = scmp.eq.s32.totalorder %s15, 0
    %p161 = por %p159, %p160
    %p162 = scmp.ne.s32.totalorder %s154, %s156
    %p163 = scmp.eq.s32.totalorder %s20, 1
    %p164 = por %p162, %p163
    %p165 = scmp.ne.s32.totalorder %s156, %s157
    %p166 = scmp.eq.s32.totalorder %s20, 0
    %p167 = por %p165, %p166
    %p168 = scmp.ne.s32.totalorder %s156, %s157
    %p169 = scmp.eq.s32.totalorder %s21, 1
    %p170 = por %p168, %p169
    %p172 = scmp.ne.s32.totalorder %s157, %s171
    %p173 = scmp.eq.s32.totalorder %s21, 0
    %p174 = por %p172, %p173
    %s176 = sadd.s32 %s175, 1
    %p179 = scmp.eq.s32.totalorder %s15, 1
    %p180 = scmp.ne.s32.totalorder %s175, %s177
    %p181 = scmp.eq.s32.totalorder %s15, 0
    %p182 = por %p180, %p181
    %p183 = scmp.ne.s32.totalorder %s175, %s177
    %p184 = scmp.eq.s32.totalorder %s20, 1
    %p185 = por %p183, %p184
    %p186 = scmp.ne.s32.totalorder %s177, %s178
    %p187 = scmp.eq.s32.totalorder %s20, 0
    %p188 = por %p186, %p187
    %p189 = scmp.ne.s32.totalorder %s177, %s178
    %p190 = scmp.eq.s32.totalorder %s21, 1
    %p191 = por %p189, %p190
    %p193 = scmp.ne.s32.totalorder %s178, %s192
    %p194 = scmp.eq.s32.totalorder %s21, 0
    %p195 = por %p193, %p194
    %s197 = sadd.s32 %s196, 1
    %p200 = scmp.eq.s32.totalorder %s15, 1
    %p201 = scmp.ne.s32.totalorder %s196, %s198
    %p202 = scmp.eq.s32.totalorder %s15, 0
    %p203 = por %p201, %p202
    %p204 = scmp.ne.s32.totalorder %s196, %s198
    %p205 = scmp.eq.s32.totalorder %s20, 1
    %p206 = por %p204, %p205
    %p207 = scmp.ne.s32.totalorder %s198, %s199
    %p208 = scmp.eq.s32.totalorder %s20, 0
    %p209 = por %p207, %p208
    %p210 = scmp.ne.s32.totalorder %s198, %s199
    %p211 = scmp.eq.s32.totalorder %s21, 1
    %p212 = por %p210, %p211
    %p214 = scmp.ne.s32.totalorder %s199, %s213
    %p215 = scmp.eq.s32.totalorder %s21, 0
    %p216 = por %p214, %p215
    %s217 = ssub.s32 %s15, %s22
    %p218 = scmp.eq.s32.totalorder %s217, 0
    %s220 = sadd.s32 %s219, 1
    %s221 = scalar_select %p218, %s219, %s220
    %p224 = pneg %p218
    %p225 = scmp.eq.s32.totalorder %s15, 1
    %p226 = por %p224, %p225
    %p227 = scmp.ne.s32.totalorder %s219, %s222
    %p228 = scmp.eq.s32.totalorder %s15, 0
    %p229 = por %p227, %p228
    %p230 = scmp.ne.s32.totalorder %s219, %s222
    %p231 = scmp.eq.s32.totalorder %s20, 1
    %p232 = por %p230, %p231
    %p233 = scmp.ne.s32.totalorder %s222, %s223
    %p234 = scmp.eq.s32.totalorder %s20, 0
    %p235 = por %p233, %p234
    %p236 = scmp.ne.s32.totalorder %s222, %s223
    %p237 = scmp.eq.s32.totalorder %s21, 1
    %p238 = por %p236, %p237
    %p240 = scmp.ne.s32.totalorder %s223, %s239
    %p241 = scmp.eq.s32.totalorder %s21, 0
    %p242 = por %p240, %p241
    %p243 = scmp.le.s32.totalorder 1, %s15
    %p244 = scmp.lt.s32.totalorder %s15, 3
    %p245 = pnand %p243, %p244
    %p246 = pneg %p245
    // Predicated region
    $region9: #{depth_refinement_forward.1} parent=5 // pred_check
      _
    $region10: #{depth_refinement_forward.1} parent=5 // pred_check_branch
      %248 = sbr.rel (%p245) target = $region12
    $region11: #{depth_refinement_forward.1} parent=5 // pred_region
      %s249 = ssub.s32 %s15, 1
      // Predicated region
      $region13: #{depth_refinement_forward.1} parent=11 // pred_check
        %p250 = pneg %p62
      $region14: #{depth_refinement_forward.1} parent=11 // pred_check_branch
        %252 = sbr.rel (%p250) target = $region16
      $region15: #{depth_refinement_forward.1} parent=11 // pred_region
        _
      $region16: #{depth_refinement_forward.1} parent=11 // pred_fallthru
        _
      // Predicated region
      $region17: #{depth_refinement_forward.1} parent=11 // pred_check
        %p253 = pneg %p83
      $region18: #{depth_refinement_forward.1} parent=11 // pred_check_branch
        %255 = sbr.rel (%p253) target = $region20
      $region19: #{depth_refinement_forward.1} parent=11 // pred_region
        _
      $region20: #{depth_refinement_forward.1} parent=11 // pred_fallthru
        _
      // Predicated region
      $region21: #{depth_refinement_forward.1} parent=11 // pred_check
        %p256 = pneg %p104
      $region22: #{depth_refinement_forward.1} parent=11 // pred_check_branch
        %258 = sbr.rel (%p256) target = $region24
      $region23: #{depth_refinement_forward.1} parent=11 // pred_region
        _
      $region24: #{depth_refinement_forward.1} parent=11 // pred_fallthru
        _
      // Predicated region
      $region25: #{depth_refinement_forward.1} parent=11 // pred_check
        %p259 = pneg %p125
      $region26: #{depth_refinement_forward.1} parent=11 // pred_check_branch
        %261 = sbr.rel (%p259) target = $region28
      $region27: #{depth_refinement_forward.1} parent=11 // pred_region
        _
      $region28: #{depth_refinement_forward.1} parent=11 // pred_fallthru
        _
      // Predicated region
      $region29: #{depth_refinement_forward.1} parent=11 // pred_check
        %p262 = pneg %p146
      $region30: #{depth_refinement_forward.1} parent=11 // pred_check_branch
        %264 = sbr.rel (%p262) target = $region32
      $region31: #{depth_refinement_forward.1} parent=11 // pred_region
        _
      $region32: #{depth_refinement_forward.1} parent=11 // pred_fallthru
        _
      // Predicated region
      $region33: #{depth_refinement_forward.1} parent=11 // pred_check
        %p265 = pneg %p167
      $region34: #{depth_refinement_forward.1} parent=11 // pred_check_branch
        %267 = sbr.rel (%p265) target = $region36
      $region35: #{depth_refinement_forward.1} parent=11 // pred_region
        _
      $region36: #{depth_refinement_forward.1} parent=11 // pred_fallthru
        _
      // Predicated region
      $region37: #{depth_refinement_forward.1} parent=11 // pred_check
        %p268 = pneg %p188
      $region38: #{depth_refinement_forward.1} parent=11 // pred_check_branch
        %270 = sbr.rel (%p268) target = $region40
      $region39: #{depth_refinement_forward.1} parent=11 // pred_region
        _
      $region40: #{depth_refinement_forward.1} parent=11 // pred_fallthru
        _
      // Predicated region
      $region41: #{depth_refinement_forward.1} parent=11 // pred_check
        %p271 = pneg %p209
      $region42: #{depth_refinement_forward.1} parent=11 // pred_check_branch
        %273 = sbr.rel (%p271) target = $region44
      $region43: #{depth_refinement_forward.1} parent=11 // pred_region
        _
      $region44: #{depth_refinement_forward.1} parent=11 // pred_fallthru
        _
    $region12: #{depth_refinement_forward.1} parent=5 // pred_fallthru
      _
    %p274 = scmp.lt.s32.totalorder %s15, 2
    // Predicated region
    $region45: #{depth_refinement_forward.1} parent=5 // pred_check
      %p275 = pneg %p274
    $region46: #{depth_refinement_forward.1} parent=5 // pred_check_branch
      %277 = sbr.rel (%p275) target = $region48
    $region47: #{depth_refinement_forward.1} parent=5 // pred_region
      // Predicated region
      $region49: #{depth_refinement_forward.1} parent=47 // pred_check
        %p278 = pneg %p35
      $region50: #{depth_refinement_forward.1} parent=47 // pred_check_branch
        %280 = sbr.rel (%p278) target = $region52
      $region51: #{depth_refinement_forward.1} parent=47 // pred_region
        %p281 = scmp.lt.s32.totalorder %s15, 1
        %s282 = scalar_select %p281, %s15, 1
        %s283 = smul.addr %s282, 54
        %s284 = smul.addr %s283, 8
        %s285 = scalar_lea.vmem %s0, %s284
      $region52: #{depth_refinement_forward.1} parent=47 // pred_fallthru
        _
    $region48: #{depth_refinement_forward.1} parent=5 // pred_fallthru
      _
    %p286 = scmp.le.s32.totalorder 1, %s15
    %p287 = scmp.lt.s32.totalorder %s15, 3
    %p288 = pnand %p286, %p287
    %p289 = pneg %p288
    // Predicated region
    $region53: #{depth_refinement_forward.1} parent=5 // pred_check
      _
    $region54: #{depth_refinement_forward.1} parent=5 // pred_check_branch
      %291 = sbr.rel (%p288) target = $region56
    $region55: #{depth_refinement_forward.1} parent=5 // pred_region
      %s292 = ssub.s32 %s15, 1
      %p293 = scmp.lt.s32.totalorder %s20, 1
      %s294 = scalar_select %p293, %s20, 1
      %s295 = smul.addr %s294, 54
      %s296 = smul.addr %s295, 8
      %s297 = scalar_lea.vmem %s0, %s296
      %p298 = pneg %p41
      %p299 = pneg %p38
      %p300 = pneg %p62
      %p301 = pneg %p59
      %p302 = pneg %p83
      %p303 = pneg %p80
      %p304 = pneg %p104
      %p305 = pneg %p101
      %p306 = pneg %p125
      %p307 = pneg %p122
      %p308 = pneg %p146
      %p309 = pneg %p143
      %p310 = pneg %p167
      %p311 = pneg %p164
      %p312 = pneg %p188
      %p313 = pneg %p185
      %p314 = pneg %p209
      %p315 = pneg %p206
      %p316 = pneg %p235
      %p317 = pneg %p232
      %p318 = scmp.lt.s32.totalorder %s20, 1
      %s319 = scalar_select %p318, %s20, 1
      %s320 = smul.addr %s319, 2
      %s321 = smul.addr %s320, 8
      %s322 = scalar_lea.vmem %s9, %s321
      %p323 = scmp.lt.s32.totalorder %s20, 1
      %s324 = scalar_select %p323, %s20, 1
      %s325 = smul.addr %s324, 54
      %s326 = smul.addr %s325, 8
      %s327 = scalar_lea.vmem %s0, %s326
      %p328 = scmp.lt.s32.totalorder %s20, 1
      %s329 = scalar_select %p328, %s20, 1
      %s330 = smul.addr %s329, 2
      %s331 = smul.addr %s330, 8
      %s332 = scalar_lea.vmem %s9, %s331
      %v334 = vld [vmem:[%s327] sm:$0xff]
      %v335 = vld [vmem:[%s327 + $0x8] sm:$0xff]
      %v336 = vld [vmem:[%s327 + $0x18] sm:$0xff]
      %v337 = vld [vmem:[%s327 + $0x20] sm:$0xff]
      %v338 = vld [vmem:[%s327 + $0x30] sm:$0xff]
      %v339 = vld [vmem:[%s327 + $0x38] sm:$0xff]
      %v340 = vld [vmem:[%s327 + $0x48] sm:$0xff]
      %v341 = vld [vmem:[%s327 + $0x50] sm:$0xff]
      %v342 = vld [vmem:[%s327 + $0x60] sm:$0xff]
      %v343 = vld [vmem:[%s327 + $0x68] sm:$0xff]
      %v344 = vld [vmem:[%s327 + $0x78] sm:$0xff]
      %v345 = vld [vmem:[%s327 + $0x80] sm:$0xff]
      %v346 = vld [vmem:[%s327 + $0x90] sm:$0xff]
      %v347 = vld [vmem:[%s327 + $0x98] sm:$0xff]
      %v348 = vld [vmem:[%s327 + $0xa8] sm:$0xff]
      %v349 = vld [vmem:[%s327 + $0xb0] sm:$0xff]
      %v350 = vld [vmem:[%s327 + $0xc0] sm:$0xff]
      %v351 = vld [vmem:[%s327 + $0xc8] sm:$0xff]
      %v352 = vld [vmem:[%s327 + $0xd8] sm:$0xff]
      %v353 = vld [vmem:[%s327 + $0xe0] sm:$0xff]
      %v354 = vld [vmem:[%s327 + $0xf0] sm:$0xff]
      %v355 = vld [vmem:[%s327 + $0xf8] sm:$0xff]
      %v356 = vld [vmem:[%s327 + $0x108] sm:$0xff]
      %v357 = vld [vmem:[%s327 + $0x110] sm:$0xff]
      %v358 = vld [vmem:[%s327 + $0x120] sm:$0xff]
      %v359 = vld [vmem:[%s327 + $0x128] sm:$0xff]
      %v360 = vld [vmem:[%s327 + $0x138] sm:$0xff]
      %v361 = vld [vmem:[%s327 + $0x140] sm:$0xff]
      %v362 = vld [vmem:[%s327 + $0x150] sm:$0xff]
      %v363 = vld [vmem:[%s327 + $0x158] sm:$0xff]
      %v364 = vld [vmem:[%s327 + $0x168] sm:$0xff]
      %v365 = vld [vmem:[%s327 + $0x170] sm:$0xff]
      %v366 = vpack.c.bf16 %v335, %v334
      %v367 = vpack.c.bf16 %v337, %v336
      %v368 = vpack.c.bf16 %v339, %v338
      %v369 = vpack.c.bf16 %v341, %v340
      %v370 = vpack.c.bf16 %v343, %v342
      %v371 = vpack.c.bf16 %v345, %v344
      %v372 = vpack.c.bf16 %v347, %v346
      %v373 = vpack.c.bf16 %v349, %v348
      %v374 = vpack.c.bf16 %v351, %v350
      %v375 = vpack.c.bf16 %v353, %v352
      %v376 = vpack.c.bf16 %v355, %v354
      %v377 = vpack.c.bf16 %v357, %v356
      %v378 = vpack.c.bf16 %v359, %v358
      %v379 = vpack.c.bf16 %v361, %v360
      %v380 = vpack.c.bf16 %v363, %v362
      %v381 = vpack.c.bf16 %v365, %v364
      %v382 = vld [vmem:[%s1] sm:$0xf]
      %v383 = vld [vmem:[%s1 + $0x4] sm:$0xf]
      %v384 = vld [vmem:[%s1 + $0x8] sm:$0xf]
      %v385 = vld [vmem:[%s1 + $0xc] sm:$0xf]
      %v386 = vld [vmem:[%s1 + $0x10] sm:$0xf]
      %v387 = vld [vmem:[%s327 + $0x1] sm:$0xff]
      %v388 = vld [vmem:[%s327 + $0x9] sm:$0xff]
      %v389 = vld [vmem:[%s327 + $0x19] sm:$0xff]
      %v390 = vld [vmem:[%s327 + $0x21] sm:$0xff]
      %v391 = vld [vmem:[%s327 + $0x31] sm:$0xff]
      %v392 = vld [vmem:[%s327 + $0x39] sm:$0xff]
      %v393 = vld [vmem:[%s327 + $0x49] sm:$0xff]
      %v394 = vld [vmem:[%s327 + $0x51] sm:$0xff]
      %v395 = vld [vmem:[%s327 + $0x61] sm:$0xff]
      %v396 = vld [vmem:[%s327 + $0x69] sm:$0xff]
      %v397 = vld [vmem:[%s327 + $0x79] sm:$0xff]
      %v398 = vld [vmem:[%s327 + $0x81] sm:$0xff]
      %v399 = vld [vmem:[%s327 + $0x91] sm:$0xff]
      %v400 = vld [vmem:[%s327 + $0x99] sm:$0xff]
      %v401 = vld [vmem:[%s327 + $0xa9] sm:$0xff]
      %v402 = vld [vmem:[%s327 + $0xb1] sm:$0xff]
      %v403 = vld [vmem:[%s327 + $0xc1] sm:$0xff]
      %v404 = vld [vmem:[%s327 + $0xc9] sm:$0xff]
      %v405 = vld [vmem:[%s327 + $0xd9] sm:$0xff]
      %v406 = vld [vmem:[%s327 + $0xe1] sm:$0xff]
      %v407 = vld [vmem:[%s327 + $0xf1] sm:$0xff]
      %v408 = vld [vmem:[%s327 + $0xf9] sm:$0xff]
      %v409 = vld [vmem:[%s327 + $0x109] sm:$0xff]
      %v410 = vld [vmem:[%s327 + $0x111] sm:$0xff]
      %v411 = vld [vmem:[%s327 + $0x121] sm:$0xff]
      %v412 = vld [vmem:[%s327 + $0x129] sm:$0xff]
      %v413 = vld [vmem:[%s327 + $0x139] sm:$0xff]
      %v414 = vld [vmem:[%s327 + $0x141] sm:$0xff]
      %v415 = vld [vmem:[%s327 + $0x151] sm:$0xff]
      %v416 = vld [vmem:[%s327 + $0x159] sm:$0xff]
      %v417 = vld [vmem:[%s327 + $0x169] sm:$0xff]
      %v418 = vld [vmem:[%s327 + $0x171] sm:$0xff]
      %v419 = vpack.c.bf16 %v388, %v387
      %v420 = vpack.c.bf16 %v390, %v389
      %v421 = vpack.c.bf16 %v392, %v391
      %v422 = vpack.c.bf16 %v394, %v393
      %v423 = vpack.c.bf16 %v396, %v395
      %v424 = vpack.c.bf16 %v398, %v397
      %v425 = vpack.c.bf16 %v400, %v399
      %v426 = vpack.c.bf16 %v402, %v401
      %v427 = vpack.c.bf16 %v404, %v403
      %v428 = vpack.c.bf16 %v406, %v405
      %v429 = vpack.c.bf16 %v408, %v407
      %v430 = vpack.c.bf16 %v410, %v409
      %v431 = vpack.c.bf16 %v412, %v411
      %v432 = vpack.c.bf16 %v414, %v413
      %v433 = vpack.c.bf16 %v416, %v415
      %v434 = vpack.c.bf16 %v418, %v417
      %s435 = scalar_lea.vmem %s1, 20
      %v436 = vld [vmem:[%s435] sm:$0xf]
      %v437 = vld [vmem:[%s435 + $0x4] sm:$0xf]
      %v438 = vld [vmem:[%s435 + $0x8] sm:$0xf]
      %v439 = vld [vmem:[%s435 + $0xc] sm:$0xf]
      %v440 = vld [vmem:[%s435 + $0x10] sm:$0xf]
      %v446 = vunpack.c.l.b16 %v436
      %v447 = vunpack.c.l.b16 %v437
      %v448 = vunpack.c.l.b16 %v438
      %v449 = vunpack.c.l.b16 %v439
      %v450 = vunpack.c.l.b16 %v440
      %v451 = vpack.c.b16 %v447, %v446
      %v452 = vpack.c.b16 %v449, %v448
      %v453 = vpack.c.b16 %v450, %v450
      %vm456 = vcmask 326656
      %v458 = vsel %vm456, %v419, 0
      %v461 = vsel %vm456, %v420, 0
      %v464 = vsel %vm456, %v421, 0
      %v467 = vsel %vm456, %v422, 0
      %v470 = vsel %vm456, %v423, 0
      %v473 = vsel %vm456, %v424, 0
      %v476 = vsel %vm456, %v425, 0
      %v479 = vsel %vm456, %v426, 0
      %v482 = vsel %vm456, %v427, 0
      %v485 = vsel %vm456, %v428, 0
      %v488 = vsel %vm456, %v429, 0
      %v491 = vsel %vm456, %v430, 0
      %v494 = vsel %vm456, %v431, 0
      %v497 = vsel %vm456, %v432, 0
      %v500 = vsel %vm456, %v433, 0
      %v503 = vsel %vm456, %v434, 0
      %vm505 = vcmask 1043456
      %v507 = vsel %vm505, %v453, 0
      %509 = vmatprep.subr.bf16.mxu0 0
      %510 = vmatpush1.bf16.msra.mxu0 0
      %511 = vmatprep.subr.bf16.mxu0 0
      %512 = vmatpush1.bf16.msra.mxu0 0
      %513 = vmatprep.subr.bf16.mxu0 0
      %514 = vmatpush1.bf16.msra.mxu0 0
      %515 = vmatprep.subr.bf16.mxu0 0
      %516 = vmatpush1.bf16.msra.mxu0 0
      %517 = vmatprep.subr.bf16.mxu0 0
      %518 = vmatpush1.bf16.msra.mxu0 0
      %519 = vmatprep.subr.bf16.mxu0 0
      %520 = vmatpush1.bf16.msra.mxu0 %v507
      %521 = vmatprep.subr.bf16.mxu0 0
      %522 = vmatpush1.bf16.msra.mxu0 %v452
      %523 = vmatprep.subr.bf16.mxu0 0
      %524 = vmatpush1.bf16.msra.mxu0 %v451
      %525 = vmatprep.subr.bf16.mxu0 0
      %526 = vmatpush2.bf16.msra.mxu0 0
      %527 = vmatprep.subr.bf16.mxu0 0
      %528 = vmatpush2.bf16.msra.mxu0 0
      %529 = vmatprep.subr.bf16.mxu0 0
      %530 = vmatpush2.bf16.msra.mxu0 0
      %531 = vmatprep.subr.bf16.mxu0 0
      %532 = vmatpush2.bf16.msra.mxu0 0
      %533 = vmatprep.subr.bf16.mxu0 0
      %534 = vmatpush2.bf16.msra.mxu0 0
      %535 = vmatprep.subr.bf16.mxu0 0
      %536 = vmatpush2.bf16.msra.mxu0 0
      %537 = vmatprep.subr.bf16.mxu0 0
      %538 = vmatpush2.bf16.msra.mxu0 0
      %539 = vmatprep.subr.bf16.mxu0 0
      %540 = vmatpush2.bf16.msra.mxu0 0
      %541 = vmatprep.mubr.bf16.mxu0 0
      %542 = vmatmul.mubr.bf16.gmra.mxu0 %v458
      %v543 = vpop.f32.mrf.mxu0
      %v544 = vadd.f32 0.0, %v543
      %v545 = vpop.f32.mrf.mxu0
      %v546 = vpop.f32.mrf.mxu0
      %v547 = vadd.f32 0.0, %v546
      %v548 = vpop.f32.mrf.mxu0
      %549 = vmatprep.mubr.bf16.mxu0 0
      %550 = vmatmul.mubr.bf16.gmra.mxu0 %v461
      %v551 = vpop.f32.mrf.mxu0
      %v552 = vadd.f32 0.0, %v551
      %v553 = vpop.f32.mrf.mxu0
      %v554 = vpop.f32.mrf.mxu0
      %v555 = vadd.f32 0.0, %v554
      %v556 = vpop.f32.mrf.mxu0
      %557 = vmatprep.mubr.bf16.mxu0 0
      %558 = vmatmul.mubr.bf16.gmra.mxu0 %v464
      %v559 = vpop.f32.mrf.mxu0
      %v560 = vadd.f32 0.0, %v559
      %v561 = vpop.f32.mrf.mxu0
      %v562 = vpop.f32.mrf.mxu0
      %v563 = vadd.f32 0.0, %v562
      %v564 = vpop.f32.mrf.mxu0
      %565 = vmatprep.mubr.bf16.mxu0 0
      %566 = vmatmul.mubr.bf16.gmra.mxu0 %v467
      %v567 = vpop.f32.mrf.mxu0
      %v568 = vadd.f32 0.0, %v567
      %v569 = vpop.f32.mrf.mxu0
      %v570 = vpop.f32.mrf.mxu0
      %v571 = vadd.f32 0.0, %v570
      %v572 = vpop.f32.mrf.mxu0
      %573 = vmatprep.mubr.bf16.mxu0 0
      %574 = vmatmul.mubr.bf16.gmra.mxu0 %v470
      %v575 = vpop.f32.mrf.mxu0
      %v576 = vadd.f32 0.0, %v575
      %v577 = vpop.f32.mrf.mxu0
      %v578 = vpop.f32.mrf.mxu0
      %v579 = vadd.f32 0.0, %v578
      %v580 = vpop.f32.mrf.mxu0
      %581 = vmatprep.mubr.bf16.mxu0 0
      %582 = vmatmul.mubr.bf16.gmra.mxu0 %v473
      %v583 = vpop.f32.mrf.mxu0
      %v584 = vadd.f32 0.0, %v583
      %v585 = vpop.f32.mrf.mxu0
      %v586 = vpop.f32.mrf.mxu0
      %v587 = vadd.f32 0.0, %v586
      %v588 = vpop.f32.mrf.mxu0
      %589 = vmatprep.mubr.bf16.mxu0 0
      %590 = vmatmul.mubr.bf16.gmra.mxu0 %v476
      %v591 = vpop.f32.mrf.mxu0
      %v592 = vadd.f32 0.0, %v591
      %v593 = vpop.f32.mrf.mxu0
      %v594 = vpop.f32.mrf.mxu0
      %v595 = vadd.f32 0.0, %v594
      %v596 = vpop.f32.mrf.mxu0
      %597 = vmatprep.mubr.bf16.mxu0 0
      %598 = vmatmul.mubr.bf16.gmra.mxu0 %v479
      %v599 = vpop.f32.mrf.mxu0
      %v600 = vadd.f32 0.0, %v599
      %v601 = vpop.f32.mrf.mxu0
      %v602 = vpop.f32.mrf.mxu0
      %v603 = vadd.f32 0.0, %v602
      %v604 = vpop.f32.mrf.mxu0
      %605 = vmatprep.mubr.bf16.mxu0 0
      %606 = vmatmul.mubr.bf16.gmra.mxu0 %v482
      %v607 = vpop.f32.mrf.mxu0
      %v608 = vadd.f32 0.0, %v607
      %v609 = vpop.f32.mrf.mxu0
      %v610 = vpop.f32.mrf.mxu0
      %v611 = vadd.f32 0.0, %v610
      %v612 = vpop.f32.mrf.mxu0
      %613 = vmatprep.mubr.bf16.mxu0 0
      %614 = vmatmul.mubr.bf16.gmra.mxu0 %v485
      %v615 = vpop.f32.mrf.mxu0
      %v616 = vadd.f32 0.0, %v615
      %v617 = vpop.f32.mrf.mxu0
      %v618 = vpop.f32.mrf.mxu0
      %v619 = vadd.f32 0.0, %v618
      %v620 = vpop.f32.mrf.mxu0
      %621 = vmatprep.mubr.bf16.mxu0 0
      %622 = vmatmul.mubr.bf16.gmra.mxu0 %v488
      %v623 = vpop.f32.mrf.mxu0
      %v624 = vadd.f32 0.0, %v623
      %v625 = vpop.f32.mrf.mxu0
      %v626 = vpop.f32.mrf.mxu0
      %v627 = vadd.f32 0.0, %v626
      %v628 = vpop.f32.mrf.mxu0
      %629 = vmatprep.mubr.bf16.mxu0 0
      %630 = vmatmul.mubr.bf16.gmra.mxu0 %v491
      %v631 = vpop.f32.mrf.mxu0
      %v632 = vadd.f32 0.0, %v631
      %v633 = vpop.f32.mrf.mxu0
      %v634 = vpop.f32.mrf.mxu0
      %v635 = vadd.f32 0.0, %v634
      %v636 = vpop.f32.mrf.mxu0
      %637 = vmatprep.mubr.bf16.mxu0 0
      %638 = vmatmul.mubr.bf16.gmra.mxu0 %v494
      %v639 = vpop.f32.mrf.mxu0
      %v640 = vadd.f32 0.0, %v639
      %v641 = vpop.f32.mrf.mxu0
      %v642 = vpop.f32.mrf.mxu0
      %v643 = vadd.f32 0.0, %v642
      %v644 = vpop.f32.mrf.mxu0
      %645 = vmatprep.mubr.bf16.mxu0 0
      %646 = vmatmul.mubr.bf16.gmra.mxu0 %v497
      %v647 = vpop.f32.mrf.mxu0
      %v648 = vadd.f32 0.0, %v647
      %v649 = vpop.f32.mrf.mxu0
      %v650 = vpop.f32.mrf.mxu0
      %v651 = vadd.f32 0.0, %v650
      %v652 = vpop.f32.mrf.mxu0
      %653 = vmatprep.mubr.bf16.mxu0 0
      %654 = vmatmul.mubr.bf16.gmra.mxu0 %v500
      %v655 = vpop.f32.mrf.mxu0
      %v656 = vadd.f32 0.0, %v655
      %v657 = vpop.f32.mrf.mxu0
      %v658 = vpop.f32.mrf.mxu0
      %v659 = vadd.f32 0.0, %v658
      %v660 = vpop.f32.mrf.mxu0
      %661 = vmatprep.mubr.bf16.mxu0 0
      %662 = vmatmul.mubr.bf16.gmra.mxu0 %v503
      %v663 = vpop.f32.mrf.mxu0
      %v664 = vadd.f32 0.0, %v663
      %v665 = vpop.f32.mrf.mxu0
      %v666 = vpop.f32.mrf.mxu0
      %v667 = vadd.f32 0.0, %v666
      %v668 = vpop.f32.mrf.mxu0
      %669 = vdwg.mxu0
      %v675 = vunpack.c.l.b16 %v382
      %v676 = vunpack.c.l.b16 %v383
      %v677 = vunpack.c.l.b16 %v384
      %v678 = vunpack.c.l.b16 %v385
      %v679 = vunpack.c.l.b16 %v386
      %v680 = vpack.c.b16 %v676, %v675
      %v681 = vpack.c.b16 %v678, %v677
      %v682 = vpack.c.b16 %v679, %v679
      %v686 = vsel %vm456, %v366, 0
      %v689 = vsel %vm456, %v367, 0
      %v692 = vsel %vm456, %v368, 0
      %v695 = vsel %vm456, %v369, 0
      %v698 = vsel %vm456, %v370, 0
      %v701 = vsel %vm456, %v371, 0
      %v704 = vsel %vm456, %v372, 0
      %v707 = vsel %vm456, %v373, 0
      %v710 = vsel %vm456, %v374, 0
      %v713 = vsel %vm456, %v375, 0
      %v716 = vsel %vm456, %v376, 0
      %v719 = vsel %vm456, %v377, 0
      %v722 = vsel %vm456, %v378, 0
      %v725 = vsel %vm456, %v379, 0
      %v728 = vsel %vm456, %v380, 0
      %v731 = vsel %vm456, %v381, 0
      %v734 = vsel %vm505, %v682, 0
      %736 = vmatprep.subr.bf16.mxu0 0
      %737 = vmatpush1.bf16.msra.mxu0 0
      %738 = vmatprep.subr.bf16.mxu0 0
      %739 = vmatpush1.bf16.msra.mxu0 0
      %740 = vmatprep.subr.bf16.mxu0 0
      %741 = vmatpush1.bf16.msra.mxu0 0
      %742 = vmatprep.subr.bf16.mxu0 0
      %743 = vmatpush1.bf16.msra.mxu0 0
      %744 = vmatprep.subr.bf16.mxu0 0
      %745 = vmatpush1.bf16.msra.mxu0 0
      %746 = vmatprep.subr.bf16.mxu0 0
      %747 = vmatpush1.bf16.msra.mxu0 %v734
      %748 = vmatprep.subr.bf16.mxu0 0
      %749 = vmatpush1.bf16.msra.mxu0 %v681
      %750 = vmatprep.subr.bf16.mxu0 0
      %751 = vmatpush1.bf16.msra.mxu0 %v680
      %752 = vmatprep.subr.bf16.mxu0 0
      %753 = vmatpush2.bf16.msra.mxu0 0
      %754 = vmatprep.subr.bf16.mxu0 0
      %755 = vmatpush2.bf16.msra.mxu0 0
      %756 = vmatprep.subr.bf16.mxu0 0
      %757 = vmatpush2.bf16.msra.mxu0 0
      %758 = vmatprep.subr.bf16.mxu0 0
      %759 = vmatpush2.bf16.msra.mxu0 0
      %760 = vmatprep.subr.bf16.mxu0 0
      %761 = vmatpush2.bf16.msra.mxu0 0
      %762 = vmatprep.subr.bf16.mxu0 0
      %763 = vmatpush2.bf16.msra.mxu0 0
      %764 = vmatprep.subr.bf16.mxu0 0
      %765 = vmatpush2.bf16.msra.mxu0 0
      %766 = vmatprep.subr.bf16.mxu0 0
      %767 = vmatpush2.bf16.msra.mxu0 0
      %768 = vmatprep.mubr.bf16.mxu0 0
      %769 = vmatmul.mubr.bf16.gmra.mxu0 %v686
      %v770 = vpop.f32.mrf.mxu0
      %v771 = vadd.f32 %v544, %v770
      %v772 = vpop.f32.mrf.mxu0
      %v773 = vpop.f32.mrf.mxu0
      %v774 = vadd.f32 %v547, %v773
      %v775 = vpop.f32.mrf.mxu0
      %776 = vmatprep.mubr.bf16.mxu0 0
      %777 = vmatmul.mubr.bf16.gmra.mxu0 %v689
      %v778 = vpop.f32.mrf.mxu0
      %v779 = vadd.f32 %v552, %v778
      %v780 = vpop.f32.mrf.mxu0
      %v781 = vpop.f32.mrf.mxu0
      %v782 = vadd.f32 %v555, %v781
      %v783 = vpop.f32.mrf.mxu0
      %784 = vmatprep.mubr.bf16.mxu0 0
      %785 = vmatmul.mubr.bf16.gmra.mxu0 %v692
      %v786 = vpop.f32.mrf.mxu0
      %v787 = vadd.f32 %v560, %v786
      %v788 = vpop.f32.mrf.mxu0
      %v789 = vpop.f32.mrf.mxu0
      %v790 = vadd.f32 %v563, %v789
      %v791 = vpop.f32.mrf.mxu0
      %792 = vmatprep.mubr.bf16.mxu0 0
      %793 = vmatmul.mubr.bf16.gmra.mxu0 %v695
      %v794 = vpop.f32.mrf.mxu0
      %v795 = vadd.f32 %v568, %v794
      %v796 = vpop.f32.mrf.mxu0
      %v797 = vpop.f32.mrf.mxu0
      %v798 = vadd.f32 %v571, %v797
      %v799 = vpop.f32.mrf.mxu0
      %800 = vmatprep.mubr.bf16.mxu0 0
      %801 = vmatmul.mubr.bf16.gmra.mxu0 %v698
      %v802 = vpop.f32.mrf.mxu0
      %v803 = vadd.f32 %v576, %v802
      %v804 = vpop.f32.mrf.mxu0
      %v805 = vpop.f32.mrf.mxu0
      %v806 = vadd.f32 %v579, %v805
      %v807 = vpop.f32.mrf.mxu0
      %808 = vmatprep.mubr.bf16.mxu0 0
      %809 = vmatmul.mubr.bf16.gmra.mxu0 %v701
      %v810 = vpop.f32.mrf.mxu0
      %v811 = vadd.f32 %v584, %v810
      %v812 = vpop.f32.mrf.mxu0
      %v813 = vpop.f32.mrf.mxu0
      %v814 = vadd.f32 %v587, %v813
      %v815 = vpop.f32.mrf.mxu0
      %816 = vmatprep.mubr.bf16.mxu0 0
      %817 = vmatmul.mubr.bf16.gmra.mxu0 %v704
      %v818 = vpop.f32.mrf.mxu0
      %v819 = vadd.f32 %v592, %v818
      %v820 = vpop.f32.mrf.mxu0
      %v821 = vpop.f32.mrf.mxu0
      %v822 = vadd.f32 %v595, %v821
      %v823 = vpop.f32.mrf.mxu0
      %824 = vmatprep.mubr.bf16.mxu0 0
      %825 = vmatmul.mubr.bf16.gmra.mxu0 %v707
      %v826 = vpop.f32.mrf.mxu0
      %v827 = vadd.f32 %v600, %v826
      %v828 = vpop.f32.mrf.mxu0
      %v829 = vpop.f32.mrf.mxu0
      %v830 = vadd.f32 %v603, %v829
      %v831 = vpop.f32.mrf.mxu0
      %832 = vmatprep.mubr.bf16.mxu0 0
      %833 = vmatmul.mubr.bf16.gmra.mxu0 %v710
      %v834 = vpop.f32.mrf.mxu0
      %v835 = vadd.f32 %v608, %v834
      %v836 = vpop.f32.mrf.mxu0
      %v837 = vpop.f32.mrf.mxu0
      %v838 = vadd.f32 %v611, %v837
      %v839 = vpop.f32.mrf.mxu0
      %840 = vmatprep.mubr.bf16.mxu0 0
      %841 = vmatmul.mubr.bf16.gmra.mxu0 %v713
      %v842 = vpop.f32.mrf.mxu0
      %v843 = vadd.f32 %v616, %v842
      %v844 = vpop.f32.mrf.mxu0
      %v845 = vpop.f32.mrf.mxu0
      %v846 = vadd.f32 %v619, %v845
      %v847 = vpop.f32.mrf.mxu0
      %848 = vmatprep.mubr.bf16.mxu0 0
      %849 = vmatmul.mubr.bf16.gmra.mxu0 %v716
      %v850 = vpop.f32.mrf.mxu0
      %v851 = vadd.f32 %v624, %v850
      %v852 = vpop.f32.mrf.mxu0
      %v853 = vpop.f32.mrf.mxu0
      %v854 = vadd.f32 %v627, %v853
      %v855 = vpop.f32.mrf.mxu0
      %856 = vmatprep.mubr.bf16.mxu0 0
      %857 = vmatmul.mubr.bf16.gmra.mxu0 %v719
      %v858 = vpop.f32.mrf.mxu0
      %v859 = vadd.f32 %v632, %v858
      %v860 = vpop.f32.mrf.mxu0
      %v861 = vpop.f32.mrf.mxu0
      %v862 = vadd.f32 %v635, %v861
      %v863 = vpop.f32.mrf.mxu0
      %864 = vmatprep.mubr.bf16.mxu0 0
      %865 = vmatmul.mubr.bf16.gmra.mxu0 %v722
      %v866 = vpop.f32.mrf.mxu0
      %v867 = vadd.f32 %v640, %v866
      %v868 = vpop.f32.mrf.mxu0
      %v869 = vpop.f32.mrf.mxu0
      %v870 = vadd.f32 %v643, %v869
      %v871 = vpop.f32.mrf.mxu0
      %872 = vmatprep.mubr.bf16.mxu0 0
      %873 = vmatmul.mubr.bf16.gmra.mxu0 %v725
      %v874 = vpop.f32.mrf.mxu0
      %v875 = vadd.f32 %v648, %v874
      %v876 = vpop.f32.mrf.mxu0
      %v877 = vpop.f32.mrf.mxu0
      %v878 = vadd.f32 %v651, %v877
      %v879 = vpop.f32.mrf.mxu0
      %880 = vmatprep.mubr.bf16.mxu0 0
      %881 = vmatmul.mubr.bf16.gmra.mxu0 %v728
      %v882 = vpop.f32.mrf.mxu0
      %v883 = vadd.f32 %v656, %v882
      %v884 = vpop.f32.mrf.mxu0
      %v885 = vpop.f32.mrf.mxu0
      %v886 = vadd.f32 %v659, %v885
      %v887 = vpop.f32.mrf.mxu0
      %888 = vmatprep.mubr.bf16.mxu0 0
      %889 = vmatmul.mubr.bf16.gmra.mxu0 %v731
      %v890 = vpop.f32.mrf.mxu0
      %v891 = vadd.f32 %v664, %v890
      %v892 = vpop.f32.mrf.mxu0
      %v893 = vpop.f32.mrf.mxu0
      %v894 = vadd.f32 %v667, %v893
      %v895 = vpop.f32.mrf.mxu0
      %896 = vdwg.mxu0
      %v897 = vld [vmem:[%s327 + $0x2] sm:$0xff]
      %v898 = vld [vmem:[%s327 + $0xa] sm:$0xff]
      %v899 = vld [vmem:[%s327 + $0x1a] sm:$0xff]
      %v900 = vld [vmem:[%s327 + $0x22] sm:$0xff]
      %v901 = vld [vmem:[%s327 + $0x32] sm:$0xff]
      %v902 = vld [vmem:[%s327 + $0x3a] sm:$0xff]
      %v903 = vld [vmem:[%s327 + $0x4a] sm:$0xff]
      %v904 = vld [vmem:[%s327 + $0x52] sm:$0xff]
      %v905 = vld [vmem:[%s327 + $0x62] sm:$0xff]
      %v906 = vld [vmem:[%s327 + $0x6a] sm:$0xff]
      %v907 = vld [vmem:[%s327 + $0x7a] sm:$0xff]
      %v908 = vld [vmem:[%s327 + $0x82] sm:$0xff]
      %v909 = vld [vmem:[%s327 + $0x92] sm:$0xff]
      %v910 = vld [vmem:[%s327 + $0x9a] sm:$0xff]
      %v911 = vld [vmem:[%s327 + $0xaa] sm:$0xff]
      %v912 = vld [vmem:[%s327 + $0xb2] sm:$0xff]
      %v913 = vld [vmem:[%s327 + $0xc2] sm:$0xff]
      %v914 = vld [vmem:[%s327 + $0xca] sm:$0xff]
      %v915 = vld [vmem:[%s327 + $0xda] sm:$0xff]
      %v916 = vld [vmem:[%s327 + $0xe2] sm:$0xff]
      %v917 = vld [vmem:[%s327 + $0xf2] sm:$0xff]
      %v918 = vld [vmem:[%s327 + $0xfa] sm:$0xff]
      %v919 = vld [vmem:[%s327 + $0x10a] sm:$0xff]
      %v920 = vld [vmem:[%s327 + $0x112] sm:$0xff]
      %v921 = vld [vmem:[%s327 + $0x122] sm:$0xff]
      %v922 = vld [vmem:[%s327 + $0x12a] sm:$0xff]
      %v923 = vld [vmem:[%s327 + $0x13a] sm:$0xff]
      %v924 = vld [vmem:[%s327 + $0x142] sm:$0xff]
      %v925 = vld [vmem:[%s327 + $0x152] sm:$0xff]
      %v926 = vld [vmem:[%s327 + $0x15a] sm:$0xff]
      %v927 = vld [vmem:[%s327 + $0x16a] sm:$0xff]
      %v928 = vld [vmem:[%s327 + $0x172] sm:$0xff]
      %v929 = vpack.c.bf16 %v898, %v897
      %v930 = vpack.c.bf16 %v900, %v899
      %v931 = vpack.c.bf16 %v902, %v901
      %v932 = vpack.c.bf16 %v904, %v903
      %v933 = vpack.c.bf16 %v906, %v905
      %v934 = vpack.c.bf16 %v908, %v907
      %v935 = vpack.c.bf16 %v910, %v909
      %v936 = vpack.c.bf16 %v912, %v911
      %v937 = vpack.c.bf16 %v914, %v913
      %v938 = vpack.c.bf16 %v916, %v915
      %v939 = vpack.c.bf16 %v918, %v917
      %v940 = vpack.c.bf16 %v920, %v919
      %v941 = vpack.c.bf16 %v922, %v921
      %v942 = vpack.c.bf16 %v924, %v923
      %v943 = vpack.c.bf16 %v926, %v925
      %v944 = vpack.c.bf16 %v928, %v927
      %s945 = scalar_lea.vmem %s1, 40
      %v946 = vld [vmem:[%s945] sm:$0xf]
      %v947 = vld [vmem:[%s945 + $0x4] sm:$0xf]
      %v948 = vld [vmem:[%s945 + $0x8] sm:$0xf]
      %v949 = vld [vmem:[%s945 + $0xc] sm:$0xf]
      %v950 = vld [vmem:[%s945 + $0x10] sm:$0xf]
      %v956 = vunpack.c.l.b16 %v946
      %v957 = vunpack.c.l.b16 %v947
      %v958 = vunpack.c.l.b16 %v948
      %v959 = vunpack.c.l.b16 %v949
      %v960 = vunpack.c.l.b16 %v950
      %v961 = vpack.c.b16 %v957, %v956
      %v962 = vpack.c.b16 %v959, %v958
      %v963 = vpack.c.b16 %v960, %v960
      %v967 = vsel %vm456, %v929, 0
      %v970 = vsel %vm456, %v930, 0
      %v973 = vsel %vm456, %v931, 0
      %v976 = vsel %vm456, %v932, 0
      %v979 = vsel %vm456, %v933, 0
      %v982 = vsel %vm456, %v934, 0
      %v985 = vsel %vm456, %v935, 0
      %v988 = vsel %vm456, %v936, 0
      %v991 = vsel %vm456, %v937, 0
      %v994 = vsel %vm456, %v938, 0
      %v997 = vsel %vm456, %v939, 0
      %v1000 = vsel %vm456, %v940, 0
      %v1003 = vsel %vm456, %v941, 0
      %v1006 = vsel %vm456, %v942, 0
      %v1009 = vsel %vm456, %v943, 0
      %v1012 = vsel %vm456, %v944, 0
      %v1015 = vsel %vm505, %v963, 0
      %1017 = vmatprep.subr.bf16.mxu0 0
      %1018 = vmatpush1.bf16.msra.mxu0 0
      %1019 = vmatprep.subr.bf16.mxu0 0
      %1020 = vmatpush1.bf16.msra.mxu0 0
      %1021 = vmatprep.subr.bf16.mxu0 0
      %1022 = vmatpush1.bf16.msra.mxu0 0
      %1023 = vmatprep.subr.bf16.mxu0 0
      %1024 = vmatpush1.bf16.msra.mxu0 0
      %1025 = vmatprep.subr.bf16.mxu0 0
      %1026 = vmatpush1.bf16.msra.mxu0 0
      %1027 = vmatprep.subr.bf16.mxu0 0
      %1028 = vmatpush1.bf16.msra.mxu0 %v1015
      %1029 = vmatprep.subr.bf16.mxu0 0
      %1030 = vmatpush1.bf16.msra.mxu0 %v962
      %1031 = vmatprep.subr.bf16.mxu0 0
      %1032 = vmatpush1.bf16.msra.mxu0 %v961
      %1033 = vmatprep.subr.bf16.mxu0 0
      %1034 = vmatpush2.bf16.msra.mxu0 0
      %1035 = vmatprep.subr.bf16.mxu0 0
      %1036 = vmatpush2.bf16.msra.mxu0 0
      %1037 = vmatprep.subr.bf16.mxu0 0
      %1038 = vmatpush2.bf16.msra.mxu0 0
      %1039 = vmatprep.subr.bf16.mxu0 0
      %1040 = vmatpush2.bf16.msra.mxu0 0
      %1041 = vmatprep.subr.bf16.mxu0 0
      %1042 = vmatpush2.bf16.msra.mxu0 0
      %1043 = vmatprep.subr.bf16.mxu0 0
      %1044 = vmatpush2.bf16.msra.mxu0 0
      %1045 = vmatprep.subr.bf16.mxu0 0
      %1046 = vmatpush2.bf16.msra.mxu0 0
      %1047 = vmatprep.subr.bf16.mxu0 0
      %1048 = vmatpush2.bf16.msra.mxu0 0
      %1049 = vmatprep.mubr.bf16.mxu0 0
      %1050 = vmatmul.mubr.bf16.gmra.mxu0 %v967
      %v1051 = vpop.f32.mrf.mxu0
      %v1052 = vadd.f32 0.0, %v1051
      %v1053 = vpop.f32.mrf.mxu0
      %v1054 = vpop.f32.mrf.mxu0
      %v1055 = vadd.f32 0.0, %v1054
      %v1056 = vpop.f32.mrf.mxu0
      %1057 = vmatprep.mubr.bf16.mxu0 0
      %1058 = vmatmul.mubr.bf16.gmra.mxu0 %v970
      %v1059 = vpop.f32.mrf.mxu0
      %v1060 = vadd.f32 0.0, %v1059
      %v1061 = vpop.f32.mrf.mxu0
      %v1062 = vpop.f32.mrf.mxu0
      %v1063 = vadd.f32 0.0, %v1062
      %v1064 = vpop.f32.mrf.mxu0
      %1065 = vmatprep.mubr.bf16.mxu0 0
      %1066 = vmatmul.mubr.bf16.gmra.mxu0 %v973
      %v1067 = vpop.f32.mrf.mxu0
      %v1068 = vadd.f32 0.0, %v1067
      %v1069 = vpop.f32.mrf.mxu0
      %v1070 = vpop.f32.mrf.mxu0
      %v1071 = vadd.f32 0.0, %v1070
      %v1072 = vpop.f32.mrf.mxu0
      %1073 = vmatprep.mubr.bf16.mxu0 0
      %1074 = vmatmul.mubr.bf16.gmra.mxu0 %v976
      %v1075 = vpop.f32.mrf.mxu0
      %v1076 = vadd.f32 0.0, %v1075
      %v1077 = vpop.f32.mrf.mxu0
      %v1078 = vpop.f32.mrf.mxu0
      %v1079 = vadd.f32 0.0, %v1078
      %v1080 = vpop.f32.mrf.mxu0
      %1081 = vmatprep.mubr.bf16.mxu0 0
      %1082 = vmatmul.mubr.bf16.gmra.mxu0 %v979
      %v1083 = vpop.f32.mrf.mxu0
      %v1084 = vadd.f32 0.0, %v1083
      %v1085 = vpop.f32.mrf.mxu0
      %v1086 = vpop.f32.mrf.mxu0
      %v1087 = vadd.f32 0.0, %v1086
      %v1088 = vpop.f32.mrf.mxu0
      %1089 = vmatprep.mubr.bf16.mxu0 0
      %1090 = vmatmul.mubr.bf16.gmra.mxu0 %v982
      %v1091 = vpop.f32.mrf.mxu0
      %v1092 = vadd.f32 0.0, %v1091
      %v1093 = vpop.f32.mrf.mxu0
      %v1094 = vpop.f32.mrf.mxu0
      %v1095 = vadd.f32 0.0, %v1094
      %v1096 = vpop.f32.mrf.mxu0
      %1097 = vmatprep.mubr.bf16.mxu0 0
      %1098 = vmatmul.mubr.bf16.gmra.mxu0 %v985
      %v1099 = vpop.f32.mrf.mxu0
      %v1100 = vadd.f32 0.0, %v1099
      %v1101 = vpop.f32.mrf.mxu0
      %v1102 = vpop.f32.mrf.mxu0
      %v1103 = vadd.f32 0.0, %v1102
      %v1104 = vpop.f32.mrf.mxu0
      %1105 = vmatprep.mubr.bf16.mxu0 0
      %1106 = vmatmul.mubr.bf16.gmra.mxu0 %v988
      %v1107 = vpop.f32.mrf.mxu0
      %v1108 = vadd.f32 0.0, %v1107
      %v1109 = vpop.f32.mrf.mxu0
      %v1110 = vpop.f32.mrf.mxu0
      %v1111 = vadd.f32 0.0, %v1110
      %v1112 = vpop.f32.mrf.mxu0
      %1113 = vmatprep.mubr.bf16.mxu0 0
      %1114 = vmatmul.mubr.bf16.gmra.mxu0 %v991
      %v1115 = vpop.f32.mrf.mxu0
      %v1116 = vadd.f32 0.0, %v1115
      %v1117 = vpop.f32.mrf.mxu0
      %v1118 = vpop.f32.mrf.mxu0
      %v1119 = vadd.f32 0.0, %v1118
      %v1120 = vpop.f32.mrf.mxu0
      %1121 = vmatprep.mubr.bf16.mxu0 0
      %1122 = vmatmul.mubr.bf16.gmra.mxu0 %v994
      %v1123 = vpop.f32.mrf.mxu0
      %v1124 = vadd.f32 0.0, %v1123
      %v1125 = vpop.f32.mrf.mxu0
      %v1126 = vpop.f32.mrf.mxu0
      %v1127 = vadd.f32 0.0, %v1126
      %v1128 = vpop.f32.mrf.mxu0
      %1129 = vmatprep.mubr.bf16.mxu0 0
      %1130 = vmatmul.mubr.bf16.gmra.mxu0 %v997
      %v1131 = vpop.f32.mrf.mxu0
      %v1132 = vadd.f32 0.0, %v1131
      %v1133 = vpop.f32.mrf.mxu0
      %v1134 = vpop.f32.mrf.mxu0
      %v1135 = vadd.f32 0.0, %v1134
      %v1136 = vpop.f32.mrf.mxu0
      %1137 = vmatprep.mubr.bf16.mxu0 0
      %1138 = vmatmul.mubr.bf16.gmra.mxu0 %v1000
      %v1139 = vpop.f32.mrf.mxu0
      %v1140 = vadd.f32 0.0, %v1139
      %v1141 = vpop.f32.mrf.mxu0
      %v1142 = vpop.f32.mrf.mxu0
      %v1143 = vadd.f32 0.0, %v1142
      %v1144 = vpop.f32.mrf.mxu0
      %1145 = vmatprep.mubr.bf16.mxu0 0
      %1146 = vmatmul.mubr.bf16.gmra.mxu0 %v1003
      %v1147 = vpop.f32.mrf.mxu0
      %v1148 = vadd.f32 0.0, %v1147
      %v1149 = vpop.f32.mrf.mxu0
      %v1150 = vpop.f32.mrf.mxu0
      %v1151 = vadd.f32 0.0, %v1150
      %v1152 = vpop.f32.mrf.mxu0
      %1153 = vmatprep.mubr.bf16.mxu0 0
      %1154 = vmatmul.mubr.bf16.gmra.mxu0 %v1006
      %v1155 = vpop.f32.mrf.mxu0
      %v1156 = vadd.f32 0.0, %v1155
      %v1157 = vpop.f32.mrf.mxu0
      %v1158 = vpop.f32.mrf.mxu0
      %v1159 = vadd.f32 0.0, %v1158
      %v1160 = vpop.f32.mrf.mxu0
      %1161 = vmatprep.mubr.bf16.mxu0 0
      %1162 = vmatmul.mubr.bf16.gmra.mxu0 %v1009
      %v1163 = vpop.f32.mrf.mxu0
      %v1164 = vadd.f32 0.0, %v1163
      %v1165 = vpop.f32.mrf.mxu0
      %v1166 = vpop.f32.mrf.mxu0
      %v1167 = vadd.f32 0.0, %v1166
      %v1168 = vpop.f32.mrf.mxu0
      %1169 = vmatprep.mubr.bf16.mxu0 0
      %1170 = vmatmul.mubr.bf16.gmra.mxu0 %v1012
      %v1171 = vpop.f32.mrf.mxu0
      %v1172 = vadd.f32 0.0, %v1171
      %v1173 = vpop.f32.mrf.mxu0
      %v1174 = vpop.f32.mrf.mxu0
      %v1175 = vadd.f32 0.0, %v1174
      %v1176 = vpop.f32.mrf.mxu0
      %1177 = vdwg.mxu0
      %v1178 = vadd.f32 %v771, %v1052
      %v1179 = vadd.f32 %v774, %v1055
      %v1180 = vadd.f32 %v779, %v1060
      %v1181 = vadd.f32 %v782, %v1063
      %v1182 = vadd.f32 %v787, %v1068
      %v1183 = vadd.f32 %v790, %v1071
      %v1184 = vadd.f32 %v795, %v1076
      %v1185 = vadd.f32 %v798, %v1079
      %v1186 = vadd.f32 %v803, %v1084
      %v1187 = vadd.f32 %v806, %v1087
      %v1188 = vadd.f32 %v811, %v1092
      %v1189 = vadd.f32 %v814, %v1095
      %v1190 = vadd.f32 %v819, %v1100
      %v1191 = vadd.f32 %v822, %v1103
      %v1192 = vadd.f32 %v827, %v1108
      %v1193 = vadd.f32 %v830, %v1111
      %v1194 = vadd.f32 %v835, %v1116
      %v1195 = vadd.f32 %v838, %v1119
      %v1196 = vadd.f32 %v843, %v1124
      %v1197 = vadd.f32 %v846, %v1127
      %v1198 = vadd.f32 %v851, %v1132
      %v1199 = vadd.f32 %v854, %v1135
      %v1200 = vadd.f32 %v859, %v1140
      %v1201 = vadd.f32 %v862, %v1143
      %v1202 = vadd.f32 %v867, %v1148
      %v1203 = vadd.f32 %v870, %v1151
      %v1204 = vadd.f32 %v875, %v1156
      %v1205 = vadd.f32 %v878, %v1159
      %v1206 = vadd.f32 %v883, %v1164
      %v1207 = vadd.f32 %v886, %v1167
      %v1208 = vadd.f32 %v891, %v1172
      %v1209 = vadd.f32 %v894, %v1175
      %s1210 = scalar_lea.vmem %s327, 24
      %v1211 = vld [vmem:[%s1210] sm:$0xff]
      %v1212 = vld [vmem:[%s1210 + $0x8] sm:$0xff]
      %v1213 = vld [vmem:[%s1210 + $0x18] sm:$0xff]
      %v1214 = vld [vmem:[%s1210 + $0x20] sm:$0xff]
      %v1215 = vld [vmem:[%s1210 + $0x30] sm:$0xff]
      %v1216 = vld [vmem:[%s1210 + $0x38] sm:$0xff]
      %v1217 = vld [vmem:[%s1210 + $0x48] sm:$0xff]
      %v1218 = vld [vmem:[%s1210 + $0x50] sm:$0xff]
      %v1219 = vld [vmem:[%s1210 + $0x60] sm:$0xff]
      %v1220 = vld [vmem:[%s1210 + $0x68] sm:$0xff]
      %v1221 = vld [vmem:[%s1210 + $0x78] sm:$0xff]
      %v1222 = vld [vmem:[%s1210 + $0x80] sm:$0xff]
      %v1223 = vld [vmem:[%s1210 + $0x90] sm:$0xff]
      %v1224 = vld [vmem:[%s1210 + $0x98] sm:$0xff]
      %v1225 = vld [vmem:[%s1210 + $0xa8] sm:$0xff]
      %v1226 = vld [vmem:[%s1210 + $0xb0] sm:$0xff]
      %v1227 = vld [vmem:[%s1210 + $0xc0] sm:$0xff]
      %v1228 = vld [vmem:[%s1210 + $0xc8] sm:$0xff]
      %v1229 = vld [vmem:[%s1210 + $0xd8] sm:$0xff]
      %v1230 = vld [vmem:[%s1210 + $0xe0] sm:$0xff]
      %v1231 = vld [vmem:[%s1210 + $0xf0] sm:$0xff]
      %v1232 = vld [vmem:[%s1210 + $0xf8] sm:$0xff]
      %v1233 = vld [vmem:[%s1210 + $0x108] sm:$0xff]
      %v1234 = vld [vmem:[%s1210 + $0x110] sm:$0xff]
      %v1235 = vld [vmem:[%s1210 + $0x120] sm:$0xff]
      %v1236 = vld [vmem:[%s1210 + $0x128] sm:$0xff]
      %v1237 = vld [vmem:[%s1210 + $0x138] sm:$0xff]
      %v1238 = vld [vmem:[%s1210 + $0x140] sm:$0xff]
      %v1239 = vld [vmem:[%s1210 + $0x150] sm:$0xff]
      %v1240 = vld [vmem:[%s1210 + $0x158] sm:$0xff]
      %v1241 = vld [vmem:[%s1210 + $0x168] sm:$0xff]
      %v1242 = vld [vmem:[%s1210 + $0x170] sm:$0xff]
      %v1243 = vpack.c.bf16 %v1212, %v1211
      %v1244 = vpack.c.bf16 %v1214, %v1213
      %v1245 = vpack.c.bf16 %v1216, %v1215
      %v1246 = vpack.c.bf16 %v1218, %v1217
      %v1247 = vpack.c.bf16 %v1220, %v1219
      %v1248 = vpack.c.bf16 %v1222, %v1221
      %v1249 = vpack.c.bf16 %v1224, %v1223
      %v1250 = vpack.c.bf16 %v1226, %v1225
      %v1251 = vpack.c.bf16 %v1228, %v1227
      %v1252 = vpack.c.bf16 %v1230, %v1229
      %v1253 = vpack.c.bf16 %v1232, %v1231
      %v1254 = vpack.c.bf16 %v1234, %v1233
      %v1255 = vpack.c.bf16 %v1236, %v1235
      %v1256 = vpack.c.bf16 %v1238, %v1237
      %v1257 = vpack.c.bf16 %v1240, %v1239
      %v1258 = vpack.c.bf16 %v1242, %v1241
      %s1259 = scalar_lea.vmem %s1, 60
      %v1260 = vld [vmem:[%s1259] sm:$0xf]
      %v1261 = vld [vmem:[%s1259 + $0x4] sm:$0xf]
      %v1262 = vld [vmem:[%s1259 + $0x8] sm:$0xf]
      %v1263 = vld [vmem:[%s1259 + $0xc] sm:$0xf]
      %v1264 = vld [vmem:[%s1259 + $0x10] sm:$0xf]
      %v1270 = vunpack.c.l.b16 %v1260
      %v1271 = vunpack.c.l.b16 %v1261
      %v1272 = vunpack.c.l.b16 %v1262
      %v1273 = vunpack.c.l.b16 %v1263
      %v1274 = vunpack.c.l.b16 %v1264
      %v1275 = vpack.c.b16 %v1271, %v1270
      %v1276 = vpack.c.b16 %v1273, %v1272
      %v1277 = vpack.c.b16 %v1274, %v1274
      %v1281 = vsel %vm456, %v1243, 0
      %v1284 = vsel %vm456, %v1244, 0
      %v1287 = vsel %vm456, %v1245, 0
      %v1290 = vsel %vm456, %v1246, 0
      %v1293 = vsel %vm456, %v1247, 0
      %v1296 = vsel %vm456, %v1248, 0
      %v1299 = vsel %vm456, %v1249, 0
      %v1302 = vsel %vm456, %v1250, 0
      %v1305 = vsel %vm456, %v1251, 0
      %v1308 = vsel %vm456, %v1252, 0
      %v1311 = vsel %vm456, %v1253, 0
      %v1314 = vsel %vm456, %v1254, 0
      %v1317 = vsel %vm456, %v1255, 0
      %v1320 = vsel %vm456, %v1256, 0
      %v1323 = vsel %vm456, %v1257, 0
      %v1326 = vsel %vm456, %v1258, 0
      %v1329 = vsel %vm505, %v1277, 0
      %1331 = vmatprep.subr.bf16.mxu0 0
      %1332 = vmatpush1.bf16.msra.mxu0 0
      %1333 = vmatprep.subr.bf16.mxu0 0
      %1334 = vmatpush1.bf16.msra.mxu0 0
      %1335 = vmatprep.subr.bf16.mxu0 0
      %1336 = vmatpush1.bf16.msra.mxu0 0
      %1337 = vmatprep.subr.bf16.mxu0 0
      %1338 = vmatpush1.bf16.msra.mxu0 0
      %1339 = vmatprep.subr.bf16.mxu0 0
      %1340 = vmatpush1.bf16.msra.mxu0 0
      %1341 = vmatprep.subr.bf16.mxu0 0
      %1342 = vmatpush1.bf16.msra.mxu0 %v1329
      %1343 = vmatprep.subr.bf16.mxu0 0
      %1344 = vmatpush1.bf16.msra.mxu0 %v1276
      %1345 = vmatprep.subr.bf16.mxu0 0
      %1346 = vmatpush1.bf16.msra.mxu0 %v1275
      %1347 = vmatprep.subr.bf16.mxu0 0
      %1348 = vmatpush2.bf16.msra.mxu0 0
      %1349 = vmatprep.subr.bf16.mxu0 0
      %1350 = vmatpush2.bf16.msra.mxu0 0
      %1351 = vmatprep.subr.bf16.mxu0 0
      %1352 = vmatpush2.bf16.msra.mxu0 0
      %1353 = vmatprep.subr.bf16.mxu0 0
      %1354 = vmatpush2.bf16.msra.mxu0 0
      %1355 = vmatprep.subr.bf16.mxu0 0
      %1356 = vmatpush2.bf16.msra.mxu0 0
      %1357 = vmatprep.subr.bf16.mxu0 0
      %1358 = vmatpush2.bf16.msra.mxu0 0
      %1359 = vmatprep.subr.bf16.mxu0 0
      %1360 = vmatpush2.bf16.msra.mxu0 0
      %1361 = vmatprep.subr.bf16.mxu0 0
      %1362 = vmatpush2.bf16.msra.mxu0 0
      %1363 = vmatprep.mubr.bf16.mxu0 0
      %1364 = vmatmul.mubr.bf16.gmra.mxu0 %v1281
      %v1365 = vpop.f32.mrf.mxu0
      %v1366 = vadd.f32 0.0, %v1365
      %v1367 = vpop.f32.mrf.mxu0
      %v1368 = vpop.f32.mrf.mxu0
      %v1369 = vadd.f32 0.0, %v1368
      %v1370 = vpop.f32.mrf.mxu0
      %1371 = vmatprep.mubr.bf16.mxu0 0
      %1372 = vmatmul.mubr.bf16.gmra.mxu0 %v1284
      %v1373 = vpop.f32.mrf.mxu0
      %v1374 = vadd.f32 0.0, %v1373
      %v1375 = vpop.f32.mrf.mxu0
      %v1376 = vpop.f32.mrf.mxu0
      %v1377 = vadd.f32 0.0, %v1376
      %v1378 = vpop.f32.mrf.mxu0
      %1379 = vmatprep.mubr.bf16.mxu0 0
      %1380 = vmatmul.mubr.bf16.gmra.mxu0 %v1287
      %v1381 = vpop.f32.mrf.mxu0
      %v1382 = vadd.f32 0.0, %v1381
      %v1383 = vpop.f32.mrf.mxu0
      %v1384 = vpop.f32.mrf.mxu0
      %v1385 = vadd.f32 0.0, %v1384
      %v1386 = vpop.f32.mrf.mxu0
      %1387 = vmatprep.mubr.bf16.mxu0 0
      %1388 = vmatmul.mubr.bf16.gmra.mxu0 %v1290
      %v1389 = vpop.f32.mrf.mxu0
      %v1390 = vadd.f32 0.0, %v1389
      %v1391 = vpop.f32.mrf.mxu0
      %v1392 = vpop.f32.mrf.mxu0
      %v1393 = vadd.f32 0.0, %v1392
      %v1394 = vpop.f32.mrf.mxu0
      %1395 = vmatprep.mubr.bf16.mxu0 0
      %1396 = vmatmul.mubr.bf16.gmra.mxu0 %v1293
      %v1397 = vpop.f32.mrf.mxu0
      %v1398 = vadd.f32 0.0, %v1397
      %v1399 = vpop.f32.mrf.mxu0
      %v1400 = vpop.f32.mrf.mxu0
      %v1401 = vadd.f32 0.0, %v1400
      %v1402 = vpop.f32.mrf.mxu0
      %1403 = vmatprep.mubr.bf16.mxu0 0
      %1404 = vmatmul.mubr.bf16.gmra.mxu0 %v1296
      %v1405 = vpop.f32.mrf.mxu0
      %v1406 = vadd.f32 0.0, %v1405
      %v1407 = vpop.f32.mrf.mxu0
      %v1408 = vpop.f32.mrf.mxu0
      %v1409 = vadd.f32 0.0, %v1408
      %v1410 = vpop.f32.mrf.mxu0
      %1411 = vmatprep.mubr.bf16.mxu0 0
      %1412 = vmatmul.mubr.bf16.gmra.mxu0 %v1299
      %v1413 = vpop.f32.mrf.mxu0
      %v1414 = vadd.f32 0.0, %v1413
      %v1415 = vpop.f32.mrf.mxu0
      %v1416 = vpop.f32.mrf.mxu0
      %v1417 = vadd.f32 0.0, %v1416
      %v1418 = vpop.f32.mrf.mxu0
      %1419 = vmatprep.mubr.bf16.mxu0 0
      %1420 = vmatmul.mubr.bf16.gmra.mxu0 %v1302
      %v1421 = vpop.f32.mrf.mxu0
      %v1422 = vadd.f32 0.0, %v1421
      %v1423 = vpop.f32.mrf.mxu0
      %v1424 = vpop.f32.mrf.mxu0
      %v1425 = vadd.f32 0.0, %v1424
      %v1426 = vpop.f32.mrf.mxu0
      %1427 = vmatprep.mubr.bf16.mxu0 0
      %1428 = vmatmul.mubr.bf16.gmra.mxu0 %v1305
      %v1429 = vpop.f32.mrf.mxu0
      %v1430 = vadd.f32 0.0, %v1429
      %v1431 = vpop.f32.mrf.mxu0
      %v1432 = vpop.f32.mrf.mxu0
      %v1433 = vadd.f32 0.0, %v1432
      %v1434 = vpop.f32.mrf.mxu0
      %1435 = vmatprep.mubr.bf16.mxu0 0
      %1436 = vmatmul.mubr.bf16.gmra.mxu0 %v1308
      %v1437 = vpop.f32.mrf.mxu0
      %v1438 = vadd.f32 0.0, %v1437
      %v1439 = vpop.f32.mrf.mxu0
      %v1440 = vpop.f32.mrf.mxu0
      %v1441 = vadd.f32 0.0, %v1440
      %v1442 = vpop.f32.mrf.mxu0
      %1443 = vmatprep.mubr.bf16.mxu0 0
      %1444 = vmatmul.mubr.bf16.gmra.mxu0 %v1311
      %v1445 = vpop.f32.mrf.mxu0
      %v1446 = vadd.f32 0.0, %v1445
      %v1447 = vpop.f32.mrf.mxu0
      %v1448 = vpop.f32.mrf.mxu0
      %v1449 = vadd.f32 0.0, %v1448
      %v1450 = vpop.f32.mrf.mxu0
      %1451 = vmatprep.mubr.bf16.mxu0 0
      %1452 = vmatmul.mubr.bf16.gmra.mxu0 %v1314
      %v1453 = vpop.f32.mrf.mxu0
      %v1454 = vadd.f32 0.0, %v1453
      %v1455 = vpop.f32.mrf.mxu0
      %v1456 = vpop.f32.mrf.mxu0
      %v1457 = vadd.f32 0.0, %v1456
      %v1458 = vpop.f32.mrf.mxu0
      %1459 = vmatprep.mubr.bf16.mxu0 0
      %1460 = vmatmul.mubr.bf16.gmra.mxu0 %v1317
      %v1461 = vpop.f32.mrf.mxu0
      %v1462 = vadd.f32 0.0, %v1461
      %v1463 = vpop.f32.mrf.mxu0
      %v1464 = vpop.f32.mrf.mxu0
      %v1465 = vadd.f32 0.0, %v1464
      %v1466 = vpop.f32.mrf.mxu0
      %1467 = vmatprep.mubr.bf16.mxu0 0
      %1468 = vmatmul.mubr.bf16.gmra.mxu0 %v1320
      %v1469 = vpop.f32.mrf.mxu0
      %v1470 = vadd.f32 0.0, %v1469
      %v1471 = vpop.f32.mrf.mxu0
      %v1472 = vpop.f32.mrf.mxu0
      %v1473 = vadd.f32 0.0, %v1472
      %v1474 = vpop.f32.mrf.mxu0
      %1475 = vmatprep.mubr.bf16.mxu0 0
      %1476 = vmatmul.mubr.bf16.gmra.mxu0 %v1323
      %v1477 = vpop.f32.mrf.mxu0
      %v1478 = vadd.f32 0.0, %v1477
      %v1479 = vpop.f32.mrf.mxu0
      %v1480 = vpop.f32.mrf.mxu0
      %v1481 = vadd.f32 0.0, %v1480
      %v1482 = vpop.f32.mrf.mxu0
      %1483 = vmatprep.mubr.bf16.mxu0 0
      %1484 = vmatmul.mubr.bf16.gmra.mxu0 %v1326
      %v1485 = vpop.f32.mrf.mxu0
      %v1486 = vadd.f32 0.0, %v1485
      %v1487 = vpop.f32.mrf.mxu0
      %v1488 = vpop.f32.mrf.mxu0
      %v1489 = vadd.f32 0.0, %v1488
      %v1490 = vpop.f32.mrf.mxu0
      %1491 = vdwg.mxu0
      %v1492 = vadd.f32 %v1178, %v1366
      %v1493 = vadd.f32 %v1179, %v1369
      %v1494 = vadd.f32 %v1180, %v1374
      %v1495 = vadd.f32 %v1181, %v1377
      %v1496 = vadd.f32 %v1182, %v1382
      %v1497 = vadd.f32 %v1183, %v1385
      %v1498 = vadd.f32 %v1184, %v1390
      %v1499 = vadd.f32 %v1185, %v1393
      %v1500 = vadd.f32 %v1186, %v1398
      %v1501 = vadd.f32 %v1187, %v1401
      %v1502 = vadd.f32 %v1188, %v1406
      %v1503 = vadd.f32 %v1189, %v1409
      %v1504 = vadd.f32 %v1190, %v1414
      %v1505 = vadd.f32 %v1191, %v1417
      %v1506 = vadd.f32 %v1192, %v1422
      %v1507 = vadd.f32 %v1193, %v1425
      %v1508 = vadd.f32 %v1194, %v1430
      %v1509 = vadd.f32 %v1195, %v1433
      %v1510 = vadd.f32 %v1196, %v1438
      %v1511 = vadd.f32 %v1197, %v1441
      %v1512 = vadd.f32 %v1198, %v1446
      %v1513 = vadd.f32 %v1199, %v1449
      %v1514 = vadd.f32 %v1200, %v1454
      %v1515 = vadd.f32 %v1201, %v1457
      %v1516 = vadd.f32 %v1202, %v1462
      %v1517 = vadd.f32 %v1203, %v1465
      %v1518 = vadd.f32 %v1204, %v1470
      %v1519 = vadd.f32 %v1205, %v1473
      %v1520 = vadd.f32 %v1206, %v1478
      %v1521 = vadd.f32 %v1207, %v1481
      %v1522 = vadd.f32 %v1208, %v1486
      %v1523 = vadd.f32 %v1209, %v1489
      %v1524 = vld [vmem:[%s1210 + $0x1] sm:$0xff]
      %v1525 = vld [vmem:[%s1210 + $0x9] sm:$0xff]
      %v1526 = vld [vmem:[%s1210 + $0x19] sm:$0xff]
      %v1527 = vld [vmem:[%s1210 + $0x21] sm:$0xff]
      %v1528 = vld [vmem:[%s1210 + $0x31] sm:$0xff]
      %v1529 = vld [vmem:[%s1210 + $0x39] sm:$0xff]
      %v1530 = vld [vmem:[%s1210 + $0x49] sm:$0xff]
      %v1531 = vld [vmem:[%s1210 + $0x51] sm:$0xff]
      %v1532 = vld [vmem:[%s1210 + $0x61] sm:$0xff]
      %v1533 = vld [vmem:[%s1210 + $0x69] sm:$0xff]
      %v1534 = vld [vmem:[%s1210 + $0x79] sm:$0xff]
      %v1535 = vld [vmem:[%s1210 + $0x81] sm:$0xff]
      %v1536 = vld [vmem:[%s1210 + $0x91] sm:$0xff]
      %v1537 = vld [vmem:[%s1210 + $0x99] sm:$0xff]
      %v1538 = vld [vmem:[%s1210 + $0xa9] sm:$0xff]
      %v1539 = vld [vmem:[%s1210 + $0xb1] sm:$0xff]
      %v1540 = vld [vmem:[%s1210 + $0xc1] sm:$0xff]
      %v1541 = vld [vmem:[%s1210 + $0xc9] sm:$0xff]
      %v1542 = vld [vmem:[%s1210 + $0xd9] sm:$0xff]
      %v1543 = vld [vmem:[%s1210 + $0xe1] sm:$0xff]
      %v1544 = vld [vmem:[%s1210 + $0xf1] sm:$0xff]
      %v1545 = vld [vmem:[%s1210 + $0xf9] sm:$0xff]
      %v1546 = vld [vmem:[%s1210 + $0x109] sm:$0xff]
      %v1547 = vld [vmem:[%s1210 + $0x111] sm:$0xff]
      %v1548 = vld [vmem:[%s1210 + $0x121] sm:$0xff]
      %v1549 = vld [vmem:[%s1210 + $0x129] sm:$0xff]
      %v1550 = vld [vmem:[%s1210 + $0x139] sm:$0xff]
      %v1551 = vld [vmem:[%s1210 + $0x141] sm:$0xff]
      %v1552 = vld [vmem:[%s1210 + $0x151] sm:$0xff]
      %v1553 = vld [vmem:[%s1210 + $0x159] sm:$0xff]
      %v1554 = vld [vmem:[%s1210 + $0x169] sm:$0xff]
      %v1555 = vld [vmem:[%s1210 + $0x171] sm:$0xff]
      %v1556 = vpack.c.bf16 %v1525, %v1524
      %v1557 = vpack.c.bf16 %v1527, %v1526
      %v1558 = vpack.c.bf16 %v1529, %v1528
      %v1559 = vpack.c.bf16 %v1531, %v1530
      %v1560 = vpack.c.bf16 %v1533, %v1532
      %v1561 = vpack.c.bf16 %v1535, %v1534
      %v1562 = vpack.c.bf16 %v1537, %v1536
      %v1563 = vpack.c.bf16 %v1539, %v1538
      %v1564 = vpack.c.bf16 %v1541, %v1540
      %v1565 = vpack.c.bf16 %v1543, %v1542
      %v1566 = vpack.c.bf16 %v1545, %v1544
      %v1567 = vpack.c.bf16 %v1547, %v1546
      %v1568 = vpack.c.bf16 %v1549, %v1548
      %v1569 = vpack.c.bf16 %v1551, %v1550
      %v1570 = vpack.c.bf16 %v1553, %v1552
      %v1571 = vpack.c.bf16 %v1555, %v1554
      %s1572 = scalar_lea.vmem %s1, 80
      %v1573 = vld [vmem:[%s1572] sm:$0xf]
      %v1574 = vld [vmem:[%s1572 + $0x4] sm:$0xf]
      %v1575 = vld [vmem:[%s1572 + $0x8] sm:$0xf]
      %v1576 = vld [vmem:[%s1572 + $0xc] sm:$0xf]
      %v1577 = vld [vmem:[%s1572 + $0x10] sm:$0xf]
      %v1583 = vunpack.c.l.b16 %v1573
      %v1584 = vunpack.c.l.b16 %v1574
      %v1585 = vunpack.c.l.b16 %v1575
      %v1586 = vunpack.c.l.b16 %v1576
      %v1587 = vunpack.c.l.b16 %v1577
      %v1588 = vpack.c.b16 %v1584, %v1583
      %v1589 = vpack.c.b16 %v1586, %v1585
      %v1590 = vpack.c.b16 %v1587, %v1587
      %v1594 = vsel %vm456, %v1556, 0
      %v1597 = vsel %vm456, %v1557, 0
      %v1600 = vsel %vm456, %v1558, 0
      %v1603 = vsel %vm456, %v1559, 0
      %v1606 = vsel %vm456, %v1560, 0
      %v1609 = vsel %vm456, %v1561, 0
      %v1612 = vsel %vm456, %v1562, 0
      %v1615 = vsel %vm456, %v1563, 0
      %v1618 = vsel %vm456, %v1564, 0
      %v1621 = vsel %vm456, %v1565, 0
      %v1624 = vsel %vm456, %v1566, 0
      %v1627 = vsel %vm456, %v1567, 0
      %v1630 = vsel %vm456, %v1568, 0
      %v1633 = vsel %vm456, %v1569, 0
      %v1636 = vsel %vm456, %v1570, 0
      %v1639 = vsel %vm456, %v1571, 0
      %v1642 = vsel %vm505, %v1590, 0
      %1644 = vmatprep.subr.bf16.mxu0 0
      %1645 = vmatpush1.bf16.msra.mxu0 0
      %1646 = vmatprep.subr.bf16.mxu0 0
      %1647 = vmatpush1.bf16.msra.mxu0 0
      %1648 = vmatprep.subr.bf16.mxu0 0
      %1649 = vmatpush1.bf16.msra.mxu0 0
      %1650 = vmatprep.subr.bf16.mxu0 0
      %1651 = vmatpush1.bf16.msra.mxu0 0
      %1652 = vmatprep.subr.bf16.mxu0 0
      %1653 = vmatpush1.bf16.msra.mxu0 0
      %1654 = vmatprep.subr.bf16.mxu0 0
      %1655 = vmatpush1.bf16.msra.mxu0 %v1642
      %1656 = vmatprep.subr.bf16.mxu0 0
      %1657 = vmatpush1.bf16.msra.mxu0 %v1589
      %1658 = vmatprep.subr.bf16.mxu0 0
      %1659 = vmatpush1.bf16.msra.mxu0 %v1588
      %1660 = vmatprep.subr.bf16.mxu0 0
      %1661 = vmatpush2.bf16.msra.mxu0 0
      %1662 = vmatprep.subr.bf16.mxu0 0
      %1663 = vmatpush2.bf16.msra.mxu0 0
      %1664 = vmatprep.subr.bf16.mxu0 0
      %1665 = vmatpush2.bf16.msra.mxu0 0
      %1666 = vmatprep.subr.bf16.mxu0 0
      %1667 = vmatpush2.bf16.msra.mxu0 0
      %1668 = vmatprep.subr.bf16.mxu0 0
      %1669 = vmatpush2.bf16.msra.mxu0 0
      %1670 = vmatprep.subr.bf16.mxu0 0
      %1671 = vmatpush2.bf16.msra.mxu0 0
      %1672 = vmatprep.subr.bf16.mxu0 0
      %1673 = vmatpush2.bf16.msra.mxu0 0
      %1674 = vmatprep.subr.bf16.mxu0 0
      %1675 = vmatpush2.bf16.msra.mxu0 0
      %1676 = vmatprep.mubr.bf16.mxu0 0
      %1677 = vmatmul.mubr.bf16.gmra.mxu0 %v1594
      %v1678 = vpop.f32.mrf.mxu0
      %v1679 = vadd.f32 0.0, %v1678
      %v1680 = vpop.f32.mrf.mxu0
      %v1681 = vpop.f32.mrf.mxu0
      %v1682 = vadd.f32 0.0, %v1681
      %v1683 = vpop.f32.mrf.mxu0
      %1684 = vmatprep.mubr.bf16.mxu0 0
      %1685 = vmatmul.mubr.bf16.gmra.mxu0 %v1597
      %v1686 = vpop.f32.mrf.mxu0
      %v1687 = vadd.f32 0.0, %v1686
      %v1688 = vpop.f32.mrf.mxu0
      %v1689 = vpop.f32.mrf.mxu0
      %v1690 = vadd.f32 0.0, %v1689
      %v1691 = vpop.f32.mrf.mxu0
      %1692 = vmatprep.mubr.bf16.mxu0 0
      %1693 = vmatmul.mubr.bf16.gmra.mxu0 %v1600
      %v1694 = vpop.f32.mrf.mxu0
      %v1695 = vadd.f32 0.0, %v1694
      %v1696 = vpop.f32.mrf.mxu0
      %v1697 = vpop.f32.mrf.mxu0
      %v1698 = vadd.f32 0.0, %v1697
      %v1699 = vpop.f32.mrf.mxu0
      %1700 = vmatprep.mubr.bf16.mxu0 0
      %1701 = vmatmul.mubr.bf16.gmra.mxu0 %v1603
      %v1702 = vpop.f32.mrf.mxu0
      %v1703 = vadd.f32 0.0, %v1702
      %v1704 = vpop.f32.mrf.mxu0
      %v1705 = vpop.f32.mrf.mxu0
      %v1706 = vadd.f32 0.0, %v1705
      %v1707 = vpop.f32.mrf.mxu0
      %1708 = vmatprep.mubr.bf16.mxu0 0
      %1709 = vmatmul.mubr.bf16.gmra.mxu0 %v1606
      %v1710 = vpop.f32.mrf.mxu0
      %v1711 = vadd.f32 0.0, %v1710
      %v1712 = vpop.f32.mrf.mxu0
      %v1713 = vpop.f32.mrf.mxu0
      %v1714 = vadd.f32 0.0, %v1713
      %v1715 = vpop.f32.mrf.mxu0
      %1716 = vmatprep.mubr.bf16.mxu0 0
      %1717 = vmatmul.mubr.bf16.gmra.mxu0 %v1609
      %v1718 = vpop.f32.mrf.mxu0
      %v1719 = vadd.f32 0.0, %v1718
      %v1720 = vpop.f32.mrf.mxu0
      %v1721 = vpop.f32.mrf.mxu0
      %v1722 = vadd.f32 0.0, %v1721
      %v1723 = vpop.f32.mrf.mxu0
      %1724 = vmatprep.mubr.bf16.mxu0 0
      %1725 = vmatmul.mubr.bf16.gmra.mxu0 %v1612
      %v1726 = vpop.f32.mrf.mxu0
      %v1727 = vadd.f32 0.0, %v1726
      %v1728 = vpop.f32.mrf.mxu0
      %v1729 = vpop.f32.mrf.mxu0
      %v1730 = vadd.f32 0.0, %v1729
      %v1731 = vpop.f32.mrf.mxu0
      %1732 = vmatprep.mubr.bf16.mxu0 0
      %1733 = vmatmul.mubr.bf16.gmra.mxu0 %v1615
      %v1734 = vpop.f32.mrf.mxu0
      %v1735 = vadd.f32 0.0, %v1734
      %v1736 = vpop.f32.mrf.mxu0
      %v1737 = vpop.f32.mrf.mxu0
      %v1738 = vadd.f32 0.0, %v1737
      %v1739 = vpop.f32.mrf.mxu0
      %1740 = vmatprep.mubr.bf16.mxu0 0
      %1741 = vmatmul.mubr.bf16.gmra.mxu0 %v1618
      %v1742 = vpop.f32.mrf.mxu0
      %v1743 = vadd.f32 0.0, %v1742
      %v1744 = vpop.f32.mrf.mxu0
      %v1745 = vpop.f32.mrf.mxu0
      %v1746 = vadd.f32 0.0, %v1745
      %v1747 = vpop.f32.mrf.mxu0
      %1748 = vmatprep.mubr.bf16.mxu0 0
      %1749 = vmatmul.mubr.bf16.gmra.mxu0 %v1621
      %v1750 = vpop.f32.mrf.mxu0
      %v1751 = vadd.f32 0.0, %v1750
      %v1752 = vpop.f32.mrf.mxu0
      %v1753 = vpop.f32.mrf.mxu0
      %v1754 = vadd.f32 0.0, %v1753
      %v1755 = vpop.f32.mrf.mxu0
      %1756 = vmatprep.mubr.bf16.mxu0 0
      %1757 = vmatmul.mubr.bf16.gmra.mxu0 %v1624
      %v1758 = vpop.f32.mrf.mxu0
      %v1759 = vadd.f32 0.0, %v1758
      %v1760 = vpop.f32.mrf.mxu0
      %v1761 = vpop.f32.mrf.mxu0
      %v1762 = vadd.f32 0.0, %v1761
      %v1763 = vpop.f32.mrf.mxu0
      %1764 = vmatprep.mubr.bf16.mxu0 0
      %1765 = vmatmul.mubr.bf16.gmra.mxu0 %v1627
      %v1766 = vpop.f32.mrf.mxu0
      %v1767 = vadd.f32 0.0, %v1766
      %v1768 = vpop.f32.mrf.mxu0
      %v1769 = vpop.f32.mrf.mxu0
      %v1770 = vadd.f32 0.0, %v1769
      %v1771 = vpop.f32.mrf.mxu0
      %1772 = vmatprep.mubr.bf16.mxu0 0
      %1773 = vmatmul.mubr.bf16.gmra.mxu0 %v1630
      %v1774 = vpop.f32.mrf.mxu0
      %v1775 = vadd.f32 0.0, %v1774
      %v1776 = vpop.f32.mrf.mxu0
      %v1777 = vpop.f32.mrf.mxu0
      %v1778 = vadd.f32 0.0, %v1777
      %v1779 = vpop.f32.mrf.mxu0
      %1780 = vmatprep.mubr.bf16.mxu0 0
      %1781 = vmatmul.mubr.bf16.gmra.mxu0 %v1633
      %v1782 = vpop.f32.mrf.mxu0
      %v1783 = vadd.f32 0.0, %v1782
      %v1784 = vpop.f32.mrf.mxu0
      %v1785 = vpop.f32.mrf.mxu0
      %v1786 = vadd.f32 0.0, %v1785
      %v1787 = vpop.f32.mrf.mxu0
      %1788 = vmatprep.mubr.bf16.mxu0 0
      %1789 = vmatmul.mubr.bf16.gmra.mxu0 %v1636
      %v1790 = vpop.f32.mrf.mxu0
      %v1791 = vadd.f32 0.0, %v1790
      %v1792 = vpop.f32.mrf.mxu0
      %v1793 = vpop.f32.mrf.mxu0
      %v1794 = vadd.f32 0.0, %v1793
      %v1795 = vpop.f32.mrf.mxu0
      %1796 = vmatprep.mubr.bf16.mxu0 0
      %1797 = vmatmul.mubr.bf16.gmra.mxu0 %v1639
      %v1798 = vpop.f32.mrf.mxu0
      %v1799 = vadd.f32 0.0, %v1798
      %v1800 = vpop.f32.mrf.mxu0
      %v1801 = vpop.f32.mrf.mxu0
      %v1802 = vadd.f32 0.0, %v1801
      %v1803 = vpop.f32.mrf.mxu0
      %1804 = vdwg.mxu0
      %v1805 = vadd.f32 %v1492, %v1679
      %v1806 = vadd.f32 %v1493, %v1682
      %v1807 = vadd.f32 %v1494, %v1687
      %v1808 = vadd.f32 %v1495, %v1690
      %v1809 = vadd.f32 %v1496, %v1695
      %v1810 = vadd.f32 %v1497, %v1698
      %v1811 = vadd.f32 %v1498, %v1703
      %v1812 = vadd.f32 %v1499, %v1706
      %v1813 = vadd.f32 %v1500, %v1711
      %v1814 = vadd.f32 %v1501, %v1714
      %v1815 = vadd.f32 %v1502, %v1719
      %v1816 = vadd.f32 %v1503, %v1722
      %v1817 = vadd.f32 %v1504, %v1727
      %v1818 = vadd.f32 %v1505, %v1730
      %v1819 = vadd.f32 %v1506, %v1735
      %v1820 = vadd.f32 %v1507, %v1738
      %v1821 = vadd.f32 %v1508, %v1743
      %v1822 = vadd.f32 %v1509, %v1746
      %v1823 = vadd.f32 %v1510, %v1751
      %v1824 = vadd.f32 %v1511, %v1754
      %v1825 = vadd.f32 %v1512, %v1759
      %v1826 = vadd.f32 %v1513, %v1762
      %v1827 = vadd.f32 %v1514, %v1767
      %v1828 = vadd.f32 %v1515, %v1770
      %v1829 = vadd.f32 %v1516, %v1775
      %v1830 = vadd.f32 %v1517, %v1778
      %v1831 = vadd.f32 %v1518, %v1783
      %v1832 = vadd.f32 %v1519, %v1786
      %v1833 = vadd.f32 %v1520, %v1791
      %v1834 = vadd.f32 %v1521, %v1794
      %v1835 = vadd.f32 %v1522, %v1799
      %v1836 = vadd.f32 %v1523, %v1802
      %v1837 = vld [vmem:[%s1210 + $0x2] sm:$0xff]
      %v1838 = vld [vmem:[%s1210 + $0xa] sm:$0xff]
      %v1839 = vld [vmem:[%s1210 + $0x1a] sm:$0xff]
      %v1840 = vld [vmem:[%s1210 + $0x22] sm:$0xff]
      %v1841 = vld [vmem:[%s1210 + $0x32] sm:$0xff]
      %v1842 = vld [vmem:[%s1210 + $0x3a] sm:$0xff]
      %v1843 = vld [vmem:[%s1210 + $0x4a] sm:$0xff]
      %v1844 = vld [vmem:[%s1210 + $0x52] sm:$0xff]
      %v1845 = vld [vmem:[%s1210 + $0x62] sm:$0xff]
      %v1846 = vld [vmem:[%s1210 + $0x6a] sm:$0xff]
      %v1847 = vld [vmem:[%s1210 + $0x7a] sm:$0xff]
      %v1848 = vld [vmem:[%s1210 + $0x82] sm:$0xff]
      %v1849 = vld [vmem:[%s1210 + $0x92] sm:$0xff]
      %v1850 = vld [vmem:[%s1210 + $0x9a] sm:$0xff]
      %v1851 = vld [vmem:[%s1210 + $0xaa] sm:$0xff]
      %v1852 = vld [vmem:[%s1210 + $0xb2] sm:$0xff]
      %v1853 = vld [vmem:[%s1210 + $0xc2] sm:$0xff]
      %v1854 = vld [vmem:[%s1210 + $0xca] sm:$0xff]
      %v1855 = vld [vmem:[%s1210 + $0xda] sm:$0xff]
      %v1856 = vld [vmem:[%s1210 + $0xe2] sm:$0xff]
      %v1857 = vld [vmem:[%s1210 + $0xf2] sm:$0xff]
      %v1858 = vld [vmem:[%s1210 + $0xfa] sm:$0xff]
      %v1859 = vld [vmem:[%s1210 + $0x10a] sm:$0xff]
      %v1860 = vld [vmem:[%s1210 + $0x112] sm:$0xff]
      %v1861 = vld [vmem:[%s1210 + $0x122] sm:$0xff]
      %v1862 = vld [vmem:[%s1210 + $0x12a] sm:$0xff]
      %v1863 = vld [vmem:[%s1210 + $0x13a] sm:$0xff]
      %v1864 = vld [vmem:[%s1210 + $0x142] sm:$0xff]
      %v1865 = vld [vmem:[%s1210 + $0x152] sm:$0xff]
      %v1866 = vld [vmem:[%s1210 + $0x15a] sm:$0xff]
      %v1867 = vld [vmem:[%s1210 + $0x16a] sm:$0xff]
      %v1868 = vld [vmem:[%s1210 + $0x172] sm:$0xff]
      %v1869 = vpack.c.bf16 %v1838, %v1837
      %v1870 = vpack.c.bf16 %v1840, %v1839
      %v1871 = vpack.c.bf16 %v1842, %v1841
      %v1872 = vpack.c.bf16 %v1844, %v1843
      %v1873 = vpack.c.bf16 %v1846, %v1845
      %v1874 = vpack.c.bf16 %v1848, %v1847
      %v1875 = vpack.c.bf16 %v1850, %v1849
      %v1876 = vpack.c.bf16 %v1852, %v1851
      %v1877 = vpack.c.bf16 %v1854, %v1853
      %v1878 = vpack.c.bf16 %v1856, %v1855
      %v1879 = vpack.c.bf16 %v1858, %v1857
      %v1880 = vpack.c.bf16 %v1860, %v1859
      %v1881 = vpack.c.bf16 %v1862, %v1861
      %v1882 = vpack.c.bf16 %v1864, %v1863
      %v1883 = vpack.c.bf16 %v1866, %v1865
      %v1884 = vpack.c.bf16 %v1868, %v1867
      %s1885 = scalar_lea.vmem %s1, 100
      %v1886 = vld [vmem:[%s1885] sm:$0xf]
      %v1887 = vld [vmem:[%s1885 + $0x4] sm:$0xf]
      %v1888 = vld [vmem:[%s1885 + $0x8] sm:$0xf]
      %v1889 = vld [vmem:[%s1885 + $0xc] sm:$0xf]
      %v1890 = vld [vmem:[%s1885 + $0x10] sm:$0xf]
      %v1896 = vunpack.c.l.b16 %v1886
      %v1897 = vunpack.c.l.b16 %v1887
      %v1898 = vunpack.c.l.b16 %v1888
      %v1899 = vunpack.c.l.b16 %v1889
      %v1900 = vunpack.c.l.b16 %v1890
      %v1901 = vpack.c.b16 %v1897, %v1896
      %v1902 = vpack.c.b16 %v1899, %v1898
      %v1903 = vpack.c.b16 %v1900, %v1900
      %v1907 = vsel %vm456, %v1869, 0
      %v1910 = vsel %vm456, %v1870, 0
      %v1913 = vsel %vm456, %v1871, 0
      %v1916 = vsel %vm456, %v1872, 0
      %v1919 = vsel %vm456, %v1873, 0
      %v1922 = vsel %vm456, %v1874, 0
      %v1925 = vsel %vm456, %v1875, 0
      %v1928 = vsel %vm456, %v1876, 0
      %v1931 = vsel %vm456, %v1877, 0
      %v1934 = vsel %vm456, %v1878, 0
      %v1937 = vsel %vm456, %v1879, 0
      %v1940 = vsel %vm456, %v1880, 0
      %v1943 = vsel %vm456, %v1881, 0
      %v1946 = vsel %vm456, %v1882, 0
      %v1949 = vsel %vm456, %v1883, 0
      %v1952 = vsel %vm456, %v1884, 0
      %v1955 = vsel %vm505, %v1903, 0
      %1957 = vmatprep.subr.bf16.mxu0 0
      %1958 = vmatpush1.bf16.msra.mxu0 0
      %1959 = vmatprep.subr.bf16.mxu0 0
      %1960 = vmatpush1.bf16.msra.mxu0 0
      %1961 = vmatprep.subr.bf16.mxu0 0
      %1962 = vmatpush1.bf16.msra.mxu0 0
      %1963 = vmatprep.subr.bf16.mxu0 0
      %1964 = vmatpush1.bf16.msra.mxu0 0
      %1965 = vmatprep.subr.bf16.mxu0 0
      %1966 = vmatpush1.bf16.msra.mxu0 0
      %1967 = vmatprep.subr.bf16.mxu0 0
      %1968 = vmatpush1.bf16.msra.mxu0 %v1955
      %1969 = vmatprep.subr.bf16.mxu0 0
      %1970 = vmatpush1.bf16.msra.mxu0 %v1902
      %1971 = vmatprep.subr.bf16.mxu0 0
      %1972 = vmatpush1.bf16.msra.mxu0 %v1901
      %1973 = vmatprep.subr.bf16.mxu0 0
      %1974 = vmatpush2.bf16.msra.mxu0 0
      %1975 = vmatprep.subr.bf16.mxu0 0
      %1976 = vmatpush2.bf16.msra.mxu0 0
      %1977 = vmatprep.subr.bf16.mxu0 0
      %1978 = vmatpush2.bf16.msra.mxu0 0
      %1979 = vmatprep.subr.bf16.mxu0 0
      %1980 = vmatpush2.bf16.msra.mxu0 0
      %1981 = vmatprep.subr.bf16.mxu0 0
      %1982 = vmatpush2.bf16.msra.mxu0 0
      %1983 = vmatprep.subr.bf16.mxu0 0
      %1984 = vmatpush2.bf16.msra.mxu0 0
      %1985 = vmatprep.subr.bf16.mxu0 0
      %1986 = vmatpush2.bf16.msra.mxu0 0
      %1987 = vmatprep.subr.bf16.mxu0 0
      %1988 = vmatpush2.bf16.msra.mxu0 0
      %1989 = vmatprep.mubr.bf16.mxu0 0
      %1990 = vmatmul.mubr.bf16.gmra.mxu0 %v1907
      %v1991 = vpop.f32.mrf.mxu0
      %v1992 = vadd.f32 0.0, %v1991
      %v1993 = vpop.f32.mrf.mxu0
      %v1994 = vpop.f32.mrf.mxu0
      %v1995 = vadd.f32 0.0, %v1994
      %v1996 = vpop.f32.mrf.mxu0
      %1997 = vmatprep.mubr.bf16.mxu0 0
      %1998 = vmatmul.mubr.bf16.gmra.mxu0 %v1910
      %v1999 = vpop.f32.mrf.mxu0
      %v2000 = vadd.f32 0.0, %v1999
      %v2001 = vpop.f32.mrf.mxu0
      %v2002 = vpop.f32.mrf.mxu0
      %v2003 = vadd.f32 0.0, %v2002
      %v2004 = vpop.f32.mrf.mxu0
      %2005 = vmatprep.mubr.bf16.mxu0 0
      %2006 = vmatmul.mubr.bf16.gmra.mxu0 %v1913
      %v2007 = vpop.f32.mrf.mxu0
      %v2008 = vadd.f32 0.0, %v2007
      %v2009 = vpop.f32.mrf.mxu0
      %v2010 = vpop.f32.mrf.mxu0
      %v2011 = vadd.f32 0.0, %v2010
      %v2012 = vpop.f32.mrf.mxu0
      %2013 = vmatprep.mubr.bf16.mxu0 0
      %2014 = vmatmul.mubr.bf16.gmra.mxu0 %v1916
      %v2015 = vpop.f32.mrf.mxu0
      %v2016 = vadd.f32 0.0, %v2015
      %v2017 = vpop.f32.mrf.mxu0
      %v2018 = vpop.f32.mrf.mxu0
      %v2019 = vadd.f32 0.0, %v2018
      %v2020 = vpop.f32.mrf.mxu0
      %2021 = vmatprep.mubr.bf16.mxu0 0
      %2022 = vmatmul.mubr.bf16.gmra.mxu0 %v1919
      %v2023 = vpop.f32.mrf.mxu0
      %v2024 = vadd.f32 0.0, %v2023
      %v2025 = vpop.f32.mrf.mxu0
      %v2026 = vpop.f32.mrf.mxu0
      %v2027 = vadd.f32 0.0, %v2026
      %v2028 = vpop.f32.mrf.mxu0
      %2029 = vmatprep.mubr.bf16.mxu0 0
      %2030 = vmatmul.mubr.bf16.gmra.mxu0 %v1922
      %v2031 = vpop.f32.mrf.mxu0
      %v2032 = vadd.f32 0.0, %v2031
      %v2033 = vpop.f32.mrf.mxu0
      %v2034 = vpop.f32.mrf.mxu0
      %v2035 = vadd.f32 0.0, %v2034
      %v2036 = vpop.f32.mrf.mxu0
      %2037 = vmatprep.mubr.bf16.mxu0 0
      %2038 = vmatmul.mubr.bf16.gmra.mxu0 %v1925
      %v2039 = vpop.f32.mrf.mxu0
      %v2040 = vadd.f32 0.0, %v2039
      %v2041 = vpop.f32.mrf.mxu0
      %v2042 = vpop.f32.mrf.mxu0
      %v2043 = vadd.f32 0.0, %v2042
      %v2044 = vpop.f32.mrf.mxu0
      %2045 = vmatprep.mubr.bf16.mxu0 0
      %2046 = vmatmul.mubr.bf16.gmra.mxu0 %v1928
      %v2047 = vpop.f32.mrf.mxu0
      %v2048 = vadd.f32 0.0, %v2047
      %v2049 = vpop.f32.mrf.mxu0
      %v2050 = vpop.f32.mrf.mxu0
      %v2051 = vadd.f32 0.0, %v2050
      %v2052 = vpop.f32.mrf.mxu0
      %2053 = vmatprep.mubr.bf16.mxu0 0
      %2054 = vmatmul.mubr.bf16.gmra.mxu0 %v1931
      %v2055 = vpop.f32.mrf.mxu0
      %v2056 = vadd.f32 0.0, %v2055
      %v2057 = vpop.f32.mrf.mxu0
      %v2058 = vpop.f32.mrf.mxu0
      %v2059 = vadd.f32 0.0, %v2058
      %v2060 = vpop.f32.mrf.mxu0
      %2061 = vmatprep.mubr.bf16.mxu0 0
      %2062 = vmatmul.mubr.bf16.gmra.mxu0 %v1934
      %v2063 = vpop.f32.mrf.mxu0
      %v2064 = vadd.f32 0.0, %v2063
      %v2065 = vpop.f32.mrf.mxu0
      %v2066 = vpop.f32.mrf.mxu0
      %v2067 = vadd.f32 0.0, %v2066
      %v2068 = vpop.f32.mrf.mxu0
      %2069 = vmatprep.mubr.bf16.mxu0 0
      %2070 = vmatmul.mubr.bf16.gmra.mxu0 %v1937
      %v2071 = vpop.f32.mrf.mxu0
      %v2072 = vadd.f32 0.0, %v2071
      %v2073 = vpop.f32.mrf.mxu0
      %v2074 = vpop.f32.mrf.mxu0
      %v2075 = vadd.f32 0.0, %v2074
      %v2076 = vpop.f32.mrf.mxu0
      %2077 = vmatprep.mubr.bf16.mxu0 0
      %2078 = vmatmul.mubr.bf16.gmra.mxu0 %v1940
      %v2079 = vpop.f32.mrf.mxu0
      %v2080 = vadd.f32 0.0, %v2079
      %v2081 = vpop.f32.mrf.mxu0
      %v2082 = vpop.f32.mrf.mxu0
      %v2083 = vadd.f32 0.0, %v2082
      %v2084 = vpop.f32.mrf.mxu0
      %2085 = vmatprep.mubr.bf16.mxu0 0
      %2086 = vmatmul.mubr.bf16.gmra.mxu0 %v1943
      %v2087 = vpop.f32.mrf.mxu0
      %v2088 = vadd.f32 0.0, %v2087
      %v2089 = vpop.f32.mrf.mxu0
      %v2090 = vpop.f32.mrf.mxu0
      %v2091 = vadd.f32 0.0, %v2090
      %v2092 = vpop.f32.mrf.mxu0
      %2093 = vmatprep.mubr.bf16.mxu0 0
      %2094 = vmatmul.mubr.bf16.gmra.mxu0 %v1946
      %v2095 = vpop.f32.mrf.mxu0
      %v2096 = vadd.f32 0.0, %v2095
      %v2097 = vpop.f32.mrf.mxu0
      %v2098 = vpop.f32.mrf.mxu0
      %v2099 = vadd.f32 0.0, %v2098
      %v2100 = vpop.f32.mrf.mxu0
      %2101 = vmatprep.mubr.bf16.mxu0 0
      %2102 = vmatmul.mubr.bf16.gmra.mxu0 %v1949
      %v2103 = vpop.f32.mrf.mxu0
      %v2104 = vadd.f32 0.0, %v2103
      %v2105 = vpop.f32.mrf.mxu0
      %v2106 = vpop.f32.mrf.mxu0
      %v2107 = vadd.f32 0.0, %v2106
      %v2108 = vpop.f32.mrf.mxu0
      %2109 = vmatprep.mubr.bf16.mxu0 0
      %2110 = vmatmul.mubr.bf16.gmra.mxu0 %v1952
      %v2111 = vpop.f32.mrf.mxu0
      %v2112 = vadd.f32 0.0, %v2111
      %v2113 = vpop.f32.mrf.mxu0
      %v2114 = vpop.f32.mrf.mxu0
      %v2115 = vadd.f32 0.0, %v2114
      %v2116 = vpop.f32.mrf.mxu0
      %2117 = vdwg.mxu0
      %v2118 = vadd.f32 %v1805, %v1992
      %v2119 = vadd.f32 %v1806, %v1995
      %v2120 = vadd.f32 %v1807, %v2000
      %v2121 = vadd.f32 %v1808, %v2003
      %v2122 = vadd.f32 %v1809, %v2008
      %v2123 = vadd.f32 %v1810, %v2011
      %v2124 = vadd.f32 %v1811, %v2016
      %v2125 = vadd.f32 %v1812, %v2019
      %v2126 = vadd.f32 %v1813, %v2024
      %v2127 = vadd.f32 %v1814, %v2027
      %v2128 = vadd.f32 %v1815, %v2032
      %v2129 = vadd.f32 %v1816, %v2035
      %v2130 = vadd.f32 %v1817, %v2040
      %v2131 = vadd.f32 %v1818, %v2043
      %v2132 = vadd.f32 %v1819, %v2048
      %v2133 = vadd.f32 %v1820, %v2051
      %v2134 = vadd.f32 %v1821, %v2056
      %v2135 = vadd.f32 %v1822, %v2059
      %v2136 = vadd.f32 %v1823, %v2064
      %v2137 = vadd.f32 %v1824, %v2067
      %v2138 = vadd.f32 %v1825, %v2072
      %v2139 = vadd.f32 %v1826, %v2075
      %v2140 = vadd.f32 %v1827, %v2080
      %v2141 = vadd.f32 %v1828, %v2083
      %v2142 = vadd.f32 %v1829, %v2088
      %v2143 = vadd.f32 %v1830, %v2091
      %v2144 = vadd.f32 %v1831, %v2096
      %v2145 = vadd.f32 %v1832, %v2099
      %v2146 = vadd.f32 %v1833, %v2104
      %v2147 = vadd.f32 %v1834, %v2107
      %v2148 = vadd.f32 %v1835, %v2112
      %v2149 = vadd.f32 %v1836, %v2115
      %s2150 = scalar_lea.vmem %s327, 48
      %v2151 = vld [vmem:[%s2150] sm:$0xff]
      %v2152 = vld [vmem:[%s2150 + $0x8] sm:$0xff]
      %v2153 = vld [vmem:[%s2150 + $0x18] sm:$0xff]
      %v2154 = vld [vmem:[%s2150 + $0x20] sm:$0xff]
      %v2155 = vld [vmem:[%s2150 + $0x30] sm:$0xff]
      %v2156 = vld [vmem:[%s2150 + $0x38] sm:$0xff]
      %v2157 = vld [vmem:[%s2150 + $0x48] sm:$0xff]
      %v2158 = vld [vmem:[%s2150 + $0x50] sm:$0xff]
      %v2159 = vld [vmem:[%s2150 + $0x60] sm:$0xff]
      %v2160 = vld [vmem:[%s2150 + $0x68] sm:$0xff]
      %v2161 = vld [vmem:[%s2150 + $0x78] sm:$0xff]
      %v2162 = vld [vmem:[%s2150 + $0x80] sm:$0xff]
      %v2163 = vld [vmem:[%s2150 + $0x90] sm:$0xff]
      %v2164 = vld [vmem:[%s2150 + $0x98] sm:$0xff]
      %v2165 = vld [vmem:[%s2150 + $0xa8] sm:$0xff]
      %v2166 = vld [vmem:[%s2150 + $0xb0] sm:$0xff]
      %v2167 = vld [vmem:[%s2150 + $0xc0] sm:$0xff]
      %v2168 = vld [vmem:[%s2150 + $0xc8] sm:$0xff]
      %v2169 = vld [vmem:[%s2150 + $0xd8] sm:$0xff]
      %v2170 = vld [vmem:[%s2150 + $0xe0] sm:$0xff]
      %v2171 = vld [vmem:[%s2150 + $0xf0] sm:$0xff]
      %v2172 = vld [vmem:[%s2150 + $0xf8] sm:$0xff]
      %v2173 = vld [vmem:[%s2150 + $0x108] sm:$0xff]
      %v2174 = vld [vmem:[%s2150 + $0x110] sm:$0xff]
      %v2175 = vld [vmem:[%s2150 + $0x120] sm:$0xff]
      %v2176 = vld [vmem:[%s2150 + $0x128] sm:$0xff]
      %v2177 = vld [vmem:[%s2150 + $0x138] sm:$0xff]
      %v2178 = vld [vmem:[%s2150 + $0x140] sm:$0xff]
      %v2179 = vld [vmem:[%s2150 + $0x150] sm:$0xff]
      %v2180 = vld [vmem:[%s2150 + $0x158] sm:$0xff]
      %v2181 = vld [vmem:[%s2150 + $0x168] sm:$0xff]
      %v2182 = vld [vmem:[%s2150 + $0x170] sm:$0xff]
      %v2183 = vpack.c.bf16 %v2152, %v2151
      %v2184 = vpack.c.bf16 %v2154, %v2153
      %v2185 = vpack.c.bf16 %v2156, %v2155
      %v2186 = vpack.c.bf16 %v2158, %v2157
      %v2187 = vpack.c.bf16 %v2160, %v2159
      %v2188 = vpack.c.bf16 %v2162, %v2161
      %v2189 = vpack.c.bf16 %v2164, %v2163
      %v2190 = vpack.c.bf16 %v2166, %v2165
      %v2191 = vpack.c.bf16 %v2168, %v2167
      %v2192 = vpack.c.bf16 %v2170, %v2169
      %v2193 = vpack.c.bf16 %v2172, %v2171
      %v2194 = vpack.c.bf16 %v2174, %v2173
      %v2195 = vpack.c.bf16 %v2176, %v2175
      %v2196 = vpack.c.bf16 %v2178, %v2177
      %v2197 = vpack.c.bf16 %v2180, %v2179
      %v2198 = vpack.c.bf16 %v2182, %v2181
      %s2199 = scalar_lea.vmem %s1, 120
      %v2200 = vld [vmem:[%s2199] sm:$0xf]
      %v2201 = vld [vmem:[%s2199 + $0x4] sm:$0xf]
      %v2202 = vld [vmem:[%s2199 + $0x8] sm:$0xf]
      %v2203 = vld [vmem:[%s2199 + $0xc] sm:$0xf]
      %v2204 = vld [vmem:[%s2199 + $0x10] sm:$0xf]
      %v2210 = vunpack.c.l.b16 %v2200
      %v2211 = vunpack.c.l.b16 %v2201
      %v2212 = vunpack.c.l.b16 %v2202
      %v2213 = vunpack.c.l.b16 %v2203
      %v2214 = vunpack.c.l.b16 %v2204
      %v2215 = vpack.c.b16 %v2211, %v2210
      %v2216 = vpack.c.b16 %v2213, %v2212
      %v2217 = vpack.c.b16 %v2214, %v2214
      %v2221 = vsel %vm456, %v2183, 0
      %v2224 = vsel %vm456, %v2184, 0
      %v2227 = vsel %vm456, %v2185, 0
      %v2230 = vsel %vm456, %v2186, 0
      %v2233 = vsel %vm456, %v2187, 0
      %v2236 = vsel %vm456, %v2188, 0
      %v2239 = vsel %vm456, %v2189, 0
      %v2242 = vsel %vm456, %v2190, 0
      %v2245 = vsel %vm456, %v2191, 0
      %v2248 = vsel %vm456, %v2192, 0
      %v2251 = vsel %vm456, %v2193, 0
      %v2254 = vsel %vm456, %v2194, 0
      %v2257 = vsel %vm456, %v2195, 0
      %v2260 = vsel %vm456, %v2196, 0
      %v2263 = vsel %vm456, %v2197, 0
      %v2266 = vsel %vm456, %v2198, 0
      %v2269 = vsel %vm505, %v2217, 0
      %2271 = vmatprep.subr.bf16.mxu0 0
      %2272 = vmatpush1.bf16.msra.mxu0 0
      %2273 = vmatprep.subr.bf16.mxu0 0
      %2274 = vmatpush1.bf16.msra.mxu0 0
      %2275 = vmatprep.subr.bf16.mxu0 0
      %2276 = vmatpush1.bf16.msra.mxu0 0
      %2277 = vmatprep.subr.bf16.mxu0 0
      %2278 = vmatpush1.bf16.msra.mxu0 0
      %2279 = vmatprep.subr.bf16.mxu0 0
      %2280 = vmatpush1.bf16.msra.mxu0 0
      %2281 = vmatprep.subr.bf16.mxu0 0
      %2282 = vmatpush1.bf16.msra.mxu0 %v2269
      %2283 = vmatprep.subr.bf16.mxu0 0
      %2284 = vmatpush1.bf16.msra.mxu0 %v2216
      %2285 = vmatprep.subr.bf16.mxu0 0
      %2286 = vmatpush1.bf16.msra.mxu0 %v2215
      %2287 = vmatprep.subr.bf16.mxu0 0
      %2288 = vmatpush2.bf16.msra.mxu0 0
      %2289 = vmatprep.subr.bf16.mxu0 0
      %2290 = vmatpush2.bf16.msra.mxu0 0
      %2291 = vmatprep.subr.bf16.mxu0 0
      %2292 = vmatpush2.bf16.msra.mxu0 0
      %2293 = vmatprep.subr.bf16.mxu0 0
      %2294 = vmatpush2.bf16.msra.mxu0 0
      %2295 = vmatprep.subr.bf16.mxu0 0
      %2296 = vmatpush2.bf16.msra.mxu0 0
      %2297 = vmatprep.subr.bf16.mxu0 0
      %2298 = vmatpush2.bf16.msra.mxu0 0
      %2299 = vmatprep.subr.bf16.mxu0 0
      %2300 = vmatpush2.bf16.msra.mxu0 0
      %2301 = vmatprep.subr.bf16.mxu0 0
      %2302 = vmatpush2.bf16.msra.mxu0 0
      %2303 = vmatprep.mubr.bf16.mxu0 0
      %2304 = vmatmul.mubr.bf16.gmra.mxu0 %v2221
      %v2305 = vpop.f32.mrf.mxu0
      %v2306 = vadd.f32 0.0, %v2305
      %v2307 = vpop.f32.mrf.mxu0
      %v2308 = vpop.f32.mrf.mxu0
      %v2309 = vadd.f32 0.0, %v2308
      %v2310 = vpop.f32.mrf.mxu0
      %2311 = vmatprep.mubr.bf16.mxu0 0
      %2312 = vmatmul.mubr.bf16.gmra.mxu0 %v2224
      %v2313 = vpop.f32.mrf.mxu0
      %v2314 = vadd.f32 0.0, %v2313
      %v2315 = vpop.f32.mrf.mxu0
      %v2316 = vpop.f32.mrf.mxu0
      %v2317 = vadd.f32 0.0, %v2316
      %v2318 = vpop.f32.mrf.mxu0
      %2319 = vmatprep.mubr.bf16.mxu0 0
      %2320 = vmatmul.mubr.bf16.gmra.mxu0 %v2227
      %v2321 = vpop.f32.mrf.mxu0
      %v2322 = vadd.f32 0.0, %v2321
      %v2323 = vpop.f32.mrf.mxu0
      %v2324 = vpop.f32.mrf.mxu0
      %v2325 = vadd.f32 0.0, %v2324
      %v2326 = vpop.f32.mrf.mxu0
      %2327 = vmatprep.mubr.bf16.mxu0 0
      %2328 = vmatmul.mubr.bf16.gmra.mxu0 %v2230
      %v2329 = vpop.f32.mrf.mxu0
      %v2330 = vadd.f32 0.0, %v2329
      %v2331 = vpop.f32.mrf.mxu0
      %v2332 = vpop.f32.mrf.mxu0
      %v2333 = vadd.f32 0.0, %v2332
      %v2334 = vpop.f32.mrf.mxu0
      %2335 = vmatprep.mubr.bf16.mxu0 0
      %2336 = vmatmul.mubr.bf16.gmra.mxu0 %v2233
      %v2337 = vpop.f32.mrf.mxu0
      %v2338 = vadd.f32 0.0, %v2337
      %v2339 = vpop.f32.mrf.mxu0
      %v2340 = vpop.f32.mrf.mxu0
      %v2341 = vadd.f32 0.0, %v2340
      %v2342 = vpop.f32.mrf.mxu0
      %2343 = vmatprep.mubr.bf16.mxu0 0
      %2344 = vmatmul.mubr.bf16.gmra.mxu0 %v2236
      %v2345 = vpop.f32.mrf.mxu0
      %v2346 = vadd.f32 0.0, %v2345
      %v2347 = vpop.f32.mrf.mxu0
      %v2348 = vpop.f32.mrf.mxu0
      %v2349 = vadd.f32 0.0, %v2348
      %v2350 = vpop.f32.mrf.mxu0
      %2351 = vmatprep.mubr.bf16.mxu0 0
      %2352 = vmatmul.mubr.bf16.gmra.mxu0 %v2239
      %v2353 = vpop.f32.mrf.mxu0
      %v2354 = vadd.f32 0.0, %v2353
      %v2355 = vpop.f32.mrf.mxu0
      %v2356 = vpop.f32.mrf.mxu0
      %v2357 = vadd.f32 0.0, %v2356
      %v2358 = vpop.f32.mrf.mxu0
      %2359 = vmatprep.mubr.bf16.mxu0 0
      %2360 = vmatmul.mubr.bf16.gmra.mxu0 %v2242
      %v2361 = vpop.f32.mrf.mxu0
      %v2362 = vadd.f32 0.0, %v2361
      %v2363 = vpop.f32.mrf.mxu0
      %v2364 = vpop.f32.mrf.mxu0
      %v2365 = vadd.f32 0.0, %v2364
      %v2366 = vpop.f32.mrf.mxu0
      %2367 = vmatprep.mubr.bf16.mxu0 0
      %2368 = vmatmul.mubr.bf16.gmra.mxu0 %v2245
      %v2369 = vpop.f32.mrf.mxu0
      %v2370 = vadd.f32 0.0, %v2369
      %v2371 = vpop.f32.mrf.mxu0
      %v2372 = vpop.f32.mrf.mxu0
      %v2373 = vadd.f32 0.0, %v2372
      %v2374 = vpop.f32.mrf.mxu0
      %2375 = vmatprep.mubr.bf16.mxu0 0
      %2376 = vmatmul.mubr.bf16.gmra.mxu0 %v2248
      %v2377 = vpop.f32.mrf.mxu0
      %v2378 = vadd.f32 0.0, %v2377
      %v2379 = vpop.f32.mrf.mxu0
      %v2380 = vpop.f32.mrf.mxu0
      %v2381 = vadd.f32 0.0, %v2380
      %v2382 = vpop.f32.mrf.mxu0
      %2383 = vmatprep.mubr.bf16.mxu0 0
      %2384 = vmatmul.mubr.bf16.gmra.mxu0 %v2251
      %v2385 = vpop.f32.mrf.mxu0
      %v2386 = vadd.f32 0.0, %v2385
      %v2387 = vpop.f32.mrf.mxu0
      %v2388 = vpop.f32.mrf.mxu0
      %v2389 = vadd.f32 0.0, %v2388
      %v2390 = vpop.f32.mrf.mxu0
      %2391 = vmatprep.mubr.bf16.mxu0 0
      %2392 = vmatmul.mubr.bf16.gmra.mxu0 %v2254
      %v2393 = vpop.f32.mrf.mxu0
      %v2394 = vadd.f32 0.0, %v2393
      %v2395 = vpop.f32.mrf.mxu0
      %v2396 = vpop.f32.mrf.mxu0
      %v2397 = vadd.f32 0.0, %v2396
      %v2398 = vpop.f32.mrf.mxu0
      %2399 = vmatprep.mubr.bf16.mxu0 0
      %2400 = vmatmul.mubr.bf16.gmra.mxu0 %v2257
      %v2401 = vpop.f32.mrf.mxu0
      %v2402 = vadd.f32 0.0, %v2401
      %v2403 = vpop.f32.mrf.mxu0
      %v2404 = vpop.f32.mrf.mxu0
      %v2405 = vadd.f32 0.0, %v2404
      %v2406 = vpop.f32.mrf.mxu0
      %2407 = vmatprep.mubr.bf16.mxu0 0
      %2408 = vmatmul.mubr.bf16.gmra.mxu0 %v2260
      %v2409 = vpop.f32.mrf.mxu0
      %v2410 = vadd.f32 0.0, %v2409
      %v2411 = vpop.f32.mrf.mxu0
      %v2412 = vpop.f32.mrf.mxu0
      %v2413 = vadd.f32 0.0, %v2412
      %v2414 = vpop.f32.mrf.mxu0
      %2415 = vmatprep.mubr.bf16.mxu0 0
      %2416 = vmatmul.mubr.bf16.gmra.mxu0 %v2263
      %v2417 = vpop.f32.mrf.mxu0
      %v2418 = vadd.f32 0.0, %v2417
      %v2419 = vpop.f32.mrf.mxu0
      %v2420 = vpop.f32.mrf.mxu0
      %v2421 = vadd.f32 0.0, %v2420
      %v2422 = vpop.f32.mrf.mxu0
      %2423 = vmatprep.mubr.bf16.mxu0 0
      %2424 = vmatmul.mubr.bf16.gmra.mxu0 %v2266
      %v2425 = vpop.f32.mrf.mxu0
      %v2426 = vadd.f32 0.0, %v2425
      %v2427 = vpop.f32.mrf.mxu0
      %v2428 = vpop.f32.mrf.mxu0
      %v2429 = vadd.f32 0.0, %v2428
      %v2430 = vpop.f32.mrf.mxu0
      %2431 = vdwg.mxu0
      %v2432 = vadd.f32 %v2118, %v2306
      %v2433 = vadd.f32 %v2119, %v2309
      %v2434 = vadd.f32 %v2120, %v2314
      %v2435 = vadd.f32 %v2121, %v2317
      %v2436 = vadd.f32 %v2122, %v2322
      %v2437 = vadd.f32 %v2123, %v2325
      %v2438 = vadd.f32 %v2124, %v2330
      %v2439 = vadd.f32 %v2125, %v2333
      %v2440 = vadd.f32 %v2126, %v2338
      %v2441 = vadd.f32 %v2127, %v2341
      %v2442 = vadd.f32 %v2128, %v2346
      %v2443 = vadd.f32 %v2129, %v2349
      %v2444 = vadd.f32 %v2130, %v2354
      %v2445 = vadd.f32 %v2131, %v2357
      %v2446 = vadd.f32 %v2132, %v2362
      %v2447 = vadd.f32 %v2133, %v2365
      %v2448 = vadd.f32 %v2134, %v2370
      %v2449 = vadd.f32 %v2135, %v2373
      %v2450 = vadd.f32 %v2136, %v2378
      %v2451 = vadd.f32 %v2137, %v2381
      %v2452 = vadd.f32 %v2138, %v2386
      %v2453 = vadd.f32 %v2139, %v2389
      %v2454 = vadd.f32 %v2140, %v2394
      %v2455 = vadd.f32 %v2141, %v2397
      %v2456 = vadd.f32 %v2142, %v2402
      %v2457 = vadd.f32 %v2143, %v2405
      %v2458 = vadd.f32 %v2144, %v2410
      %v2459 = vadd.f32 %v2145, %v2413
      %v2460 = vadd.f32 %v2146, %v2418
      %v2461 = vadd.f32 %v2147, %v2421
      %v2462 = vadd.f32 %v2148, %v2426
      %v2463 = vadd.f32 %v2149, %v2429
      %v2464 = vld [vmem:[%s2150 + $0x1] sm:$0xff]
      %v2465 = vld [vmem:[%s2150 + $0x9] sm:$0xff]
      %v2466 = vld [vmem:[%s2150 + $0x19] sm:$0xff]
      %v2467 = vld [vmem:[%s2150 + $0x21] sm:$0xff]
      %v2468 = vld [vmem:[%s2150 + $0x31] sm:$0xff]
      %v2469 = vld [vmem:[%s2150 + $0x39] sm:$0xff]
      %v2470 = vld [vmem:[%s2150 + $0x49] sm:$0xff]
      %v2471 = vld [vmem:[%s2150 + $0x51] sm:$0xff]
      %v2472 = vld [vmem:[%s2150 + $0x61] sm:$0xff]
      %v2473 = vld [vmem:[%s2150 + $0x69] sm:$0xff]
      %v2474 = vld [vmem:[%s2150 + $0x79] sm:$0xff]
      %v2475 = vld [vmem:[%s2150 + $0x81] sm:$0xff]
      %v2476 = vld [vmem:[%s2150 + $0x91] sm:$0xff]
      %v2477 = vld [vmem:[%s2150 + $0x99] sm:$0xff]
      %v2478 = vld [vmem:[%s2150 + $0xa9] sm:$0xff]
      %v2479 = vld [vmem:[%s2150 + $0xb1] sm:$0xff]
      %v2480 = vld [vmem:[%s2150 + $0xc1] sm:$0xff]
      %v2481 = vld [vmem:[%s2150 + $0xc9] sm:$0xff]
      %v2482 = vld [vmem:[%s2150 + $0xd9] sm:$0xff]
      %v2483 = vld [vmem:[%s2150 + $0xe1] sm:$0xff]
      %v2484 = vld [vmem:[%s2150 + $0xf1] sm:$0xff]
      %v2485 = vld [vmem:[%s2150 + $0xf9] sm:$0xff]
      %v2486 = vld [vmem:[%s2150 + $0x109] sm:$0xff]
      %v2487 = vld [vmem:[%s2150 + $0x111] sm:$0xff]
      %v2488 = vld [vmem:[%s2150 + $0x121] sm:$0xff]
      %v2489 = vld [vmem:[%s2150 + $0x129] sm:$0xff]
      %v2490 = vld [vmem:[%s2150 + $0x139] sm:$0xff]
      %v2491 = vld [vmem:[%s2150 + $0x141] sm:$0xff]
      %v2492 = vld [vmem:[%s2150 + $0x151] sm:$0xff]
      %v2493 = vld [vmem:[%s2150 + $0x159] sm:$0xff]
      %v2494 = vld [vmem:[%s2150 + $0x169] sm:$0xff]
      %v2495 = vld [vmem:[%s2150 + $0x171] sm:$0xff]
      %v2496 = vpack.c.bf16 %v2465, %v2464
      %v2497 = vpack.c.bf16 %v2467, %v2466
      %v2498 = vpack.c.bf16 %v2469, %v2468
      %v2499 = vpack.c.bf16 %v2471, %v2470
      %v2500 = vpack.c.bf16 %v2473, %v2472
      %v2501 = vpack.c.bf16 %v2475, %v2474
      %v2502 = vpack.c.bf16 %v2477, %v2476
      %v2503 = vpack.c.bf16 %v2479, %v2478
      %v2504 = vpack.c.bf16 %v2481, %v2480
      %v2505 = vpack.c.bf16 %v2483, %v2482
      %v2506 = vpack.c.bf16 %v2485, %v2484
      %v2507 = vpack.c.bf16 %v2487, %v2486
      %v2508 = vpack.c.bf16 %v2489, %v2488
      %v2509 = vpack.c.bf16 %v2491, %v2490
      %v2510 = vpack.c.bf16 %v2493, %v2492
      %v2511 = vpack.c.bf16 %v2495, %v2494
      %s2512 = scalar_lea.vmem %s1, 140
      %v2513 = vld [vmem:[%s2512] sm:$0xf]
      %v2514 = vld [vmem:[%s2512 + $0x4] sm:$0xf]
      %v2515 = vld [vmem:[%s2512 + $0x8] sm:$0xf]
      %v2516 = vld [vmem:[%s2512 + $0xc] sm:$0xf]
      %v2517 = vld [vmem:[%s2512 + $0x10] sm:$0xf]
      %v2523 = vunpack.c.l.b16 %v2513
      %v2524 = vunpack.c.l.b16 %v2514
      %v2525 = vunpack.c.l.b16 %v2515
      %v2526 = vunpack.c.l.b16 %v2516
      %v2527 = vunpack.c.l.b16 %v2517
      %v2528 = vpack.c.b16 %v2524, %v2523
      %v2529 = vpack.c.b16 %v2526, %v2525
      %v2530 = vpack.c.b16 %v2527, %v2527
      %v2534 = vsel %vm456, %v2496, 0
      %v2537 = vsel %vm456, %v2497, 0
      %v2540 = vsel %vm456, %v2498, 0
      %v2543 = vsel %vm456, %v2499, 0
      %v2546 = vsel %vm456, %v2500, 0
      %v2549 = vsel %vm456, %v2501, 0
      %v2552 = vsel %vm456, %v2502, 0
      %v2555 = vsel %vm456, %v2503, 0
      %v2558 = vsel %vm456, %v2504, 0
      %v2561 = vsel %vm456, %v2505, 0
      %v2564 = vsel %vm456, %v2506, 0
      %v2567 = vsel %vm456, %v2507, 0
      %v2570 = vsel %vm456, %v2508, 0
      %v2573 = vsel %vm456, %v2509, 0
      %v2576 = vsel %vm456, %v2510, 0
      %v2579 = vsel %vm456, %v2511, 0
      %v2582 = vsel %vm505, %v2530, 0
      %2584 = vmatprep.subr.bf16.mxu0 0
      %2585 = vmatpush1.bf16.msra.mxu0 0
      %2586 = vmatprep.subr.bf16.mxu0 0
      %2587 = vmatpush1.bf16.msra.mxu0 0
      %2588 = vmatprep.subr.bf16.mxu0 0
      %2589 = vmatpush1.bf16.msra.mxu0 0
      %2590 = vmatprep.subr.bf16.mxu0 0
      %2591 = vmatpush1.bf16.msra.mxu0 0
      %2592 = vmatprep.subr.bf16.mxu0 0
      %2593 = vmatpush1.bf16.msra.mxu0 0
      %2594 = vmatprep.subr.bf16.mxu0 0
      %2595 = vmatpush1.bf16.msra.mxu0 %v2582
      %2596 = vmatprep.subr.bf16.mxu0 0
      %2597 = vmatpush1.bf16.msra.mxu0 %v2529
      %2598 = vmatprep.subr.bf16.mxu0 0
      %2599 = vmatpush1.bf16.msra.mxu0 %v2528
      %2600 = vmatprep.subr.bf16.mxu0 0
      %2601 = vmatpush2.bf16.msra.mxu0 0
      %2602 = vmatprep.subr.bf16.mxu0 0
      %2603 = vmatpush2.bf16.msra.mxu0 0
      %2604 = vmatprep.subr.bf16.mxu0 0
      %2605 = vmatpush2.bf16.msra.mxu0 0
      %2606 = vmatprep.subr.bf16.mxu0 0
      %2607 = vmatpush2.bf16.msra.mxu0 0
      %2608 = vmatprep.subr.bf16.mxu0 0
      %2609 = vmatpush2.bf16.msra.mxu0 0
      %2610 = vmatprep.subr.bf16.mxu0 0
      %2611 = vmatpush2.bf16.msra.mxu0 0
      %2612 = vmatprep.subr.bf16.mxu0 0
      %2613 = vmatpush2.bf16.msra.mxu0 0
      %2614 = vmatprep.subr.bf16.mxu0 0
      %2615 = vmatpush2.bf16.msra.mxu0 0
      %2616 = vmatprep.mubr.bf16.mxu0 0
      %2617 = vmatmul.mubr.bf16.gmra.mxu0 %v2534
      %v2618 = vpop.f32.mrf.mxu0
      %v2619 = vadd.f32 0.0, %v2618
      %v2620 = vpop.f32.mrf.mxu0
      %v2621 = vpop.f32.mrf.mxu0
      %v2622 = vadd.f32 0.0, %v2621
      %v2623 = vpop.f32.mrf.mxu0
      %2624 = vmatprep.mubr.bf16.mxu0 0
      %2625 = vmatmul.mubr.bf16.gmra.mxu0 %v2537
      %v2626 = vpop.f32.mrf.mxu0
      %v2627 = vadd.f32 0.0, %v2626
      %v2628 = vpop.f32.mrf.mxu0
      %v2629 = vpop.f32.mrf.mxu0
      %v2630 = vadd.f32 0.0, %v2629
      %v2631 = vpop.f32.mrf.mxu0
      %2632 = vmatprep.mubr.bf16.mxu0 0
      %2633 = vmatmul.mubr.bf16.gmra.mxu0 %v2540
      %v2634 = vpop.f32.mrf.mxu0
      %v2635 = vadd.f32 0.0, %v2634
      %v2636 = vpop.f32.mrf.mxu0
      %v2637 = vpop.f32.mrf.mxu0
      %v2638 = vadd.f32 0.0, %v2637
      %v2639 = vpop.f32.mrf.mxu0
      %2640 = vmatprep.mubr.bf16.mxu0 0
      %2641 = vmatmul.mubr.bf16.gmra.mxu0 %v2543
      %v2642 = vpop.f32.mrf.mxu0
      %v2643 = vadd.f32 0.0, %v2642
      %v2644 = vpop.f32.mrf.mxu0
      %v2645 = vpop.f32.mrf.mxu0
      %v2646 = vadd.f32 0.0, %v2645
      %v2647 = vpop.f32.mrf.mxu0
      %2648 = vmatprep.mubr.bf16.mxu0 0
      %2649 = vmatmul.mubr.bf16.gmra.mxu0 %v2546
      %v2650 = vpop.f32.mrf.mxu0
      %v2651 = vadd.f32 0.0, %v2650
      %v2652 = vpop.f32.mrf.mxu0
      %v2653 = vpop.f32.mrf.mxu0
      %v2654 = vadd.f32 0.0, %v2653
      %v2655 = vpop.f32.mrf.mxu0
      %2656 = vmatprep.mubr.bf16.mxu0 0
      %2657 = vmatmul.mubr.bf16.gmra.mxu0 %v2549
      %v2658 = vpop.f32.mrf.mxu0
      %v2659 = vadd.f32 0.0, %v2658
      %v2660 = vpop.f32.mrf.mxu0
      %v2661 = vpop.f32.mrf.mxu0
      %v2662 = vadd.f32 0.0, %v2661
      %v2663 = vpop.f32.mrf.mxu0
      %2664 = vmatprep.mubr.bf16.mxu0 0
      %2665 = vmatmul.mubr.bf16.gmra.mxu0 %v2552
      %v2666 = vpop.f32.mrf.mxu0
      %v2667 = vadd.f32 0.0, %v2666
      %v2668 = vpop.f32.mrf.mxu0
      %v2669 = vpop.f32.mrf.mxu0
      %v2670 = vadd.f32 0.0, %v2669
      %v2671 = vpop.f32.mrf.mxu0
      %2672 = vmatprep.mubr.bf16.mxu0 0
      %2673 = vmatmul.mubr.bf16.gmra.mxu0 %v2555
      %v2674 = vpop.f32.mrf.mxu0
      %v2675 = vadd.f32 0.0, %v2674
      %v2676 = vpop.f32.mrf.mxu0
      %v2677 = vpop.f32.mrf.mxu0
      %v2678 = vadd.f32 0.0, %v2677
      %v2679 = vpop.f32.mrf.mxu0
      %2680 = vmatprep.mubr.bf16.mxu0 0
      %2681 = vmatmul.mubr.bf16.gmra.mxu0 %v2558
      %v2682 = vpop.f32.mrf.mxu0
      %v2683 = vadd.f32 0.0, %v2682
      %v2684 = vpop.f32.mrf.mxu0
      %v2685 = vpop.f32.mrf.mxu0
      %v2686 = vadd.f32 0.0, %v2685
      %v2687 = vpop.f32.mrf.mxu0
      %2688 = vmatprep.mubr.bf16.mxu0 0
      %2689 = vmatmul.mubr.bf16.gmra.mxu0 %v2561
      %v2690 = vpop.f32.mrf.mxu0
      %v2691 = vadd.f32 0.0, %v2690
      %v2692 = vpop.f32.mrf.mxu0
      %v2693 = vpop.f32.mrf.mxu0
      %v2694 = vadd.f32 0.0, %v2693
      %v2695 = vpop.f32.mrf.mxu0
      %2696 = vmatprep.mubr.bf16.mxu0 0
      %2697 = vmatmul.mubr.bf16.gmra.mxu0 %v2564
      %v2698 = vpop.f32.mrf.mxu0
      %v2699 = vadd.f32 0.0, %v2698
      %v2700 = vpop.f32.mrf.mxu0
      %v2701 = vpop.f32.mrf.mxu0
      %v2702 = vadd.f32 0.0, %v2701
      %v2703 = vpop.f32.mrf.mxu0
      %2704 = vmatprep.mubr.bf16.mxu0 0
      %2705 = vmatmul.mubr.bf16.gmra.mxu0 %v2567
      %v2706 = vpop.f32.mrf.mxu0
      %v2707 = vadd.f32 0.0, %v2706
      %v2708 = vpop.f32.mrf.mxu0
      %v2709 = vpop.f32.mrf.mxu0
      %v2710 = vadd.f32 0.0, %v2709
      %v2711 = vpop.f32.mrf.mxu0
      %2712 = vmatprep.mubr.bf16.mxu0 0
      %2713 = vmatmul.mubr.bf16.gmra.mxu0 %v2570
      %v2714 = vpop.f32.mrf.mxu0
      %v2715 = vadd.f32 0.0, %v2714
      %v2716 = vpop.f32.mrf.mxu0
      %v2717 = vpop.f32.mrf.mxu0
      %v2718 = vadd.f32 0.0, %v2717
      %v2719 = vpop.f32.mrf.mxu0
      %2720 = vmatprep.mubr.bf16.mxu0 0
      %2721 = vmatmul.mubr.bf16.gmra.mxu0 %v2573
      %v2722 = vpop.f32.mrf.mxu0
      %v2723 = vadd.f32 0.0, %v2722
      %v2724 = vpop.f32.mrf.mxu0
      %v2725 = vpop.f32.mrf.mxu0
      %v2726 = vadd.f32 0.0, %v2725
      %v2727 = vpop.f32.mrf.mxu0
      %2728 = vmatprep.mubr.bf16.mxu0 0
      %2729 = vmatmul.mubr.bf16.gmra.mxu0 %v2576
      %v2730 = vpop.f32.mrf.mxu0
      %v2731 = vadd.f32 0.0, %v2730
      %v2732 = vpop.f32.mrf.mxu0
      %v2733 = vpop.f32.mrf.mxu0
      %v2734 = vadd.f32 0.0, %v2733
      %v2735 = vpop.f32.mrf.mxu0
      %2736 = vmatprep.mubr.bf16.mxu0 0
      %2737 = vmatmul.mubr.bf16.gmra.mxu0 %v2579
      %v2738 = vpop.f32.mrf.mxu0
      %v2739 = vadd.f32 0.0, %v2738
      %v2740 = vpop.f32.mrf.mxu0
      %v2741 = vpop.f32.mrf.mxu0
      %v2742 = vadd.f32 0.0, %v2741
      %v2743 = vpop.f32.mrf.mxu0
      %2744 = vdwg.mxu0
      %v2745 = vadd.f32 %v2432, %v2619
      %v2746 = vadd.f32 %v2433, %v2622
      %v2747 = vadd.f32 %v2434, %v2627
      %v2748 = vadd.f32 %v2435, %v2630
      %v2749 = vadd.f32 %v2436, %v2635
      %v2750 = vadd.f32 %v2437, %v2638
      %v2751 = vadd.f32 %v2438, %v2643
      %v2752 = vadd.f32 %v2439, %v2646
      %v2753 = vadd.f32 %v2440, %v2651
      %v2754 = vadd.f32 %v2441, %v2654
      %v2755 = vadd.f32 %v2442, %v2659
      %v2756 = vadd.f32 %v2443, %v2662
      %v2757 = vadd.f32 %v2444, %v2667
      %v2758 = vadd.f32 %v2445, %v2670
      %v2759 = vadd.f32 %v2446, %v2675
      %v2760 = vadd.f32 %v2447, %v2678
      %v2761 = vadd.f32 %v2448, %v2683
      %v2762 = vadd.f32 %v2449, %v2686
      %v2763 = vadd.f32 %v2450, %v2691
      %v2764 = vadd.f32 %v2451, %v2694
      %v2765 = vadd.f32 %v2452, %v2699
      %v2766 = vadd.f32 %v2453, %v2702
      %v2767 = vadd.f32 %v2454, %v2707
      %v2768 = vadd.f32 %v2455, %v2710
      %v2769 = vadd.f32 %v2456, %v2715
      %v2770 = vadd.f32 %v2457, %v2718
      %v2771 = vadd.f32 %v2458, %v2723
      %v2772 = vadd.f32 %v2459, %v2726
      %v2773 = vadd.f32 %v2460, %v2731
      %v2774 = vadd.f32 %v2461, %v2734
      %v2775 = vadd.f32 %v2462, %v2739
      %v2776 = vadd.f32 %v2463, %v2742
      %v2777 = vld [vmem:[%s2150 + $0x2] sm:$0xff]
      %v2778 = vld [vmem:[%s2150 + $0xa] sm:$0xff]
      %v2779 = vld [vmem:[%s2150 + $0x1a] sm:$0xff]
      %v2780 = vld [vmem:[%s2150 + $0x22] sm:$0xff]
      %v2781 = vld [vmem:[%s2150 + $0x32] sm:$0xff]
      %v2782 = vld [vmem:[%s2150 + $0x3a] sm:$0xff]
      %v2783 = vld [vmem:[%s2150 + $0x4a] sm:$0xff]
      %v2784 = vld [vmem:[%s2150 + $0x52] sm:$0xff]
      %v2785 = vld [vmem:[%s2150 + $0x62] sm:$0xff]
      %v2786 = vld [vmem:[%s2150 + $0x6a] sm:$0xff]
      %v2787 = vld [vmem:[%s2150 + $0x7a] sm:$0xff]
      %v2788 = vld [vmem:[%s2150 + $0x82] sm:$0xff]
      %v2789 = vld [vmem:[%s2150 + $0x92] sm:$0xff]
      %v2790 = vld [vmem:[%s2150 + $0x9a] sm:$0xff]
      %v2791 = vld [vmem:[%s2150 + $0xaa] sm:$0xff]
      %v2792 = vld [vmem:[%s2150 + $0xb2] sm:$0xff]
      %v2793 = vld [vmem:[%s2150 + $0xc2] sm:$0xff]
      %v2794 = vld [vmem:[%s2150 + $0xca] sm:$0xff]
      %v2795 = vld [vmem:[%s2150 + $0xda] sm:$0xff]
      %v2796 = vld [vmem:[%s2150 + $0xe2] sm:$0xff]
      %v2797 = vld [vmem:[%s2150 + $0xf2] sm:$0xff]
      %v2798 = vld [vmem:[%s2150 + $0xfa] sm:$0xff]
      %v2799 = vld [vmem:[%s2150 + $0x10a] sm:$0xff]
      %v2800 = vld [vmem:[%s2150 + $0x112] sm:$0xff]
      %v2801 = vld [vmem:[%s2150 + $0x122] sm:$0xff]
      %v2802 = vld [vmem:[%s2150 + $0x12a] sm:$0xff]
      %v2803 = vld [vmem:[%s2150 + $0x13a] sm:$0xff]
      %v2804 = vld [vmem:[%s2150 + $0x142] sm:$0xff]
      %v2805 = vld [vmem:[%s2150 + $0x152] sm:$0xff]
      %v2806 = vld [vmem:[%s2150 + $0x15a] sm:$0xff]
      %v2807 = vld [vmem:[%s2150 + $0x16a] sm:$0xff]
      %v2808 = vld [vmem:[%s2150 + $0x172] sm:$0xff]
      %v2809 = vpack.c.bf16 %v2778, %v2777
      %v2810 = vpack.c.bf16 %v2780, %v2779
      %v2811 = vpack.c.bf16 %v2782, %v2781
      %v2812 = vpack.c.bf16 %v2784, %v2783
      %v2813 = vpack.c.bf16 %v2786, %v2785
      %v2814 = vpack.c.bf16 %v2788, %v2787
      %v2815 = vpack.c.bf16 %v2790, %v2789
      %v2816 = vpack.c.bf16 %v2792, %v2791
      %v2817 = vpack.c.bf16 %v2794, %v2793
      %v2818 = vpack.c.bf16 %v2796, %v2795
      %v2819 = vpack.c.bf16 %v2798, %v2797
      %v2820 = vpack.c.bf16 %v2800, %v2799
      %v2821 = vpack.c.bf16 %v2802, %v2801
      %v2822 = vpack.c.bf16 %v2804, %v2803
      %v2823 = vpack.c.bf16 %v2806, %v2805
      %v2824 = vpack.c.bf16 %v2808, %v2807
      %s2825 = scalar_lea.vmem %s1, 160
      %v2826 = vld [vmem:[%s2825] sm:$0xf]
      %v2827 = vld [vmem:[%s2825 + $0x4] sm:$0xf]
      %v2828 = vld [vmem:[%s2825 + $0x8] sm:$0xf]
      %v2829 = vld [vmem:[%s2825 + $0xc] sm:$0xf]
      %v2830 = vld [vmem:[%s2825 + $0x10] sm:$0xf]
      %v2836 = vunpack.c.l.b16 %v2826
      %v2837 = vunpack.c.l.b16 %v2827
      %v2838 = vunpack.c.l.b16 %v2828
      %v2839 = vunpack.c.l.b16 %v2829
      %v2840 = vunpack.c.l.b16 %v2830
      %v2841 = vpack.c.b16 %v2837, %v2836
      %v2842 = vpack.c.b16 %v2839, %v2838
      %v2843 = vpack.c.b16 %v2840, %v2840
      %v2847 = vsel %vm456, %v2809, 0
      %v2850 = vsel %vm456, %v2810, 0
      %v2853 = vsel %vm456, %v2811, 0
      %v2856 = vsel %vm456, %v2812, 0
      %v2859 = vsel %vm456, %v2813, 0
      %v2862 = vsel %vm456, %v2814, 0
      %v2865 = vsel %vm456, %v2815, 0
      %v2868 = vsel %vm456, %v2816, 0
      %v2871 = vsel %vm456, %v2817, 0
      %v2874 = vsel %vm456, %v2818, 0
      %v2877 = vsel %vm456, %v2819, 0
      %v2880 = vsel %vm456, %v2820, 0
      %v2883 = vsel %vm456, %v2821, 0
      %v2886 = vsel %vm456, %v2822, 0
      %v2889 = vsel %vm456, %v2823, 0
      %v2892 = vsel %vm456, %v2824, 0
      %v2895 = vsel %vm505, %v2843, 0
      %2897 = vmatprep.subr.bf16.mxu0 0
      %2898 = vmatpush1.bf16.msra.mxu0 0
      %2899 = vmatprep.subr.bf16.mxu0 0
      %2900 = vmatpush1.bf16.msra.mxu0 0
      %2901 = vmatprep.subr.bf16.mxu0 0
      %2902 = vmatpush1.bf16.msra.mxu0 0
      %2903 = vmatprep.subr.bf16.mxu0 0
      %2904 = vmatpush1.bf16.msra.mxu0 0
      %2905 = vmatprep.subr.bf16.mxu0 0
      %2906 = vmatpush1.bf16.msra.mxu0 0
      %2907 = vmatprep.subr.bf16.mxu0 0
      %2908 = vmatpush1.bf16.msra.mxu0 %v2895
      %2909 = vmatprep.subr.bf16.mxu0 0
      %2910 = vmatpush1.bf16.msra.mxu0 %v2842
      %2911 = vmatprep.subr.bf16.mxu0 0
      %2912 = vmatpush1.bf16.msra.mxu0 %v2841
      %2913 = vmatprep.subr.bf16.mxu0 0
      %2914 = vmatpush2.bf16.msra.mxu0 0
      %2915 = vmatprep.subr.bf16.mxu0 0
      %2916 = vmatpush2.bf16.msra.mxu0 0
      %2917 = vmatprep.subr.bf16.mxu0 0
      %2918 = vmatpush2.bf16.msra.mxu0 0
      %2919 = vmatprep.subr.bf16.mxu0 0
      %2920 = vmatpush2.bf16.msra.mxu0 0
      %2921 = vmatprep.subr.bf16.mxu0 0
      %2922 = vmatpush2.bf16.msra.mxu0 0
      %2923 = vmatprep.subr.bf16.mxu0 0
      %2924 = vmatpush2.bf16.msra.mxu0 0
      %2925 = vmatprep.subr.bf16.mxu0 0
      %2926 = vmatpush2.bf16.msra.mxu0 0
      %2927 = vmatprep.subr.bf16.mxu0 0
      %2928 = vmatpush2.bf16.msra.mxu0 0
      %2929 = vmatprep.mubr.bf16.mxu0 0
      %2930 = vmatmul.mubr.bf16.gmra.mxu0 %v2847
      %v2931 = vpop.f32.mrf.mxu0
      %v2932 = vadd.f32 0.0, %v2931
      %v2933 = vpop.f32.mrf.mxu0
      %v2934 = vpop.f32.mrf.mxu0
      %v2935 = vadd.f32 0.0, %v2934
      %v2936 = vpop.f32.mrf.mxu0
      %2937 = vmatprep.mubr.bf16.mxu0 0
      %2938 = vmatmul.mubr.bf16.gmra.mxu0 %v2850
      %v2939 = vpop.f32.mrf.mxu0
      %v2940 = vadd.f32 0.0, %v2939
      %v2941 = vpop.f32.mrf.mxu0
      %v2942 = vpop.f32.mrf.mxu0
      %v2943 = vadd.f32 0.0, %v2942
      %v2944 = vpop.f32.mrf.mxu0
      %2945 = vmatprep.mubr.bf16.mxu0 0
      %2946 = vmatmul.mubr.bf16.gmra.mxu0 %v2853
      %v2947 = vpop.f32.mrf.mxu0
      %v2948 = vadd.f32 0.0, %v2947
      %v2949 = vpop.f32.mrf.mxu0
      %v2950 = vpop.f32.mrf.mxu0
      %v2951 = vadd.f32 0.0, %v2950
      %v2952 = vpop.f32.mrf.mxu0
      %2953 = vmatprep.mubr.bf16.mxu0 0
      %2954 = vmatmul.mubr.bf16.gmra.mxu0 %v2856
      %v2955 = vpop.f32.mrf.mxu0
      %v2956 = vadd.f32 0.0, %v2955
      %v2957 = vpop.f32.mrf.mxu0
      %v2958 = vpop.f32.mrf.mxu0
      %v2959 = vadd.f32 0.0, %v2958
      %v2960 = vpop.f32.mrf.mxu0
      %2961 = vmatprep.mubr.bf16.mxu0 0
      %2962 = vmatmul.mubr.bf16.gmra.mxu0 %v2859
      %v2963 = vpop.f32.mrf.mxu0
      %v2964 = vadd.f32 0.0, %v2963
      %v2965 = vpop.f32.mrf.mxu0
      %v2966 = vpop.f32.mrf.mxu0
      %v2967 = vadd.f32 0.0, %v2966
      %v2968 = vpop.f32.mrf.mxu0
      %2969 = vmatprep.mubr.bf16.mxu0 0
      %2970 = vmatmul.mubr.bf16.gmra.mxu0 %v2862
      %v2971 = vpop.f32.mrf.mxu0
      %v2972 = vadd.f32 0.0, %v2971
      %v2973 = vpop.f32.mrf.mxu0
      %v2974 = vpop.f32.mrf.mxu0
      %v2975 = vadd.f32 0.0, %v2974
      %v2976 = vpop.f32.mrf.mxu0
      %2977 = vmatprep.mubr.bf16.mxu0 0
      %2978 = vmatmul.mubr.bf16.gmra.mxu0 %v2865
      %v2979 = vpop.f32.mrf.mxu0
      %v2980 = vadd.f32 0.0, %v2979
      %v2981 = vpop.f32.mrf.mxu0
      %v2982 = vpop.f32.mrf.mxu0
      %v2983 = vadd.f32 0.0, %v2982
      %v2984 = vpop.f32.mrf.mxu0
      %2985 = vmatprep.mubr.bf16.mxu0 0
      %2986 = vmatmul.mubr.bf16.gmra.mxu0 %v2868
      %v2987 = vpop.f32.mrf.mxu0
      %v2988 = vadd.f32 0.0, %v2987
      %v2989 = vpop.f32.mrf.mxu0
      %v2990 = vpop.f32.mrf.mxu0
      %v2991 = vadd.f32 0.0, %v2990
      %v2992 = vpop.f32.mrf.mxu0
      %2993 = vmatprep.mubr.bf16.mxu0 0
      %2994 = vmatmul.mubr.bf16.gmra.mxu0 %v2871
      %v2995 = vpop.f32.mrf.mxu0
      %v2996 = vadd.f32 0.0, %v2995
      %v2997 = vpop.f32.mrf.mxu0
      %v2998 = vpop.f32.mrf.mxu0
      %v2999 = vadd.f32 0.0, %v2998
      %v3000 = vpop.f32.mrf.mxu0
      %3001 = vmatprep.mubr.bf16.mxu0 0
      %3002 = vmatmul.mubr.bf16.gmra.mxu0 %v2874
      %v3003 = vpop.f32.mrf.mxu0
      %v3004 = vadd.f32 0.0, %v3003
      %v3005 = vpop.f32.mrf.mxu0
      %v3006 = vpop.f32.mrf.mxu0
      %v3007 = vadd.f32 0.0, %v3006
      %v3008 = vpop.f32.mrf.mxu0
      %3009 = vmatprep.mubr.bf16.mxu0 0
      %3010 = vmatmul.mubr.bf16.gmra.mxu0 %v2877
      %v3011 = vpop.f32.mrf.mxu0
      %v3012 = vadd.f32 0.0, %v3011
      %v3013 = vpop.f32.mrf.mxu0
      %v3014 = vpop.f32.mrf.mxu0
      %v3015 = vadd.f32 0.0, %v3014
      %v3016 = vpop.f32.mrf.mxu0
      %3017 = vmatprep.mubr.bf16.mxu0 0
      %3018 = vmatmul.mubr.bf16.gmra.mxu0 %v2880
      %v3019 = vpop.f32.mrf.mxu0
      %v3020 = vadd.f32 0.0, %v3019
      %v3021 = vpop.f32.mrf.mxu0
      %v3022 = vpop.f32.mrf.mxu0
      %v3023 = vadd.f32 0.0, %v3022
      %v3024 = vpop.f32.mrf.mxu0
      %3025 = vmatprep.mubr.bf16.mxu0 0
      %3026 = vmatmul.mubr.bf16.gmra.mxu0 %v2883
      %v3027 = vpop.f32.mrf.mxu0
      %v3028 = vadd.f32 0.0, %v3027
      %v3029 = vpop.f32.mrf.mxu0
      %v3030 = vpop.f32.mrf.mxu0
      %v3031 = vadd.f32 0.0, %v3030
      %v3032 = vpop.f32.mrf.mxu0
      %3033 = vmatprep.mubr.bf16.mxu0 0
      %3034 = vmatmul.mubr.bf16.gmra.mxu0 %v2886
      %v3035 = vpop.f32.mrf.mxu0
      %v3036 = vadd.f32 0.0, %v3035
      %v3037 = vpop.f32.mrf.mxu0
      %v3038 = vpop.f32.mrf.mxu0
      %v3039 = vadd.f32 0.0, %v3038
      %v3040 = vpop.f32.mrf.mxu0
      %3041 = vmatprep.mubr.bf16.mxu0 0
      %3042 = vmatmul.mubr.bf16.gmra.mxu0 %v2889
      %v3043 = vpop.f32.mrf.mxu0
      %v3044 = vadd.f32 0.0, %v3043
      %v3045 = vpop.f32.mrf.mxu0
      %v3046 = vpop.f32.mrf.mxu0
      %v3047 = vadd.f32 0.0, %v3046
      %v3048 = vpop.f32.mrf.mxu0
      %3049 = vmatprep.mubr.bf16.mxu0 0
      %3050 = vmatmul.mubr.bf16.gmra.mxu0 %v2892
      %v3051 = vpop.f32.mrf.mxu0
      %v3052 = vadd.f32 0.0, %v3051
      %v3053 = vpop.f32.mrf.mxu0
      %v3054 = vpop.f32.mrf.mxu0
      %v3055 = vadd.f32 0.0, %v3054
      %v3056 = vpop.f32.mrf.mxu0
      %3057 = vdwg.mxu0
      %v3058 = vadd.f32 %v2745, %v2932
      %v3059 = vadd.f32 %v2746, %v2935
      %v3060 = vadd.f32 %v2747, %v2940
      %v3061 = vadd.f32 %v2748, %v2943
      %v3062 = vadd.f32 %v2749, %v2948
      %v3063 = vadd.f32 %v2750, %v2951
      %v3064 = vadd.f32 %v2751, %v2956
      %v3065 = vadd.f32 %v2752, %v2959
      %v3066 = vadd.f32 %v2753, %v2964
      %v3067 = vadd.f32 %v2754, %v2967
      %v3068 = vadd.f32 %v2755, %v2972
      %v3069 = vadd.f32 %v2756, %v2975
      %v3070 = vadd.f32 %v2757, %v2980
      %v3071 = vadd.f32 %v2758, %v2983
      %v3072 = vadd.f32 %v2759, %v2988
      %v3073 = vadd.f32 %v2760, %v2991
      %v3074 = vadd.f32 %v2761, %v2996
      %v3075 = vadd.f32 %v2762, %v2999
      %v3076 = vadd.f32 %v2763, %v3004
      %v3077 = vadd.f32 %v2764, %v3007
      %v3078 = vadd.f32 %v2765, %v3012
      %v3079 = vadd.f32 %v2766, %v3015
      %v3080 = vadd.f32 %v2767, %v3020
      %v3081 = vadd.f32 %v2768, %v3023
      %v3082 = vadd.f32 %v2769, %v3028
      %v3083 = vadd.f32 %v2770, %v3031
      %v3084 = vadd.f32 %v2771, %v3036
      %v3085 = vadd.f32 %v2772, %v3039
      %v3086 = vadd.f32 %v2773, %v3044
      %v3087 = vadd.f32 %v2774, %v3047
      %v3088 = vadd.f32 %v2775, %v3052
      %v3089 = vadd.f32 %v2776, %v3055
      %v3090 = vld [vmem:[%s4] sm:$0x1]
      %v3092 = vlaneseq
      %v3093 = vshrl.u32 %v3092, 7
      %v3094 = vsub.s32 0, %v3093
      %v3095 = vrot.slane %v3090, %v3094
      %v3097 = vmul.f32 %v3058, %v3095
      %v3098 = vmul.f32 %v3059, %v3095
      %v3099 = vmul.f32 %v3060, %v3095
      %v3100 = vmul.f32 %v3061, %v3095
      %v3101 = vmul.f32 %v3062, %v3095
      %v3102 = vmul.f32 %v3063, %v3095
      %v3103 = vmul.f32 %v3064, %v3095
      %v3104 = vmul.f32 %v3065, %v3095
      %v3105 = vmul.f32 %v3066, %v3095
      %v3106 = vmul.f32 %v3067, %v3095
      %v3107 = vmul.f32 %v3068, %v3095
      %v3108 = vmul.f32 %v3069, %v3095
      %v3109 = vmul.f32 %v3070, %v3095
      %v3110 = vmul.f32 %v3071, %v3095
      %v3111 = vmul.f32 %v3072, %v3095
      %v3112 = vmul.f32 %v3073, %v3095
      %v3113 = vmul.f32 %v3074, %v3095
      %v3114 = vmul.f32 %v3075, %v3095
      %v3115 = vmul.f32 %v3076, %v3095
      %v3116 = vmul.f32 %v3077, %v3095
      %v3117 = vmul.f32 %v3078, %v3095
      %v3118 = vmul.f32 %v3079, %v3095
      %v3119 = vmul.f32 %v3080, %v3095
      %v3120 = vmul.f32 %v3081, %v3095
      %v3121 = vmul.f32 %v3082, %v3095
      %v3122 = vmul.f32 %v3083, %v3095
      %v3123 = vmul.f32 %v3084, %v3095
      %v3124 = vmul.f32 %v3085, %v3095
      %v3125 = vmul.f32 %v3086, %v3095
      %v3126 = vmul.f32 %v3087, %v3095
      %v3127 = vmul.f32 %v3088, %v3095
      %v3128 = vmul.f32 %v3089, %v3095
      %v3129 = vld [vmem:[%s5] sm:$0x1]
      %v3131 = vlaneseq
      %v3132 = vshrl.u32 %v3131, 7
      %v3133 = vsub.s32 0, %v3132
      %v3134 = vrot.slane %v3129, %v3133
      %v3136 = vadd.f32 %v3097, %v3134
      %v3137 = vadd.f32 %v3098, %v3134
      %v3138 = vadd.f32 %v3099, %v3134
      %v3139 = vadd.f32 %v3100, %v3134
      %v3140 = vadd.f32 %v3101, %v3134
      %v3141 = vadd.f32 %v3102, %v3134
      %v3142 = vadd.f32 %v3103, %v3134
      %v3143 = vadd.f32 %v3104, %v3134
      %v3144 = vadd.f32 %v3105, %v3134
      %v3145 = vadd.f32 %v3106, %v3134
      %v3146 = vadd.f32 %v3107, %v3134
      %v3147 = vadd.f32 %v3108, %v3134
      %v3148 = vadd.f32 %v3109, %v3134
      %v3149 = vadd.f32 %v3110, %v3134
      %v3150 = vadd.f32 %v3111, %v3134
      %v3151 = vadd.f32 %v3112, %v3134
      %v3152 = vadd.f32 %v3113, %v3134
      %v3153 = vadd.f32 %v3114, %v3134
      %v3154 = vadd.f32 %v3115, %v3134
      %v3155 = vadd.f32 %v3116, %v3134
      %v3156 = vadd.f32 %v3117, %v3134
      %v3157 = vadd.f32 %v3118, %v3134
      %v3158 = vadd.f32 %v3119, %v3134
      %v3159 = vadd.f32 %v3120, %v3134
      %v3160 = vadd.f32 %v3121, %v3134
      %v3161 = vadd.f32 %v3122, %v3134
      %v3162 = vadd.f32 %v3123, %v3134
      %v3163 = vadd.f32 %v3124, %v3134
      %v3164 = vadd.f32 %v3125, %v3134
      %v3165 = vadd.f32 %v3126, %v3134
      %v3166 = vadd.f32 %v3127, %v3134
      %v3167 = vadd.f32 %v3128, %v3134
      %v3168 = vmax.f32 %v3136, 0.0
      %v3169 = vmax.f32 %v3137, 0.0
      %v3170 = vmax.f32 %v3138, 0.0
      %v3171 = vmax.f32 %v3139, 0.0
      %v3172 = vmax.f32 %v3140, 0.0
      %v3173 = vmax.f32 %v3141, 0.0
      %v3174 = vmax.f32 %v3142, 0.0
      %v3175 = vmax.f32 %v3143, 0.0
      %v3176 = vmax.f32 %v3144, 0.0
      %v3177 = vmax.f32 %v3145, 0.0
      %v3178 = vmax.f32 %v3146, 0.0
      %v3179 = vmax.f32 %v3147, 0.0
      %v3180 = vmax.f32 %v3148, 0.0
      %v3181 = vmax.f32 %v3149, 0.0
      %v3182 = vmax.f32 %v3150, 0.0
      %v3183 = vmax.f32 %v3151, 0.0
      %v3184 = vmax.f32 %v3152, 0.0
      %v3185 = vmax.f32 %v3153, 0.0
      %v3186 = vmax.f32 %v3154, 0.0
      %v3187 = vmax.f32 %v3155, 0.0
      %v3188 = vmax.f32 %v3156, 0.0
      %v3189 = vmax.f32 %v3157, 0.0
      %v3190 = vmax.f32 %v3158, 0.0
      %v3191 = vmax.f32 %v3159, 0.0
      %v3192 = vmax.f32 %v3160, 0.0
      %v3193 = vmax.f32 %v3161, 0.0
      %v3194 = vmax.f32 %v3162, 0.0
      %v3195 = vmax.f32 %v3163, 0.0
      %v3196 = vmax.f32 %v3164, 0.0
      %v3197 = vmax.f32 %v3165, 0.0
      %v3198 = vmax.f32 %v3166, 0.0
      %v3199 = vmax.f32 %v3167, 0.0
      %3200 = vst [vmem:[#allocation2] sm:$0xff] 0.0
      %3201 = vst [vmem:[#allocation2 + $0x8] sm:$0xff] 0.0
      %3202 = vst [vmem:[#allocation2 + $0x10] sm:$0xff] 0.0
      %3203 = vst [vmem:[#allocation2 + $0x18] sm:$0xff] 0.0
      %3204 = vst [vmem:[#allocation2 + $0x20] sm:$0xff] 0.0
      %3205 = vst [vmem:[#allocation2 + $0x28] sm:$0xff] 0.0
      %3206 = vst [vmem:[#allocation2 + $0x30] sm:$0xff] 0.0
      %3207 = vst [vmem:[#allocation2 + $0x38] sm:$0xff] 0.0
      %3208 = vst [vmem:[#allocation2 + $0x40] sm:$0xff] 0.0
      %3209 = vst [vmem:[#allocation2 + $0x48] sm:$0xff] 0.0
      %3210 = vst [vmem:[#allocation2 + $0x50] sm:$0xff] 0.0
      %3211 = vst [vmem:[#allocation2 + $0x58] sm:$0xff] 0.0
      %3212 = vst [vmem:[#allocation2 + $0x60] sm:$0xff] 0.0
      %3213 = vst [vmem:[#allocation2 + $0x68] sm:$0xff] 0.0
      %3214 = vst [vmem:[#allocation2 + $0x70] sm:$0xff] 0.0
      %3215 = vst [vmem:[#allocation2 + $0x78] sm:$0xff] 0.0
      %3216 = vst [vmem:[#allocation2 + $0x80] sm:$0xff] 0.0
      %3217 = vst [vmem:[#allocation2 + $0x88] sm:$0xff] 0.0
      %3218 = vst [vmem:[#allocation2 + $0x90] sm:$0xff] 0.0
      %3219 = vst [vmem:[#allocation2 + $0x98] sm:$0xff] 0.0
      %3220 = vst [vmem:[#allocation2 + $0xa0] sm:$0xff] 0.0
      %3221 = vst [vmem:[#allocation2 + $0xa8] sm:$0xff] 0.0
      %3222 = vst [vmem:[#allocation2 + $0xb0] sm:$0xff] 0.0
      %3223 = vst [vmem:[#allocation2 + $0xb8] sm:$0xff] 0.0
      %3224 = vst [vmem:[#allocation2 + $0xc0] sm:$0xff] 0.0
      %3225 = vst [vmem:[#allocation2 + $0xc8] sm:$0xff] 0.0
      %3226 = vst [vmem:[#allocation2 + $0xd0] sm:$0xff] 0.0
      %3227 = vst [vmem:[#allocation2 + $0xd8] sm:$0xff] 0.0
      %3228 = vst [vmem:[#allocation2 + $0xe0] sm:$0xff] 0.0
      %3229 = vst [vmem:[#allocation2 + $0xe8] sm:$0xff] 0.0
      %3230 = vst [vmem:[#allocation2 + $0xf0] sm:$0xff] 0.0
      %3231 = vst [vmem:[#allocation2 + $0xf8] sm:$0xff] 0.0
      %3232 = vst [vmem:[#allocation2 + $0x100] sm:$0xff] 0.0
      %3233 = vst [vmem:[#allocation2 + $0x108] sm:$0xff] 0.0
      %3234 = vst [vmem:[#allocation2 + $0x110] sm:$0xff] 0.0
      %3235 = vst [vmem:[#allocation2 + $0x118] sm:$0xff] 0.0
      %3236 = vst [vmem:[#allocation2 + $0x120] sm:$0xff] 0.0
      %3237 = vst [vmem:[#allocation2 + $0x128] sm:$0xff] 0.0
      %3238 = vst [vmem:[#allocation2 + $0x130] sm:$0xff] 0.0
      %3239 = vst [vmem:[#allocation2 + $0x138] sm:$0xff] 0.0
      %3240 = vst [vmem:[#allocation2 + $0x140] sm:$0xff] 0.0
      %3241 = vst [vmem:[#allocation2 + $0x148] sm:$0xff] 0.0
      %3242 = vst [vmem:[#allocation2 + $0x150] sm:$0xff] 0.0
      %3243 = vst [vmem:[#allocation2 + $0x158] sm:$0xff] 0.0
      %3244 = vst [vmem:[#allocation2 + $0x160] sm:$0xff] 0.0
      %3245 = vst [vmem:[#allocation2 + $0x168] sm:$0xff] 0.0
      %3246 = vst [vmem:[#allocation2 + $0x170] sm:$0xff] 0.0
      %3247 = vst [vmem:[#allocation2 + $0x178] sm:$0xff] 0.0
      %3248 = vst [vmem:[#allocation2 + $0x180] sm:$0xff] 0.0
      %3249 = vst [vmem:[#allocation2 + $0x188] sm:$0xff] 0.0
      %3250 = vst [vmem:[#allocation2 + $0x190] sm:$0xff] 0.0
      %3251 = vst [vmem:[#allocation2 + $0x198] sm:$0xff] 0.0
      %3252 = vst [vmem:[#allocation2 + $0x1a0] sm:$0xff] 0.0
      %3253 = vst [vmem:[#allocation2 + $0x1a8] sm:$0xff] 0.0
      %3254 = vst [vmem:[#allocation2 + $0x1b0] sm:$0xff] 0.0
      %3255 = vst [vmem:[#allocation2 + $0x1b8] sm:$0xff] 0.0
      %3256 = vst [vmem:[#allocation2 + $0x1c0] sm:$0xff] 0.0
      %3257 = vst [vmem:[#allocation2 + $0x1c8] sm:$0xff] 0.0
      %3258 = vst [vmem:[#allocation2 + $0x1d0] sm:$0xff] 0.0
      %3259 = vst [vmem:[#allocation2 + $0x1d8] sm:$0xff] 0.0
      %3260 = vst [vmem:[#allocation2 + $0x1e0] sm:$0xff] 0.0
      %3261 = vst [vmem:[#allocation2 + $0x1e8] sm:$0xff] 0.0
      %3262 = vst [vmem:[#allocation2 + $0x1f0] sm:$0xff] 0.0
      %3263 = vst [vmem:[#allocation2 + $0x1f8] sm:$0xff] 0.0
      %3264 = vst [vmem:[#allocation2 + $0x200] sm:$0xff] 0.0
      %3265 = vst [vmem:[#allocation2 + $0x208] sm:$0xff] 0.0
      %3266 = vst [vmem:[#allocation2 + $0x210] sm:$0xff] 0.0
      %3267 = vst [vmem:[#allocation2 + $0x218] sm:$0xff] 0.0
      %3268 = vst [vmem:[#allocation2 + $0x220] sm:$0xff] 0.0
      %3269 = vst [vmem:[#allocation2 + $0x228] sm:$0xff] 0.0
      %3270 = vst [vmem:[#allocation2 + $0x230] sm:$0xff] 0.0
      %3271 = vst [vmem:[#allocation2 + $0x238] sm:$0xff] 0.0
      %s3272 = scalar_lea.vmem [#allocation2], 32
      %3273 = vst [vmem:[%s3272 + $0x8] sm:$0xff] %v3168
      %3274 = vst [vmem:[%s3272 + $0x10] sm:$0xff] %v3169
      %3275 = vst [vmem:[%s3272 + $0x28] sm:$0xff] %v3170
      %3276 = vst [vmem:[%s3272 + $0x30] sm:$0xff] %v3171
      %3277 = vst [vmem:[%s3272 + $0x48] sm:$0xff] %v3172
      %3278 = vst [vmem:[%s3272 + $0x50] sm:$0xff] %v3173
      %3279 = vst [vmem:[%s3272 + $0x68] sm:$0xff] %v3174
      %3280 = vst [vmem:[%s3272 + $0x70] sm:$0xff] %v3175
      %3281 = vst [vmem:[%s3272 + $0x88] sm:$0xff] %v3176
      %3282 = vst [vmem:[%s3272 + $0x90] sm:$0xff] %v3177
      %3283 = vst [vmem:[%s3272 + $0xa8] sm:$0xff] %v3178
      %3284 = vst [vmem:[%s3272 + $0xb0] sm:$0xff] %v3179
      %3285 = vst [vmem:[%s3272 + $0xc8] sm:$0xff] %v3180
      %3286 = vst [vmem:[%s3272 + $0xd0] sm:$0xff] %v3181
      %3287 = vst [vmem:[%s3272 + $0xe8] sm:$0xff] %v3182
      %3288 = vst [vmem:[%s3272 + $0xf0] sm:$0xff] %v3183
      %3289 = vst [vmem:[%s3272 + $0x108] sm:$0xff] %v3184
      %3290 = vst [vmem:[%s3272 + $0x110] sm:$0xff] %v3185
      %3291 = vst [vmem:[%s3272 + $0x128] sm:$0xff] %v3186
      %3292 = vst [vmem:[%s3272 + $0x130] sm:$0xff] %v3187
      %3293 = vst [vmem:[%s3272 + $0x148] sm:$0xff] %v3188
      %3294 = vst [vmem:[%s3272 + $0x150] sm:$0xff] %v3189
      %3295 = vst [vmem:[%s3272 + $0x168] sm:$0xff] %v3190
      %3296 = vst [vmem:[%s3272 + $0x170] sm:$0xff] %v3191
      %3297 = vst [vmem:[%s3272 + $0x188] sm:$0xff] %v3192
      %3298 = vst [vmem:[%s3272 + $0x190] sm:$0xff] %v3193
      %3299 = vst [vmem:[%s3272 + $0x1a8] sm:$0xff] %v3194
      %3300 = vst [vmem:[%s3272 + $0x1b0] sm:$0xff] %v3195
      %3301 = vst [vmem:[%s3272 + $0x1c8] sm:$0xff] %v3196
      %3302 = vst [vmem:[%s3272 + $0x1d0] sm:$0xff] %v3197
      %3303 = vst [vmem:[%s3272 + $0x1e8] sm:$0xff] %v3198
      %3304 = vst [vmem:[%s3272 + $0x1f0] sm:$0xff] %v3199
      %v3305 = vld [vmem:[#allocation2 + $0x7] sm:$0xff]
      %v3306 = vld [vmem:[#allocation2 + $0xf] sm:$0xff]
      %v3307 = vld [vmem:[#allocation2 + $0x27] sm:$0xff]
      %v3308 = vld [vmem:[#allocation2 + $0x2f] sm:$0xff]
      %v3309 = vld [vmem:[#allocation2 + $0x47] sm:$0xff]
      %v3310 = vld [vmem:[#allocation2 + $0x4f] sm:$0xff]
      %v3311 = vld [vmem:[#allocation2 + $0x67] sm:$0xff]
      %v3312 = vld [vmem:[#allocation2 + $0x6f] sm:$0xff]
      %v3313 = vld [vmem:[#allocation2 + $0x87] sm:$0xff]
      %v3314 = vld [vmem:[#allocation2 + $0x8f] sm:$0xff]
      %v3315 = vld [vmem:[#allocation2 + $0xa7] sm:$0xff]
      %v3316 = vld [vmem:[#allocation2 + $0xaf] sm:$0xff]
      %v3317 = vld [vmem:[#allocation2 + $0xc7] sm:$0xff]
      %v3318 = vld [vmem:[#allocation2 + $0xcf] sm:$0xff]
      %v3319 = vld [vmem:[#allocation2 + $0xe7] sm:$0xff]
      %v3320 = vld [vmem:[#allocation2 + $0xef] sm:$0xff]
      %v3321 = vld [vmem:[#allocation2 + $0x107] sm:$0xff]
      %v3322 = vld [vmem:[#allocation2 + $0x10f] sm:$0xff]
      %v3323 = vld [vmem:[#allocation2 + $0x127] sm:$0xff]
      %v3324 = vld [vmem:[#allocation2 + $0x12f] sm:$0xff]
      %v3325 = vld [vmem:[#allocation2 + $0x147] sm:$0xff]
      %v3326 = vld [vmem:[#allocation2 + $0x14f] sm:$0xff]
      %v3327 = vld [vmem:[#allocation2 + $0x167] sm:$0xff]
      %v3328 = vld [vmem:[#allocation2 + $0x16f] sm:$0xff]
      %v3329 = vld [vmem:[#allocation2 + $0x187] sm:$0xff]
      %v3330 = vld [vmem:[#allocation2 + $0x18f] sm:$0xff]
      %v3331 = vld [vmem:[#allocation2 + $0x1a7] sm:$0xff]
      %v3332 = vld [vmem:[#allocation2 + $0x1af] sm:$0xff]
      %v3333 = vld [vmem:[#allocation2 + $0x1c7] sm:$0xff]
      %v3334 = vld [vmem:[#allocation2 + $0x1cf] sm:$0xff]
      %v3335 = vld [vmem:[#allocation2 + $0x1e7] sm:$0xff]
      %v3336 = vld [vmem:[#allocation2 + $0x1ef] sm:$0xff]
      %v3337 = vpack.c.bf16 %v3306, %v3305
      %v3338 = vpack.c.bf16 %v3308, %v3307
      %v3339 = vpack.c.bf16 %v3310, %v3309
      %v3340 = vpack.c.bf16 %v3312, %v3311
      %v3341 = vpack.c.bf16 %v3314, %v3313
      %v3342 = vpack.c.bf16 %v3316, %v3315
      %v3343 = vpack.c.bf16 %v3318, %v3317
      %v3344 = vpack.c.bf16 %v3320, %v3319
      %v3345 = vpack.c.bf16 %v3322, %v3321
      %v3346 = vpack.c.bf16 %v3324, %v3323
      %v3347 = vpack.c.bf16 %v3326, %v3325
      %v3348 = vpack.c.bf16 %v3328, %v3327
      %v3349 = vpack.c.bf16 %v3330, %v3329
      %v3350 = vpack.c.bf16 %v3332, %v3331
      %v3351 = vpack.c.bf16 %v3334, %v3333
      %v3352 = vpack.c.bf16 %v3336, %v3335
      %v3353 = vld [vmem:[%s2] sm:$0xf]
      %v3354 = vld [vmem:[%s2 + $0x4] sm:$0xf]
      %v3355 = vld [vmem:[%s2 + $0x8] sm:$0xf]
      %v3356 = vld [vmem:[%s2 + $0xc] sm:$0xf]
      %v3357 = vld [vmem:[%s2 + $0x10] sm:$0xf]
      %v3358 = vld [vmem:[%s2 + $0x14] sm:$0xf]
      %v3359 = vld [vmem:[%s2 + $0x18] sm:$0xf]
      %v3360 = vld [vmem:[%s2 + $0x1c] sm:$0xf]
      %v3361 = vld [vmem:[%s2 + $0x20] sm:$0xf]
      %v3362 = vld [vmem:[%s2 + $0x24] sm:$0xf]
      %v3363 = vld [vmem:[%s2 + $0x28] sm:$0xf]
      %v3364 = vld [vmem:[%s2 + $0x2c] sm:$0xf]
      %v3365 = vld [vmem:[%s2 + $0x30] sm:$0xf]
      %v3366 = vld [vmem:[%s2 + $0x34] sm:$0xf]
      %v3367 = vld [vmem:[%s2 + $0x38] sm:$0xf]
      %v3368 = vld [vmem:[%s2 + $0x3c] sm:$0xf]
      %v3369 = vld [vmem:[#allocation2 + $0x8] sm:$0xff]
      %v3370 = vld [vmem:[#allocation2 + $0x10] sm:$0xff]
      %v3371 = vld [vmem:[#allocation2 + $0x28] sm:$0xff]
      %v3372 = vld [vmem:[#allocation2 + $0x30] sm:$0xff]
      %v3373 = vld [vmem:[#allocation2 + $0x48] sm:$0xff]
      %v3374 = vld [vmem:[#allocation2 + $0x50] sm:$0xff]
      %v3375 = vld [vmem:[#allocation2 + $0x68] sm:$0xff]
      %v3376 = vld [vmem:[#allocation2 + $0x70] sm:$0xff]
      %v3377 = vld [vmem:[#allocation2 + $0x88] sm:$0xff]
      %v3378 = vld [vmem:[#allocation2 + $0x90] sm:$0xff]
      %v3379 = vld [vmem:[#allocation2 + $0xa8] sm:$0xff]
      %v3380 = vld [vmem:[#allocation2 + $0xb0] sm:$0xff]
      %v3381 = vld [vmem:[#allocation2 + $0xc8] sm:$0xff]
      %v3382 = vld [vmem:[#allocation2 + $0xd0] sm:$0xff]
      %v3383 = vld [vmem:[#allocation2 + $0xe8] sm:$0xff]
      %v3384 = vld [vmem:[#allocation2 + $0xf0] sm:$0xff]
      %v3385 = vld [vmem:[#allocation2 + $0x108] sm:$0xff]
      %v3386 = vld [vmem:[#allocation2 + $0x110] sm:$0xff]
      %v3387 = vld [vmem:[#allocation2 + $0x128] sm:$0xff]
      %v3388 = vld [vmem:[#allocation2 + $0x130] sm:$0xff]
      %v3389 = vld [vmem:[#allocation2 + $0x148] sm:$0xff]
      %v3390 = vld [vmem:[#allocation2 + $0x150] sm:$0xff]
      %v3391 = vld [vmem:[#allocation2 + $0x168] sm:$0xff]
      %v3392 = vld [vmem:[#allocation2 + $0x170] sm:$0xff]
      %v3393 = vld [vmem:[#allocation2 + $0x188] sm:$0xff]
      %v3394 = vld [vmem:[#allocation2 + $0x190] sm:$0xff]
      %v3395 = vld [vmem:[#allocation2 + $0x1a8] sm:$0xff]
      %v3396 = vld [vmem:[#allocation2 + $0x1b0] sm:$0xff]
      %v3397 = vld [vmem:[#allocation2 + $0x1c8] sm:$0xff]
      %v3398 = vld [vmem:[#allocation2 + $0x1d0] sm:$0xff]
      %v3399 = vld [vmem:[#allocation2 + $0x1e8] sm:$0xff]
      %v3400 = vld [vmem:[#allocation2 + $0x1f0] sm:$0xff]
      %v3401 = vpack.c.bf16 %v3370, %v3369
      %v3402 = vpack.c.bf16 %v3372, %v3371
      %v3403 = vpack.c.bf16 %v3374, %v3373
      %v3404 = vpack.c.bf16 %v3376, %v3375
      %v3405 = vpack.c.bf16 %v3378, %v3377
      %v3406 = vpack.c.bf16 %v3380, %v3379
      %v3407 = vpack.c.bf16 %v3382, %v3381
      %v3408 = vpack.c.bf16 %v3384, %v3383
      %v3409 = vpack.c.bf16 %v3386, %v3385
      %v3410 = vpack.c.bf16 %v3388, %v3387
      %v3411 = vpack.c.bf16 %v3390, %v3389
      %v3412 = vpack.c.bf16 %v3392, %v3391
      %v3413 = vpack.c.bf16 %v3394, %v3393
      %v3414 = vpack.c.bf16 %v3396, %v3395
      %v3415 = vpack.c.bf16 %v3398, %v3397
      %v3416 = vpack.c.bf16 %v3400, %v3399
      %s3417 = scalar_lea.vmem %s2, 64
      %v3418 = vld [vmem:[%s3417] sm:$0xf]
      %v3419 = vld [vmem:[%s3417 + $0x4] sm:$0xf]
      %v3420 = vld [vmem:[%s3417 + $0x8] sm:$0xf]
      %v3421 = vld [vmem:[%s3417 + $0xc] sm:$0xf]
      %v3422 = vld [vmem:[%s3417 + $0x10] sm:$0xf]
      %v3423 = vld [vmem:[%s3417 + $0x14] sm:$0xf]
      %v3424 = vld [vmem:[%s3417 + $0x18] sm:$0xf]
      %v3425 = vld [vmem:[%s3417 + $0x1c] sm:$0xf]
      %v3426 = vld [vmem:[%s3417 + $0x20] sm:$0xf]
      %v3427 = vld [vmem:[%s3417 + $0x24] sm:$0xf]
      %v3428 = vld [vmem:[%s3417 + $0x28] sm:$0xf]
      %v3429 = vld [vmem:[%s3417 + $0x2c] sm:$0xf]
      %v3430 = vld [vmem:[%s3417 + $0x30] sm:$0xf]
      %v3431 = vld [vmem:[%s3417 + $0x34] sm:$0xf]
      %v3432 = vld [vmem:[%s3417 + $0x38] sm:$0xf]
      %v3433 = vld [vmem:[%s3417 + $0x3c] sm:$0xf]
      %v3450 = vunpack.c.l.b16 %v3418
      %v3451 = vunpack.c.l.b16 %v3419
      %v3452 = vunpack.c.l.b16 %v3420
      %v3453 = vunpack.c.l.b16 %v3421
      %v3454 = vunpack.c.l.b16 %v3422
      %v3455 = vunpack.c.l.b16 %v3423
      %v3456 = vunpack.c.l.b16 %v3424
      %v3457 = vunpack.c.l.b16 %v3425
      %v3458 = vunpack.c.l.b16 %v3426
      %v3459 = vunpack.c.l.b16 %v3427
      %v3460 = vunpack.c.l.b16 %v3428
      %v3461 = vunpack.c.l.b16 %v3429
      %v3462 = vunpack.c.l.b16 %v3430
      %v3463 = vunpack.c.l.b16 %v3431
      %v3464 = vunpack.c.l.b16 %v3432
      %v3465 = vunpack.c.l.b16 %v3433
      %v3466 = vpack.c.b16 %v3451, %v3450
      %v3467 = vpack.c.b16 %v3453, %v3452
      %v3468 = vpack.c.b16 %v3455, %v3454
      %v3469 = vpack.c.b16 %v3457, %v3456
      %v3470 = vpack.c.b16 %v3459, %v3458
      %v3471 = vpack.c.b16 %v3461, %v3460
      %v3472 = vpack.c.b16 %v3463, %v3462
      %v3473 = vpack.c.b16 %v3465, %v3464
      %3482 = vmatprep.subr.bf16.mxu0 0
      %3483 = vmatpush1.bf16.msra.mxu0 %v3473
      %3484 = vmatprep.subr.bf16.mxu0 0
      %3485 = vmatpush1.bf16.msra.mxu0 %v3472
      %3486 = vmatprep.subr.bf16.mxu0 0
      %3487 = vmatpush1.bf16.msra.mxu0 %v3471
      %3488 = vmatprep.subr.bf16.mxu0 0
      %3489 = vmatpush1.bf16.msra.mxu0 %v3470
      %3490 = vmatprep.subr.bf16.mxu0 0
      %3491 = vmatpush1.bf16.msra.mxu0 %v3469
      %3492 = vmatprep.subr.bf16.mxu0 0
      %3493 = vmatpush1.bf16.msra.mxu0 %v3468
      %3494 = vmatprep.subr.bf16.mxu0 0
      %3495 = vmatpush1.bf16.msra.mxu0 %v3467
      %3496 = vmatprep.subr.bf16.mxu0 0
      %3497 = vmatpush1.bf16.msra.mxu0 %v3466
      %3498 = vmatprep.subr.bf16.mxu0 0
      %3499 = vmatpush2.bf16.msra.mxu0 0
      %3500 = vmatprep.subr.bf16.mxu0 0
      %3501 = vmatpush2.bf16.msra.mxu0 0
      %3502 = vmatprep.subr.bf16.mxu0 0
      %3503 = vmatpush2.bf16.msra.mxu0 0
      %3504 = vmatprep.subr.bf16.mxu0 0
      %3505 = vmatpush2.bf16.msra.mxu0 0
      %3506 = vmatprep.subr.bf16.mxu0 0
      %3507 = vmatpush2.bf16.msra.mxu0 0
      %3508 = vmatprep.subr.bf16.mxu0 0
      %3509 = vmatpush2.bf16.msra.mxu0 0
      %3510 = vmatprep.subr.bf16.mxu0 0
      %3511 = vmatpush2.bf16.msra.mxu0 0
      %3512 = vmatprep.subr.bf16.mxu0 0
      %3513 = vmatpush2.bf16.msra.mxu0 0
      %3514 = vmatprep.mubr.bf16.mxu0 0
      %3515 = vmatmul.mubr.bf16.gmra.mxu0 %v3401
      %v3516 = vpop.f32.mrf.mxu0
      %v3517 = vadd.f32 0.0, %v3516
      %v3518 = vpop.f32.mrf.mxu0
      %v3519 = vpop.f32.mrf.mxu0
      %v3520 = vadd.f32 0.0, %v3519
      %v3521 = vpop.f32.mrf.mxu0
      %3522 = vmatprep.mubr.bf16.mxu0 0
      %3523 = vmatmul.mubr.bf16.gmra.mxu0 %v3402
      %v3524 = vpop.f32.mrf.mxu0
      %v3525 = vadd.f32 0.0, %v3524
      %v3526 = vpop.f32.mrf.mxu0
      %v3527 = vpop.f32.mrf.mxu0
      %v3528 = vadd.f32 0.0, %v3527
      %v3529 = vpop.f32.mrf.mxu0
      %3530 = vmatprep.mubr.bf16.mxu0 0
      %3531 = vmatmul.mubr.bf16.gmra.mxu0 %v3403
      %v3532 = vpop.f32.mrf.mxu0
      %v3533 = vadd.f32 0.0, %v3532
      %v3534 = vpop.f32.mrf.mxu0
      %v3535 = vpop.f32.mrf.mxu0
      %v3536 = vadd.f32 0.0, %v3535
      %v3537 = vpop.f32.mrf.mxu0
      %3538 = vmatprep.mubr.bf16.mxu0 0
      %3539 = vmatmul.mubr.bf16.gmra.mxu0 %v3404
      %v3540 = vpop.f32.mrf.mxu0
      %v3541 = vadd.f32 0.0, %v3540
      %v3542 = vpop.f32.mrf.mxu0
      %v3543 = vpop.f32.mrf.mxu0
      %v3544 = vadd.f32 0.0, %v3543
      %v3545 = vpop.f32.mrf.mxu0
      %3546 = vmatprep.mubr.bf16.mxu0 0
      %3547 = vmatmul.mubr.bf16.gmra.mxu0 %v3405
      %v3548 = vpop.f32.mrf.mxu0
      %v3549 = vadd.f32 0.0, %v3548
      %v3550 = vpop.f32.mrf.mxu0
      %v3551 = vpop.f32.mrf.mxu0
      %v3552 = vadd.f32 0.0, %v3551
      %v3553 = vpop.f32.mrf.mxu0
      %3554 = vmatprep.mubr.bf16.mxu0 0
      %3555 = vmatmul.mubr.bf16.gmra.mxu0 %v3406
      %v3556 = vpop.f32.mrf.mxu0
      %v3557 = vadd.f32 0.0, %v3556
      %v3558 = vpop.f32.mrf.mxu0
      %v3559 = vpop.f32.mrf.mxu0
      %v3560 = vadd.f32 0.0, %v3559
      %v3561 = vpop.f32.mrf.mxu0
      %3562 = vmatprep.mubr.bf16.mxu0 0
      %3563 = vmatmul.mubr.bf16.gmra.mxu0 %v3407
      %v3564 = vpop.f32.mrf.mxu0
      %v3565 = vadd.f32 0.0, %v3564
      %v3566 = vpop.f32.mrf.mxu0
      %v3567 = vpop.f32.mrf.mxu0
      %v3568 = vadd.f32 0.0, %v3567
      %v3569 = vpop.f32.mrf.mxu0
      %3570 = vmatprep.mubr.bf16.mxu0 0
      %3571 = vmatmul.mubr.bf16.gmra.mxu0 %v3408
      %v3572 = vpop.f32.mrf.mxu0
      %v3573 = vadd.f32 0.0, %v3572
      %v3574 = vpop.f32.mrf.mxu0
      %v3575 = vpop.f32.mrf.mxu0
      %v3576 = vadd.f32 0.0, %v3575
      %v3577 = vpop.f32.mrf.mxu0
      %3578 = vmatprep.mubr.bf16.mxu0 0
      %3579 = vmatmul.mubr.bf16.gmra.mxu0 %v3409
      %v3580 = vpop.f32.mrf.mxu0
      %v3581 = vadd.f32 0.0, %v3580
      %v3582 = vpop.f32.mrf.mxu0
      %v3583 = vpop.f32.mrf.mxu0
      %v3584 = vadd.f32 0.0, %v3583
      %v3585 = vpop.f32.mrf.mxu0
      %3586 = vmatprep.mubr.bf16.mxu0 0
      %3587 = vmatmul.mubr.bf16.gmra.mxu0 %v3410
      %v3588 = vpop.f32.mrf.mxu0
      %v3589 = vadd.f32 0.0, %v3588
      %v3590 = vpop.f32.mrf.mxu0
      %v3591 = vpop.f32.mrf.mxu0
      %v3592 = vadd.f32 0.0, %v3591
      %v3593 = vpop.f32.mrf.mxu0
      %3594 = vmatprep.mubr.bf16.mxu0 0
      %3595 = vmatmul.mubr.bf16.gmra.mxu0 %v3411
      %v3596 = vpop.f32.mrf.mxu0
      %v3597 = vadd.f32 0.0, %v3596
      %v3598 = vpop.f32.mrf.mxu0
      %v3599 = vpop.f32.mrf.mxu0
      %v3600 = vadd.f32 0.0, %v3599
      %v3601 = vpop.f32.mrf.mxu0
      %3602 = vmatprep.mubr.bf16.mxu0 0
      %3603 = vmatmul.mubr.bf16.gmra.mxu0 %v3412
      %v3604 = vpop.f32.mrf.mxu0
      %v3605 = vadd.f32 0.0, %v3604
      %v3606 = vpop.f32.mrf.mxu0
      %v3607 = vpop.f32.mrf.mxu0
      %v3608 = vadd.f32 0.0, %v3607
      %v3609 = vpop.f32.mrf.mxu0
      %3610 = vmatprep.mubr.bf16.mxu0 0
      %3611 = vmatmul.mubr.bf16.gmra.mxu0 %v3413
      %v3612 = vpop.f32.mrf.mxu0
      %v3613 = vadd.f32 0.0, %v3612
      %v3614 = vpop.f32.mrf.mxu0
      %v3615 = vpop.f32.mrf.mxu0
      %v3616 = vadd.f32 0.0, %v3615
      %v3617 = vpop.f32.mrf.mxu0
      %3618 = vmatprep.mubr.bf16.mxu0 0
      %3619 = vmatmul.mubr.bf16.gmra.mxu0 %v3414
      %v3620 = vpop.f32.mrf.mxu0
      %v3621 = vadd.f32 0.0, %v3620
      %v3622 = vpop.f32.mrf.mxu0
      %v3623 = vpop.f32.mrf.mxu0
      %v3624 = vadd.f32 0.0, %v3623
      %v3625 = vpop.f32.mrf.mxu0
      %3626 = vmatprep.mubr.bf16.mxu0 0
      %3627 = vmatmul.mubr.bf16.gmra.mxu0 %v3415
      %v3628 = vpop.f32.mrf.mxu0
      %v3629 = vadd.f32 0.0, %v3628
      %v3630 = vpop.f32.mrf.mxu0
      %v3631 = vpop.f32.mrf.mxu0
      %v3632 = vadd.f32 0.0, %v3631
      %v3633 = vpop.f32.mrf.mxu0
      %3634 = vmatprep.mubr.bf16.mxu0 0
      %3635 = vmatmul.mubr.bf16.gmra.mxu0 %v3416
      %v3636 = vpop.f32.mrf.mxu0
      %v3637 = vadd.f32 0.0, %v3636
      %v3638 = vpop.f32.mrf.mxu0
      %v3639 = vpop.f32.mrf.mxu0
      %v3640 = vadd.f32 0.0, %v3639
      %v3641 = vpop.f32.mrf.mxu0
      %3642 = vdwg.mxu0
      %v3659 = vunpack.c.l.b16 %v3353
      %v3660 = vunpack.c.l.b16 %v3354
      %v3661 = vunpack.c.l.b16 %v3355
      %v3662 = vunpack.c.l.b16 %v3356
      %v3663 = vunpack.c.l.b16 %v3357
      %v3664 = vunpack.c.l.b16 %v3358
      %v3665 = vunpack.c.l.b16 %v3359
      %v3666 = vunpack.c.l.b16 %v3360
      %v3667 = vunpack.c.l.b16 %v3361
      %v3668 = vunpack.c.l.b16 %v3362
      %v3669 = vunpack.c.l.b16 %v3363
      %v3670 = vunpack.c.l.b16 %v3364
      %v3671 = vunpack.c.l.b16 %v3365
      %v3672 = vunpack.c.l.b16 %v3366
      %v3673 = vunpack.c.l.b16 %v3367
      %v3674 = vunpack.c.l.b16 %v3368
      %v3675 = vpack.c.b16 %v3660, %v3659
      %v3676 = vpack.c.b16 %v3662, %v3661
      %v3677 = vpack.c.b16 %v3664, %v3663
      %v3678 = vpack.c.b16 %v3666, %v3665
      %v3679 = vpack.c.b16 %v3668, %v3667
      %v3680 = vpack.c.b16 %v3670, %v3669
      %v3681 = vpack.c.b16 %v3672, %v3671
      %v3682 = vpack.c.b16 %v3674, %v3673
      %3691 = vmatprep.subr.bf16.mxu0 0
      %3692 = vmatpush1.bf16.msra.mxu0 %v3682
      %3693 = vmatprep.subr.bf16.mxu0 0
      %3694 = vmatpush1.bf16.msra.mxu0 %v3681
      %3695 = vmatprep.subr.bf16.mxu0 0
      %3696 = vmatpush1.bf16.msra.mxu0 %v3680
      %3697 = vmatprep.subr.bf16.mxu0 0
      %3698 = vmatpush1.bf16.msra.mxu0 %v3679
      %3699 = vmatprep.subr.bf16.mxu0 0
      %3700 = vmatpush1.bf16.msra.mxu0 %v3678
      %3701 = vmatprep.subr.bf16.mxu0 0
      %3702 = vmatpush1.bf16.msra.mxu0 %v3677
      %3703 = vmatprep.subr.bf16.mxu0 0
      %3704 = vmatpush1.bf16.msra.mxu0 %v3676
      %3705 = vmatprep.subr.bf16.mxu0 0
      %3706 = vmatpush1.bf16.msra.mxu0 %v3675
      %3707 = vmatprep.subr.bf16.mxu0 0
      %3708 = vmatpush2.bf16.msra.mxu0 0
      %3709 = vmatprep.subr.bf16.mxu0 0
      %3710 = vmatpush2.bf16.msra.mxu0 0
      %3711 = vmatprep.subr.bf16.mxu0 0
      %3712 = vmatpush2.bf16.msra.mxu0 0
      %3713 = vmatprep.subr.bf16.mxu0 0
      %3714 = vmatpush2.bf16.msra.mxu0 0
      %3715 = vmatprep.subr.bf16.mxu0 0
      %3716 = vmatpush2.bf16.msra.mxu0 0
      %3717 = vmatprep.subr.bf16.mxu0 0
      %3718 = vmatpush2.bf16.msra.mxu0 0
      %3719 = vmatprep.subr.bf16.mxu0 0
      %3720 = vmatpush2.bf16.msra.mxu0 0
      %3721 = vmatprep.subr.bf16.mxu0 0
      %3722 = vmatpush2.bf16.msra.mxu0 0
      %3723 = vmatprep.mubr.bf16.mxu0 0
      %3724 = vmatmul.mubr.bf16.gmra.mxu0 %v3337
      %v3725 = vpop.f32.mrf.mxu0
      %v3726 = vadd.f32 %v3517, %v3725
      %v3727 = vpop.f32.mrf.mxu0
      %v3728 = vpop.f32.mrf.mxu0
      %v3729 = vadd.f32 %v3520, %v3728
      %v3730 = vpop.f32.mrf.mxu0
      %3731 = vmatprep.mubr.bf16.mxu0 0
      %3732 = vmatmul.mubr.bf16.gmra.mxu0 %v3338
      %v3733 = vpop.f32.mrf.mxu0
      %v3734 = vadd.f32 %v3525, %v3733
      %v3735 = vpop.f32.mrf.mxu0
      %v3736 = vpop.f32.mrf.mxu0
      %v3737 = vadd.f32 %v3528, %v3736
      %v3738 = vpop.f32.mrf.mxu0
      %3739 = vmatprep.mubr.bf16.mxu0 0
      %3740 = vmatmul.mubr.bf16.gmra.mxu0 %v3339
      %v3741 = vpop.f32.mrf.mxu0
      %v3742 = vadd.f32 %v3533, %v3741
      %v3743 = vpop.f32.mrf.mxu0
      %v3744 = vpop.f32.mrf.mxu0
      %v3745 = vadd.f32 %v3536, %v3744
      %v3746 = vpop.f32.mrf.mxu0
      %3747 = vmatprep.mubr.bf16.mxu0 0
      %3748 = vmatmul.mubr.bf16.gmra.mxu0 %v3340
      %v3749 = vpop.f32.mrf.mxu0
      %v3750 = vadd.f32 %v3541, %v3749
      %v3751 = vpop.f32.mrf.mxu0
      %v3752 = vpop.f32.mrf.mxu0
      %v3753 = vadd.f32 %v3544, %v3752
      %v3754 = vpop.f32.mrf.mxu0
      %3755 = vmatprep.mubr.bf16.mxu0 0
      %3756 = vmatmul.mubr.bf16.gmra.mxu0 %v3341
      %v3757 = vpop.f32.mrf.mxu0
      %v3758 = vadd.f32 %v3549, %v3757
      %v3759 = vpop.f32.mrf.mxu0
      %v3760 = vpop.f32.mrf.mxu0
      %v3761 = vadd.f32 %v3552, %v3760
      %v3762 = vpop.f32.mrf.mxu0
      %3763 = vmatprep.mubr.bf16.mxu0 0
      %3764 = vmatmul.mubr.bf16.gmra.mxu0 %v3342
      %v3765 = vpop.f32.mrf.mxu0
      %v3766 = vadd.f32 %v3557, %v3765
      %v3767 = vpop.f32.mrf.mxu0
      %v3768 = vpop.f32.mrf.mxu0
      %v3769 = vadd.f32 %v3560, %v3768
      %v3770 = vpop.f32.mrf.mxu0
      %3771 = vmatprep.mubr.bf16.mxu0 0
      %3772 = vmatmul.mubr.bf16.gmra.mxu0 %v3343
      %v3773 = vpop.f32.mrf.mxu0
      %v3774 = vadd.f32 %v3565, %v3773
      %v3775 = vpop.f32.mrf.mxu0
      %v3776 = vpop.f32.mrf.mxu0
      %v3777 = vadd.f32 %v3568, %v3776
      %v3778 = vpop.f32.mrf.mxu0
      %3779 = vmatprep.mubr.bf16.mxu0 0
      %3780 = vmatmul.mubr.bf16.gmra.mxu0 %v3344
      %v3781 = vpop.f32.mrf.mxu0
      %v3782 = vadd.f32 %v3573, %v3781
      %v3783 = vpop.f32.mrf.mxu0
      %v3784 = vpop.f32.mrf.mxu0
      %v3785 = vadd.f32 %v3576, %v3784
      %v3786 = vpop.f32.mrf.mxu0
      %3787 = vmatprep.mubr.bf16.mxu0 0
      %3788 = vmatmul.mubr.bf16.gmra.mxu0 %v3345
      %v3789 = vpop.f32.mrf.mxu0
      %v3790 = vadd.f32 %v3581, %v3789
      %v3791 = vpop.f32.mrf.mxu0
      %v3792 = vpop.f32.mrf.mxu0
      %v3793 = vadd.f32 %v3584, %v3792
      %v3794 = vpop.f32.mrf.mxu0
      %3795 = vmatprep.mubr.bf16.mxu0 0
      %3796 = vmatmul.mubr.bf16.gmra.mxu0 %v3346
      %v3797 = vpop.f32.mrf.mxu0
      %v3798 = vadd.f32 %v3589, %v3797
      %v3799 = vpop.f32.mrf.mxu0
      %v3800 = vpop.f32.mrf.mxu0
      %v3801 = vadd.f32 %v3592, %v3800
      %v3802 = vpop.f32.mrf.mxu0
      %3803 = vmatprep.mubr.bf16.mxu0 0
      %3804 = vmatmul.mubr.bf16.gmra.mxu0 %v3347
      %v3805 = vpop.f32.mrf.mxu0
      %v3806 = vadd.f32 %v3597, %v3805
      %v3807 = vpop.f32.mrf.mxu0
      %v3808 = vpop.f32.mrf.mxu0
      %v3809 = vadd.f32 %v3600, %v3808
      %v3810 = vpop.f32.mrf.mxu0
      %3811 = vmatprep.mubr.bf16.mxu0 0
      %3812 = vmatmul.mubr.bf16.gmra.mxu0 %v3348
      %v3813 = vpop.f32.mrf.mxu0
      %v3814 = vadd.f32 %v3605, %v3813
      %v3815 = vpop.f32.mrf.mxu0
      %v3816 = vpop.f32.mrf.mxu0
      %v3817 = vadd.f32 %v3608, %v3816
      %v3818 = vpop.f32.mrf.mxu0
      %3819 = vmatprep.mubr.bf16.mxu0 0
      %3820 = vmatmul.mubr.bf16.gmra.mxu0 %v3349
      %v3821 = vpop.f32.mrf.mxu0
      %v3822 = vadd.f32 %v3613, %v3821
      %v3823 = vpop.f32.mrf.mxu0
      %v3824 = vpop.f32.mrf.mxu0
      %v3825 = vadd.f32 %v3616, %v3824
      %v3826 = vpop.f32.mrf.mxu0
      %3827 = vmatprep.mubr.bf16.mxu0 0
      %3828 = vmatmul.mubr.bf16.gmra.mxu0 %v3350
      %v3829 = vpop.f32.mrf.mxu0
      %v3830 = vadd.f32 %v3621, %v3829
      %v3831 = vpop.f32.mrf.mxu0
      %v3832 = vpop.f32.mrf.mxu0
      %v3833 = vadd.f32 %v3624, %v3832
      %v3834 = vpop.f32.mrf.mxu0
      %3835 = vmatprep.mubr.bf16.mxu0 0
      %3836 = vmatmul.mubr.bf16.gmra.mxu0 %v3351
      %v3837 = vpop.f32.mrf.mxu0
      %v3838 = vadd.f32 %v3629, %v3837
      %v3839 = vpop.f32.mrf.mxu0
      %v3840 = vpop.f32.mrf.mxu0
      %v3841 = vadd.f32 %v3632, %v3840
      %v3842 = vpop.f32.mrf.mxu0
      %3843 = vmatprep.mubr.bf16.mxu0 0
      %3844 = vmatmul.mubr.bf16.gmra.mxu0 %v3352
      %v3845 = vpop.f32.mrf.mxu0
      %v3846 = vadd.f32 %v3637, %v3845
      %v3847 = vpop.f32.mrf.mxu0
      %v3848 = vpop.f32.mrf.mxu0
      %v3849 = vadd.f32 %v3640, %v3848
      %v3850 = vpop.f32.mrf.mxu0
      %3851 = vdwg.mxu0
      %v3852 = vld [vmem:[#allocation2 + $0x9] sm:$0xff]
      %v3853 = vld [vmem:[#allocation2 + $0x11] sm:$0xff]
      %v3854 = vld [vmem:[#allocation2 + $0x29] sm:$0xff]
      %v3855 = vld [vmem:[#allocation2 + $0x31] sm:$0xff]
      %v3856 = vld [vmem:[#allocation2 + $0x49] sm:$0xff]
      %v3857 = vld [vmem:[#allocation2 + $0x51] sm:$0xff]
      %v3858 = vld [vmem:[#allocation2 + $0x69] sm:$0xff]
      %v3859 = vld [vmem:[#allocation2 + $0x71] sm:$0xff]
      %v3860 = vld [vmem:[#allocation2 + $0x89] sm:$0xff]
      %v3861 = vld [vmem:[#allocation2 + $0x91] sm:$0xff]
      %v3862 = vld [vmem:[#allocation2 + $0xa9] sm:$0xff]
      %v3863 = vld [vmem:[#allocation2 + $0xb1] sm:$0xff]
      %v3864 = vld [vmem:[#allocation2 + $0xc9] sm:$0xff]
      %v3865 = vld [vmem:[#allocation2 + $0xd1] sm:$0xff]
      %v3866 = vld [vmem:[#allocation2 + $0xe9] sm:$0xff]
      %v3867 = vld [vmem:[#allocation2 + $0xf1] sm:$0xff]
      %v3868 = vld [vmem:[#allocation2 + $0x109] sm:$0xff]
      %v3869 = vld [vmem:[#allocation2 + $0x111] sm:$0xff]
      %v3870 = vld [vmem:[#allocation2 + $0x129] sm:$0xff]
      %v3871 = vld [vmem:[#allocation2 + $0x131] sm:$0xff]
      %v3872 = vld [vmem:[#allocation2 + $0x149] sm:$0xff]
      %v3873 = vld [vmem:[#allocation2 + $0x151] sm:$0xff]
      %v3874 = vld [vmem:[#allocation2 + $0x169] sm:$0xff]
      %v3875 = vld [vmem:[#allocation2 + $0x171] sm:$0xff]
      %v3876 = vld [vmem:[#allocation2 + $0x189] sm:$0xff]
      %v3877 = vld [vmem:[#allocation2 + $0x191] sm:$0xff]
      %v3878 = vld [vmem:[#allocation2 + $0x1a9] sm:$0xff]
      %v3879 = vld [vmem:[#allocation2 + $0x1b1] sm:$0xff]
      %v3880 = vld [vmem:[#allocation2 + $0x1c9] sm:$0xff]
      %v3881 = vld [vmem:[#allocation2 + $0x1d1] sm:$0xff]
      %v3882 = vld [vmem:[#allocation2 + $0x1e9] sm:$0xff]
      %v3883 = vld [vmem:[#allocation2 + $0x1f1] sm:$0xff]
      %v3884 = vpack.c.bf16 %v3853, %v3852
      %v3885 = vpack.c.bf16 %v3855, %v3854
      %v3886 = vpack.c.bf16 %v3857, %v3856
      %v3887 = vpack.c.bf16 %v3859, %v3858
      %v3888 = vpack.c.bf16 %v3861, %v3860
      %v3889 = vpack.c.bf16 %v3863, %v3862
      %v3890 = vpack.c.bf16 %v3865, %v3864
      %v3891 = vpack.c.bf16 %v3867, %v3866
      %v3892 = vpack.c.bf16 %v3869, %v3868
      %v3893 = vpack.c.bf16 %v3871, %v3870
      %v3894 = vpack.c.bf16 %v3873, %v3872
      %v3895 = vpack.c.bf16 %v3875, %v3874
      %v3896 = vpack.c.bf16 %v3877, %v3876
      %v3897 = vpack.c.bf16 %v3879, %v3878
      %v3898 = vpack.c.bf16 %v3881, %v3880
      %v3899 = vpack.c.bf16 %v3883, %v3882
      %s3900 = scalar_lea.vmem %s2, 128
      %v3901 = vld [vmem:[%s3900] sm:$0xf]
      %v3902 = vld [vmem:[%s3900 + $0x4] sm:$0xf]
      %v3903 = vld [vmem:[%s3900 + $0x8] sm:$0xf]
      %v3904 = vld [vmem:[%s3900 + $0xc] sm:$0xf]
      %v3905 = vld [vmem:[%s3900 + $0x10] sm:$0xf]
      %v3906 = vld [vmem:[%s3900 + $0x14] sm:$0xf]
      %v3907 = vld [vmem:[%s3900 + $0x18] sm:$0xf]
      %v3908 = vld [vmem:[%s3900 + $0x1c] sm:$0xf]
      %v3909 = vld [vmem:[%s3900 + $0x20] sm:$0xf]
      %v3910 = vld [vmem:[%s3900 + $0x24] sm:$0xf]
      %v3911 = vld [vmem:[%s3900 + $0x28] sm:$0xf]
      %v3912 = vld [vmem:[%s3900 + $0x2c] sm:$0xf]
      %v3913 = vld [vmem:[%s3900 + $0x30] sm:$0xf]
      %v3914 = vld [vmem:[%s3900 + $0x34] sm:$0xf]
      %v3915 = vld [vmem:[%s3900 + $0x38] sm:$0xf]
      %v3916 = vld [vmem:[%s3900 + $0x3c] sm:$0xf]
      %v3933 = vunpack.c.l.b16 %v3901
      %v3934 = vunpack.c.l.b16 %v3902
      %v3935 = vunpack.c.l.b16 %v3903
      %v3936 = vunpack.c.l.b16 %v3904
      %v3937 = vunpack.c.l.b16 %v3905
      %v3938 = vunpack.c.l.b16 %v3906
      %v3939 = vunpack.c.l.b16 %v3907
      %v3940 = vunpack.c.l.b16 %v3908
      %v3941 = vunpack.c.l.b16 %v3909
      %v3942 = vunpack.c.l.b16 %v3910
      %v3943 = vunpack.c.l.b16 %v3911
      %v3944 = vunpack.c.l.b16 %v3912
      %v3945 = vunpack.c.l.b16 %v3913
      %v3946 = vunpack.c.l.b16 %v3914
      %v3947 = vunpack.c.l.b16 %v3915
      %v3948 = vunpack.c.l.b16 %v3916
      %v3949 = vpack.c.b16 %v3934, %v3933
      %v3950 = vpack.c.b16 %v3936, %v3935
      %v3951 = vpack.c.b16 %v3938, %v3937
      %v3952 = vpack.c.b16 %v3940, %v3939
      %v3953 = vpack.c.b16 %v3942, %v3941
      %v3954 = vpack.c.b16 %v3944, %v3943
      %v3955 = vpack.c.b16 %v3946, %v3945
      %v3956 = vpack.c.b16 %v3948, %v3947
      %3965 = vmatprep.subr.bf16.mxu0 0
      %3966 = vmatpush1.bf16.msra.mxu0 %v3956
      %3967 = vmatprep.subr.bf16.mxu0 0
      %3968 = vmatpush1.bf16.msra.mxu0 %v3955
      %3969 = vmatprep.subr.bf16.mxu0 0
      %3970 = vmatpush1.bf16.msra.mxu0 %v3954
      %3971 = vmatprep.subr.bf16.mxu0 0
      %3972 = vmatpush1.bf16.msra.mxu0 %v3953
      %3973 = vmatprep.subr.bf16.mxu0 0
      %3974 = vmatpush1.bf16.msra.mxu0 %v3952
      %3975 = vmatprep.subr.bf16.mxu0 0
      %3976 = vmatpush1.bf16.msra.mxu0 %v3951
      %3977 = vmatprep.subr.bf16.mxu0 0
      %3978 = vmatpush1.bf16.msra.mxu0 %v3950
      %3979 = vmatprep.subr.bf16.mxu0 0
      %3980 = vmatpush1.bf16.msra.mxu0 %v3949
      %3981 = vmatprep.subr.bf16.mxu0 0
      %3982 = vmatpush2.bf16.msra.mxu0 0
      %3983 = vmatprep.subr.bf16.mxu0 0
      %3984 = vmatpush2.bf16.msra.mxu0 0
      %3985 = vmatprep.subr.bf16.mxu0 0
      %3986 = vmatpush2.bf16.msra.mxu0 0
      %3987 = vmatprep.subr.bf16.mxu0 0
      %3988 = vmatpush2.bf16.msra.mxu0 0
      %3989 = vmatprep.subr.bf16.mxu0 0
      %3990 = vmatpush2.bf16.msra.mxu0 0
      %3991 = vmatprep.subr.bf16.mxu0 0
      %3992 = vmatpush2.bf16.msra.mxu0 0
      %3993 = vmatprep.subr.bf16.mxu0 0
      %3994 = vmatpush2.bf16.msra.mxu0 0
      %3995 = vmatprep.subr.bf16.mxu0 0
      %3996 = vmatpush2.bf16.msra.mxu0 0
      %3997 = vmatprep.mubr.bf16.mxu0 0
      %3998 = vmatmul.mubr.bf16.gmra.mxu0 %v3884
      %v3999 = vpop.f32.mrf.mxu0
      %v4000 = vadd.f32 0.0, %v3999
      %v4001 = vpop.f32.mrf.mxu0
      %v4002 = vpop.f32.mrf.mxu0
      %v4003 = vadd.f32 0.0, %v4002
      %v4004 = vpop.f32.mrf.mxu0
      %4005 = vmatprep.mubr.bf16.mxu0 0
      %4006 = vmatmul.mubr.bf16.gmra.mxu0 %v3885
      %v4007 = vpop.f32.mrf.mxu0
      %v4008 = vadd.f32 0.0, %v4007
      %v4009 = vpop.f32.mrf.mxu0
      %v4010 = vpop.f32.mrf.mxu0
      %v4011 = vadd.f32 0.0, %v4010
      %v4012 = vpop.f32.mrf.mxu0
      %4013 = vmatprep.mubr.bf16.mxu0 0
      %4014 = vmatmul.mubr.bf16.gmra.mxu0 %v3886
      %v4015 = vpop.f32.mrf.mxu0
      %v4016 = vadd.f32 0.0, %v4015
      %v4017 = vpop.f32.mrf.mxu0
      %v4018 = vpop.f32.mrf.mxu0
      %v4019 = vadd.f32 0.0, %v4018
      %v4020 = vpop.f32.mrf.mxu0
      %4021 = vmatprep.mubr.bf16.mxu0 0
      %4022 = vmatmul.mubr.bf16.gmra.mxu0 %v3887
      %v4023 = vpop.f32.mrf.mxu0
      %v4024 = vadd.f32 0.0, %v4023
      %v4025 = vpop.f32.mrf.mxu0
      %v4026 = vpop.f32.mrf.mxu0
      %v4027 = vadd.f32 0.0, %v4026
      %v4028 = vpop.f32.mrf.mxu0
      %4029 = vmatprep.mubr.bf16.mxu0 0
      %4030 = vmatmul.mubr.bf16.gmra.mxu0 %v3888
      %v4031 = vpop.f32.mrf.mxu0
      %v4032 = vadd.f32 0.0, %v4031
      %v4033 = vpop.f32.mrf.mxu0
      %v4034 = vpop.f32.mrf.mxu0
      %v4035 = vadd.f32 0.0, %v4034
      %v4036 = vpop.f32.mrf.mxu0
      %4037 = vmatprep.mubr.bf16.mxu0 0
      %4038 = vmatmul.mubr.bf16.gmra.mxu0 %v3889
      %v4039 = vpop.f32.mrf.mxu0
      %v4040 = vadd.f32 0.0, %v4039
      %v4041 = vpop.f32.mrf.mxu0
      %v4042 = vpop.f32.mrf.mxu0
      %v4043 = vadd.f32 0.0, %v4042
      %v4044 = vpop.f32.mrf.mxu0
      %4045 = vmatprep.mubr.bf16.mxu0 0
      %4046 = vmatmul.mubr.bf16.gmra.mxu0 %v3890
      %v4047 = vpop.f32.mrf.mxu0
      %v4048 = vadd.f32 0.0, %v4047
      %v4049 = vpop.f32.mrf.mxu0
      %v4050 = vpop.f32.mrf.mxu0
      %v4051 = vadd.f32 0.0, %v4050
      %v4052 = vpop.f32.mrf.mxu0
      %4053 = vmatprep.mubr.bf16.mxu0 0
      %4054 = vmatmul.mubr.bf16.gmra.mxu0 %v3891
      %v4055 = vpop.f32.mrf.mxu0
      %v4056 = vadd.f32 0.0, %v4055
      %v4057 = vpop.f32.mrf.mxu0
      %v4058 = vpop.f32.mrf.mxu0
      %v4059 = vadd.f32 0.0, %v4058
      %v4060 = vpop.f32.mrf.mxu0
      %4061 = vmatprep.mubr.bf16.mxu0 0
      %4062 = vmatmul.mubr.bf16.gmra.mxu0 %v3892
      %v4063 = vpop.f32.mrf.mxu0
      %v4064 = vadd.f32 0.0, %v4063
      %v4065 = vpop.f32.mrf.mxu0
      %v4066 = vpop.f32.mrf.mxu0
      %v4067 = vadd.f32 0.0, %v4066
      %v4068 = vpop.f32.mrf.mxu0
      %4069 = vmatprep.mubr.bf16.mxu0 0
      %4070 = vmatmul.mubr.bf16.gmra.mxu0 %v3893
      %v4071 = vpop.f32.mrf.mxu0
      %v4072 = vadd.f32 0.0, %v4071
      %v4073 = vpop.f32.mrf.mxu0
      %v4074 = vpop.f32.mrf.mxu0
      %v4075 = vadd.f32 0.0, %v4074
      %v4076 = vpop.f32.mrf.mxu0
      %4077 = vmatprep.mubr.bf16.mxu0 0
      %4078 = vmatmul.mubr.bf16.gmra.mxu0 %v3894
      %v4079 = vpop.f32.mrf.mxu0
      %v4080 = vadd.f32 0.0, %v4079
      %v4081 = vpop.f32.mrf.mxu0
      %v4082 = vpop.f32.mrf.mxu0
      %v4083 = vadd.f32 0.0, %v4082
      %v4084 = vpop.f32.mrf.mxu0
      %4085 = vmatprep.mubr.bf16.mxu0 0
      %4086 = vmatmul.mubr.bf16.gmra.mxu0 %v3895
      %v4087 = vpop.f32.mrf.mxu0
      %v4088 = vadd.f32 0.0, %v4087
      %v4089 = vpop.f32.mrf.mxu0
      %v4090 = vpop.f32.mrf.mxu0
      %v4091 = vadd.f32 0.0, %v4090
      %v4092 = vpop.f32.mrf.mxu0
      %4093 = vmatprep.mubr.bf16.mxu0 0
      %4094 = vmatmul.mubr.bf16.gmra.mxu0 %v3896
      %v4095 = vpop.f32.mrf.mxu0
      %v4096 = vadd.f32 0.0, %v4095
      %v4097 = vpop.f32.mrf.mxu0
      %v4098 = vpop.f32.mrf.mxu0
      %v4099 = vadd.f32 0.0, %v4098
      %v4100 = vpop.f32.mrf.mxu0
      %4101 = vmatprep.mubr.bf16.mxu0 0
      %4102 = vmatmul.mubr.bf16.gmra.mxu0 %v3897
      %v4103 = vpop.f32.mrf.mxu0
      %v4104 = vadd.f32 0.0, %v4103
      %v4105 = vpop.f32.mrf.mxu0
      %v4106 = vpop.f32.mrf.mxu0
      %v4107 = vadd.f32 0.0, %v4106
      %v4108 = vpop.f32.mrf.mxu0
      %4109 = vmatprep.mubr.bf16.mxu0 0
      %4110 = vmatmul.mubr.bf16.gmra.mxu0 %v3898
      %v4111 = vpop.f32.mrf.mxu0
      %v4112 = vadd.f32 0.0, %v4111
      %v4113 = vpop.f32.mrf.mxu0
      %v4114 = vpop.f32.mrf.mxu0
      %v4115 = vadd.f32 0.0, %v4114
      %v4116 = vpop.f32.mrf.mxu0
      %4117 = vmatprep.mubr.bf16.mxu0 0
      %4118 = vmatmul.mubr.bf16.gmra.mxu0 %v3899
      %v4119 = vpop.f32.mrf.mxu0
      %v4120 = vadd.f32 0.0, %v4119
      %v4121 = vpop.f32.mrf.mxu0
      %v4122 = vpop.f32.mrf.mxu0
      %v4123 = vadd.f32 0.0, %v4122
      %v4124 = vpop.f32.mrf.mxu0
      %4125 = vdwg.mxu0
      %v4126 = vadd.f32 %v3726, %v4000
      %v4127 = vadd.f32 %v3729, %v4003
      %v4128 = vadd.f32 %v3734, %v4008
      %v4129 = vadd.f32 %v3737, %v4011
      %v4130 = vadd.f32 %v3742, %v4016
      %v4131 = vadd.f32 %v3745, %v4019
      %v4132 = vadd.f32 %v3750, %v4024
      %v4133 = vadd.f32 %v3753, %v4027
      %v4134 = vadd.f32 %v3758, %v4032
      %v4135 = vadd.f32 %v3761, %v4035
      %v4136 = vadd.f32 %v3766, %v4040
      %v4137 = vadd.f32 %v3769, %v4043
      %v4138 = vadd.f32 %v3774, %v4048
      %v4139 = vadd.f32 %v3777, %v4051
      %v4140 = vadd.f32 %v3782, %v4056
      %v4141 = vadd.f32 %v3785, %v4059
      %v4142 = vadd.f32 %v3790, %v4064
      %v4143 = vadd.f32 %v3793, %v4067
      %v4144 = vadd.f32 %v3798, %v4072
      %v4145 = vadd.f32 %v3801, %v4075
      %v4146 = vadd.f32 %v3806, %v4080
      %v4147 = vadd.f32 %v3809, %v4083
      %v4148 = vadd.f32 %v3814, %v4088
      %v4149 = vadd.f32 %v3817, %v4091
      %v4150 = vadd.f32 %v3822, %v4096
      %v4151 = vadd.f32 %v3825, %v4099
      %v4152 = vadd.f32 %v3830, %v4104
      %v4153 = vadd.f32 %v3833, %v4107
      %v4154 = vadd.f32 %v3838, %v4112
      %v4155 = vadd.f32 %v3841, %v4115
      %v4156 = vadd.f32 %v3846, %v4120
      %v4157 = vadd.f32 %v3849, %v4123
      %v4158 = vld [vmem:[%s3272 + $0x7] sm:$0xff]
      %v4159 = vld [vmem:[%s3272 + $0xf] sm:$0xff]
      %v4160 = vld [vmem:[%s3272 + $0x27] sm:$0xff]
      %v4161 = vld [vmem:[%s3272 + $0x2f] sm:$0xff]
      %v4162 = vld [vmem:[%s3272 + $0x47] sm:$0xff]
      %v4163 = vld [vmem:[%s3272 + $0x4f] sm:$0xff]
      %v4164 = vld [vmem:[%s3272 + $0x67] sm:$0xff]
      %v4165 = vld [vmem:[%s3272 + $0x6f] sm:$0xff]
      %v4166 = vld [vmem:[%s3272 + $0x87] sm:$0xff]
      %v4167 = vld [vmem:[%s3272 + $0x8f] sm:$0xff]
      %v4168 = vld [vmem:[%s3272 + $0xa7] sm:$0xff]
      %v4169 = vld [vmem:[%s3272 + $0xaf] sm:$0xff]
      %v4170 = vld [vmem:[%s3272 + $0xc7] sm:$0xff]
      %v4171 = vld [vmem:[%s3272 + $0xcf] sm:$0xff]
      %v4172 = vld [vmem:[%s3272 + $0xe7] sm:$0xff]
      %v4173 = vld [vmem:[%s3272 + $0xef] sm:$0xff]
      %v4174 = vld [vmem:[%s3272 + $0x107] sm:$0xff]
      %v4175 = vld [vmem:[%s3272 + $0x10f] sm:$0xff]
      %v4176 = vld [vmem:[%s3272 + $0x127] sm:$0xff]
      %v4177 = vld [vmem:[%s3272 + $0x12f] sm:$0xff]
      %v4178 = vld [vmem:[%s3272 + $0x147] sm:$0xff]
      %v4179 = vld [vmem:[%s3272 + $0x14f] sm:$0xff]
      %v4180 = vld [vmem:[%s3272 + $0x167] sm:$0xff]
      %v4181 = vld [vmem:[%s3272 + $0x16f] sm:$0xff]
      %v4182 = vld [vmem:[%s3272 + $0x187] sm:$0xff]
      %v4183 = vld [vmem:[%s3272 + $0x18f] sm:$0xff]
      %v4184 = vld [vmem:[%s3272 + $0x1a7] sm:$0xff]
      %v4185 = vld [vmem:[%s3272 + $0x1af] sm:$0xff]
      %v4186 = vld [vmem:[%s3272 + $0x1c7] sm:$0xff]
      %v4187 = vld [vmem:[%s3272 + $0x1cf] sm:$0xff]
      %v4188 = vld [vmem:[%s3272 + $0x1e7] sm:$0xff]
      %v4189 = vld [vmem:[%s3272 + $0x1ef] sm:$0xff]
      %v4190 = vpack.c.bf16 %v4159, %v4158
      %v4191 = vpack.c.bf16 %v4161, %v4160
      %v4192 = vpack.c.bf16 %v4163, %v4162
      %v4193 = vpack.c.bf16 %v4165, %v4164
      %v4194 = vpack.c.bf16 %v4167, %v4166
      %v4195 = vpack.c.bf16 %v4169, %v4168
      %v4196 = vpack.c.bf16 %v4171, %v4170
      %v4197 = vpack.c.bf16 %v4173, %v4172
      %v4198 = vpack.c.bf16 %v4175, %v4174
      %v4199 = vpack.c.bf16 %v4177, %v4176
      %v4200 = vpack.c.bf16 %v4179, %v4178
      %v4201 = vpack.c.bf16 %v4181, %v4180
      %v4202 = vpack.c.bf16 %v4183, %v4182
      %v4203 = vpack.c.bf16 %v4185, %v4184
      %v4204 = vpack.c.bf16 %v4187, %v4186
      %v4205 = vpack.c.bf16 %v4189, %v4188
      %s4206 = scalar_lea.vmem %s2, 192
      %v4207 = vld [vmem:[%s4206] sm:$0xf]
      %v4208 = vld [vmem:[%s4206 + $0x4] sm:$0xf]
      %v4209 = vld [vmem:[%s4206 + $0x8] sm:$0xf]
      %v4210 = vld [vmem:[%s4206 + $0xc] sm:$0xf]
      %v4211 = vld [vmem:[%s4206 + $0x10] sm:$0xf]
      %v4212 = vld [vmem:[%s4206 + $0x14] sm:$0xf]
      %v4213 = vld [vmem:[%s4206 + $0x18] sm:$0xf]
      %v4214 = vld [vmem:[%s4206 + $0x1c] sm:$0xf]
      %v4215 = vld [vmem:[%s4206 + $0x20] sm:$0xf]
      %v4216 = vld [vmem:[%s4206 + $0x24] sm:$0xf]
      %v4217 = vld [vmem:[%s4206 + $0x28] sm:$0xf]
      %v4218 = vld [vmem:[%s4206 + $0x2c] sm:$0xf]
      %v4219 = vld [vmem:[%s4206 + $0x30] sm:$0xf]
      %v4220 = vld [vmem:[%s4206 + $0x34] sm:$0xf]
      %v4221 = vld [vmem:[%s4206 + $0x38] sm:$0xf]
      %v4222 = vld [vmem:[%s4206 + $0x3c] sm:$0xf]
      %v4239 = vunpack.c.l.b16 %v4207
      %v4240 = vunpack.c.l.b16 %v4208
      %v4241 = vunpack.c.l.b16 %v4209
      %v4242 = vunpack.c.l.b16 %v4210
      %v4243 = vunpack.c.l.b16 %v4211
      %v4244 = vunpack.c.l.b16 %v4212
      %v4245 = vunpack.c.l.b16 %v4213
      %v4246 = vunpack.c.l.b16 %v4214
      %v4247 = vunpack.c.l.b16 %v4215
      %v4248 = vunpack.c.l.b16 %v4216
      %v4249 = vunpack.c.l.b16 %v4217
      %v4250 = vunpack.c.l.b16 %v4218
      %v4251 = vunpack.c.l.b16 %v4219
      %v4252 = vunpack.c.l.b16 %v4220
      %v4253 = vunpack.c.l.b16 %v4221
      %v4254 = vunpack.c.l.b16 %v4222
      %v4255 = vpack.c.b16 %v4240, %v4239
      %v4256 = vpack.c.b16 %v4242, %v4241
      %v4257 = vpack.c.b16 %v4244, %v4243
      %v4258 = vpack.c.b16 %v4246, %v4245
      %v4259 = vpack.c.b16 %v4248, %v4247
      %v4260 = vpack.c.b16 %v4250, %v4249
      %v4261 = vpack.c.b16 %v4252, %v4251
      %v4262 = vpack.c.b16 %v4254, %v4253
      %4271 = vmatprep.subr.bf16.mxu0 0
      %4272 = vmatpush1.bf16.msra.mxu0 %v4262
      %4273 = vmatprep.subr.bf16.mxu0 0
      %4274 = vmatpush1.bf16.msra.mxu0 %v4261
      %4275 = vmatprep.subr.bf16.mxu0 0
      %4276 = vmatpush1.bf16.msra.mxu0 %v4260
      %4277 = vmatprep.subr.bf16.mxu0 0
      %4278 = vmatpush1.bf16.msra.mxu0 %v4259
      %4279 = vmatprep.subr.bf16.mxu0 0
      %4280 = vmatpush1.bf16.msra.mxu0 %v4258
      %4281 = vmatprep.subr.bf16.mxu0 0
      %4282 = vmatpush1.bf16.msra.mxu0 %v4257
      %4283 = vmatprep.subr.bf16.mxu0 0
      %4284 = vmatpush1.bf16.msra.mxu0 %v4256
      %4285 = vmatprep.subr.bf16.mxu0 0
      %4286 = vmatpush1.bf16.msra.mxu0 %v4255
      %4287 = vmatprep.subr.bf16.mxu0 0
      %4288 = vmatpush2.bf16.msra.mxu0 0
      %4289 = vmatprep.subr.bf16.mxu0 0
      %4290 = vmatpush2.bf16.msra.mxu0 0
      %4291 = vmatprep.subr.bf16.mxu0 0
      %4292 = vmatpush2.bf16.msra.mxu0 0
      %4293 = vmatprep.subr.bf16.mxu0 0
      %4294 = vmatpush2.bf16.msra.mxu0 0
      %4295 = vmatprep.subr.bf16.mxu0 0
      %4296 = vmatpush2.bf16.msra.mxu0 0
      %4297 = vmatprep.subr.bf16.mxu0 0
      %4298 = vmatpush2.bf16.msra.mxu0 0
      %4299 = vmatprep.subr.bf16.mxu0 0
      %4300 = vmatpush2.bf16.msra.mxu0 0
      %4301 = vmatprep.subr.bf16.mxu0 0
      %4302 = vmatpush2.bf16.msra.mxu0 0
      %4303 = vmatprep.mubr.bf16.mxu0 0
      %4304 = vmatmul.mubr.bf16.gmra.mxu0 %v4190
      %v4305 = vpop.f32.mrf.mxu0
      %v4306 = vadd.f32 0.0, %v4305
      %v4307 = vpop.f32.mrf.mxu0
      %v4308 = vpop.f32.mrf.mxu0
      %v4309 = vadd.f32 0.0, %v4308
      %v4310 = vpop.f32.mrf.mxu0
      %4311 = vmatprep.mubr.bf16.mxu0 0
      %4312 = vmatmul.mubr.bf16.gmra.mxu0 %v4191
      %v4313 = vpop.f32.mrf.mxu0
      %v4314 = vadd.f32 0.0, %v4313
      %v4315 = vpop.f32.mrf.mxu0
      %v4316 = vpop.f32.mrf.mxu0
      %v4317 = vadd.f32 0.0, %v4316
      %v4318 = vpop.f32.mrf.mxu0
      %4319 = vmatprep.mubr.bf16.mxu0 0
      %4320 = vmatmul.mubr.bf16.gmra.mxu0 %v4192
      %v4321 = vpop.f32.mrf.mxu0
      %v4322 = vadd.f32 0.0, %v4321
      %v4323 = vpop.f32.mrf.mxu0
      %v4324 = vpop.f32.mrf.mxu0
      %v4325 = vadd.f32 0.0, %v4324
      %v4326 = vpop.f32.mrf.mxu0
      %4327 = vmatprep.mubr.bf16.mxu0 0
      %4328 = vmatmul.mubr.bf16.gmra.mxu0 %v4193
      %v4329 = vpop.f32.mrf.mxu0
      %v4330 = vadd.f32 0.0, %v4329
      %v4331 = vpop.f32.mrf.mxu0
      %v4332 = vpop.f32.mrf.mxu0
      %v4333 = vadd.f32 0.0, %v4332
      %v4334 = vpop.f32.mrf.mxu0
      %4335 = vmatprep.mubr.bf16.mxu0 0
      %4336 = vmatmul.mubr.bf16.gmra.mxu0 %v4194
      %v4337 = vpop.f32.mrf.mxu0
      %v4338 = vadd.f32 0.0, %v4337
      %v4339 = vpop.f32.mrf.mxu0
      %v4340 = vpop.f32.mrf.mxu0
      %v4341 = vadd.f32 0.0, %v4340
      %v4342 = vpop.f32.mrf.mxu0
      %4343 = vmatprep.mubr.bf16.mxu0 0
      %4344 = vmatmul.mubr.bf16.gmra.mxu0 %v4195
      %v4345 = vpop.f32.mrf.mxu0
      %v4346 = vadd.f32 0.0, %v4345
      %v4347 = vpop.f32.mrf.mxu0
      %v4348 = vpop.f32.mrf.mxu0
      %v4349 = vadd.f32 0.0, %v4348
      %v4350 = vpop.f32.mrf.mxu0
      %4351 = vmatprep.mubr.bf16.mxu0 0
      %4352 = vmatmul.mubr.bf16.gmra.mxu0 %v4196
      %v4353 = vpop.f32.mrf.mxu0
      %v4354 = vadd.f32 0.0, %v4353
      %v4355 = vpop.f32.mrf.mxu0
      %v4356 = vpop.f32.mrf.mxu0
      %v4357 = vadd.f32 0.0, %v4356
      %v4358 = vpop.f32.mrf.mxu0
      %4359 = vmatprep.mubr.bf16.mxu0 0
      %4360 = vmatmul.mubr.bf16.gmra.mxu0 %v4197
      %v4361 = vpop.f32.mrf.mxu0
      %v4362 = vadd.f32 0.0, %v4361
      %v4363 = vpop.f32.mrf.mxu0
      %v4364 = vpop.f32.mrf.mxu0
      %v4365 = vadd.f32 0.0, %v4364
      %v4366 = vpop.f32.mrf.mxu0
      %4367 = vmatprep.mubr.bf16.mxu0 0
      %4368 = vmatmul.mubr.bf16.gmra.mxu0 %v4198
      %v4369 = vpop.f32.mrf.mxu0
      %v4370 = vadd.f32 0.0, %v4369
      %v4371 = vpop.f32.mrf.mxu0
      %v4372 = vpop.f32.mrf.mxu0
      %v4373 = vadd.f32 0.0, %v4372
      %v4374 = vpop.f32.mrf.mxu0
      %4375 = vmatprep.mubr.bf16.mxu0 0
      %4376 = vmatmul.mubr.bf16.gmra.mxu0 %v4199
      %v4377 = vpop.f32.mrf.mxu0
      %v4378 = vadd.f32 0.0, %v4377
      %v4379 = vpop.f32.mrf.mxu0
      %v4380 = vpop.f32.mrf.mxu0
      %v4381 = vadd.f32 0.0, %v4380
      %v4382 = vpop.f32.mrf.mxu0
      %4383 = vmatprep.mubr.bf16.mxu0 0
      %4384 = vmatmul.mubr.bf16.gmra.mxu0 %v4200
      %v4385 = vpop.f32.mrf.mxu0
      %v4386 = vadd.f32 0.0, %v4385
      %v4387 = vpop.f32.mrf.mxu0
      %v4388 = vpop.f32.mrf.mxu0
      %v4389 = vadd.f32 0.0, %v4388
      %v4390 = vpop.f32.mrf.mxu0
      %4391 = vmatprep.mubr.bf16.mxu0 0
      %4392 = vmatmul.mubr.bf16.gmra.mxu0 %v4201
      %v4393 = vpop.f32.mrf.mxu0
      %v4394 = vadd.f32 0.0, %v4393
      %v4395 = vpop.f32.mrf.mxu0
      %v4396 = vpop.f32.mrf.mxu0
      %v4397 = vadd.f32 0.0, %v4396
      %v4398 = vpop.f32.mrf.mxu0
      %4399 = vmatprep.mubr.bf16.mxu0 0
      %4400 = vmatmul.mubr.bf16.gmra.mxu0 %v4202
      %v4401 = vpop.f32.mrf.mxu0
      %v4402 = vadd.f32 0.0, %v4401
      %v4403 = vpop.f32.mrf.mxu0
      %v4404 = vpop.f32.mrf.mxu0
      %v4405 = vadd.f32 0.0, %v4404
      %v4406 = vpop.f32.mrf.mxu0
      %4407 = vmatprep.mubr.bf16.mxu0 0
      %4408 = vmatmul.mubr.bf16.gmra.mxu0 %v4203
      %v4409 = vpop.f32.mrf.mxu0
      %v4410 = vadd.f32 0.0, %v4409
      %v4411 = vpop.f32.mrf.mxu0
      %v4412 = vpop.f32.mrf.mxu0
      %v4413 = vadd.f32 0.0, %v4412
      %v4414 = vpop.f32.mrf.mxu0
      %4415 = vmatprep.mubr.bf16.mxu0 0
      %4416 = vmatmul.mubr.bf16.gmra.mxu0 %v4204
      %v4417 = vpop.f32.mrf.mxu0
      %v4418 = vadd.f32 0.0, %v4417
      %v4419 = vpop.f32.mrf.mxu0
      %v4420 = vpop.f32.mrf.mxu0
      %v4421 = vadd.f32 0.0, %v4420
      %v4422 = vpop.f32.mrf.mxu0
      %4423 = vmatprep.mubr.bf16.mxu0 0
      %4424 = vmatmul.mubr.bf16.gmra.mxu0 %v4205
      %v4425 = vpop.f32.mrf.mxu0
      %v4426 = vadd.f32 0.0, %v4425
      %v4427 = vpop.f32.mrf.mxu0
      %v4428 = vpop.f32.mrf.mxu0
      %v4429 = vadd.f32 0.0, %v4428
      %v4430 = vpop.f32.mrf.mxu0
      %4431 = vdwg.mxu0
      %v4432 = vadd.f32 %v4126, %v4306
      %v4433 = vadd.f32 %v4127, %v4309
      %v4434 = vadd.f32 %v4128, %v4314
      %v4435 = vadd.f32 %v4129, %v4317
      %v4436 = vadd.f32 %v4130, %v4322
      %v4437 = vadd.f32 %v4131, %v4325
      %v4438 = vadd.f32 %v4132, %v4330
      %v4439 = vadd.f32 %v4133, %v4333
      %v4440 = vadd.f32 %v4134, %v4338
      %v4441 = vadd.f32 %v4135, %v4341
      %v4442 = vadd.f32 %v4136, %v4346
      %v4443 = vadd.f32 %v4137, %v4349
      %v4444 = vadd.f32 %v4138, %v4354
      %v4445 = vadd.f32 %v4139, %v4357
      %v4446 = vadd.f32 %v4140, %v4362
      %v4447 = vadd.f32 %v4141, %v4365
      %v4448 = vadd.f32 %v4142, %v4370
      %v4449 = vadd.f32 %v4143, %v4373
      %v4450 = vadd.f32 %v4144, %v4378
      %v4451 = vadd.f32 %v4145, %v4381
      %v4452 = vadd.f32 %v4146, %v4386
      %v4453 = vadd.f32 %v4147, %v4389
      %v4454 = vadd.f32 %v4148, %v4394
      %v4455 = vadd.f32 %v4149, %v4397
      %v4456 = vadd.f32 %v4150, %v4402
      %v4457 = vadd.f32 %v4151, %v4405
      %v4458 = vadd.f32 %v4152, %v4410
      %v4459 = vadd.f32 %v4153, %v4413
      %v4460 = vadd.f32 %v4154, %v4418
      %v4461 = vadd.f32 %v4155, %v4421
      %v4462 = vadd.f32 %v4156, %v4426
      %v4463 = vadd.f32 %v4157, %v4429
      %v4464 = vld [vmem:[%s3272 + $0x8] sm:$0xff]
      %v4465 = vld [vmem:[%s3272 + $0x10] sm:$0xff]
      %v4466 = vld [vmem:[%s3272 + $0x28] sm:$0xff]
      %v4467 = vld [vmem:[%s3272 + $0x30] sm:$0xff]
      %v4468 = vld [vmem:[%s3272 + $0x48] sm:$0xff]
      %v4469 = vld [vmem:[%s3272 + $0x50] sm:$0xff]
      %v4470 = vld [vmem:[%s3272 + $0x68] sm:$0xff]
      %v4471 = vld [vmem:[%s3272 + $0x70] sm:$0xff]
      %v4472 = vld [vmem:[%s3272 + $0x88] sm:$0xff]
      %v4473 = vld [vmem:[%s3272 + $0x90] sm:$0xff]
      %v4474 = vld [vmem:[%s3272 + $0xa8] sm:$0xff]
      %v4475 = vld [vmem:[%s3272 + $0xb0] sm:$0xff]
      %v4476 = vld [vmem:[%s3272 + $0xc8] sm:$0xff]
      %v4477 = vld [vmem:[%s3272 + $0xd0] sm:$0xff]
      %v4478 = vld [vmem:[%s3272 + $0xe8] sm:$0xff]
      %v4479 = vld [vmem:[%s3272 + $0xf0] sm:$0xff]
      %v4480 = vld [vmem:[%s3272 + $0x108] sm:$0xff]
      %v4481 = vld [vmem:[%s3272 + $0x110] sm:$0xff]
      %v4482 = vld [vmem:[%s3272 + $0x128] sm:$0xff]
      %v4483 = vld [vmem:[%s3272 + $0x130] sm:$0xff]
      %v4484 = vld [vmem:[%s3272 + $0x148] sm:$0xff]
      %v4485 = vld [vmem:[%s3272 + $0x150] sm:$0xff]
      %v4486 = vld [vmem:[%s3272 + $0x168] sm:$0xff]
      %v4487 = vld [vmem:[%s3272 + $0x170] sm:$0xff]
      %v4488 = vld [vmem:[%s3272 + $0x188] sm:$0xff]
      %v4489 = vld [vmem:[%s3272 + $0x190] sm:$0xff]
      %v4490 = vld [vmem:[%s3272 + $0x1a8] sm:$0xff]
      %v4491 = vld [vmem:[%s3272 + $0x1b0] sm:$0xff]
      %v4492 = vld [vmem:[%s3272 + $0x1c8] sm:$0xff]
      %v4493 = vld [vmem:[%s3272 + $0x1d0] sm:$0xff]
      %v4494 = vld [vmem:[%s3272 + $0x1e8] sm:$0xff]
      %v4495 = vld [vmem:[%s3272 + $0x1f0] sm:$0xff]
      %v4496 = vpack.c.bf16 %v4465, %v4464
      %v4497 = vpack.c.bf16 %v4467, %v4466
      %v4498 = vpack.c.bf16 %v4469, %v4468
      %v4499 = vpack.c.bf16 %v4471, %v4470
      %v4500 = vpack.c.bf16 %v4473, %v4472
      %v4501 = vpack.c.bf16 %v4475, %v4474
      %v4502 = vpack.c.bf16 %v4477, %v4476
      %v4503 = vpack.c.bf16 %v4479, %v4478
      %v4504 = vpack.c.bf16 %v4481, %v4480
      %v4505 = vpack.c.bf16 %v4483, %v4482
      %v4506 = vpack.c.bf16 %v4485, %v4484
      %v4507 = vpack.c.bf16 %v4487, %v4486
      %v4508 = vpack.c.bf16 %v4489, %v4488
      %v4509 = vpack.c.bf16 %v4491, %v4490
      %v4510 = vpack.c.bf16 %v4493, %v4492
      %v4511 = vpack.c.bf16 %v4495, %v4494
      %s4512 = scalar_lea.vmem %s2, 256
      %v4513 = vld [vmem:[%s4512] sm:$0xf]
      %v4514 = vld [vmem:[%s4512 + $0x4] sm:$0xf]
      %v4515 = vld [vmem:[%s4512 + $0x8] sm:$0xf]
      %v4516 = vld [vmem:[%s4512 + $0xc] sm:$0xf]
      %v4517 = vld [vmem:[%s4512 + $0x10] sm:$0xf]
      %v4518 = vld [vmem:[%s4512 + $0x14] sm:$0xf]
      %v4519 = vld [vmem:[%s4512 + $0x18] sm:$0xf]
      %v4520 = vld [vmem:[%s4512 + $0x1c] sm:$0xf]
      %v4521 = vld [vmem:[%s4512 + $0x20] sm:$0xf]
      %v4522 = vld [vmem:[%s4512 + $0x24] sm:$0xf]
      %v4523 = vld [vmem:[%s4512 + $0x28] sm:$0xf]
      %v4524 = vld [vmem:[%s4512 + $0x2c] sm:$0xf]
      %v4525 = vld [vmem:[%s4512 + $0x30] sm:$0xf]
      %v4526 = vld [vmem:[%s4512 + $0x34] sm:$0xf]
      %v4527 = vld [vmem:[%s4512 + $0x38] sm:$0xf]
      %v4528 = vld [vmem:[%s4512 + $0x3c] sm:$0xf]
      %v4545 = vunpack.c.l.b16 %v4513
      %v4546 = vunpack.c.l.b16 %v4514
      %v4547 = vunpack.c.l.b16 %v4515
      %v4548 = vunpack.c.l.b16 %v4516
      %v4549 = vunpack.c.l.b16 %v4517
      %v4550 = vunpack.c.l.b16 %v4518
      %v4551 = vunpack.c.l.b16 %v4519
      %v4552 = vunpack.c.l.b16 %v4520
      %v4553 = vunpack.c.l.b16 %v4521
      %v4554 = vunpack.c.l.b16 %v4522
      %v4555 = vunpack.c.l.b16 %v4523
      %v4556 = vunpack.c.l.b16 %v4524
      %v4557 = vunpack.c.l.b16 %v4525
      %v4558 = vunpack.c.l.b16 %v4526
      %v4559 = vunpack.c.l.b16 %v4527
      %v4560 = vunpack.c.l.b16 %v4528
      %v4561 = vpack.c.b16 %v4546, %v4545
      %v4562 = vpack.c.b16 %v4548, %v4547
      %v4563 = vpack.c.b16 %v4550, %v4549
      %v4564 = vpack.c.b16 %v4552, %v4551
      %v4565 = vpack.c.b16 %v4554, %v4553
      %v4566 = vpack.c.b16 %v4556, %v4555
      %v4567 = vpack.c.b16 %v4558, %v4557
      %v4568 = vpack.c.b16 %v4560, %v4559
      %4577 = vmatprep.subr.bf16.mxu0 0
      %4578 = vmatpush1.bf16.msra.mxu0 %v4568
      %4579 = vmatprep.subr.bf16.mxu0 0
      %4580 = vmatpush1.bf16.msra.mxu0 %v4567
      %4581 = vmatprep.subr.bf16.mxu0 0
      %4582 = vmatpush1.bf16.msra.mxu0 %v4566
      %4583 = vmatprep.subr.bf16.mxu0 0
      %4584 = vmatpush1.bf16.msra.mxu0 %v4565
      %4585 = vmatprep.subr.bf16.mxu0 0
      %4586 = vmatpush1.bf16.msra.mxu0 %v4564
      %4587 = vmatprep.subr.bf16.mxu0 0
      %4588 = vmatpush1.bf16.msra.mxu0 %v4563
      %4589 = vmatprep.subr.bf16.mxu0 0
      %4590 = vmatpush1.bf16.msra.mxu0 %v4562
      %4591 = vmatprep.subr.bf16.mxu0 0
      %4592 = vmatpush1.bf16.msra.mxu0 %v4561
      %4593 = vmatprep.subr.bf16.mxu0 0
      %4594 = vmatpush2.bf16.msra.mxu0 0
      %4595 = vmatprep.subr.bf16.mxu0 0
      %4596 = vmatpush2.bf16.msra.mxu0 0
      %4597 = vmatprep.subr.bf16.mxu0 0
      %4598 = vmatpush2.bf16.msra.mxu0 0
      %4599 = vmatprep.subr.bf16.mxu0 0
      %4600 = vmatpush2.bf16.msra.mxu0 0
      %4601 = vmatprep.subr.bf16.mxu0 0
      %4602 = vmatpush2.bf16.msra.mxu0 0
      %4603 = vmatprep.subr.bf16.mxu0 0
      %4604 = vmatpush2.bf16.msra.mxu0 0
      %4605 = vmatprep.subr.bf16.mxu0 0
      %4606 = vmatpush2.bf16.msra.mxu0 0
      %4607 = vmatprep.subr.bf16.mxu0 0
      %4608 = vmatpush2.bf16.msra.mxu0 0
      %4609 = vmatprep.mubr.bf16.mxu0 0
      %4610 = vmatmul.mubr.bf16.gmra.mxu0 %v4496
      %v4611 = vpop.f32.mrf.mxu0
      %v4612 = vadd.f32 0.0, %v4611
      %v4613 = vpop.f32.mrf.mxu0
      %v4614 = vpop.f32.mrf.mxu0
      %v4615 = vadd.f32 0.0, %v4614
      %v4616 = vpop.f32.mrf.mxu0
      %4617 = vmatprep.mubr.bf16.mxu0 0
      %4618 = vmatmul.mubr.bf16.gmra.mxu0 %v4497
      %v4619 = vpop.f32.mrf.mxu0
      %v4620 = vadd.f32 0.0, %v4619
      %v4621 = vpop.f32.mrf.mxu0
      %v4622 = vpop.f32.mrf.mxu0
      %v4623 = vadd.f32 0.0, %v4622
      %v4624 = vpop.f32.mrf.mxu0
      %4625 = vmatprep.mubr.bf16.mxu0 0
      %4626 = vmatmul.mubr.bf16.gmra.mxu0 %v4498
      %v4627 = vpop.f32.mrf.mxu0
      %v4628 = vadd.f32 0.0, %v4627
      %v4629 = vpop.f32.mrf.mxu0
      %v4630 = vpop.f32.mrf.mxu0
      %v4631 = vadd.f32 0.0, %v4630
      %v4632 = vpop.f32.mrf.mxu0
      %4633 = vmatprep.mubr.bf16.mxu0 0
      %4634 = vmatmul.mubr.bf16.gmra.mxu0 %v4499
      %v4635 = vpop.f32.mrf.mxu0
      %v4636 = vadd.f32 0.0, %v4635
      %v4637 = vpop.f32.mrf.mxu0
      %v4638 = vpop.f32.mrf.mxu0
      %v4639 = vadd.f32 0.0, %v4638
      %v4640 = vpop.f32.mrf.mxu0
      %4641 = vmatprep.mubr.bf16.mxu0 0
      %4642 = vmatmul.mubr.bf16.gmra.mxu0 %v4500
      %v4643 = vpop.f32.mrf.mxu0
      %v4644 = vadd.f32 0.0, %v4643
      %v4645 = vpop.f32.mrf.mxu0
      %v4646 = vpop.f32.mrf.mxu0
      %v4647 = vadd.f32 0.0, %v4646
      %v4648 = vpop.f32.mrf.mxu0
      %4649 = vmatprep.mubr.bf16.mxu0 0
      %4650 = vmatmul.mubr.bf16.gmra.mxu0 %v4501
      %v4651 = vpop.f32.mrf.mxu0
      %v4652 = vadd.f32 0.0, %v4651
      %v4653 = vpop.f32.mrf.mxu0
      %v4654 = vpop.f32.mrf.mxu0
      %v4655 = vadd.f32 0.0, %v4654
      %v4656 = vpop.f32.mrf.mxu0
      %4657 = vmatprep.mubr.bf16.mxu0 0
      %4658 = vmatmul.mubr.bf16.gmra.mxu0 %v4502
      %v4659 = vpop.f32.mrf.mxu0
      %v4660 = vadd.f32 0.0, %v4659
      %v4661 = vpop.f32.mrf.mxu0
      %v4662 = vpop.f32.mrf.mxu0
      %v4663 = vadd.f32 0.0, %v4662
      %v4664 = vpop.f32.mrf.mxu0
      %4665 = vmatprep.mubr.bf16.mxu0 0
      %4666 = vmatmul.mubr.bf16.gmra.mxu0 %v4503
      %v4667 = vpop.f32.mrf.mxu0
      %v4668 = vadd.f32 0.0, %v4667
      %v4669 = vpop.f32.mrf.mxu0
      %v4670 = vpop.f32.mrf.mxu0
      %v4671 = vadd.f32 0.0, %v4670
      %v4672 = vpop.f32.mrf.mxu0
      %4673 = vmatprep.mubr.bf16.mxu0 0
      %4674 = vmatmul.mubr.bf16.gmra.mxu0 %v4504
      %v4675 = vpop.f32.mrf.mxu0
      %v4676 = vadd.f32 0.0, %v4675
      %v4677 = vpop.f32.mrf.mxu0
      %v4678 = vpop.f32.mrf.mxu0
      %v4679 = vadd.f32 0.0, %v4678
      %v4680 = vpop.f32.mrf.mxu0
      %4681 = vmatprep.mubr.bf16.mxu0 0
      %4682 = vmatmul.mubr.bf16.gmra.mxu0 %v4505
      %v4683 = vpop.f32.mrf.mxu0
      %v4684 = vadd.f32 0.0, %v4683
      %v4685 = vpop.f32.mrf.mxu0
      %v4686 = vpop.f32.mrf.mxu0
      %v4687 = vadd.f32 0.0, %v4686
      %v4688 = vpop.f32.mrf.mxu0
      %4689 = vmatprep.mubr.bf16.mxu0 0
      %4690 = vmatmul.mubr.bf16.gmra.mxu0 %v4506
      %v4691 = vpop.f32.mrf.mxu0
      %v4692 = vadd.f32 0.0, %v4691
      %v4693 = vpop.f32.mrf.mxu0
      %v4694 = vpop.f32.mrf.mxu0
      %v4695 = vadd.f32 0.0, %v4694
      %v4696 = vpop.f32.mrf.mxu0
      %4697 = vmatprep.mubr.bf16.mxu0 0
      %4698 = vmatmul.mubr.bf16.gmra.mxu0 %v4507
      %v4699 = vpop.f32.mrf.mxu0
      %v4700 = vadd.f32 0.0, %v4699
      %v4701 = vpop.f32.mrf.mxu0
      %v4702 = vpop.f32.mrf.mxu0
      %v4703 = vadd.f32 0.0, %v4702
      %v4704 = vpop.f32.mrf.mxu0
      %4705 = vmatprep.mubr.bf16.mxu0 0
      %4706 = vmatmul.mubr.bf16.gmra.mxu0 %v4508
      %v4707 = vpop.f32.mrf.mxu0
      %v4708 = vadd.f32 0.0, %v4707
      %v4709 = vpop.f32.mrf.mxu0
      %v4710 = vpop.f32.mrf.mxu0
      %v4711 = vadd.f32 0.0, %v4710
      %v4712 = vpop.f32.mrf.mxu0
      %4713 = vmatprep.mubr.bf16.mxu0 0
      %4714 = vmatmul.mubr.bf16.gmra.mxu0 %v4509
      %v4715 = vpop.f32.mrf.mxu0
      %v4716 = vadd.f32 0.0, %v4715
      %v4717 = vpop.f32.mrf.mxu0
      %v4718 = vpop.f32.mrf.mxu0
      %v4719 = vadd.f32 0.0, %v4718
      %v4720 = vpop.f32.mrf.mxu0
      %4721 = vmatprep.mubr.bf16.mxu0 0
      %4722 = vmatmul.mubr.bf16.gmra.mxu0 %v4510
      %v4723 = vpop.f32.mrf.mxu0
      %v4724 = vadd.f32 0.0, %v4723
      %v4725 = vpop.f32.mrf.mxu0
      %v4726 = vpop.f32.mrf.mxu0
      %v4727 = vadd.f32 0.0, %v4726
      %v4728 = vpop.f32.mrf.mxu0
      %4729 = vmatprep.mubr.bf16.mxu0 0
      %4730 = vmatmul.mubr.bf16.gmra.mxu0 %v4511
      %v4731 = vpop.f32.mrf.mxu0
      %v4732 = vadd.f32 0.0, %v4731
      %v4733 = vpop.f32.mrf.mxu0
      %v4734 = vpop.f32.mrf.mxu0
      %v4735 = vadd.f32 0.0, %v4734
      %v4736 = vpop.f32.mrf.mxu0
      %4737 = vdwg.mxu0
      %v4738 = vadd.f32 %v4432, %v4612
      %v4739 = vadd.f32 %v4433, %v4615
      %v4740 = vadd.f32 %v4434, %v4620
      %v4741 = vadd.f32 %v4435, %v4623
      %v4742 = vadd.f32 %v4436, %v4628
      %v4743 = vadd.f32 %v4437, %v4631
      %v4744 = vadd.f32 %v4438, %v4636
      %v4745 = vadd.f32 %v4439, %v4639
      %v4746 = vadd.f32 %v4440, %v4644
      %v4747 = vadd.f32 %v4441, %v4647
      %v4748 = vadd.f32 %v4442, %v4652
      %v4749 = vadd.f32 %v4443, %v4655
      %v4750 = vadd.f32 %v4444, %v4660
      %v4751 = vadd.f32 %v4445, %v4663
      %v4752 = vadd.f32 %v4446, %v4668
      %v4753 = vadd.f32 %v4447, %v4671
      %v4754 = vadd.f32 %v4448, %v4676
      %v4755 = vadd.f32 %v4449, %v4679
      %v4756 = vadd.f32 %v4450, %v4684
      %v4757 = vadd.f32 %v4451, %v4687
      %v4758 = vadd.f32 %v4452, %v4692
      %v4759 = vadd.f32 %v4453, %v4695
      %v4760 = vadd.f32 %v4454, %v4700
      %v4761 = vadd.f32 %v4455, %v4703
      %v4762 = vadd.f32 %v4456, %v4708
      %v4763 = vadd.f32 %v4457, %v4711
      %v4764 = vadd.f32 %v4458, %v4716
      %v4765 = vadd.f32 %v4459, %v4719
      %v4766 = vadd.f32 %v4460, %v4724
      %v4767 = vadd.f32 %v4461, %v4727
      %v4768 = vadd.f32 %v4462, %v4732
      %v4769 = vadd.f32 %v4463, %v4735
      %v4770 = vld [vmem:[%s3272 + $0x9] sm:$0xff]
      %v4771 = vld [vmem:[%s3272 + $0x11] sm:$0xff]
      %v4772 = vld [vmem:[%s3272 + $0x29] sm:$0xff]
      %v4773 = vld [vmem:[%s3272 + $0x31] sm:$0xff]
      %v4774 = vld [vmem:[%s3272 + $0x49] sm:$0xff]
      %v4775 = vld [vmem:[%s3272 + $0x51] sm:$0xff]
      %v4776 = vld [vmem:[%s3272 + $0x69] sm:$0xff]
      %v4777 = vld [vmem:[%s3272 + $0x71] sm:$0xff]
      %v4778 = vld [vmem:[%s3272 + $0x89] sm:$0xff]
      %v4779 = vld [vmem:[%s3272 + $0x91] sm:$0xff]
      %v4780 = vld [vmem:[%s3272 + $0xa9] sm:$0xff]
      %v4781 = vld [vmem:[%s3272 + $0xb1] sm:$0xff]
      %v4782 = vld [vmem:[%s3272 + $0xc9] sm:$0xff]
      %v4783 = vld [vmem:[%s3272 + $0xd1] sm:$0xff]
      %v4784 = vld [vmem:[%s3272 + $0xe9] sm:$0xff]
      %v4785 = vld [vmem:[%s3272 + $0xf1] sm:$0xff]
      %v4786 = vld [vmem:[%s3272 + $0x109] sm:$0xff]
      %v4787 = vld [vmem:[%s3272 + $0x111] sm:$0xff]
      %v4788 = vld [vmem:[%s3272 + $0x129] sm:$0xff]
      %v4789 = vld [vmem:[%s3272 + $0x131] sm:$0xff]
      %v4790 = vld [vmem:[%s3272 + $0x149] sm:$0xff]
      %v4791 = vld [vmem:[%s3272 + $0x151] sm:$0xff]
      %v4792 = vld [vmem:[%s3272 + $0x169] sm:$0xff]
      %v4793 = vld [vmem:[%s3272 + $0x171] sm:$0xff]
      %v4794 = vld [vmem:[%s3272 + $0x189] sm:$0xff]
      %v4795 = vld [vmem:[%s3272 + $0x191] sm:$0xff]
      %v4796 = vld [vmem:[%s3272 + $0x1a9] sm:$0xff]
      %v4797 = vld [vmem:[%s3272 + $0x1b1] sm:$0xff]
      %v4798 = vld [vmem:[%s3272 + $0x1c9] sm:$0xff]
      %v4799 = vld [vmem:[%s3272 + $0x1d1] sm:$0xff]
      %v4800 = vld [vmem:[%s3272 + $0x1e9] sm:$0xff]
      %v4801 = vld [vmem:[%s3272 + $0x1f1] sm:$0xff]
      %v4802 = vpack.c.bf16 %v4771, %v4770
      %v4803 = vpack.c.bf16 %v4773, %v4772
      %v4804 = vpack.c.bf16 %v4775, %v4774
      %v4805 = vpack.c.bf16 %v4777, %v4776
      %v4806 = vpack.c.bf16 %v4779, %v4778
      %v4807 = vpack.c.bf16 %v4781, %v4780
      %v4808 = vpack.c.bf16 %v4783, %v4782
      %v4809 = vpack.c.bf16 %v4785, %v4784
      %v4810 = vpack.c.bf16 %v4787, %v4786
      %v4811 = vpack.c.bf16 %v4789, %v4788
      %v4812 = vpack.c.bf16 %v4791, %v4790
      %v4813 = vpack.c.bf16 %v4793, %v4792
      %v4814 = vpack.c.bf16 %v4795, %v4794
      %v4815 = vpack.c.bf16 %v4797, %v4796
      %v4816 = vpack.c.bf16 %v4799, %v4798
      %v4817 = vpack.c.bf16 %v4801, %v4800
      %s4818 = scalar_lea.vmem %s2, 320
      %v4819 = vld [vmem:[%s4818] sm:$0xf]
      %v4820 = vld [vmem:[%s4818 + $0x4] sm:$0xf]
      %v4821 = vld [vmem:[%s4818 + $0x8] sm:$0xf]
      %v4822 = vld [vmem:[%s4818 + $0xc] sm:$0xf]
      %v4823 = vld [vmem:[%s4818 + $0x10] sm:$0xf]
      %v4824 = vld [vmem:[%s4818 + $0x14] sm:$0xf]
      %v4825 = vld [vmem:[%s4818 + $0x18] sm:$0xf]
      %v4826 = vld [vmem:[%s4818 + $0x1c] sm:$0xf]
      %v4827 = vld [vmem:[%s4818 + $0x20] sm:$0xf]
      %v4828 = vld [vmem:[%s4818 + $0x24] sm:$0xf]
      %v4829 = vld [vmem:[%s4818 + $0x28] sm:$0xf]
      %v4830 = vld [vmem:[%s4818 + $0x2c] sm:$0xf]
      %v4831 = vld [vmem:[%s4818 + $0x30] sm:$0xf]
      %v4832 = vld [vmem:[%s4818 + $0x34] sm:$0xf]
      %v4833 = vld [vmem:[%s4818 + $0x38] sm:$0xf]
      %v4834 = vld [vmem:[%s4818 + $0x3c] sm:$0xf]
      %v4851 = vunpack.c.l.b16 %v4819
      %v4852 = vunpack.c.l.b16 %v4820
      %v4853 = vunpack.c.l.b16 %v4821
      %v4854 = vunpack.c.l.b16 %v4822
      %v4855 = vunpack.c.l.b16 %v4823
      %v4856 = vunpack.c.l.b16 %v4824
      %v4857 = vunpack.c.l.b16 %v4825
      %v4858 = vunpack.c.l.b16 %v4826
      %v4859 = vunpack.c.l.b16 %v4827
      %v4860 = vunpack.c.l.b16 %v4828
      %v4861 = vunpack.c.l.b16 %v4829
      %v4862 = vunpack.c.l.b16 %v4830
      %v4863 = vunpack.c.l.b16 %v4831
      %v4864 = vunpack.c.l.b16 %v4832
      %v4865 = vunpack.c.l.b16 %v4833
      %v4866 = vunpack.c.l.b16 %v4834
      %v4867 = vpack.c.b16 %v4852, %v4851
      %v4868 = vpack.c.b16 %v4854, %v4853
      %v4869 = vpack.c.b16 %v4856, %v4855
      %v4870 = vpack.c.b16 %v4858, %v4857
      %v4871 = vpack.c.b16 %v4860, %v4859
      %v4872 = vpack.c.b16 %v4862, %v4861
      %v4873 = vpack.c.b16 %v4864, %v4863
      %v4874 = vpack.c.b16 %v4866, %v4865
      %4883 = vmatprep.subr.bf16.mxu0 0
      %4884 = vmatpush1.bf16.msra.mxu0 %v4874
      %4885 = vmatprep.subr.bf16.mxu0 0
      %4886 = vmatpush1.bf16.msra.mxu0 %v4873
      %4887 = vmatprep.subr.bf16.mxu0 0
      %4888 = vmatpush1.bf16.msra.mxu0 %v4872
      %4889 = vmatprep.subr.bf16.mxu0 0
      %4890 = vmatpush1.bf16.msra.mxu0 %v4871
      %4891 = vmatprep.subr.bf16.mxu0 0
      %4892 = vmatpush1.bf16.msra.mxu0 %v4870
      %4893 = vmatprep.subr.bf16.mxu0 0
      %4894 = vmatpush1.bf16.msra.mxu0 %v4869
      %4895 = vmatprep.subr.bf16.mxu0 0
      %4896 = vmatpush1.bf16.msra.mxu0 %v4868
      %4897 = vmatprep.subr.bf16.mxu0 0
      %4898 = vmatpush1.bf16.msra.mxu0 %v4867
      %4899 = vmatprep.subr.bf16.mxu0 0
      %4900 = vmatpush2.bf16.msra.mxu0 0
      %4901 = vmatprep.subr.bf16.mxu0 0
      %4902 = vmatpush2.bf16.msra.mxu0 0
      %4903 = vmatprep.subr.bf16.mxu0 0
      %4904 = vmatpush2.bf16.msra.mxu0 0
      %4905 = vmatprep.subr.bf16.mxu0 0
      %4906 = vmatpush2.bf16.msra.mxu0 0
      %4907 = vmatprep.subr.bf16.mxu0 0
      %4908 = vmatpush2.bf16.msra.mxu0 0
      %4909 = vmatprep.subr.bf16.mxu0 0
      %4910 = vmatpush2.bf16.msra.mxu0 0
      %4911 = vmatprep.subr.bf16.mxu0 0
      %4912 = vmatpush2.bf16.msra.mxu0 0
      %4913 = vmatprep.subr.bf16.mxu0 0
      %4914 = vmatpush2.bf16.msra.mxu0 0
      %4915 = vmatprep.mubr.bf16.mxu0 0
      %4916 = vmatmul.mubr.bf16.gmra.mxu0 %v4802
      %v4917 = vpop.f32.mrf.mxu0
      %v4918 = vadd.f32 0.0, %v4917
      %v4919 = vpop.f32.mrf.mxu0
      %v4920 = vpop.f32.mrf.mxu0
      %v4921 = vadd.f32 0.0, %v4920
      %v4922 = vpop.f32.mrf.mxu0
      %4923 = vmatprep.mubr.bf16.mxu0 0
      %4924 = vmatmul.mubr.bf16.gmra.mxu0 %v4803
      %v4925 = vpop.f32.mrf.mxu0
      %v4926 = vadd.f32 0.0, %v4925
      %v4927 = vpop.f32.mrf.mxu0
      %v4928 = vpop.f32.mrf.mxu0
      %v4929 = vadd.f32 0.0, %v4928
      %v4930 = vpop.f32.mrf.mxu0
      %4931 = vmatprep.mubr.bf16.mxu0 0
      %4932 = vmatmul.mubr.bf16.gmra.mxu0 %v4804
      %v4933 = vpop.f32.mrf.mxu0
      %v4934 = vadd.f32 0.0, %v4933
      %v4935 = vpop.f32.mrf.mxu0
      %v4936 = vpop.f32.mrf.mxu0
      %v4937 = vadd.f32 0.0, %v4936
      %v4938 = vpop.f32.mrf.mxu0
      %4939 = vmatprep.mubr.bf16.mxu0 0
      %4940 = vmatmul.mubr.bf16.gmra.mxu0 %v4805
      %v4941 = vpop.f32.mrf.mxu0
      %v4942 = vadd.f32 0.0, %v4941
      %v4943 = vpop.f32.mrf.mxu0
      %v4944 = vpop.f32.mrf.mxu0
      %v4945 = vadd.f32 0.0, %v4944
      %v4946 = vpop.f32.mrf.mxu0
      %4947 = vmatprep.mubr.bf16.mxu0 0
      %4948 = vmatmul.mubr.bf16.gmra.mxu0 %v4806
      %v4949 = vpop.f32.mrf.mxu0
      %v4950 = vadd.f32 0.0, %v4949
      %v4951 = vpop.f32.mrf.mxu0
      %v4952 = vpop.f32.mrf.mxu0
      %v4953 = vadd.f32 0.0, %v4952
      %v4954 = vpop.f32.mrf.mxu0
      %4955 = vmatprep.mubr.bf16.mxu0 0
      %4956 = vmatmul.mubr.bf16.gmra.mxu0 %v4807
      %v4957 = vpop.f32.mrf.mxu0
      %v4958 = vadd.f32 0.0, %v4957
      %v4959 = vpop.f32.mrf.mxu0
      %v4960 = vpop.f32.mrf.mxu0
      %v4961 = vadd.f32 0.0, %v4960
      %v4962 = vpop.f32.mrf.mxu0
      %4963 = vmatprep.mubr.bf16.mxu0 0
      %4964 = vmatmul.mubr.bf16.gmra.mxu0 %v4808
      %v4965 = vpop.f32.mrf.mxu0
      %v4966 = vadd.f32 0.0, %v4965
      %v4967 = vpop.f32.mrf.mxu0
      %v4968 = vpop.f32.mrf.mxu0
      %v4969 = vadd.f32 0.0, %v4968
      %v4970 = vpop.f32.mrf.mxu0
      %4971 = vmatprep.mubr.bf16.mxu0 0
      %4972 = vmatmul.mubr.bf16.gmra.mxu0 %v4809
      %v4973 = vpop.f32.mrf.mxu0
      %v4974 = vadd.f32 0.0, %v4973
      %v4975 = vpop.f32.mrf.mxu0
      %v4976 = vpop.f32.mrf.mxu0
      %v4977 = vadd.f32 0.0, %v4976
      %v4978 = vpop.f32.mrf.mxu0
      %4979 = vmatprep.mubr.bf16.mxu0 0
      %4980 = vmatmul.mubr.bf16.gmra.mxu0 %v4810
      %v4981 = vpop.f32.mrf.mxu0
      %v4982 = vadd.f32 0.0, %v4981
      %v4983 = vpop.f32.mrf.mxu0
      %v4984 = vpop.f32.mrf.mxu0
      %v4985 = vadd.f32 0.0, %v4984
      %v4986 = vpop.f32.mrf.mxu0
      %4987 = vmatprep.mubr.bf16.mxu0 0
      %4988 = vmatmul.mubr.bf16.gmra.mxu0 %v4811
      %v4989 = vpop.f32.mrf.mxu0
      %v4990 = vadd.f32 0.0, %v4989
      %v4991 = vpop.f32.mrf.mxu0
      %v4992 = vpop.f32.mrf.mxu0
      %v4993 = vadd.f32 0.0, %v4992
      %v4994 = vpop.f32.mrf.mxu0
      %4995 = vmatprep.mubr.bf16.mxu0 0
      %4996 = vmatmul.mubr.bf16.gmra.mxu0 %v4812
      %v4997 = vpop.f32.mrf.mxu0
      %v4998 = vadd.f32 0.0, %v4997
      %v4999 = vpop.f32.mrf.mxu0
      %v5000 = vpop.f32.mrf.mxu0
      %v5001 = vadd.f32 0.0, %v5000
      %v5002 = vpop.f32.mrf.mxu0
      %5003 = vmatprep.mubr.bf16.mxu0 0
      %5004 = vmatmul.mubr.bf16.gmra.mxu0 %v4813
      %v5005 = vpop.f32.mrf.mxu0
      %v5006 = vadd.f32 0.0, %v5005
      %v5007 = vpop.f32.mrf.mxu0
      %v5008 = vpop.f32.mrf.mxu0
      %v5009 = vadd.f32 0.0, %v5008
      %v5010 = vpop.f32.mrf.mxu0
      %5011 = vmatprep.mubr.bf16.mxu0 0
      %5012 = vmatmul.mubr.bf16.gmra.mxu0 %v4814
      %v5013 = vpop.f32.mrf.mxu0
      %v5014 = vadd.f32 0.0, %v5013
      %v5015 = vpop.f32.mrf.mxu0
      %v5016 = vpop.f32.mrf.mxu0
      %v5017 = vadd.f32 0.0, %v5016
      %v5018 = vpop.f32.mrf.mxu0
      %5019 = vmatprep.mubr.bf16.mxu0 0
      %5020 = vmatmul.mubr.bf16.gmra.mxu0 %v4815
      %v5021 = vpop.f32.mrf.mxu0
      %v5022 = vadd.f32 0.0, %v5021
      %v5023 = vpop.f32.mrf.mxu0
      %v5024 = vpop.f32.mrf.mxu0
      %v5025 = vadd.f32 0.0, %v5024
      %v5026 = vpop.f32.mrf.mxu0
      %5027 = vmatprep.mubr.bf16.mxu0 0
      %5028 = vmatmul.mubr.bf16.gmra.mxu0 %v4816
      %v5029 = vpop.f32.mrf.mxu0
      %v5030 = vadd.f32 0.0, %v5029
      %v5031 = vpop.f32.mrf.mxu0
      %v5032 = vpop.f32.mrf.mxu0
      %v5033 = vadd.f32 0.0, %v5032
      %v5034 = vpop.f32.mrf.mxu0
      %5035 = vmatprep.mubr.bf16.mxu0 0
      %5036 = vmatmul.mubr.bf16.gmra.mxu0 %v4817
      %v5037 = vpop.f32.mrf.mxu0
      %v5038 = vadd.f32 0.0, %v5037
      %v5039 = vpop.f32.mrf.mxu0
      %v5040 = vpop.f32.mrf.mxu0
      %v5041 = vadd.f32 0.0, %v5040
      %v5042 = vpop.f32.mrf.mxu0
      %5043 = vdwg.mxu0
      %v5044 = vadd.f32 %v4738, %v4918
      %v5045 = vadd.f32 %v4739, %v4921
      %v5046 = vadd.f32 %v4740, %v4926
      %v5047 = vadd.f32 %v4741, %v4929
      %v5048 = vadd.f32 %v4742, %v4934
      %v5049 = vadd.f32 %v4743, %v4937
      %v5050 = vadd.f32 %v4744, %v4942
      %v5051 = vadd.f32 %v4745, %v4945
      %v5052 = vadd.f32 %v4746, %v4950
      %v5053 = vadd.f32 %v4747, %v4953
      %v5054 = vadd.f32 %v4748, %v4958
      %v5055 = vadd.f32 %v4749, %v4961
      %v5056 = vadd.f32 %v4750, %v4966
      %v5057 = vadd.f32 %v4751, %v4969
      %v5058 = vadd.f32 %v4752, %v4974
      %v5059 = vadd.f32 %v4753, %v4977
      %v5060 = vadd.f32 %v4754, %v4982
      %v5061 = vadd.f32 %v4755, %v4985
      %v5062 = vadd.f32 %v4756, %v4990
      %v5063 = vadd.f32 %v4757, %v4993
      %v5064 = vadd.f32 %v4758, %v4998
      %v5065 = vadd.f32 %v4759, %v5001
      %v5066 = vadd.f32 %v4760, %v5006
      %v5067 = vadd.f32 %v4761, %v5009
      %v5068 = vadd.f32 %v4762, %v5014
      %v5069 = vadd.f32 %v4763, %v5017
      %v5070 = vadd.f32 %v4764, %v5022
      %v5071 = vadd.f32 %v4765, %v5025
      %v5072 = vadd.f32 %v4766, %v5030
      %v5073 = vadd.f32 %v4767, %v5033
      %v5074 = vadd.f32 %v4768, %v5038
      %v5075 = vadd.f32 %v4769, %v5041
      %s5076 = scalar_lea.vmem [#allocation2], 64
      %v5077 = vld [vmem:[%s5076 + $0x7] sm:$0xff]
      %v5078 = vld [vmem:[%s5076 + $0xf] sm:$0xff]
      %v5079 = vld [vmem:[%s5076 + $0x27] sm:$0xff]
      %v5080 = vld [vmem:[%s5076 + $0x2f] sm:$0xff]
      %v5081 = vld [vmem:[%s5076 + $0x47] sm:$0xff]
      %v5082 = vld [vmem:[%s5076 + $0x4f] sm:$0xff]
      %v5083 = vld [vmem:[%s5076 + $0x67] sm:$0xff]
      %v5084 = vld [vmem:[%s5076 + $0x6f] sm:$0xff]
      %v5085 = vld [vmem:[%s5076 + $0x87] sm:$0xff]
      %v5086 = vld [vmem:[%s5076 + $0x8f] sm:$0xff]
      %v5087 = vld [vmem:[%s5076 + $0xa7] sm:$0xff]
      %v5088 = vld [vmem:[%s5076 + $0xaf] sm:$0xff]
      %v5089 = vld [vmem:[%s5076 + $0xc7] sm:$0xff]
      %v5090 = vld [vmem:[%s5076 + $0xcf] sm:$0xff]
      %v5091 = vld [vmem:[%s5076 + $0xe7] sm:$0xff]
      %v5092 = vld [vmem:[%s5076 + $0xef] sm:$0xff]
      %v5093 = vld [vmem:[%s5076 + $0x107] sm:$0xff]
      %v5094 = vld [vmem:[%s5076 + $0x10f] sm:$0xff]
      %v5095 = vld [vmem:[%s5076 + $0x127] sm:$0xff]
      %v5096 = vld [vmem:[%s5076 + $0x12f] sm:$0xff]
      %v5097 = vld [vmem:[%s5076 + $0x147] sm:$0xff]
      %v5098 = vld [vmem:[%s5076 + $0x14f] sm:$0xff]
      %v5099 = vld [vmem:[%s5076 + $0x167] sm:$0xff]
      %v5100 = vld [vmem:[%s5076 + $0x16f] sm:$0xff]
      %v5101 = vld [vmem:[%s5076 + $0x187] sm:$0xff]
      %v5102 = vld [vmem:[%s5076 + $0x18f] sm:$0xff]
      %v5103 = vld [vmem:[%s5076 + $0x1a7] sm:$0xff]
      %v5104 = vld [vmem:[%s5076 + $0x1af] sm:$0xff]
      %v5105 = vld [vmem:[%s5076 + $0x1c7] sm:$0xff]
      %v5106 = vld [vmem:[%s5076 + $0x1cf] sm:$0xff]
      %v5107 = vld [vmem:[%s5076 + $0x1e7] sm:$0xff]
      %v5108 = vld [vmem:[%s5076 + $0x1ef] sm:$0xff]
      %v5109 = vpack.c.bf16 %v5078, %v5077
      %v5110 = vpack.c.bf16 %v5080, %v5079
      %v5111 = vpack.c.bf16 %v5082, %v5081
      %v5112 = vpack.c.bf16 %v5084, %v5083
      %v5113 = vpack.c.bf16 %v5086, %v5085
      %v5114 = vpack.c.bf16 %v5088, %v5087
      %v5115 = vpack.c.bf16 %v5090, %v5089
      %v5116 = vpack.c.bf16 %v5092, %v5091
      %v5117 = vpack.c.bf16 %v5094, %v5093
      %v5118 = vpack.c.bf16 %v5096, %v5095
      %v5119 = vpack.c.bf16 %v5098, %v5097
      %v5120 = vpack.c.bf16 %v5100, %v5099
      %v5121 = vpack.c.bf16 %v5102, %v5101
      %v5122 = vpack.c.bf16 %v5104, %v5103
      %v5123 = vpack.c.bf16 %v5106, %v5105
      %v5124 = vpack.c.bf16 %v5108, %v5107
      %s5125 = scalar_lea.vmem %s2, 384
      %v5126 = vld [vmem:[%s5125] sm:$0xf]
      %v5127 = vld [vmem:[%s5125 + $0x4] sm:$0xf]
      %v5128 = vld [vmem:[%s5125 + $0x8] sm:$0xf]
      %v5129 = vld [vmem:[%s5125 + $0xc] sm:$0xf]
      %v5130 = vld [vmem:[%s5125 + $0x10] sm:$0xf]
      %v5131 = vld [vmem:[%s5125 + $0x14] sm:$0xf]
      %v5132 = vld [vmem:[%s5125 + $0x18] sm:$0xf]
      %v5133 = vld [vmem:[%s5125 + $0x1c] sm:$0xf]
      %v5134 = vld [vmem:[%s5125 + $0x20] sm:$0xf]
      %v5135 = vld [vmem:[%s5125 + $0x24] sm:$0xf]
      %v5136 = vld [vmem:[%s5125 + $0x28] sm:$0xf]
      %v5137 = vld [vmem:[%s5125 + $0x2c] sm:$0xf]
      %v5138 = vld [vmem:[%s5125 + $0x30] sm:$0xf]
      %v5139 = vld [vmem:[%s5125 + $0x34] sm:$0xf]
      %v5140 = vld [vmem:[%s5125 + $0x38] sm:$0xf]
      %v5141 = vld [vmem:[%s5125 + $0x3c] sm:$0xf]
      %v5158 = vunpack.c.l.b16 %v5126
      %v5159 = vunpack.c.l.b16 %v5127
      %v5160 = vunpack.c.l.b16 %v5128
      %v5161 = vunpack.c.l.b16 %v5129
      %v5162 = vunpack.c.l.b16 %v5130
      %v5163 = vunpack.c.l.b16 %v5131
      %v5164 = vunpack.c.l.b16 %v5132
      %v5165 = vunpack.c.l.b16 %v5133
      %v5166 = vunpack.c.l.b16 %v5134
      %v5167 = vunpack.c.l.b16 %v5135
      %v5168 = vunpack.c.l.b16 %v5136
      %v5169 = vunpack.c.l.b16 %v5137
      %v5170 = vunpack.c.l.b16 %v5138
      %v5171 = vunpack.c.l.b16 %v5139
      %v5172 = vunpack.c.l.b16 %v5140
      %v5173 = vunpack.c.l.b16 %v5141
      %v5174 = vpack.c.b16 %v5159, %v5158
      %v5175 = vpack.c.b16 %v5161, %v5160
      %v5176 = vpack.c.b16 %v5163, %v5162
      %v5177 = vpack.c.b16 %v5165, %v5164
      %v5178 = vpack.c.b16 %v5167, %v5166
      %v5179 = vpack.c.b16 %v5169, %v5168
      %v5180 = vpack.c.b16 %v5171, %v5170
      %v5181 = vpack.c.b16 %v5173, %v5172
      %5190 = vmatprep.subr.bf16.mxu0 0
      %5191 = vmatpush1.bf16.msra.mxu0 %v5181
      %5192 = vmatprep.subr.bf16.mxu0 0
      %5193 = vmatpush1.bf16.msra.mxu0 %v5180
      %5194 = vmatprep.subr.bf16.mxu0 0
      %5195 = vmatpush1.bf16.msra.mxu0 %v5179
      %5196 = vmatprep.subr.bf16.mxu0 0
      %5197 = vmatpush1.bf16.msra.mxu0 %v5178
      %5198 = vmatprep.subr.bf16.mxu0 0
      %5199 = vmatpush1.bf16.msra.mxu0 %v5177
      %5200 = vmatprep.subr.bf16.mxu0 0
      %5201 = vmatpush1.bf16.msra.mxu0 %v5176
      %5202 = vmatprep.subr.bf16.mxu0 0
      %5203 = vmatpush1.bf16.msra.mxu0 %v5175
      %5204 = vmatprep.subr.bf16.mxu0 0
      %5205 = vmatpush1.bf16.msra.mxu0 %v5174
      %5206 = vmatprep.subr.bf16.mxu0 0
      %5207 = vmatpush2.bf16.msra.mxu0 0
      %5208 = vmatprep.subr.bf16.mxu0 0
      %5209 = vmatpush2.bf16.msra.mxu0 0
      %5210 = vmatprep.subr.bf16.mxu0 0
      %5211 = vmatpush2.bf16.msra.mxu0 0
      %5212 = vmatprep.subr.bf16.mxu0 0
      %5213 = vmatpush2.bf16.msra.mxu0 0
      %5214 = vmatprep.subr.bf16.mxu0 0
      %5215 = vmatpush2.bf16.msra.mxu0 0
      %5216 = vmatprep.subr.bf16.mxu0 0
      %5217 = vmatpush2.bf16.msra.mxu0 0
      %5218 = vmatprep.subr.bf16.mxu0 0
      %5219 = vmatpush2.bf16.msra.mxu0 0
      %5220 = vmatprep.subr.bf16.mxu0 0
      %5221 = vmatpush2.bf16.msra.mxu0 0
      %5222 = vmatprep.mubr.bf16.mxu0 0
      %5223 = vmatmul.mubr.bf16.gmra.mxu0 %v5109
      %v5224 = vpop.f32.mrf.mxu0
      %v5225 = vadd.f32 0.0, %v5224
      %v5226 = vpop.f32.mrf.mxu0
      %v5227 = vpop.f32.mrf.mxu0
      %v5228 = vadd.f32 0.0, %v5227
      %v5229 = vpop.f32.mrf.mxu0
      %5230 = vmatprep.mubr.bf16.mxu0 0
      %5231 = vmatmul.mubr.bf16.gmra.mxu0 %v5110
      %v5232 = vpop.f32.mrf.mxu0
      %v5233 = vadd.f32 0.0, %v5232
      %v5234 = vpop.f32.mrf.mxu0
      %v5235 = vpop.f32.mrf.mxu0
      %v5236 = vadd.f32 0.0, %v5235
      %v5237 = vpop.f32.mrf.mxu0
      %5238 = vmatprep.mubr.bf16.mxu0 0
      %5239 = vmatmul.mubr.bf16.gmra.mxu0 %v5111
      %v5240 = vpop.f32.mrf.mxu0
      %v5241 = vadd.f32 0.0, %v5240
      %v5242 = vpop.f32.mrf.mxu0
      %v5243 = vpop.f32.mrf.mxu0
      %v5244 = vadd.f32 0.0, %v5243
      %v5245 = vpop.f32.mrf.mxu0
      %5246 = vmatprep.mubr.bf16.mxu0 0
      %5247 = vmatmul.mubr.bf16.gmra.mxu0 %v5112
      %v5248 = vpop.f32.mrf.mxu0
      %v5249 = vadd.f32 0.0, %v5248
      %v5250 = vpop.f32.mrf.mxu0
      %v5251 = vpop.f32.mrf.mxu0
      %v5252 = vadd.f32 0.0, %v5251
      %v5253 = vpop.f32.mrf.mxu0
      %5254 = vmatprep.mubr.bf16.mxu0 0
      %5255 = vmatmul.mubr.bf16.gmra.mxu0 %v5113
      %v5256 = vpop.f32.mrf.mxu0
      %v5257 = vadd.f32 0.0, %v5256
      %v5258 = vpop.f32.mrf.mxu0
      %v5259 = vpop.f32.mrf.mxu0
      %v5260 = vadd.f32 0.0, %v5259
      %v5261 = vpop.f32.mrf.mxu0
      %5262 = vmatprep.mubr.bf16.mxu0 0
      %5263 = vmatmul.mubr.bf16.gmra.mxu0 %v5114
      %v5264 = vpop.f32.mrf.mxu0
      %v5265 = vadd.f32 0.0, %v5264
      %v5266 = vpop.f32.mrf.mxu0
      %v5267 = vpop.f32.mrf.mxu0
      %v5268 = vadd.f32 0.0, %v5267
      %v5269 = vpop.f32.mrf.mxu0
      %5270 = vmatprep.mubr.bf16.mxu0 0
      %5271 = vmatmul.mubr.bf16.gmra.mxu0 %v5115
      %v5272 = vpop.f32.mrf.mxu0
      %v5273 = vadd.f32 0.0, %v5272
      %v5274 = vpop.f32.mrf.mxu0
      %v5275 = vpop.f32.mrf.mxu0
      %v5276 = vadd.f32 0.0, %v5275
      %v5277 = vpop.f32.mrf.mxu0
      %5278 = vmatprep.mubr.bf16.mxu0 0
      %5279 = vmatmul.mubr.bf16.gmra.mxu0 %v5116
      %v5280 = vpop.f32.mrf.mxu0
      %v5281 = vadd.f32 0.0, %v5280
      %v5282 = vpop.f32.mrf.mxu0
      %v5283 = vpop.f32.mrf.mxu0
      %v5284 = vadd.f32 0.0, %v5283
      %v5285 = vpop.f32.mrf.mxu0
      %5286 = vmatprep.mubr.bf16.mxu0 0
      %5287 = vmatmul.mubr.bf16.gmra.mxu0 %v5117
      %v5288 = vpop.f32.mrf.mxu0
      %v5289 = vadd.f32 0.0, %v5288
      %v5290 = vpop.f32.mrf.mxu0
      %v5291 = vpop.f32.mrf.mxu0
      %v5292 = vadd.f32 0.0, %v5291
      %v5293 = vpop.f32.mrf.mxu0
      %5294 = vmatprep.mubr.bf16.mxu0 0
      %5295 = vmatmul.mubr.bf16.gmra.mxu0 %v5118
      %v5296 = vpop.f32.mrf.mxu0
      %v5297 = vadd.f32 0.0, %v5296
      %v5298 = vpop.f32.mrf.mxu0
      %v5299 = vpop.f32.mrf.mxu0
      %v5300 = vadd.f32 0.0, %v5299
      %v5301 = vpop.f32.mrf.mxu0
      %5302 = vmatprep.mubr.bf16.mxu0 0
      %5303 = vmatmul.mubr.bf16.gmra.mxu0 %v5119
      %v5304 = vpop.f32.mrf.mxu0
      %v5305 = vadd.f32 0.0, %v5304
      %v5306 = vpop.f32.mrf.mxu0
      %v5307 = vpop.f32.mrf.mxu0
      %v5308 = vadd.f32 0.0, %v5307
      %v5309 = vpop.f32.mrf.mxu0
      %5310 = vmatprep.mubr.bf16.mxu0 0
      %5311 = vmatmul.mubr.bf16.gmra.mxu0 %v5120
      %v5312 = vpop.f32.mrf.mxu0
      %v5313 = vadd.f32 0.0, %v5312
      %v5314 = vpop.f32.mrf.mxu0
      %v5315 = vpop.f32.mrf.mxu0
      %v5316 = vadd.f32 0.0, %v5315
      %v5317 = vpop.f32.mrf.mxu0
      %5318 = vmatprep.mubr.bf16.mxu0 0
      %5319 = vmatmul.mubr.bf16.gmra.mxu0 %v5121
      %v5320 = vpop.f32.mrf.mxu0
      %v5321 = vadd.f32 0.0, %v5320
      %v5322 = vpop.f32.mrf.mxu0
      %v5323 = vpop.f32.mrf.mxu0
      %v5324 = vadd.f32 0.0, %v5323
      %v5325 = vpop.f32.mrf.mxu0
      %5326 = vmatprep.mubr.bf16.mxu0 0
      %5327 = vmatmul.mubr.bf16.gmra.mxu0 %v5122
      %v5328 = vpop.f32.mrf.mxu0
      %v5329 = vadd.f32 0.0, %v5328
      %v5330 = vpop.f32.mrf.mxu0
      %v5331 = vpop.f32.mrf.mxu0
      %v5332 = vadd.f32 0.0, %v5331
      %v5333 = vpop.f32.mrf.mxu0
      %5334 = vmatprep.mubr.bf16.mxu0 0
      %5335 = vmatmul.mubr.bf16.gmra.mxu0 %v5123
      %v5336 = vpop.f32.mrf.mxu0
      %v5337 = vadd.f32 0.0, %v5336
      %v5338 = vpop.f32.mrf.mxu0
      %v5339 = vpop.f32.mrf.mxu0
      %v5340 = vadd.f32 0.0, %v5339
      %v5341 = vpop.f32.mrf.mxu0
      %5342 = vmatprep.mubr.bf16.mxu0 0
      %5343 = vmatmul.mubr.bf16.gmra.mxu0 %v5124
      %v5344 = vpop.f32.mrf.mxu0
      %v5345 = vadd.f32 0.0, %v5344
      %v5346 = vpop.f32.mrf.mxu0
      %v5347 = vpop.f32.mrf.mxu0
      %v5348 = vadd.f32 0.0, %v5347
      %v5349 = vpop.f32.mrf.mxu0
      %5350 = vdwg.mxu0
      %v5351 = vadd.f32 %v5044, %v5225
      %v5352 = vadd.f32 %v5045, %v5228
      %v5353 = vadd.f32 %v5046, %v5233
      %v5354 = vadd.f32 %v5047, %v5236
      %v5355 = vadd.f32 %v5048, %v5241
      %v5356 = vadd.f32 %v5049, %v5244
      %v5357 = vadd.f32 %v5050, %v5249
      %v5358 = vadd.f32 %v5051, %v5252
      %v5359 = vadd.f32 %v5052, %v5257
      %v5360 = vadd.f32 %v5053, %v5260
      %v5361 = vadd.f32 %v5054, %v5265
      %v5362 = vadd.f32 %v5055, %v5268
      %v5363 = vadd.f32 %v5056, %v5273
      %v5364 = vadd.f32 %v5057, %v5276
      %v5365 = vadd.f32 %v5058, %v5281
      %v5366 = vadd.f32 %v5059, %v5284
      %v5367 = vadd.f32 %v5060, %v5289
      %v5368 = vadd.f32 %v5061, %v5292
      %v5369 = vadd.f32 %v5062, %v5297
      %v5370 = vadd.f32 %v5063, %v5300
      %v5371 = vadd.f32 %v5064, %v5305
      %v5372 = vadd.f32 %v5065, %v5308
      %v5373 = vadd.f32 %v5066, %v5313
      %v5374 = vadd.f32 %v5067, %v5316
      %v5375 = vadd.f32 %v5068, %v5321
      %v5376 = vadd.f32 %v5069, %v5324
      %v5377 = vadd.f32 %v5070, %v5329
      %v5378 = vadd.f32 %v5071, %v5332
      %v5379 = vadd.f32 %v5072, %v5337
      %v5380 = vadd.f32 %v5073, %v5340
      %v5381 = vadd.f32 %v5074, %v5345
      %v5382 = vadd.f32 %v5075, %v5348
      %v5383 = vld [vmem:[%s5076 + $0x8] sm:$0xff]
      %v5384 = vld [vmem:[%s5076 + $0x10] sm:$0xff]
      %v5385 = vld [vmem:[%s5076 + $0x28] sm:$0xff]
      %v5386 = vld [vmem:[%s5076 + $0x30] sm:$0xff]
      %v5387 = vld [vmem:[%s5076 + $0x48] sm:$0xff]
      %v5388 = vld [vmem:[%s5076 + $0x50] sm:$0xff]
      %v5389 = vld [vmem:[%s5076 + $0x68] sm:$0xff]
      %v5390 = vld [vmem:[%s5076 + $0x70] sm:$0xff]
      %v5391 = vld [vmem:[%s5076 + $0x88] sm:$0xff]
      %v5392 = vld [vmem:[%s5076 + $0x90] sm:$0xff]
      %v5393 = vld [vmem:[%s5076 + $0xa8] sm:$0xff]
      %v5394 = vld [vmem:[%s5076 + $0xb0] sm:$0xff]
      %v5395 = vld [vmem:[%s5076 + $0xc8] sm:$0xff]
      %v5396 = vld [vmem:[%s5076 + $0xd0] sm:$0xff]
      %v5397 = vld [vmem:[%s5076 + $0xe8] sm:$0xff]
      %v5398 = vld [vmem:[%s5076 + $0xf0] sm:$0xff]
      %v5399 = vld [vmem:[%s5076 + $0x108] sm:$0xff]
      %v5400 = vld [vmem:[%s5076 + $0x110] sm:$0xff]
      %v5401 = vld [vmem:[%s5076 + $0x128] sm:$0xff]
      %v5402 = vld [vmem:[%s5076 + $0x130] sm:$0xff]
      %v5403 = vld [vmem:[%s5076 + $0x148] sm:$0xff]
      %v5404 = vld [vmem:[%s5076 + $0x150] sm:$0xff]
      %v5405 = vld [vmem:[%s5076 + $0x168] sm:$0xff]
      %v5406 = vld [vmem:[%s5076 + $0x170] sm:$0xff]
      %v5407 = vld [vmem:[%s5076 + $0x188] sm:$0xff]
      %v5408 = vld [vmem:[%s5076 + $0x190] sm:$0xff]
      %v5409 = vld [vmem:[%s5076 + $0x1a8] sm:$0xff]
      %v5410 = vld [vmem:[%s5076 + $0x1b0] sm:$0xff]
      %v5411 = vld [vmem:[%s5076 + $0x1c8] sm:$0xff]
      %v5412 = vld [vmem:[%s5076 + $0x1d0] sm:$0xff]
      %v5413 = vld [vmem:[%s5076 + $0x1e8] sm:$0xff]
      %v5414 = vld [vmem:[%s5076 + $0x1f0] sm:$0xff]
      %v5415 = vpack.c.bf16 %v5384, %v5383
      %v5416 = vpack.c.bf16 %v5386, %v5385
      %v5417 = vpack.c.bf16 %v5388, %v5387
      %v5418 = vpack.c.bf16 %v5390, %v5389
      %v5419 = vpack.c.bf16 %v5392, %v5391
      %v5420 = vpack.c.bf16 %v5394, %v5393
      %v5421 = vpack.c.bf16 %v5396, %v5395
      %v5422 = vpack.c.bf16 %v5398, %v5397
      %v5423 = vpack.c.bf16 %v5400, %v5399
      %v5424 = vpack.c.bf16 %v5402, %v5401
      %v5425 = vpack.c.bf16 %v5404, %v5403
      %v5426 = vpack.c.bf16 %v5406, %v5405
      %v5427 = vpack.c.bf16 %v5408, %v5407
      %v5428 = vpack.c.bf16 %v5410, %v5409
      %v5429 = vpack.c.bf16 %v5412, %v5411
      %v5430 = vpack.c.bf16 %v5414, %v5413
      %s5431 = scalar_lea.vmem %s2, 448
      %v5432 = vld [vmem:[%s5431] sm:$0xf]
      %v5433 = vld [vmem:[%s5431 + $0x4] sm:$0xf]
      %v5434 = vld [vmem:[%s5431 + $0x8] sm:$0xf]
      %v5435 = vld [vmem:[%s5431 + $0xc] sm:$0xf]
      %v5436 = vld [vmem:[%s5431 + $0x10] sm:$0xf]
      %v5437 = vld [vmem:[%s5431 + $0x14] sm:$0xf]
      %v5438 = vld [vmem:[%s5431 + $0x18] sm:$0xf]
      %v5439 = vld [vmem:[%s5431 + $0x1c] sm:$0xf]
      %v5440 = vld [vmem:[%s5431 + $0x20] sm:$0xf]
      %v5441 = vld [vmem:[%s5431 + $0x24] sm:$0xf]
      %v5442 = vld [vmem:[%s5431 + $0x28] sm:$0xf]
      %v5443 = vld [vmem:[%s5431 + $0x2c] sm:$0xf]
      %v5444 = vld [vmem:[%s5431 + $0x30] sm:$0xf]
      %v5445 = vld [vmem:[%s5431 + $0x34] sm:$0xf]
      %v5446 = vld [vmem:[%s5431 + $0x38] sm:$0xf]
      %v5447 = vld [vmem:[%s5431 + $0x3c] sm:$0xf]
      %v5464 = vunpack.c.l.b16 %v5432
      %v5465 = vunpack.c.l.b16 %v5433
      %v5466 = vunpack.c.l.b16 %v5434
      %v5467 = vunpack.c.l.b16 %v5435
      %v5468 = vunpack.c.l.b16 %v5436
      %v5469 = vunpack.c.l.b16 %v5437
      %v5470 = vunpack.c.l.b16 %v5438
      %v5471 = vunpack.c.l.b16 %v5439
      %v5472 = vunpack.c.l.b16 %v5440
      %v5473 = vunpack.c.l.b16 %v5441
      %v5474 = vunpack.c.l.b16 %v5442
      %v5475 = vunpack.c.l.b16 %v5443
      %v5476 = vunpack.c.l.b16 %v5444
      %v5477 = vunpack.c.l.b16 %v5445
      %v5478 = vunpack.c.l.b16 %v5446
      %v5479 = vunpack.c.l.b16 %v5447
      %v5480 = vpack.c.b16 %v5465, %v5464
      %v5481 = vpack.c.b16 %v5467, %v5466
      %v5482 = vpack.c.b16 %v5469, %v5468
      %v5483 = vpack.c.b16 %v5471, %v5470
      %v5484 = vpack.c.b16 %v5473, %v5472
      %v5485 = vpack.c.b16 %v5475, %v5474
      %v5486 = vpack.c.b16 %v5477, %v5476
      %v5487 = vpack.c.b16 %v5479, %v5478
      %5496 = vmatprep.subr.bf16.mxu0 0
      %5497 = vmatpush1.bf16.msra.mxu0 %v5487
      %5498 = vmatprep.subr.bf16.mxu0 0
      %5499 = vmatpush1.bf16.msra.mxu0 %v5486
      %5500 = vmatprep.subr.bf16.mxu0 0
      %5501 = vmatpush1.bf16.msra.mxu0 %v5485
      %5502 = vmatprep.subr.bf16.mxu0 0
      %5503 = vmatpush1.bf16.msra.mxu0 %v5484
      %5504 = vmatprep.subr.bf16.mxu0 0
      %5505 = vmatpush1.bf16.msra.mxu0 %v5483
      %5506 = vmatprep.subr.bf16.mxu0 0
      %5507 = vmatpush1.bf16.msra.mxu0 %v5482
      %5508 = vmatprep.subr.bf16.mxu0 0
      %5509 = vmatpush1.bf16.msra.mxu0 %v5481
      %5510 = vmatprep.subr.bf16.mxu0 0
      %5511 = vmatpush1.bf16.msra.mxu0 %v5480
      %5512 = vmatprep.subr.bf16.mxu0 0
      %5513 = vmatpush2.bf16.msra.mxu0 0
      %5514 = vmatprep.subr.bf16.mxu0 0
      %5515 = vmatpush2.bf16.msra.mxu0 0
      %5516 = vmatprep.subr.bf16.mxu0 0
      %5517 = vmatpush2.bf16.msra.mxu0 0
      %5518 = vmatprep.subr.bf16.mxu0 0
      %5519 = vmatpush2.bf16.msra.mxu0 0
      %5520 = vmatprep.subr.bf16.mxu0 0
      %5521 = vmatpush2.bf16.msra.mxu0 0
      %5522 = vmatprep.subr.bf16.mxu0 0
      %5523 = vmatpush2.bf16.msra.mxu0 0
      %5524 = vmatprep.subr.bf16.mxu0 0
      %5525 = vmatpush2.bf16.msra.mxu0 0
      %5526 = vmatprep.subr.bf16.mxu0 0
      %5527 = vmatpush2.bf16.msra.mxu0 0
      %5528 = vmatprep.mubr.bf16.mxu0 0
      %5529 = vmatmul.mubr.bf16.gmra.mxu0 %v5415
      %v5530 = vpop.f32.mrf.mxu0
      %v5531 = vadd.f32 0.0, %v5530
      %v5532 = vpop.f32.mrf.mxu0
      %v5533 = vpop.f32.mrf.mxu0
      %v5534 = vadd.f32 0.0, %v5533
      %v5535 = vpop.f32.mrf.mxu0
      %5536 = vmatprep.mubr.bf16.mxu0 0
      %5537 = vmatmul.mubr.bf16.gmra.mxu0 %v5416
      %v5538 = vpop.f32.mrf.mxu0
      %v5539 = vadd.f32 0.0, %v5538
      %v5540 = vpop.f32.mrf.mxu0
      %v5541 = vpop.f32.mrf.mxu0
      %v5542 = vadd.f32 0.0, %v5541
      %v5543 = vpop.f32.mrf.mxu0
      %5544 = vmatprep.mubr.bf16.mxu0 0
      %5545 = vmatmul.mubr.bf16.gmra.mxu0 %v5417
      %v5546 = vpop.f32.mrf.mxu0
      %v5547 = vadd.f32 0.0, %v5546
      %v5548 = vpop.f32.mrf.mxu0
      %v5549 = vpop.f32.mrf.mxu0
      %v5550 = vadd.f32 0.0, %v5549
      %v5551 = vpop.f32.mrf.mxu0
      %5552 = vmatprep.mubr.bf16.mxu0 0
      %5553 = vmatmul.mubr.bf16.gmra.mxu0 %v5418
      %v5554 = vpop.f32.mrf.mxu0
      %v5555 = vadd.f32 0.0, %v5554
      %v5556 = vpop.f32.mrf.mxu0
      %v5557 = vpop.f32.mrf.mxu0
      %v5558 = vadd.f32 0.0, %v5557
      %v5559 = vpop.f32.mrf.mxu0
      %5560 = vmatprep.mubr.bf16.mxu0 0
      %5561 = vmatmul.mubr.bf16.gmra.mxu0 %v5419
      %v5562 = vpop.f32.mrf.mxu0
      %v5563 = vadd.f32 0.0, %v5562
      %v5564 = vpop.f32.mrf.mxu0
      %v5565 = vpop.f32.mrf.mxu0
      %v5566 = vadd.f32 0.0, %v5565
      %v5567 = vpop.f32.mrf.mxu0
      %5568 = vmatprep.mubr.bf16.mxu0 0
      %5569 = vmatmul.mubr.bf16.gmra.mxu0 %v5420
      %v5570 = vpop.f32.mrf.mxu0
      %v5571 = vadd.f32 0.0, %v5570
      %v5572 = vpop.f32.mrf.mxu0
      %v5573 = vpop.f32.mrf.mxu0
      %v5574 = vadd.f32 0.0, %v5573
      %v5575 = vpop.f32.mrf.mxu0
      %5576 = vmatprep.mubr.bf16.mxu0 0
      %5577 = vmatmul.mubr.bf16.gmra.mxu0 %v5421
      %v5578 = vpop.f32.mrf.mxu0
      %v5579 = vadd.f32 0.0, %v5578
      %v5580 = vpop.f32.mrf.mxu0
      %v5581 = vpop.f32.mrf.mxu0
      %v5582 = vadd.f32 0.0, %v5581
      %v5583 = vpop.f32.mrf.mxu0
      %5584 = vmatprep.mubr.bf16.mxu0 0
      %5585 = vmatmul.mubr.bf16.gmra.mxu0 %v5422
      %v5586 = vpop.f32.mrf.mxu0
      %v5587 = vadd.f32 0.0, %v5586
      %v5588 = vpop.f32.mrf.mxu0
      %v5589 = vpop.f32.mrf.mxu0
      %v5590 = vadd.f32 0.0, %v5589
      %v5591 = vpop.f32.mrf.mxu0
      %5592 = vmatprep.mubr.bf16.mxu0 0
      %5593 = vmatmul.mubr.bf16.gmra.mxu0 %v5423
      %v5594 = vpop.f32.mrf.mxu0
      %v5595 = vadd.f32 0.0, %v5594
      %v5596 = vpop.f32.mrf.mxu0
      %v5597 = vpop.f32.mrf.mxu0
      %v5598 = vadd.f32 0.0, %v5597
      %v5599 = vpop.f32.mrf.mxu0
      %5600 = vmatprep.mubr.bf16.mxu0 0
      %5601 = vmatmul.mubr.bf16.gmra.mxu0 %v5424
      %v5602 = vpop.f32.mrf.mxu0
      %v5603 = vadd.f32 0.0, %v5602
      %v5604 = vpop.f32.mrf.mxu0
      %v5605 = vpop.f32.mrf.mxu0
      %v5606 = vadd.f32 0.0, %v5605
      %v5607 = vpop.f32.mrf.mxu0
      %5608 = vmatprep.mubr.bf16.mxu0 0
      %5609 = vmatmul.mubr.bf16.gmra.mxu0 %v5425
      %v5610 = vpop.f32.mrf.mxu0
      %v5611 = vadd.f32 0.0, %v5610
      %v5612 = vpop.f32.mrf.mxu0
      %v5613 = vpop.f32.mrf.mxu0
      %v5614 = vadd.f32 0.0, %v5613
      %v5615 = vpop.f32.mrf.mxu0
      %5616 = vmatprep.mubr.bf16.mxu0 0
      %5617 = vmatmul.mubr.bf16.gmra.mxu0 %v5426
      %v5618 = vpop.f32.mrf.mxu0
      %v5619 = vadd.f32 0.0, %v5618
      %v5620 = vpop.f32.mrf.mxu0
      %v5621 = vpop.f32.mrf.mxu0
      %v5622 = vadd.f32 0.0, %v5621
      %v5623 = vpop.f32.mrf.mxu0
      %5624 = vmatprep.mubr.bf16.mxu0 0
      %5625 = vmatmul.mubr.bf16.gmra.mxu0 %v5427
      %v5626 = vpop.f32.mrf.mxu0
      %v5627 = vadd.f32 0.0, %v5626
      %v5628 = vpop.f32.mrf.mxu0
      %v5629 = vpop.f32.mrf.mxu0
      %v5630 = vadd.f32 0.0, %v5629
      %v5631 = vpop.f32.mrf.mxu0
      %5632 = vmatprep.mubr.bf16.mxu0 0
      %5633 = vmatmul.mubr.bf16.gmra.mxu0 %v5428
      %v5634 = vpop.f32.mrf.mxu0
      %v5635 = vadd.f32 0.0, %v5634
      %v5636 = vpop.f32.mrf.mxu0
      %v5637 = vpop.f32.mrf.mxu0
      %v5638 = vadd.f32 0.0, %v5637
      %v5639 = vpop.f32.mrf.mxu0
      %5640 = vmatprep.mubr.bf16.mxu0 0
      %5641 = vmatmul.mubr.bf16.gmra.mxu0 %v5429
      %v5642 = vpop.f32.mrf.mxu0
      %v5643 = vadd.f32 0.0, %v5642
      %v5644 = vpop.f32.mrf.mxu0
      %v5645 = vpop.f32.mrf.mxu0
      %v5646 = vadd.f32 0.0, %v5645
      %v5647 = vpop.f32.mrf.mxu0
      %5648 = vmatprep.mubr.bf16.mxu0 0
      %5649 = vmatmul.mubr.bf16.gmra.mxu0 %v5430
      %v5650 = vpop.f32.mrf.mxu0
      %v5651 = vadd.f32 0.0, %v5650
      %v5652 = vpop.f32.mrf.mxu0
      %v5653 = vpop.f32.mrf.mxu0
      %v5654 = vadd.f32 0.0, %v5653
      %v5655 = vpop.f32.mrf.mxu0
      %5656 = vdwg.mxu0
      %v5657 = vadd.f32 %v5351, %v5531
      %v5658 = vadd.f32 %v5352, %v5534
      %v5659 = vadd.f32 %v5353, %v5539
      %v5660 = vadd.f32 %v5354, %v5542
      %v5661 = vadd.f32 %v5355, %v5547
      %v5662 = vadd.f32 %v5356, %v5550
      %v5663 = vadd.f32 %v5357, %v5555
      %v5664 = vadd.f32 %v5358, %v5558
      %v5665 = vadd.f32 %v5359, %v5563
      %v5666 = vadd.f32 %v5360, %v5566
      %v5667 = vadd.f32 %v5361, %v5571
      %v5668 = vadd.f32 %v5362, %v5574
      %v5669 = vadd.f32 %v5363, %v5579
      %v5670 = vadd.f32 %v5364, %v5582
      %v5671 = vadd.f32 %v5365, %v5587
      %v5672 = vadd.f32 %v5366, %v5590
      %v5673 = vadd.f32 %v5367, %v5595
      %v5674 = vadd.f32 %v5368, %v5598
      %v5675 = vadd.f32 %v5369, %v5603
      %v5676 = vadd.f32 %v5370, %v5606
      %v5677 = vadd.f32 %v5371, %v5611
      %v5678 = vadd.f32 %v5372, %v5614
      %v5679 = vadd.f32 %v5373, %v5619
      %v5680 = vadd.f32 %v5374, %v5622
      %v5681 = vadd.f32 %v5375, %v5627
      %v5682 = vadd.f32 %v5376, %v5630
      %v5683 = vadd.f32 %v5377, %v5635
      %v5684 = vadd.f32 %v5378, %v5638
      %v5685 = vadd.f32 %v5379, %v5643
      %v5686 = vadd.f32 %v5380, %v5646
      %v5687 = vadd.f32 %v5381, %v5651
      %v5688 = vadd.f32 %v5382, %v5654
      %v5689 = vld [vmem:[%s5076 + $0x9] sm:$0xff]
      %v5690 = vld [vmem:[%s5076 + $0x11] sm:$0xff]
      %v5691 = vld [vmem:[%s5076 + $0x29] sm:$0xff]
      %v5692 = vld [vmem:[%s5076 + $0x31] sm:$0xff]
      %v5693 = vld [vmem:[%s5076 + $0x49] sm:$0xff]
      %v5694 = vld [vmem:[%s5076 + $0x51] sm:$0xff]
      %v5695 = vld [vmem:[%s5076 + $0x69] sm:$0xff]
      %v5696 = vld [vmem:[%s5076 + $0x71] sm:$0xff]
      %v5697 = vld [vmem:[%s5076 + $0x89] sm:$0xff]
      %v5698 = vld [vmem:[%s5076 + $0x91] sm:$0xff]
      %v5699 = vld [vmem:[%s5076 + $0xa9] sm:$0xff]
      %v5700 = vld [vmem:[%s5076 + $0xb1] sm:$0xff]
      %v5701 = vld [vmem:[%s5076 + $0xc9] sm:$0xff]
      %v5702 = vld [vmem:[%s5076 + $0xd1] sm:$0xff]
      %v5703 = vld [vmem:[%s5076 + $0xe9] sm:$0xff]
      %v5704 = vld [vmem:[%s5076 + $0xf1] sm:$0xff]
      %v5705 = vld [vmem:[%s5076 + $0x109] sm:$0xff]
      %v5706 = vld [vmem:[%s5076 + $0x111] sm:$0xff]
      %v5707 = vld [vmem:[%s5076 + $0x129] sm:$0xff]
      %v5708 = vld [vmem:[%s5076 + $0x131] sm:$0xff]
      %v5709 = vld [vmem:[%s5076 + $0x149] sm:$0xff]
      %v5710 = vld [vmem:[%s5076 + $0x151] sm:$0xff]
      %v5711 = vld [vmem:[%s5076 + $0x169] sm:$0xff]
      %v5712 = vld [vmem:[%s5076 + $0x171] sm:$0xff]
      %v5713 = vld [vmem:[%s5076 + $0x189] sm:$0xff]
      %v5714 = vld [vmem:[%s5076 + $0x191] sm:$0xff]
      %v5715 = vld [vmem:[%s5076 + $0x1a9] sm:$0xff]
      %v5716 = vld [vmem:[%s5076 + $0x1b1] sm:$0xff]
      %v5717 = vld [vmem:[%s5076 + $0x1c9] sm:$0xff]
      %v5718 = vld [vmem:[%s5076 + $0x1d1] sm:$0xff]
      %v5719 = vld [vmem:[%s5076 + $0x1e9] sm:$0xff]
      %v5720 = vld [vmem:[%s5076 + $0x1f1] sm:$0xff]
      %v5721 = vpack.c.bf16 %v5690, %v5689
      %v5722 = vpack.c.bf16 %v5692, %v5691
      %v5723 = vpack.c.bf16 %v5694, %v5693
      %v5724 = vpack.c.bf16 %v5696, %v5695
      %v5725 = vpack.c.bf16 %v5698, %v5697
      %v5726 = vpack.c.bf16 %v5700, %v5699
      %v5727 = vpack.c.bf16 %v5702, %v5701
      %v5728 = vpack.c.bf16 %v5704, %v5703
      %v5729 = vpack.c.bf16 %v5706, %v5705
      %v5730 = vpack.c.bf16 %v5708, %v5707
      %v5731 = vpack.c.bf16 %v5710, %v5709
      %v5732 = vpack.c.bf16 %v5712, %v5711
      %v5733 = vpack.c.bf16 %v5714, %v5713
      %v5734 = vpack.c.bf16 %v5716, %v5715
      %v5735 = vpack.c.bf16 %v5718, %v5717
      %v5736 = vpack.c.bf16 %v5720, %v5719
      %s5737 = scalar_lea.vmem %s2, 512
      %v5738 = vld [vmem:[%s5737] sm:$0xf]
      %v5739 = vld [vmem:[%s5737 + $0x4] sm:$0xf]
      %v5740 = vld [vmem:[%s5737 + $0x8] sm:$0xf]
      %v5741 = vld [vmem:[%s5737 + $0xc] sm:$0xf]
      %v5742 = vld [vmem:[%s5737 + $0x10] sm:$0xf]
      %v5743 = vld [vmem:[%s5737 + $0x14] sm:$0xf]
      %v5744 = vld [vmem:[%s5737 + $0x18] sm:$0xf]
      %v5745 = vld [vmem:[%s5737 + $0x1c] sm:$0xf]
      %v5746 = vld [vmem:[%s5737 + $0x20] sm:$0xf]
      %v5747 = vld [vmem:[%s5737 + $0x24] sm:$0xf]
      %v5748 = vld [vmem:[%s5737 + $0x28] sm:$0xf]
      %v5749 = vld [vmem:[%s5737 + $0x2c] sm:$0xf]
      %v5750 = vld [vmem:[%s5737 + $0x30] sm:$0xf]
      %v5751 = vld [vmem:[%s5737 + $0x34] sm:$0xf]
      %v5752 = vld [vmem:[%s5737 + $0x38] sm:$0xf]
      %v5753 = vld [vmem:[%s5737 + $0x3c] sm:$0xf]
      %v5770 = vunpack.c.l.b16 %v5738
      %v5771 = vunpack.c.l.b16 %v5739
      %v5772 = vunpack.c.l.b16 %v5740
      %v5773 = vunpack.c.l.b16 %v5741
      %v5774 = vunpack.c.l.b16 %v5742
      %v5775 = vunpack.c.l.b16 %v5743
      %v5776 = vunpack.c.l.b16 %v5744
      %v5777 = vunpack.c.l.b16 %v5745
      %v5778 = vunpack.c.l.b16 %v5746
      %v5779 = vunpack.c.l.b16 %v5747
      %v5780 = vunpack.c.l.b16 %v5748
      %v5781 = vunpack.c.l.b16 %v5749
      %v5782 = vunpack.c.l.b16 %v5750
      %v5783 = vunpack.c.l.b16 %v5751
      %v5784 = vunpack.c.l.b16 %v5752
      %v5785 = vunpack.c.l.b16 %v5753
      %v5786 = vpack.c.b16 %v5771, %v5770
      %v5787 = vpack.c.b16 %v5773, %v5772
      %v5788 = vpack.c.b16 %v5775, %v5774
      %v5789 = vpack.c.b16 %v5777, %v5776
      %v5790 = vpack.c.b16 %v5779, %v5778
      %v5791 = vpack.c.b16 %v5781, %v5780
      %v5792 = vpack.c.b16 %v5783, %v5782
      %v5793 = vpack.c.b16 %v5785, %v5784
      %5802 = vmatprep.subr.bf16.mxu0 0
      %5803 = vmatpush1.bf16.msra.mxu0 %v5793
      %5804 = vmatprep.subr.bf16.mxu0 0
      %5805 = vmatpush1.bf16.msra.mxu0 %v5792
      %5806 = vmatprep.subr.bf16.mxu0 0
      %5807 = vmatpush1.bf16.msra.mxu0 %v5791
      %5808 = vmatprep.subr.bf16.mxu0 0
      %5809 = vmatpush1.bf16.msra.mxu0 %v5790
      %5810 = vmatprep.subr.bf16.mxu0 0
      %5811 = vmatpush1.bf16.msra.mxu0 %v5789
      %5812 = vmatprep.subr.bf16.mxu0 0
      %5813 = vmatpush1.bf16.msra.mxu0 %v5788
      %5814 = vmatprep.subr.bf16.mxu0 0
      %5815 = vmatpush1.bf16.msra.mxu0 %v5787
      %5816 = vmatprep.subr.bf16.mxu0 0
      %5817 = vmatpush1.bf16.msra.mxu0 %v5786
      %5818 = vmatprep.subr.bf16.mxu0 0
      %5819 = vmatpush2.bf16.msra.mxu0 0
      %5820 = vmatprep.subr.bf16.mxu0 0
      %5821 = vmatpush2.bf16.msra.mxu0 0
      %5822 = vmatprep.subr.bf16.mxu0 0
      %5823 = vmatpush2.bf16.msra.mxu0 0
      %5824 = vmatprep.subr.bf16.mxu0 0
      %5825 = vmatpush2.bf16.msra.mxu0 0
      %5826 = vmatprep.subr.bf16.mxu0 0
      %5827 = vmatpush2.bf16.msra.mxu0 0
      %5828 = vmatprep.subr.bf16.mxu0 0
      %5829 = vmatpush2.bf16.msra.mxu0 0
      %5830 = vmatprep.subr.bf16.mxu0 0
      %5831 = vmatpush2.bf16.msra.mxu0 0
      %5832 = vmatprep.subr.bf16.mxu0 0
      %5833 = vmatpush2.bf16.msra.mxu0 0
      %5834 = vmatprep.mubr.bf16.mxu0 0
      %5835 = vmatmul.mubr.bf16.gmra.mxu0 %v5721
      %v5836 = vpop.f32.mrf.mxu0
      %v5837 = vadd.f32 0.0, %v5836
      %v5838 = vpop.f32.mrf.mxu0
      %v5839 = vpop.f32.mrf.mxu0
      %v5840 = vadd.f32 0.0, %v5839
      %v5841 = vpop.f32.mrf.mxu0
      %5842 = vmatprep.mubr.bf16.mxu0 0
      %5843 = vmatmul.mubr.bf16.gmra.mxu0 %v5722
      %v5844 = vpop.f32.mrf.mxu0
      %v5845 = vadd.f32 0.0, %v5844
      %v5846 = vpop.f32.mrf.mxu0
      %v5847 = vpop.f32.mrf.mxu0
      %v5848 = vadd.f32 0.0, %v5847
      %v5849 = vpop.f32.mrf.mxu0
      %5850 = vmatprep.mubr.bf16.mxu0 0
      %5851 = vmatmul.mubr.bf16.gmra.mxu0 %v5723
      %v5852 = vpop.f32.mrf.mxu0
      %v5853 = vadd.f32 0.0, %v5852
      %v5854 = vpop.f32.mrf.mxu0
      %v5855 = vpop.f32.mrf.mxu0
      %v5856 = vadd.f32 0.0, %v5855
      %v5857 = vpop.f32.mrf.mxu0
      %5858 = vmatprep.mubr.bf16.mxu0 0
      %5859 = vmatmul.mubr.bf16.gmra.mxu0 %v5724
      %v5860 = vpop.f32.mrf.mxu0
      %v5861 = vadd.f32 0.0, %v5860
      %v5862 = vpop.f32.mrf.mxu0
      %v5863 = vpop.f32.mrf.mxu0
      %v5864 = vadd.f32 0.0, %v5863
      %v5865 = vpop.f32.mrf.mxu0
      %5866 = vmatprep.mubr.bf16.mxu0 0
      %5867 = vmatmul.mubr.bf16.gmra.mxu0 %v5725
      %v5868 = vpop.f32.mrf.mxu0
      %v5869 = vadd.f32 0.0, %v5868
      %v5870 = vpop.f32.mrf.mxu0
      %v5871 = vpop.f32.mrf.mxu0
      %v5872 = vadd.f32 0.0, %v5871
      %v5873 = vpop.f32.mrf.mxu0
      %5874 = vmatprep.mubr.bf16.mxu0 0
      %5875 = vmatmul.mubr.bf16.gmra.mxu0 %v5726
      %v5876 = vpop.f32.mrf.mxu0
      %v5877 = vadd.f32 0.0, %v5876
      %v5878 = vpop.f32.mrf.mxu0
      %v5879 = vpop.f32.mrf.mxu0
      %v5880 = vadd.f32 0.0, %v5879
      %v5881 = vpop.f32.mrf.mxu0
      %5882 = vmatprep.mubr.bf16.mxu0 0
      %5883 = vmatmul.mubr.bf16.gmra.mxu0 %v5727
      %v5884 = vpop.f32.mrf.mxu0
      %v5885 = vadd.f32 0.0, %v5884
      %v5886 = vpop.f32.mrf.mxu0
      %v5887 = vpop.f32.mrf.mxu0
      %v5888 = vadd.f32 0.0, %v5887
      %v5889 = vpop.f32.mrf.mxu0
      %5890 = vmatprep.mubr.bf16.mxu0 0
      %5891 = vmatmul.mubr.bf16.gmra.mxu0 %v5728
      %v5892 = vpop.f32.mrf.mxu0
      %v5893 = vadd.f32 0.0, %v5892
      %v5894 = vpop.f32.mrf.mxu0
      %v5895 = vpop.f32.mrf.mxu0
      %v5896 = vadd.f32 0.0, %v5895
      %v5897 = vpop.f32.mrf.mxu0
      %5898 = vmatprep.mubr.bf16.mxu0 0
      %5899 = vmatmul.mubr.bf16.gmra.mxu0 %v5729
      %v5900 = vpop.f32.mrf.mxu0
      %v5901 = vadd.f32 0.0, %v5900
      %v5902 = vpop.f32.mrf.mxu0
      %v5903 = vpop.f32.mrf.mxu0
      %v5904 = vadd.f32 0.0, %v5903
      %v5905 = vpop.f32.mrf.mxu0
      %5906 = vmatprep.mubr.bf16.mxu0 0
      %5907 = vmatmul.mubr.bf16.gmra.mxu0 %v5730
      %v5908 = vpop.f32.mrf.mxu0
      %v5909 = vadd.f32 0.0, %v5908
      %v5910 = vpop.f32.mrf.mxu0
      %v5911 = vpop.f32.mrf.mxu0
      %v5912 = vadd.f32 0.0, %v5911
      %v5913 = vpop.f32.mrf.mxu0
      %5914 = vmatprep.mubr.bf16.mxu0 0
      %5915 = vmatmul.mubr.bf16.gmra.mxu0 %v5731
      %v5916 = vpop.f32.mrf.mxu0
      %v5917 = vadd.f32 0.0, %v5916
      %v5918 = vpop.f32.mrf.mxu0
      %v5919 = vpop.f32.mrf.mxu0
      %v5920 = vadd.f32 0.0, %v5919
      %v5921 = vpop.f32.mrf.mxu0
      %5922 = vmatprep.mubr.bf16.mxu0 0
      %5923 = vmatmul.mubr.bf16.gmra.mxu0 %v5732
      %v5924 = vpop.f32.mrf.mxu0
      %v5925 = vadd.f32 0.0, %v5924
      %v5926 = vpop.f32.mrf.mxu0
      %v5927 = vpop.f32.mrf.mxu0
      %v5928 = vadd.f32 0.0, %v5927
      %v5929 = vpop.f32.mrf.mxu0
      %5930 = vmatprep.mubr.bf16.mxu0 0
      %5931 = vmatmul.mubr.bf16.gmra.mxu0 %v5733
      %v5932 = vpop.f32.mrf.mxu0
      %v5933 = vadd.f32 0.0, %v5932
      %v5934 = vpop.f32.mrf.mxu0
      %v5935 = vpop.f32.mrf.mxu0
      %v5936 = vadd.f32 0.0, %v5935
      %v5937 = vpop.f32.mrf.mxu0
      %5938 = vmatprep.mubr.bf16.mxu0 0
      %5939 = vmatmul.mubr.bf16.gmra.mxu0 %v5734
      %v5940 = vpop.f32.mrf.mxu0
      %v5941 = vadd.f32 0.0, %v5940
      %v5942 = vpop.f32.mrf.mxu0
      %v5943 = vpop.f32.mrf.mxu0
      %v5944 = vadd.f32 0.0, %v5943
      %v5945 = vpop.f32.mrf.mxu0
      %5946 = vmatprep.mubr.bf16.mxu0 0
      %5947 = vmatmul.mubr.bf16.gmra.mxu0 %v5735
      %v5948 = vpop.f32.mrf.mxu0
      %v5949 = vadd.f32 0.0, %v5948
      %v5950 = vpop.f32.mrf.mxu0
      %v5951 = vpop.f32.mrf.mxu0
      %v5952 = vadd.f32 0.0, %v5951
      %v5953 = vpop.f32.mrf.mxu0
      %5954 = vmatprep.mubr.bf16.mxu0 0
      %5955 = vmatmul.mubr.bf16.gmra.mxu0 %v5736
      %v5956 = vpop.f32.mrf.mxu0
      %v5957 = vadd.f32 0.0, %v5956
      %v5958 = vpop.f32.mrf.mxu0
      %v5959 = vpop.f32.mrf.mxu0
      %v5960 = vadd.f32 0.0, %v5959
      %v5961 = vpop.f32.mrf.mxu0
      %5962 = vdwg.mxu0
      %v5963 = vadd.f32 %v5657, %v5837
      %v5964 = vadd.f32 %v5658, %v5840
      %v5965 = vadd.f32 %v5659, %v5845
      %v5966 = vadd.f32 %v5660, %v5848
      %v5967 = vadd.f32 %v5661, %v5853
      %v5968 = vadd.f32 %v5662, %v5856
      %v5969 = vadd.f32 %v5663, %v5861
      %v5970 = vadd.f32 %v5664, %v5864
      %v5971 = vadd.f32 %v5665, %v5869
      %v5972 = vadd.f32 %v5666, %v5872
      %v5973 = vadd.f32 %v5667, %v5877
      %v5974 = vadd.f32 %v5668, %v5880
      %v5975 = vadd.f32 %v5669, %v5885
      %v5976 = vadd.f32 %v5670, %v5888
      %v5977 = vadd.f32 %v5671, %v5893
      %v5978 = vadd.f32 %v5672, %v5896
      %v5979 = vadd.f32 %v5673, %v5901
      %v5980 = vadd.f32 %v5674, %v5904
      %v5981 = vadd.f32 %v5675, %v5909
      %v5982 = vadd.f32 %v5676, %v5912
      %v5983 = vadd.f32 %v5677, %v5917
      %v5984 = vadd.f32 %v5678, %v5920
      %v5985 = vadd.f32 %v5679, %v5925
      %v5986 = vadd.f32 %v5680, %v5928
      %v5987 = vadd.f32 %v5681, %v5933
      %v5988 = vadd.f32 %v5682, %v5936
      %v5989 = vadd.f32 %v5683, %v5941
      %v5990 = vadd.f32 %v5684, %v5944
      %v5991 = vadd.f32 %v5685, %v5949
      %v5992 = vadd.f32 %v5686, %v5952
      %v5993 = vadd.f32 %v5687, %v5957
      %v5994 = vadd.f32 %v5688, %v5960
      %v5995 = vld [vmem:[%s6] sm:$0x1]
      %v5997 = vlaneseq
      %v5998 = vshrl.u32 %v5997, 7
      %v5999 = vsub.s32 0, %v5998
      %v6000 = vrot.slane %v5995, %v5999
      %v6002 = vmul.f32 %v5963, %v6000
      %v6003 = vmul.f32 %v5964, %v6000
      %v6004 = vmul.f32 %v5965, %v6000
      %v6005 = vmul.f32 %v5966, %v6000
      %v6006 = vmul.f32 %v5967, %v6000
      %v6007 = vmul.f32 %v5968, %v6000
      %v6008 = vmul.f32 %v5969, %v6000
      %v6009 = vmul.f32 %v5970, %v6000
      %v6010 = vmul.f32 %v5971, %v6000
      %v6011 = vmul.f32 %v5972, %v6000
      %v6012 = vmul.f32 %v5973, %v6000
      %v6013 = vmul.f32 %v5974, %v6000
      %v6014 = vmul.f32 %v5975, %v6000
      %v6015 = vmul.f32 %v5976, %v6000
      %v6016 = vmul.f32 %v5977, %v6000
      %v6017 = vmul.f32 %v5978, %v6000
      %v6018 = vmul.f32 %v5979, %v6000
      %v6019 = vmul.f32 %v5980, %v6000
      %v6020 = vmul.f32 %v5981, %v6000
      %v6021 = vmul.f32 %v5982, %v6000
      %v6022 = vmul.f32 %v5983, %v6000
      %v6023 = vmul.f32 %v5984, %v6000
      %v6024 = vmul.f32 %v5985, %v6000
      %v6025 = vmul.f32 %v5986, %v6000
      %v6026 = vmul.f32 %v5987, %v6000
      %v6027 = vmul.f32 %v5988, %v6000
      %v6028 = vmul.f32 %v5989, %v6000
      %v6029 = vmul.f32 %v5990, %v6000
      %v6030 = vmul.f32 %v5991, %v6000
      %v6031 = vmul.f32 %v5992, %v6000
      %v6032 = vmul.f32 %v5993, %v6000
      %v6033 = vmul.f32 %v5994, %v6000
      %v6034 = vld [vmem:[%s7] sm:$0x1]
      %v6036 = vlaneseq
      %v6037 = vshrl.u32 %v6036, 7
      %v6038 = vsub.s32 0, %v6037
      %v6039 = vrot.slane %v6034, %v6038
      %v6041 = vadd.f32 %v6002, %v6039
      %v6042 = vadd.f32 %v6003, %v6039
      %v6043 = vadd.f32 %v6004, %v6039
      %v6044 = vadd.f32 %v6005, %v6039
      %v6045 = vadd.f32 %v6006, %v6039
      %v6046 = vadd.f32 %v6007, %v6039
      %v6047 = vadd.f32 %v6008, %v6039
      %v6048 = vadd.f32 %v6009, %v6039
      %v6049 = vadd.f32 %v6010, %v6039
      %v6050 = vadd.f32 %v6011, %v6039
      %v6051 = vadd.f32 %v6012, %v6039
      %v6052 = vadd.f32 %v6013, %v6039
      %v6053 = vadd.f32 %v6014, %v6039
      %v6054 = vadd.f32 %v6015, %v6039
      %v6055 = vadd.f32 %v6016, %v6039
      %v6056 = vadd.f32 %v6017, %v6039
      %v6057 = vadd.f32 %v6018, %v6039
      %v6058 = vadd.f32 %v6019, %v6039
      %v6059 = vadd.f32 %v6020, %v6039
      %v6060 = vadd.f32 %v6021, %v6039
      %v6061 = vadd.f32 %v6022, %v6039
      %v6062 = vadd.f32 %v6023, %v6039
      %v6063 = vadd.f32 %v6024, %v6039
      %v6064 = vadd.f32 %v6025, %v6039
      %v6065 = vadd.f32 %v6026, %v6039
      %v6066 = vadd.f32 %v6027, %v6039
      %v6067 = vadd.f32 %v6028, %v6039
      %v6068 = vadd.f32 %v6029, %v6039
      %v6069 = vadd.f32 %v6030, %v6039
      %v6070 = vadd.f32 %v6031, %v6039
      %v6071 = vadd.f32 %v6032, %v6039
      %v6072 = vadd.f32 %v6033, %v6039
      %v6073 = vmax.f32 %v6041, 0.0
      %v6074 = vmax.f32 %v6042, 0.0
      %v6075 = vmax.f32 %v6043, 0.0
      %v6076 = vmax.f32 %v6044, 0.0
      %v6077 = vmax.f32 %v6045, 0.0
      %v6078 = vmax.f32 %v6046, 0.0
      %v6079 = vmax.f32 %v6047, 0.0
      %v6080 = vmax.f32 %v6048, 0.0
      %v6081 = vmax.f32 %v6049, 0.0
      %v6082 = vmax.f32 %v6050, 0.0
      %v6083 = vmax.f32 %v6051, 0.0
      %v6084 = vmax.f32 %v6052, 0.0
      %v6085 = vmax.f32 %v6053, 0.0
      %v6086 = vmax.f32 %v6054, 0.0
      %v6087 = vmax.f32 %v6055, 0.0
      %v6088 = vmax.f32 %v6056, 0.0
      %v6089 = vmax.f32 %v6057, 0.0
      %v6090 = vmax.f32 %v6058, 0.0
      %v6091 = vmax.f32 %v6059, 0.0
      %v6092 = vmax.f32 %v6060, 0.0
      %v6093 = vmax.f32 %v6061, 0.0
      %v6094 = vmax.f32 %v6062, 0.0
      %v6095 = vmax.f32 %v6063, 0.0
      %v6096 = vmax.f32 %v6064, 0.0
      %v6097 = vmax.f32 %v6065, 0.0
      %v6098 = vmax.f32 %v6066, 0.0
      %v6099 = vmax.f32 %v6067, 0.0
      %v6100 = vmax.f32 %v6068, 0.0
      %v6101 = vmax.f32 %v6069, 0.0
      %v6102 = vmax.f32 %v6070, 0.0
      %v6103 = vmax.f32 %v6071, 0.0
      %v6104 = vmax.f32 %v6072, 0.0
      %v6105 = vld [vmem:[%s3] sm:$0xf]
      %v6106 = vpack.c.bf16 %v6074, %v6073
      %v6107 = vpack.c.bf16 %v6076, %v6075
      %v6108 = vpack.c.bf16 %v6078, %v6077
      %v6109 = vpack.c.bf16 %v6080, %v6079
      %v6110 = vpack.c.bf16 %v6082, %v6081
      %v6111 = vpack.c.bf16 %v6084, %v6083
      %v6112 = vpack.c.bf16 %v6086, %v6085
      %v6113 = vpack.c.bf16 %v6088, %v6087
      %v6114 = vpack.c.bf16 %v6090, %v6089
      %v6115 = vpack.c.bf16 %v6092, %v6091
      %v6116 = vpack.c.bf16 %v6094, %v6093
      %v6117 = vpack.c.bf16 %v6096, %v6095
      %v6118 = vpack.c.bf16 %v6098, %v6097
      %v6119 = vpack.c.bf16 %v6100, %v6099
      %v6120 = vpack.c.bf16 %v6102, %v6101
      %v6121 = vpack.c.bf16 %v6104, %v6103
      %v6122 = vld [vmem:[%s8] sm:$0xff]
      %6124 = vset.pattern.permute.xlu0 0
      %6125 = vperm.xlu0 %6124, %v6122
      %v6126 = vpop.permute.xlu0 %6125
      %6128 = vmatprep.subr.bf16.mxu0 0
      %6129 = vmatpush1.bf16.xpose.msra.mxu0 %v6113
      %6130 = vmatprep.subr.bf16.mxu0 0
      %6131 = vmatpush1.bf16.xpose.msra.mxu0 %v6112
      %6132 = vmatprep.subr.bf16.mxu0 0
      %6133 = vmatpush1.bf16.xpose.msra.mxu0 %v6111
      %6134 = vmatprep.subr.bf16.mxu0 0
      %6135 = vmatpush1.bf16.xpose.msra.mxu0 %v6110
      %6136 = vmatprep.subr.bf16.mxu0 0
      %6137 = vmatpush1.bf16.xpose.msra.mxu0 %v6109
      %6138 = vmatprep.subr.bf16.mxu0 0
      %6139 = vmatpush1.bf16.xpose.msra.mxu0 %v6108
      %6140 = vmatprep.subr.bf16.mxu0 0
      %6141 = vmatpush1.bf16.xpose.msra.mxu0 %v6107
      %6142 = vmatprep.subr.bf16.mxu0 0
      %6143 = vmatpush1.bf16.xpose.msra.mxu0 %v6106
      %6144 = vmatprep.subr.bf16.mxu0 0
      %6145 = vmatpush2.bf16.xpose.msra.mxu0 %v6121
      %6146 = vmatprep.subr.bf16.mxu0 0
      %6147 = vmatpush2.bf16.xpose.msra.mxu0 %v6120
      %6148 = vmatprep.subr.bf16.mxu0 0
      %6149 = vmatpush2.bf16.xpose.msra.mxu0 %v6119
      %6150 = vmatprep.subr.bf16.mxu0 0
      %6151 = vmatpush2.bf16.xpose.msra.mxu0 %v6118
      %6152 = vmatprep.subr.bf16.mxu0 0
      %6153 = vmatpush2.bf16.xpose.msra.mxu0 %v6117
      %6154 = vmatprep.subr.bf16.mxu0 0
      %6155 = vmatpush2.bf16.xpose.msra.mxu0 %v6116
      %6156 = vmatprep.subr.bf16.mxu0 0
      %6157 = vmatpush2.bf16.xpose.msra.mxu0 %v6115
      %6158 = vmatprep.subr.bf16.mxu0 0
      %6159 = vmatpush2.bf16.xpose.msra.mxu0 %v6114
      %6160 = vmatprep.mubr.bf16.mxu0 0
      %6161 = vmatmul.mubr.bf16.gmra.mxu0 %v6105
      %v6162 = vpop.f32.mrf.mxu0
      %v6163 = vadd.f32 %v6126, %v6162
      %v6164 = vpop.f32.mrf.mxu0
      %v6165 = vadd.f32 %v6126, %v6164
      %v6166 = vpop.f32.mrf.mxu0
      %v6167 = vpop.f32.mrf.mxu0
      %6168 = vdwg.mxu0
      %6169 = vst [vmem:[%s332] sm:$0xff] %v6163
      %6170 = vst [vmem:[%s332 + $0x8] sm:$0xff] %v6165
      %p6171 = scmp.lt.s32.totalorder %s20, 1
      %s6172 = scalar_select %p6171, %s20, 1
      %s6173 = smul.addr %s6172, 2
      %s6174 = smul.addr %s6173, 8
      %s6175 = scalar_lea.vmem %s9, %s6174
      // Predicated region
      $region57: #{depth_refinement_forward.1} parent=55 // pred_check
        %p6176 = pneg %p232
      $region58: #{depth_refinement_forward.1} parent=55 // pred_check_branch
        %6178 = sbr.rel (%p6176) target = $region60
      $region59: #{depth_refinement_forward.1} parent=55 // pred_region
        _
      $region60: #{depth_refinement_forward.1} parent=55 // pred_fallthru
        _
    $region56: #{depth_refinement_forward.1} parent=5 // pred_fallthru
      _
    %p6179 = scmp.le.s32.totalorder 2, %s15
    // Predicated region
    $region61: #{depth_refinement_forward.1} parent=5 // pred_check
      %p6180 = pneg %p6179
    $region62: #{depth_refinement_forward.1} parent=5 // pred_check_branch
      %6182 = sbr.rel (%p6180) target = $region64
    $region63: #{depth_refinement_forward.1} parent=5 // pred_region
      %s6183 = ssub.s32 %s15, 2
      // Predicated region
      $region65: #{depth_refinement_forward.1} parent=63 // pred_check
        %p6184 = pneg %p238
      $region66: #{depth_refinement_forward.1} parent=63 // pred_check_branch
        %6186 = sbr.rel (%p6184) target = $region68
      $region67: #{depth_refinement_forward.1} parent=63 // pred_region
        %p6187 = scmp.lt.s32.totalorder %s21, 1
        %s6188 = scalar_select %p6187, %s21, 1
        %s6189 = smul.addr %s6188, 2
        %s6190 = smul.addr %s6189, 8
        %s6191 = scalar_lea.vmem %s9, %s6190
      $region68: #{depth_refinement_forward.1} parent=63 // pred_fallthru
        _
    $region64: #{depth_refinement_forward.1} parent=5 // pred_fallthru
      _
  $region6: #{depth_refinement_forward.1} parent=0 // loop_footer
    %s19 = sadd.s32 1, %s15
  $region7: #{depth_refinement_forward.1} parent=0 // loop_footer_branch
    %14 = sbr.rel target = $region3
  $region8: #{depth_refinement_forward.1} parent=0 // loop_exit
    _

</llo_original>
